<compile_context>
chip_gen: v7x
topology: tpu7x:2x2x1
jax: 0.10.0
libtpu: 0.0.40
codegen_flags: <defaults>
</compile_context>

<pallas_src>
import jax
import jax.numpy as jnp
from jax import lax
from jax.experimental import pallas as pl
from jax.experimental.pallas import tpu as pltpu

BN_EPS = 1e-5

# Network geometry (from x.view(-1, 1, 151, 3) and the Conv2d configs).
H0, W0 = 151, 3
# conv1: Conv2d(1, 32, (9, 2), stride=(2, 1))  -> feature map (72, 2)
H1, W1, C1, KH1, KW1, SH1 = 72, 2, 32, 9, 2, 2
# (H_in, W_in, C_in, KH, KW, SH, C_out) for conv2..conv5 (stride_w == 1 everywhere)
CONV_CFGS = (
    (72, 2, 32, 7, 2, 2, 32),    # conv2 -> (33, 1)
    (33, 1, 32, 5, 1, 3, 64),    # conv3 -> (10, 1)
    (10, 1, 64, 5, 1, 2, 128),   # conv4 -> (3, 1)
    (3, 1, 128, 3, 1, 1, 512),   # conv5 -> (1, 1)
)
C5 = 512


# --------------------------------------------------------------------------- #
# The single fused Pallas kernel
# --------------------------------------------------------------------------- #
def _encoder_kernel(p1, w1, b1, g1, be1,
                    w2, b2, g2, be2,
                    w3, b3, g3, be3,
                    w4, b4, g4, be4,
                    w5, b5, g5, be5,
                    wz, bz,
                    z_ref,
                    a1, a2, a3, a4, a5):
    """Whole ConvEncoder_shar forward; all activations stay in VMEM scratch."""
    N = z_ref.shape[0]

    def bn_relu(dst, g, be):
        # Training-mode BatchNorm2d: batch stats over N*H*W rows, biased variance.
        y = dst[...]
        m = float(y.shape[0])
        mean = jnp.sum(y, axis=0, keepdims=True) * (1.0 / m)
        yc = y - mean
        var = jnp.sum(yc * yc, axis=0, keepdims=True) * (1.0 / m)
        dst[...] = jnp.maximum(yc * lax.rsqrt(var + BN_EPS) * g[...] + be[...], 0.0)

    # ---- conv1 + bn1 + relu: patches were im2col'd wrapper-side -> one matmul ----
    a1[...] = jnp.dot(p1[...], w1[...],
                      preferred_element_type=jnp.float32) + b1[...]
    bn_relu(a1, g1, be1)

    # ---- conv2..conv5 (+ bn + relu): in-kernel im2col via strided VMEM reads ----
    def conv_bn_relu(src, dst, w, b, g, be, cfg):
        H_in, W_in, C_in, KH, KW, SH, C_out = cfg
        H_out = (H_in - KH) // SH + 1
        W_out = W_in - KW + 1
        for n in range(N):                       # tiny static loops, fully unrolled
            for wo in range(W_out):
                acc = jnp.zeros((H_out, C_out), jnp.float32)
                for kh in range(KH):
                    for kw in range(KW):
                        start = n * W_in * H_in + (wo + kw) * H_in + kh
                        if SH == 1:
                            patch = src[pl.ds(start, H_out), :]
                        else:
                            patch = src[pl.ds(start, H_out, stride=SH), :]
                        tap = w[pl.ds((kh * KW + kw) * C_in, C_in), :]
                        acc = acc + jnp.dot(patch.astype(jnp.bfloat16), tap,
                                            preferred_element_type=jnp.float32)
                dst[pl.ds((n * W_out + wo) * H_out, H_out), :] = acc + b[...]
        bn_relu(dst, g, be)

    conv_bn_relu(a1, a2, w2, b2, g2, be2, CONV_CFGS[0])
    conv_bn_relu(a2, a3, w3, b3, g3, be3, CONV_CFGS[1])
    conv_bn_relu(a3, a4, w4, b4, g4, be4, CONV_CFGS[2])
    conv_bn_relu(a4, a5, w5, b5, g5, be5, CONV_CFGS[3])

    # ---- conv_z: 1x1 conv == plain matmul, no BN, no ReLU (lane-dense output) ----
    z_ref[...] = jnp.dot(a5[...].astype(jnp.bfloat16), wz[...],
                         preferred_element_type=jnp.float32) + bz[...]


# --------------------------------------------------------------------------- #
# Wrapper
# --------------------------------------------------------------------------- #
def _im2col_conv1(x3):
    """(N, 151, 3) -> (N*144, 18) bf16 patches; row = n*144 + wo*72 + ho,
    col = kh*KW1 + kw (matching the w-major activation layout used in-kernel)."""
    ho = jnp.arange(H1)
    wo = jnp.arange(W1)
    kh = jnp.arange(KH1)
    kw = jnp.arange(KW1)
    h_idx = (SH1 * ho[:, None] + kh[None, :]).reshape(1, H1, KH1, 1)
    w_idx = (wo[:, None] + kw[None, :]).reshape(W1, 1, 1, KW1)
    patches = x3[:, h_idx, w_idx]                          # (N, 2, 72, 9, 2)
    N = x3.shape[0]
    return patches.reshape(N * W1 * H1, KH1 * KW1).astype(jnp.bfloat16)


def conv_encoder_shar_forward(x, params):
    """x: any shape with 151*3 elements per sample (PyTorch does x.view(-1,1,151,3))."""
    x = x.astype(jnp.float32)
    N = x.size // (H0 * W0)
    x3 = x.reshape(N, H0, W0)
    patches1 = _im2col_conv1(x3)       # only wrapper-side layout glue in the model
    zdim = params["wz"].shape[1]

    args = [patches1]
    for i in range(1, 6):
        args += [params[f"w{i}"], params[f"b{i}"], params[f"g{i}"], params[f"be{i}"]]
    args += [params["wz"], params["bz"]]

    return pl.pallas_call(
        _encoder_kernel,
        out_shape=jax.ShapeDtypeStruct((N, zdim), jnp.float32),
        scratch_shapes=[
            pltpu.VMEM((N * W1 * H1, C1), jnp.float32),   # a1: (N*144, 32)
            pltpu.VMEM((N * 33, 32), jnp.float32),        # a2
            pltpu.VMEM((N * 10, 64), jnp.float32),        # a3
            pltpu.VMEM((N * 3, 128), jnp.float32),        # a4
            pltpu.VMEM((N, C5), jnp.float32),             # a5
        ],
    )(*args)


# --------------------------------------------------------------------------- #
# Synthetic, deterministic parameters (PyTorch-style init scale not required)
# --------------------------------------------------------------------------- #
def init_params(key, output_dim):
    CFG = [(1, 32, 9, 2), (32, 32, 7, 2), (32, 64, 5, 1), (64, 128, 5, 1), (128, 512, 3, 1)]
    keys = iter(jax.random.split(key, 16))

    def w_init(shape, scale=0.05):
        return (scale * jax.random.normal(next(keys), shape, jnp.float32)).astype(jnp.bfloat16)

    def b_init(co, scale=0.05):
        return scale * jax.random.normal(next(keys), (1, co), jnp.float32)

    p = {}
    for i, (ci, co, kh, kw) in enumerate(CFG, start=1):
        p[f"w{i}"] = w_init((kh * kw * ci, co))             # (KH*KW*C_in, C_out)
        p[f"b{i}"] = b_init(co)
        p[f"g{i}"] = jnp.ones((1, co), jnp.float32)         # BatchNorm weight init
        p[f"be{i}"] = jnp.zeros((1, co), jnp.float32)       # BatchNorm bias init
    p["wz"] = w_init((C5, output_dim))
    p["bz"] = b_init(output_dim)
    return p


# --------------------------------------------------------------------------- #
if __name__ == "__main__":
    N, OUTPUT_DIM = 2, 64

    key = jax.random.PRNGKey(0)
    kx, kp = jax.random.split(key)
    x = jax.random.normal(kx, (N, 1, H0, W0), jnp.float32)   # matches x.view(-1, 1, 151, 3)
    params = init_params(kp, OUTPUT_DIM)

    fwd = jax.jit(conv_encoder_shar_forward)
    z = fwd(x, params)
    jax.block_until_ready(z)

    assert z.shape == (N, OUTPUT_DIM)
    assert bool(jnp.all(jnp.isfinite(z)))
    print("KERNEL_OK")
</pallas_src>

<mosaic_0001>
module attributes {stable_mosaic.version = 11 : i64} {
  func.func @_encoder_kernel(%arg0: memref<288x18xbf16, #tpu.memory_space<vmem>>, %arg1: memref<18x32xbf16, #tpu.memory_space<vmem>>, %arg2: memref<1x32xf32, #tpu.memory_space<vmem>>, %arg3: memref<1x32xf32, #tpu.memory_space<vmem>>, %arg4: memref<1x32xf32, #tpu.memory_space<vmem>>, %arg5: memref<448x32xbf16, #tpu.memory_space<vmem>>, %arg6: memref<1x32xf32, #tpu.memory_space<vmem>>, %arg7: memref<1x32xf32, #tpu.memory_space<vmem>>, %arg8: memref<1x32xf32, #tpu.memory_space<vmem>>, %arg9: memref<160x64xbf16, #tpu.memory_space<vmem>>, %arg10: memref<1x64xf32, #tpu.memory_space<vmem>>, %arg11: memref<1x64xf32, #tpu.memory_space<vmem>>, %arg12: memref<1x64xf32, #tpu.memory_space<vmem>>, %arg13: memref<320x128xbf16, #tpu.memory_space<vmem>>, %arg14: memref<1x128xf32, #tpu.memory_space<vmem>>, %arg15: memref<1x128xf32, #tpu.memory_space<vmem>>, %arg16: memref<1x128xf32, #tpu.memory_space<vmem>>, %arg17: memref<384x512xbf16, #tpu.memory_space<vmem>>, %arg18: memref<1x512xf32, #tpu.memory_space<vmem>>, %arg19: memref<1x512xf32, #tpu.memory_space<vmem>>, %arg20: memref<1x512xf32, #tpu.memory_space<vmem>>, %arg21: memref<512x64xbf16, #tpu.memory_space<vmem>>, %arg22: memref<1x64xf32, #tpu.memory_space<vmem>>, %arg23: memref<2x64xf32, #tpu.memory_space<vmem>>, %arg24: memref<288x32xf32, #tpu.memory_space<vmem>>, %arg25: memref<66x32xf32, #tpu.memory_space<vmem>>, %arg26: memref<20x64xf32, #tpu.memory_space<vmem>>, %arg27: memref<6x128xf32, #tpu.memory_space<vmem>>, %arg28: memref<2x512xf32, #tpu.memory_space<vmem>>) attributes {dimension_semantics = [], scalar_prefetch = 0 : i64, scratch_operands = 5 : i64, tpu.core_type = #tpu.core_type<tc>} {
    %c0 = arith.constant 0 : index
    %c0_0 = arith.constant 0 : index
    %0 = vector.load %arg0[%c0, %c0_0] : memref<288x18xbf16, #tpu.memory_space<vmem>>, vector<288x18xbf16>
    %c0_1 = arith.constant 0 : index
    %c0_2 = arith.constant 0 : index
    %1 = vector.load %arg1[%c0_1, %c0_2] : memref<18x32xbf16, #tpu.memory_space<vmem>>, vector<18x32xbf16>
    %cst = arith.constant dense<0.000000e+00> : vector<288x32xf32>
    %2 = tpu.matmul %0, %1, %cst {dimension_numbers = #tpu.dot_dimension_numbers<[1], [0], [0], [1], [0, 0, 1, 1], [], []>} : vector<288x18xbf16>, vector<18x32xbf16>, vector<288x32xf32> -> vector<288x32xf32>
    %c0_3 = arith.constant 0 : index
    %c0_4 = arith.constant 0 : index
    %3 = vector.load %arg2[%c0_3, %c0_4] : memref<1x32xf32, #tpu.memory_space<vmem>>, vector<1x32xf32>
    %4 = vector.broadcast %3 : vector<1x32xf32> to vector<288x32xf32>
    %5 = arith.addf %2, %4 : vector<288x32xf32>
    %c0_5 = arith.constant 0 : index
    %c0_6 = arith.constant 0 : index
    %6 = vector.load %arg24[%c0_5, %c0_6] : memref<288x32xf32, #tpu.memory_space<vmem>>, vector<288x32xf32>
    tpu.vector_store %arg24[%c0_5, %c0_6], %5 {strides = array<i32>} : memref<288x32xf32, #tpu.memory_space<vmem>>, vector<288x32xf32>,
    %c0_7 = arith.constant 0 : index
    %c0_8 = arith.constant 0 : index
    %7 = vector.load %arg24[%c0_7, %c0_8] : memref<288x32xf32, #tpu.memory_space<vmem>>, vector<288x32xf32>
    %cst_9 = arith.constant dense<0.000000e+00> : vector<32xf32>
    %8 = vector.multi_reduction <add>, %7, %cst_9 [0] : vector<288x32xf32> to vector<32xf32>
    %9 = vector.shape_cast %8 : vector<32xf32> to vector<1x32xf32>
    %cst_10 = arith.constant 0.00347222225 : f32
    %10 = vector.broadcast %cst_10 : f32 to vector<1x32xf32>
    %11 = arith.mulf %9, %10 : vector<1x32xf32>
    %12 = vector.broadcast %11 : vector<1x32xf32> to vector<288x32xf32>
    %13 = arith.subf %7, %12 : vector<288x32xf32>
    %14 = arith.mulf %13, %13 : vector<288x32xf32>
    %cst_11 = arith.constant dense<0.000000e+00> : vector<32xf32>
    %15 = vector.multi_reduction <add>, %14, %cst_11 [0] : vector<288x32xf32> to vector<32xf32>
    %16 = vector.shape_cast %15 : vector<32xf32> to vector<1x32xf32>
    %cst_12 = arith.constant 0.00347222225 : f32
    %17 = vector.broadcast %cst_12 : f32 to vector<1x32xf32>
    %18 = arith.mulf %16, %17 : vector<1x32xf32>
    %cst_13 = arith.constant 9.99999974E-6 : f32
    %19 = vector.broadcast %cst_13 : f32 to vector<1x32xf32>
    %20 = arith.addf %18, %19 : vector<1x32xf32>
    %21 = math.rsqrt %20 : vector<1x32xf32>
    %22 = vector.broadcast %21 : vector<1x32xf32> to vector<288x32xf32>
    %23 = arith.mulf %13, %22 : vector<288x32xf32>
    %c0_14 = arith.constant 0 : index
    %c0_15 = arith.constant 0 : index
    %24 = vector.load %arg3[%c0_14, %c0_15] : memref<1x32xf32, #tpu.memory_space<vmem>>, vector<1x32xf32>
    %25 = vector.broadcast %24 : vector<1x32xf32> to vector<288x32xf32>
    %26 = arith.mulf %23, %25 : vector<288x32xf32>
    %c0_16 = arith.constant 0 : index
    %c0_17 = arith.constant 0 : index
    %27 = vector.load %arg4[%c0_16, %c0_17] : memref<1x32xf32, #tpu.memory_space<vmem>>, vector<1x32xf32>
    %28 = vector.broadcast %27 : vector<1x32xf32> to vector<288x32xf32>
    %29 = arith.addf %26, %28 : vector<288x32xf32>
    %cst_18 = arith.constant 0.000000e+00 : f32
    %30 = vector.broadcast %cst_18 : f32 to vector<288x32xf32>
    %31 = arith.maximumf %29, %30 : vector<288x32xf32>
    %c0_19 = arith.constant 0 : index
    %c0_20 = arith.constant 0 : index
    %32 = vector.load %arg24[%c0_19, %c0_20] : memref<288x32xf32, #tpu.memory_space<vmem>>, vector<288x32xf32>
    tpu.vector_store %arg24[%c0_19, %c0_20], %31 {strides = array<i32>} : memref<288x32xf32, #tpu.memory_space<vmem>>, vector<288x32xf32>,
    %cst_21 = arith.constant 0.000000e+00 : f32
    %33 = vector.broadcast %cst_21 : f32 to vector<33x32xf32>
    %c0_22 = arith.constant 0 : index
    %c0_23 = arith.constant 0 : index
    %34 = tpu.strided_load %arg24[%c0_22, %c0_23] {strides = array<i32: 2, 1>} : memref<288x32xf32, #tpu.memory_space<vmem>>, vector<33x32xf32>
    %c0_24 = arith.constant 0 : index
    %c0_25 = arith.constant 0 : index
    %35 = vector.load %arg5[%c0_24, %c0_25] : memref<448x32xbf16, #tpu.memory_space<vmem>>, vector<32x32xbf16>
    %36 = arith.truncf %34 : vector<33x32xf32> to vector<33x32xbf16>
    %cst_26 = arith.constant dense<0.000000e+00> : vector<33x32xf32>
    %37 = tpu.matmul %36, %35, %cst_26 {dimension_numbers = #tpu.dot_dimension_numbers<[1], [0], [0], [1], [0, 0, 1, 1], [], []>} : vector<33x32xbf16>, vector<32x32xbf16>, vector<33x32xf32> -> vector<33x32xf32>
    %38 = arith.addf %33, %37 : vector<33x32xf32>
    %c72 = arith.constant 72 : index
    %c0_27 = arith.constant 0 : index
    %39 = tpu.strided_load %arg24[%c72, %c0_27] {strides = array<i32: 2, 1>} : memref<288x32xf32, #tpu.memory_space<vmem>>, vector<33x32xf32>
    %c32 = arith.constant 32 : index
    %c0_28 = arith.constant 0 : index
    %40 = vector.load %arg5[%c32, %c0_28] : memref<448x32xbf16, #tpu.memory_space<vmem>>, vector<32x32xbf16>
    %41 = arith.truncf %39 : vector<33x32xf32> to vector<33x32xbf16>
    %cst_29 = arith.constant dense<0.000000e+00> : vector<33x32xf32>
    %42 = tpu.matmul %41, %40, %cst_29 {dimension_numbers = #tpu.dot_dimension_numbers<[1], [0], [0], [1], [0, 0, 1, 1], [], []>} : vector<33x32xbf16>, vector<32x32xbf16>, vector<33x32xf32> -> vector<33x32xf32>
    %43 = arith.addf %38, %42 : vector<33x32xf32>
    %c1 = arith.constant 1 : index
    %c0_30 = arith.constant 0 : index
    %44 = tpu.strided_load %arg24[%c1, %c0_30] {strides = array<i32: 2, 1>} : memref<288x32xf32, #tpu.memory_space<vmem>>, vector<33x32xf32>
    %c64 = arith.constant 64 : index
    %c0_31 = arith.constant 0 : index
    %45 = vector.load %arg5[%c64, %c0_31] : memref<448x32xbf16, #tpu.memory_space<vmem>>, vector<32x32xbf16>
    %46 = arith.truncf %44 : vector<33x32xf32> to vector<33x32xbf16>
    %cst_32 = arith.constant dense<0.000000e+00> : vector<33x32xf32>
    %47 = tpu.matmul %46, %45, %cst_32 {dimension_numbers = #tpu.dot_dimension_numbers<[1], [0], [0], [1], [0, 0, 1, 1], [], []>} : vector<33x32xbf16>, vector<32x32xbf16>, vector<33x32xf32> -> vector<33x32xf32>
    %48 = arith.addf %43, %47 : vector<33x32xf32>
    %c73 = arith.constant 73 : index
    %c0_33 = arith.constant 0 : index
    %49 = tpu.strided_load %arg24[%c73, %c0_33] {strides = array<i32: 2, 1>} : memref<288x32xf32, #tpu.memory_space<vmem>>, vector<33x32xf32>
    %c96 = arith.constant 96 : index
    %c0_34 = arith.constant 0 : index
    %50 = vector.load %arg5[%c96, %c0_34] : memref<448x32xbf16, #tpu.memory_space<vmem>>, vector<32x32xbf16>
    %51 = arith.truncf %49 : vector<33x32xf32> to vector<33x32xbf16>
    %cst_35 = arith.constant dense<0.000000e+00> : vector<33x32xf32>
    %52 = tpu.matmul %51, %50, %cst_35 {dimension_numbers = #tpu.dot_dimension_numbers<[1], [0], [0], [1], [0, 0, 1, 1], [], []>} : vector<33x32xbf16>, vector<32x32xbf16>, vector<33x32xf32> -> vector<33x32xf32>
    %53 = arith.addf %48, %52 : vector<33x32xf32>
    %c2 = arith.constant 2 : index
    %c0_36 = arith.constant 0 : index
    %54 = tpu.strided_load %arg24[%c2, %c0_36] {strides = array<i32: 2, 1>} : memref<288x32xf32, #tpu.memory_space<vmem>>, vector<33x32xf32>
    %c128 = arith.constant 128 : index
    %c0_37 = arith.constant 0 : index
    %55 = vector.load %arg5[%c128, %c0_37] : memref<448x32xbf16, #tpu.memory_space<vmem>>, vector<32x32xbf16>
    %56 = arith.truncf %54 : vector<33x32xf32> to vector<33x32xbf16>
    %cst_38 = arith.constant dense<0.000000e+00> : vector<33x32xf32>
    %57 = tpu.matmul %56, %55, %cst_38 {dimension_numbers = #tpu.dot_dimension_numbers<[1], [0], [0], [1], [0, 0, 1, 1], [], []>} : vector<33x32xbf16>, vector<32x32xbf16>, vector<33x32xf32> -> vector<33x32xf32>
    %58 = arith.addf %53, %57 : vector<33x32xf32>
    %c74 = arith.constant 74 : index
    %c0_39 = arith.constant 0 : index
    %59 = tpu.strided_load %arg24[%c74, %c0_39] {strides = array<i32: 2, 1>} : memref<288x32xf32, #tpu.memory_space<vmem>>, vector<33x32xf32>
    %c160 = arith.constant 160 : index
    %c0_40 = arith.constant 0 : index
    %60 = vector.load %arg5[%c160, %c0_40] : memref<448x32xbf16, #tpu.memory_space<vmem>>, vector<32x32xbf16>
    %61 = arith.truncf %59 : vector<33x32xf32> to vector<33x32xbf16>
    %cst_41 = arith.constant dense<0.000000e+00> : vector<33x32xf32>
    %62 = tpu.matmul %61, %60, %cst_41 {dimension_numbers = #tpu.dot_dimension_numbers<[1], [0], [0], [1], [0, 0, 1, 1], [], []>} : vector<33x32xbf16>, vector<32x32xbf16>, vector<33x32xf32> -> vector<33x32xf32>
    %63 = arith.addf %58, %62 : vector<33x32xf32>
    %c3 = arith.constant 3 : index
    %c0_42 = arith.constant 0 : index
    %64 = tpu.strided_load %arg24[%c3, %c0_42] {strides = array<i32: 2, 1>} : memref<288x32xf32, #tpu.memory_space<vmem>>, vector<33x32xf32>
    %c192 = arith.constant 192 : index
    %c0_43 = arith.constant 0 : index
    %65 = vector.load %arg5[%c192, %c0_43] : memref<448x32xbf16, #tpu.memory_space<vmem>>, vector<32x32xbf16>
    %66 = arith.truncf %64 : vector<33x32xf32> to vector<33x32xbf16>
    %cst_44 = arith.constant dense<0.000000e+00> : vector<33x32xf32>
    %67 = tpu.matmul %66, %65, %cst_44 {dimension_numbers = #tpu.dot_dimension_numbers<[1], [0], [0], [1], [0, 0, 1, 1], [], []>} : vector<33x32xbf16>, vector<32x32xbf16>, vector<33x32xf32> -> vector<33x32xf32>
    %68 = arith.addf %63, %67 : vector<33x32xf32>
    %c75 = arith.constant 75 : index
    %c0_45 = arith.constant 0 : index
    %69 = tpu.strided_load %arg24[%c75, %c0_45] {strides = array<i32: 2, 1>} : memref<288x32xf32, #tpu.memory_space<vmem>>, vector<33x32xf32>
    %c224 = arith.constant 224 : index
    %c0_46 = arith.constant 0 : index
    %70 = vector.load %arg5[%c224, %c0_46] : memref<448x32xbf16, #tpu.memory_space<vmem>>, vector<32x32xbf16>
    %71 = arith.truncf %69 : vector<33x32xf32> to vector<33x32xbf16>
    %cst_47 = arith.constant dense<0.000000e+00> : vector<33x32xf32>
    %72 = tpu.matmul %71, %70, %cst_47 {dimension_numbers = #tpu.dot_dimension_numbers<[1], [0], [0], [1], [0, 0, 1, 1], [], []>} : vector<33x32xbf16>, vector<32x32xbf16>, vector<33x32xf32> -> vector<33x32xf32>
    %73 = arith.addf %68, %72 : vector<33x32xf32>
    %c4 = arith.constant 4 : index
    %c0_48 = arith.constant 0 : index
    %74 = tpu.strided_load %arg24[%c4, %c0_48] {strides = array<i32: 2, 1>} : memref<288x32xf32, #tpu.memory_space<vmem>>, vector<33x32xf32>
    %c256 = arith.constant 256 : index
    %c0_49 = arith.constant 0 : index
    %75 = vector.load %arg5[%c256, %c0_49] : memref<448x32xbf16, #tpu.memory_space<vmem>>, vector<32x32xbf16>
    %76 = arith.truncf %74 : vector<33x32xf32> to vector<33x32xbf16>
    %cst_50 = arith.constant dense<0.000000e+00> : vector<33x32xf32>
    %77 = tpu.matmul %76, %75, %cst_50 {dimension_numbers = #tpu.dot_dimension_numbers<[1], [0], [0], [1], [0, 0, 1, 1], [], []>} : vector<33x32xbf16>, vector<32x32xbf16>, vector<33x32xf32> -> vector<33x32xf32>
    %78 = arith.addf %73, %77 : vector<33x32xf32>
    %c76 = arith.constant 76 : index
    %c0_51 = arith.constant 0 : index
    %79 = tpu.strided_load %arg24[%c76, %c0_51] {strides = array<i32: 2, 1>} : memref<288x32xf32, #tpu.memory_space<vmem>>, vector<33x32xf32>
    %c288 = arith.constant 288 : index
    %c0_52 = arith.constant 0 : index
    %80 = vector.load %arg5[%c288, %c0_52] : memref<448x32xbf16, #tpu.memory_space<vmem>>, vector<32x32xbf16>
    %81 = arith.truncf %79 : vector<33x32xf32> to vector<33x32xbf16>
    %cst_53 = arith.constant dense<0.000000e+00> : vector<33x32xf32>
    %82 = tpu.matmul %81, %80, %cst_53 {dimension_numbers = #tpu.dot_dimension_numbers<[1], [0], [0], [1], [0, 0, 1, 1], [], []>} : vector<33x32xbf16>, vector<32x32xbf16>, vector<33x32xf32> -> vector<33x32xf32>
    %83 = arith.addf %78, %82 : vector<33x32xf32>
    %c5 = arith.constant 5 : index
    %c0_54 = arith.constant 0 : index
    %84 = tpu.strided_load %arg24[%c5, %c0_54] {strides = array<i32: 2, 1>} : memref<288x32xf32, #tpu.memory_space<vmem>>, vector<33x32xf32>
    %c320 = arith.constant 320 : index
    %c0_55 = arith.constant 0 : index
    %85 = vector.load %arg5[%c320, %c0_55] : memref<448x32xbf16, #tpu.memory_space<vmem>>, vector<32x32xbf16>
    %86 = arith.truncf %84 : vector<33x32xf32> to vector<33x32xbf16>
    %cst_56 = arith.constant dense<0.000000e+00> : vector<33x32xf32>
    %87 = tpu.matmul %86, %85, %cst_56 {dimension_numbers = #tpu.dot_dimension_numbers<[1], [0], [0], [1], [0, 0, 1, 1], [], []>} : vector<33x32xbf16>, vector<32x32xbf16>, vector<33x32xf32> -> vector<33x32xf32>
    %88 = arith.addf %83, %87 : vector<33x32xf32>
    %c77 = arith.constant 77 : index
    %c0_57 = arith.constant 0 : index
    %89 = tpu.strided_load %arg24[%c77, %c0_57] {strides = array<i32: 2, 1>} : memref<288x32xf32, #tpu.memory_space<vmem>>, vector<33x32xf32>
    %c352 = arith.constant 352 : index
    %c0_58 = arith.constant 0 : index
    %90 = vector.load %arg5[%c352, %c0_58] : memref<448x32xbf16, #tpu.memory_space<vmem>>, vector<32x32xbf16>
    %91 = arith.truncf %89 : vector<33x32xf32> to vector<33x32xbf16>
    %cst_59 = arith.constant dense<0.000000e+00> : vector<33x32xf32>
    %92 = tpu.matmul %91, %90, %cst_59 {dimension_numbers = #tpu.dot_dimension_numbers<[1], [0], [0], [1], [0, 0, 1, 1], [], []>} : vector<33x32xbf16>, vector<32x32xbf16>, vector<33x32xf32> -> vector<33x32xf32>
    %93 = arith.addf %88, %92 : vector<33x32xf32>
    %c6 = arith.constant 6 : index
    %c0_60 = arith.constant 0 : index
    %94 = tpu.strided_load %arg24[%c6, %c0_60] {strides = array<i32: 2, 1>} : memref<288x32xf32, #tpu.memory_space<vmem>>, vector<33x32xf32>
    %c384 = arith.constant 384 : index
    %c0_61 = arith.constant 0 : index
    %95 = vector.load %arg5[%c384, %c0_61] : memref<448x32xbf16, #tpu.memory_space<vmem>>, vector<32x32xbf16>
    %96 = arith.truncf %94 : vector<33x32xf32> to vector<33x32xbf16>
    %cst_62 = arith.constant dense<0.000000e+00> : vector<33x32xf32>
    %97 = tpu.matmul %96, %95, %cst_62 {dimension_numbers = #tpu.dot_dimension_numbers<[1], [0], [0], [1], [0, 0, 1, 1], [], []>} : vector<33x32xbf16>, vector<32x32xbf16>, vector<33x32xf32> -> vector<33x32xf32>
    %98 = arith.addf %93, %97 : vector<33x32xf32>
    %c78 = arith.constant 78 : index
    %c0_63 = arith.constant 0 : index
    %99 = tpu.strided_load %arg24[%c78, %c0_63] {strides = array<i32: 2, 1>} : memref<288x32xf32, #tpu.memory_space<vmem>>, vector<33x32xf32>
    %c416 = arith.constant 416 : index
    %c0_64 = arith.constant 0 : index
    %100 = vector.load %arg5[%c416, %c0_64] : memref<448x32xbf16, #tpu.memory_space<vmem>>, vector<32x32xbf16>
    %101 = arith.truncf %99 : vector<33x32xf32> to vector<33x32xbf16>
    %cst_65 = arith.constant dense<0.000000e+00> : vector<33x32xf32>
    %102 = tpu.matmul %101, %100, %cst_65 {dimension_numbers = #tpu.dot_dimension_numbers<[1], [0], [0], [1], [0, 0, 1, 1], [], []>} : vector<33x32xbf16>, vector<32x32xbf16>, vector<33x32xf32> -> vector<33x32xf32>
    %103 = arith.addf %98, %102 : vector<33x32xf32>
    %c0_66 = arith.constant 0 : index
    %c0_67 = arith.constant 0 : index
    %104 = vector.load %arg6[%c0_66, %c0_67] : memref<1x32xf32, #tpu.memory_space<vmem>>, vector<1x32xf32>
    %105 = vector.broadcast %104 : vector<1x32xf32> to vector<33x32xf32>
    %106 = arith.addf %103, %105 : vector<33x32xf32>
    %c0_68 = arith.constant 0 : index
    %c0_69 = arith.constant 0 : index
    %107 = vector.load %arg25[%c0_68, %c0_69] : memref<66x32xf32, #tpu.memory_space<vmem>>, vector<33x32xf32>
    tpu.vector_store %arg25[%c0_68, %c0_69], %106 {strides = array<i32>} : memref<66x32xf32, #tpu.memory_space<vmem>>, vector<33x32xf32>,
    %cst_70 = arith.constant 0.000000e+00 : f32
    %108 = vector.broadcast %cst_70 : f32 to vector<33x32xf32>
    %c144 = arith.constant 144 : index
    %c0_71 = arith.constant 0 : index
    %109 = tpu.strided_load %arg24[%c144, %c0_71] {strides = array<i32: 2, 1>} : memref<288x32xf32, #tpu.memory_space<vmem>>, vector<33x32xf32>
    %c0_72 = arith.constant 0 : index
    %c0_73 = arith.constant 0 : index
    %110 = vector.load %arg5[%c0_72, %c0_73] : memref<448x32xbf16, #tpu.memory_space<vmem>>, vector<32x32xbf16>
    %111 = arith.truncf %109 : vector<33x32xf32> to vector<33x32xbf16>
    %cst_74 = arith.constant dense<0.000000e+00> : vector<33x32xf32>
    %112 = tpu.matmul %111, %110, %cst_74 {dimension_numbers = #tpu.dot_dimension_numbers<[1], [0], [0], [1], [0, 0, 1, 1], [], []>} : vector<33x32xbf16>, vector<32x32xbf16>, vector<33x32xf32> -> vector<33x32xf32>
    %113 = arith.addf %108, %112 : vector<33x32xf32>
    %c216 = arith.constant 216 : index
    %c0_75 = arith.constant 0 : index
    %114 = tpu.strided_load %arg24[%c216, %c0_75] {strides = array<i32: 2, 1>} : memref<288x32xf32, #tpu.memory_space<vmem>>, vector<33x32xf32>
    %c32_76 = arith.constant 32 : index
    %c0_77 = arith.constant 0 : index
    %115 = vector.load %arg5[%c32_76, %c0_77] : memref<448x32xbf16, #tpu.memory_space<vmem>>, vector<32x32xbf16>
    %116 = arith.truncf %114 : vector<33x32xf32> to vector<33x32xbf16>
    %cst_78 = arith.constant dense<0.000000e+00> : vector<33x32xf32>
    %117 = tpu.matmul %116, %115, %cst_78 {dimension_numbers = #tpu.dot_dimension_numbers<[1], [0], [0], [1], [0, 0, 1, 1], [], []>} : vector<33x32xbf16>, vector<32x32xbf16>, vector<33x32xf32> -> vector<33x32xf32>
    %118 = arith.addf %113, %117 : vector<33x32xf32>
    %c145 = arith.constant 145 : index
    %c0_79 = arith.constant 0 : index
    %119 = tpu.strided_load %arg24[%c145, %c0_79] {strides = array<i32: 2, 1>} : memref<288x32xf32, #tpu.memory_space<vmem>>, vector<33x32xf32>
    %c64_80 = arith.constant 64 : index
    %c0_81 = arith.constant 0 : index
    %120 = vector.load %arg5[%c64_80, %c0_81] : memref<448x32xbf16, #tpu.memory_space<vmem>>, vector<32x32xbf16>
    %121 = arith.truncf %119 : vector<33x32xf32> to vector<33x32xbf16>
    %cst_82 = arith.constant dense<0.000000e+00> : vector<33x32xf32>
    %122 = tpu.matmul %121, %120, %cst_82 {dimension_numbers = #tpu.dot_dimension_numbers<[1], [0], [0], [1], [0, 0, 1, 1], [], []>} : vector<33x32xbf16>, vector<32x32xbf16>, vector<33x32xf32> -> vector<33x32xf32>
    %123 = arith.addf %118, %122 : vector<33x32xf32>
    %c217 = arith.constant 217 : index
    %c0_83 = arith.constant 0 : index
    %124 = tpu.strided_load %arg24[%c217, %c0_83] {strides = array<i32: 2, 1>} : memref<288x32xf32, #tpu.memory_space<vmem>>, vector<33x32xf32>
    %c96_84 = arith.constant 96 : index
    %c0_85 = arith.constant 0 : index
    %125 = vector.load %arg5[%c96_84, %c0_85] : memref<448x32xbf16, #tpu.memory_space<vmem>>, vector<32x32xbf16>
    %126 = arith.truncf %124 : vector<33x32xf32> to vector<33x32xbf16>
    %cst_86 = arith.constant dense<0.000000e+00> : vector<33x32xf32>
    %127 = tpu.matmul %126, %125, %cst_86 {dimension_numbers = #tpu.dot_dimension_numbers<[1], [0], [0], [1], [0, 0, 1, 1], [], []>} : vector<33x32xbf16>, vector<32x32xbf16>, vector<33x32xf32> -> vector<33x32xf32>
    %128 = arith.addf %123, %127 : vector<33x32xf32>
    %c146 = arith.constant 146 : index
    %c0_87 = arith.constant 0 : index
    %129 = tpu.strided_load %arg24[%c146, %c0_87] {strides = array<i32: 2, 1>} : memref<288x32xf32, #tpu.memory_space<vmem>>, vector<33x32xf32>
    %c128_88 = arith.constant 128 : index
    %c0_89 = arith.constant 0 : index
    %130 = vector.load %arg5[%c128_88, %c0_89] : memref<448x32xbf16, #tpu.memory_space<vmem>>, vector<32x32xbf16>
    %131 = arith.truncf %129 : vector<33x32xf32> to vector<33x32xbf16>
    %cst_90 = arith.constant dense<0.000000e+00> : vector<33x32xf32>
    %132 = tpu.matmul %131, %130, %cst_90 {dimension_numbers = #tpu.dot_dimension_numbers<[1], [0], [0], [1], [0, 0, 1, 1], [], []>} : vector<33x32xbf16>, vector<32x32xbf16>, vector<33x32xf32> -> vector<33x32xf32>
    %133 = arith.addf %128, %132 : vector<33x32xf32>
    %c218 = arith.constant 218 : index
    %c0_91 = arith.constant 0 : index
    %134 = tpu.strided_load %arg24[%c218, %c0_91] {strides = array<i32: 2, 1>} : memref<288x32xf32, #tpu.memory_space<vmem>>, vector<33x32xf32>
    %c160_92 = arith.constant 160 : index
    %c0_93 = arith.constant 0 : index
    %135 = vector.load %arg5[%c160_92, %c0_93] : memref<448x32xbf16, #tpu.memory_space<vmem>>, vector<32x32xbf16>
    %136 = arith.truncf %134 : vector<33x32xf32> to vector<33x32xbf16>
    %cst_94 = arith.constant dense<0.000000e+00> : vector<33x32xf32>
    %137 = tpu.matmul %136, %135, %cst_94 {dimension_numbers = #tpu.dot_dimension_numbers<[1], [0], [0], [1], [0, 0, 1, 1], [], []>} : vector<33x32xbf16>, vector<32x32xbf16>, vector<33x32xf32> -> vector<33x32xf32>
    %138 = arith.addf %133, %137 : vector<33x32xf32>
    %c147 = arith.constant 147 : index
    %c0_95 = arith.constant 0 : index
    %139 = tpu.strided_load %arg24[%c147, %c0_95] {strides = array<i32: 2, 1>} : memref<288x32xf32, #tpu.memory_space<vmem>>, vector<33x32xf32>
    %c192_96 = arith.constant 192 : index
    %c0_97 = arith.constant 0 : index
    %140 = vector.load %arg5[%c192_96, %c0_97] : memref<448x32xbf16, #tpu.memory_space<vmem>>, vector<32x32xbf16>
    %141 = arith.truncf %139 : vector<33x32xf32> to vector<33x32xbf16>
    %cst_98 = arith.constant dense<0.000000e+00> : vector<33x32xf32>
    %142 = tpu.matmul %141, %140, %cst_98 {dimension_numbers = #tpu.dot_dimension_numbers<[1], [0], [0], [1], [0, 0, 1, 1], [], []>} : vector<33x32xbf16>, vector<32x32xbf16>, vector<33x32xf32> -> vector<33x32xf32>
    %143 = arith.addf %138, %142 : vector<33x32xf32>
    %c219 = arith.constant 219 : index
    %c0_99 = arith.constant 0 : index
    %144 = tpu.strided_load %arg24[%c219, %c0_99] {strides = array<i32: 2, 1>} : memref<288x32xf32, #tpu.memory_space<vmem>>, vector<33x32xf32>
    %c224_100 = arith.constant 224 : index
    %c0_101 = arith.constant 0 : index
    %145 = vector.load %arg5[%c224_100, %c0_101] : memref<448x32xbf16, #tpu.memory_space<vmem>>, vector<32x32xbf16>
    %146 = arith.truncf %144 : vector<33x32xf32> to vector<33x32xbf16>
    %cst_102 = arith.constant dense<0.000000e+00> : vector<33x32xf32>
    %147 = tpu.matmul %146, %145, %cst_102 {dimension_numbers = #tpu.dot_dimension_numbers<[1], [0], [0], [1], [0, 0, 1, 1], [], []>} : vector<33x32xbf16>, vector<32x32xbf16>, vector<33x32xf32> -> vector<33x32xf32>
    %148 = arith.addf %143, %147 : vector<33x32xf32>
    %c148 = arith.constant 148 : index
    %c0_103 = arith.constant 0 : index
    %149 = tpu.strided_load %arg24[%c148, %c0_103] {strides = array<i32: 2, 1>} : memref<288x32xf32, #tpu.memory_space<vmem>>, vector<33x32xf32>
    %c256_104 = arith.constant 256 : index
    %c0_105 = arith.constant 0 : index
    %150 = vector.load %arg5[%c256_104, %c0_105] : memref<448x32xbf16, #tpu.memory_space<vmem>>, vector<32x32xbf16>
    %151 = arith.truncf %149 : vector<33x32xf32> to vector<33x32xbf16>
    %cst_106 = arith.constant dense<0.000000e+00> : vector<33x32xf32>
    %152 = tpu.matmul %151, %150, %cst_106 {dimension_numbers = #tpu.dot_dimension_numbers<[1], [0], [0], [1], [0, 0, 1, 1], [], []>} : vector<33x32xbf16>, vector<32x32xbf16>, vector<33x32xf32> -> vector<33x32xf32>
    %153 = arith.addf %148, %152 : vector<33x32xf32>
    %c220 = arith.constant 220 : index
    %c0_107 = arith.constant 0 : index
    %154 = tpu.strided_load %arg24[%c220, %c0_107] {strides = array<i32: 2, 1>} : memref<288x32xf32, #tpu.memory_space<vmem>>, vector<33x32xf32>
    %c288_108 = arith.constant 288 : index
    %c0_109 = arith.constant 0 : index
    %155 = vector.load %arg5[%c288_108, %c0_109] : memref<448x32xbf16, #tpu.memory_space<vmem>>, vector<32x32xbf16>
    %156 = arith.truncf %154 : vector<33x32xf32> to vector<33x32xbf16>
    %cst_110 = arith.constant dense<0.000000e+00> : vector<33x32xf32>
    %157 = tpu.matmul %156, %155, %cst_110 {dimension_numbers = #tpu.dot_dimension_numbers<[1], [0], [0], [1], [0, 0, 1, 1], [], []>} : vector<33x32xbf16>, vector<32x32xbf16>, vector<33x32xf32> -> vector<33x32xf32>
    %158 = arith.addf %153, %157 : vector<33x32xf32>
    %c149 = arith.constant 149 : index
    %c0_111 = arith.constant 0 : index
    %159 = tpu.strided_load %arg24[%c149, %c0_111] {strides = array<i32: 2, 1>} : memref<288x32xf32, #tpu.memory_space<vmem>>, vector<33x32xf32>
    %c320_112 = arith.constant 320 : index
    %c0_113 = arith.constant 0 : index
    %160 = vector.load %arg5[%c320_112, %c0_113] : memref<448x32xbf16, #tpu.memory_space<vmem>>, vector<32x32xbf16>
    %161 = arith.truncf %159 : vector<33x32xf32> to vector<33x32xbf16>
    %cst_114 = arith.constant dense<0.000000e+00> : vector<33x32xf32>
    %162 = tpu.matmul %161, %160, %cst_114 {dimension_numbers = #tpu.dot_dimension_numbers<[1], [0], [0], [1], [0, 0, 1, 1], [], []>} : vector<33x32xbf16>, vector<32x32xbf16>, vector<33x32xf32> -> vector<33x32xf32>
    %163 = arith.addf %158, %162 : vector<33x32xf32>
    %c221 = arith.constant 221 : index
    %c0_115 = arith.constant 0 : index
    %164 = tpu.strided_load %arg24[%c221, %c0_115] {strides = array<i32: 2, 1>} : memref<288x32xf32, #tpu.memory_space<vmem>>, vector<33x32xf32>
    %c352_116 = arith.constant 352 : index
    %c0_117 = arith.constant 0 : index
    %165 = vector.load %arg5[%c352_116, %c0_117] : memref<448x32xbf16, #tpu.memory_space<vmem>>, vector<32x32xbf16>
    %166 = arith.truncf %164 : vector<33x32xf32> to vector<33x32xbf16>
    %cst_118 = arith.constant dense<0.000000e+00> : vector<33x32xf32>
    %167 = tpu.matmul %166, %165, %cst_118 {dimension_numbers = #tpu.dot_dimension_numbers<[1], [0], [0], [1], [0, 0, 1, 1], [], []>} : vector<33x32xbf16>, vector<32x32xbf16>, vector<33x32xf32> -> vector<33x32xf32>
    %168 = arith.addf %163, %167 : vector<33x32xf32>
    %c150 = arith.constant 150 : index
    %c0_119 = arith.constant 0 : index
    %169 = tpu.strided_load %arg24[%c150, %c0_119] {strides = array<i32: 2, 1>} : memref<288x32xf32, #tpu.memory_space<vmem>>, vector<33x32xf32>
    %c384_120 = arith.constant 384 : index
    %c0_121 = arith.constant 0 : index
    %170 = vector.load %arg5[%c384_120, %c0_121] : memref<448x32xbf16, #tpu.memory_space<vmem>>, vector<32x32xbf16>
    %171 = arith.truncf %169 : vector<33x32xf32> to vector<33x32xbf16>
    %cst_122 = arith.constant dense<0.000000e+00> : vector<33x32xf32>
    %172 = tpu.matmul %171, %170, %cst_122 {dimension_numbers = #tpu.dot_dimension_numbers<[1], [0], [0], [1], [0, 0, 1, 1], [], []>} : vector<33x32xbf16>, vector<32x32xbf16>, vector<33x32xf32> -> vector<33x32xf32>
    %173 = arith.addf %168, %172 : vector<33x32xf32>
    %c222 = arith.constant 222 : index
    %c0_123 = arith.constant 0 : index
    %174 = tpu.strided_load %arg24[%c222, %c0_123] {strides = array<i32: 2, 1>} : memref<288x32xf32, #tpu.memory_space<vmem>>, vector<33x32xf32>
    %c416_124 = arith.constant 416 : index
    %c0_125 = arith.constant 0 : index
    %175 = vector.load %arg5[%c416_124, %c0_125] : memref<448x32xbf16, #tpu.memory_space<vmem>>, vector<32x32xbf16>
    %176 = arith.truncf %174 : vector<33x32xf32> to vector<33x32xbf16>
    %cst_126 = arith.constant dense<0.000000e+00> : vector<33x32xf32>
    %177 = tpu.matmul %176, %175, %cst_126 {dimension_numbers = #tpu.dot_dimension_numbers<[1], [0], [0], [1], [0, 0, 1, 1], [], []>} : vector<33x32xbf16>, vector<32x32xbf16>, vector<33x32xf32> -> vector<33x32xf32>
    %178 = arith.addf %173, %177 : vector<33x32xf32>
    %c0_127 = arith.constant 0 : index
    %c0_128 = arith.constant 0 : index
    %179 = vector.load %arg6[%c0_127, %c0_128] : memref<1x32xf32, #tpu.memory_space<vmem>>, vector<1x32xf32>
    %180 = vector.broadcast %179 : vector<1x32xf32> to vector<33x32xf32>
    %181 = arith.addf %178, %180 : vector<33x32xf32>
    %c33 = arith.constant 33 : index
    %c0_129 = arith.constant 0 : index
    %182 = vector.load %arg25[%c33, %c0_129] : memref<66x32xf32, #tpu.memory_space<vmem>>, vector<33x32xf32>
    tpu.vector_store %arg25[%c33, %c0_129], %181 {strides = array<i32>} : memref<66x32xf32, #tpu.memory_space<vmem>>, vector<33x32xf32>,
    %c0_130 = arith.constant 0 : index
    %c0_131 = arith.constant 0 : index
    %183 = vector.load %arg25[%c0_130, %c0_131] : memref<66x32xf32, #tpu.memory_space<vmem>>, vector<66x32xf32>
    %cst_132 = arith.constant dense<0.000000e+00> : vector<32xf32>
    %184 = vector.multi_reduction <add>, %183, %cst_132 [0] : vector<66x32xf32> to vector<32xf32>
    %185 = vector.shape_cast %184 : vector<32xf32> to vector<1x32xf32>
    %cst_133 = arith.constant 0.0151515156 : f32
    %186 = vector.broadcast %cst_133 : f32 to vector<1x32xf32>
    %187 = arith.mulf %185, %186 : vector<1x32xf32>
    %188 = vector.broadcast %187 : vector<1x32xf32> to vector<66x32xf32>
    %189 = arith.subf %183, %188 : vector<66x32xf32>
    %190 = arith.mulf %189, %189 : vector<66x32xf32>
    %cst_134 = arith.constant dense<0.000000e+00> : vector<32xf32>
    %191 = vector.multi_reduction <add>, %190, %cst_134 [0] : vector<66x32xf32> to vector<32xf32>
    %192 = vector.shape_cast %191 : vector<32xf32> to vector<1x32xf32>
    %cst_135 = arith.constant 0.0151515156 : f32
    %193 = vector.broadcast %cst_135 : f32 to vector<1x32xf32>
    %194 = arith.mulf %192, %193 : vector<1x32xf32>
    %cst_136 = arith.constant 9.99999974E-6 : f32
    %195 = vector.broadcast %cst_136 : f32 to vector<1x32xf32>
    %196 = arith.addf %194, %195 : vector<1x32xf32>
    %197 = math.rsqrt %196 : vector<1x32xf32>
    %198 = vector.broadcast %197 : vector<1x32xf32> to vector<66x32xf32>
    %199 = arith.mulf %189, %198 : vector<66x32xf32>
    %c0_137 = arith.constant 0 : index
    %c0_138 = arith.constant 0 : index
    %200 = vector.load %arg7[%c0_137, %c0_138] : memref<1x32xf32, #tpu.memory_space<vmem>>, vector<1x32xf32>
    %201 = vector.broadcast %200 : vector<1x32xf32> to vector<66x32xf32>
    %202 = arith.mulf %199, %201 : vector<66x32xf32>
    %c0_139 = arith.constant 0 : index
    %c0_140 = arith.constant 0 : index
    %203 = vector.load %arg8[%c0_139, %c0_140] : memref<1x32xf32, #tpu.memory_space<vmem>>, vector<1x32xf32>
    %204 = vector.broadcast %203 : vector<1x32xf32> to vector<66x32xf32>
    %205 = arith.addf %202, %204 : vector<66x32xf32>
    %cst_141 = arith.constant 0.000000e+00 : f32
    %206 = vector.broadcast %cst_141 : f32 to vector<66x32xf32>
    %207 = arith.maximumf %205, %206 : vector<66x32xf32>
    %c0_142 = arith.constant 0 : index
    %c0_143 = arith.constant 0 : index
    %208 = vector.load %arg25[%c0_142, %c0_143] : memref<66x32xf32, #tpu.memory_space<vmem>>, vector<66x32xf32>
    tpu.vector_store %arg25[%c0_142, %c0_143], %207 {strides = array<i32>} : memref<66x32xf32, #tpu.memory_space<vmem>>, vector<66x32xf32>,
    %cst_144 = arith.constant 0.000000e+00 : f32
    %209 = vector.broadcast %cst_144 : f32 to vector<10x64xf32>
    %c0_145 = arith.constant 0 : index
    %c0_146 = arith.constant 0 : index
    %210 = tpu.strided_load %arg25[%c0_145, %c0_146] {strides = array<i32: 3, 1>} : memref<66x32xf32, #tpu.memory_space<vmem>>, vector<10x32xf32>
    %c0_147 = arith.constant 0 : index
    %c0_148 = arith.constant 0 : index
    %211 = vector.load %arg9[%c0_147, %c0_148] : memref<160x64xbf16, #tpu.memory_space<vmem>>, vector<32x64xbf16>
    %212 = arith.truncf %210 : vector<10x32xf32> to vector<10x32xbf16>
    %cst_149 = arith.constant dense<0.000000e+00> : vector<10x64xf32>
    %213 = tpu.matmul %212, %211, %cst_149 {dimension_numbers = #tpu.dot_dimension_numbers<[1], [0], [0], [1], [0, 0, 1, 1], [], []>} : vector<10x32xbf16>, vector<32x64xbf16>, vector<10x64xf32> -> vector<10x64xf32>
    %214 = arith.addf %209, %213 : vector<10x64xf32>
    %c1_150 = arith.constant 1 : index
    %c0_151 = arith.constant 0 : index
    %215 = tpu.strided_load %arg25[%c1_150, %c0_151] {strides = array<i32: 3, 1>} : memref<66x32xf32, #tpu.memory_space<vmem>>, vector<10x32xf32>
    %c32_152 = arith.constant 32 : index
    %c0_153 = arith.constant 0 : index
    %216 = vector.load %arg9[%c32_152, %c0_153] : memref<160x64xbf16, #tpu.memory_space<vmem>>, vector<32x64xbf16>
    %217 = arith.truncf %215 : vector<10x32xf32> to vector<10x32xbf16>
    %cst_154 = arith.constant dense<0.000000e+00> : vector<10x64xf32>
    %218 = tpu.matmul %217, %216, %cst_154 {dimension_numbers = #tpu.dot_dimension_numbers<[1], [0], [0], [1], [0, 0, 1, 1], [], []>} : vector<10x32xbf16>, vector<32x64xbf16>, vector<10x64xf32> -> vector<10x64xf32>
    %219 = arith.addf %214, %218 : vector<10x64xf32>
    %c2_155 = arith.constant 2 : index
    %c0_156 = arith.constant 0 : index
    %220 = tpu.strided_load %arg25[%c2_155, %c0_156] {strides = array<i32: 3, 1>} : memref<66x32xf32, #tpu.memory_space<vmem>>, vector<10x32xf32>
    %c64_157 = arith.constant 64 : index
    %c0_158 = arith.constant 0 : index
    %221 = vector.load %arg9[%c64_157, %c0_158] : memref<160x64xbf16, #tpu.memory_space<vmem>>, vector<32x64xbf16>
    %222 = arith.truncf %220 : vector<10x32xf32> to vector<10x32xbf16>
    %cst_159 = arith.constant dense<0.000000e+00> : vector<10x64xf32>
    %223 = tpu.matmul %222, %221, %cst_159 {dimension_numbers = #tpu.dot_dimension_numbers<[1], [0], [0], [1], [0, 0, 1, 1], [], []>} : vector<10x32xbf16>, vector<32x64xbf16>, vector<10x64xf32> -> vector<10x64xf32>
    %224 = arith.addf %219, %223 : vector<10x64xf32>
    %c3_160 = arith.constant 3 : index
    %c0_161 = arith.constant 0 : index
    %225 = tpu.strided_load %arg25[%c3_160, %c0_161] {strides = array<i32: 3, 1>} : memref<66x32xf32, #tpu.memory_space<vmem>>, vector<10x32xf32>
    %c96_162 = arith.constant 96 : index
    %c0_163 = arith.constant 0 : index
    %226 = vector.load %arg9[%c96_162, %c0_163] : memref<160x64xbf16, #tpu.memory_space<vmem>>, vector<32x64xbf16>
    %227 = arith.truncf %225 : vector<10x32xf32> to vector<10x32xbf16>
    %cst_164 = arith.constant dense<0.000000e+00> : vector<10x64xf32>
    %228 = tpu.matmul %227, %226, %cst_164 {dimension_numbers = #tpu.dot_dimension_numbers<[1], [0], [0], [1], [0, 0, 1, 1], [], []>} : vector<10x32xbf16>, vector<32x64xbf16>, vector<10x64xf32> -> vector<10x64xf32>
    %229 = arith.addf %224, %228 : vector<10x64xf32>
    %c4_165 = arith.constant 4 : index
    %c0_166 = arith.constant 0 : index
    %230 = tpu.strided_load %arg25[%c4_165, %c0_166] {strides = array<i32: 3, 1>} : memref<66x32xf32, #tpu.memory_space<vmem>>, vector<10x32xf32>
    %c128_167 = arith.constant 128 : index
    %c0_168 = arith.constant 0 : index
    %231 = vector.load %arg9[%c128_167, %c0_168] : memref<160x64xbf16, #tpu.memory_space<vmem>>, vector<32x64xbf16>
    %232 = arith.truncf %230 : vector<10x32xf32> to vector<10x32xbf16>
    %cst_169 = arith.constant dense<0.000000e+00> : vector<10x64xf32>
    %233 = tpu.matmul %232, %231, %cst_169 {dimension_numbers = #tpu.dot_dimension_numbers<[1], [0], [0], [1], [0, 0, 1, 1], [], []>} : vector<10x32xbf16>, vector<32x64xbf16>, vector<10x64xf32> -> vector<10x64xf32>
    %234 = arith.addf %229, %233 : vector<10x64xf32>
    %c0_170 = arith.constant 0 : index
    %c0_171 = arith.constant 0 : index
    %235 = vector.load %arg10[%c0_170, %c0_171] : memref<1x64xf32, #tpu.memory_space<vmem>>, vector<1x64xf32>
    %236 = vector.broadcast %235 : vector<1x64xf32> to vector<10x64xf32>
    %237 = arith.addf %234, %236 : vector<10x64xf32>
    %c0_172 = arith.constant 0 : index
    %c0_173 = arith.constant 0 : index
    %238 = vector.load %arg26[%c0_172, %c0_173] : memref<20x64xf32, #tpu.memory_space<vmem>>, vector<10x64xf32>
    tpu.vector_store %arg26[%c0_172, %c0_173], %237 {strides = array<i32>} : memref<20x64xf32, #tpu.memory_space<vmem>>, vector<10x64xf32>,
    %cst_174 = arith.constant 0.000000e+00 : f32
    %239 = vector.broadcast %cst_174 : f32 to vector<10x64xf32>
    %c33_175 = arith.constant 33 : index
    %c0_176 = arith.constant 0 : index
    %240 = tpu.strided_load %arg25[%c33_175, %c0_176] {strides = array<i32: 3, 1>} : memref<66x32xf32, #tpu.memory_space<vmem>>, vector<10x32xf32>
    %c0_177 = arith.constant 0 : index
    %c0_178 = arith.constant 0 : index
    %241 = vector.load %arg9[%c0_177, %c0_178] : memref<160x64xbf16, #tpu.memory_space<vmem>>, vector<32x64xbf16>
    %242 = arith.truncf %240 : vector<10x32xf32> to vector<10x32xbf16>
    %cst_179 = arith.constant dense<0.000000e+00> : vector<10x64xf32>
    %243 = tpu.matmul %242, %241, %cst_179 {dimension_numbers = #tpu.dot_dimension_numbers<[1], [0], [0], [1], [0, 0, 1, 1], [], []>} : vector<10x32xbf16>, vector<32x64xbf16>, vector<10x64xf32> -> vector<10x64xf32>
    %244 = arith.addf %239, %243 : vector<10x64xf32>
    %c34 = arith.constant 34 : index
    %c0_180 = arith.constant 0 : index
    %245 = tpu.strided_load %arg25[%c34, %c0_180] {strides = array<i32: 3, 1>} : memref<66x32xf32, #tpu.memory_space<vmem>>, vector<10x32xf32>
    %c32_181 = arith.constant 32 : index
    %c0_182 = arith.constant 0 : index
    %246 = vector.load %arg9[%c32_181, %c0_182] : memref<160x64xbf16, #tpu.memory_space<vmem>>, vector<32x64xbf16>
    %247 = arith.truncf %245 : vector<10x32xf32> to vector<10x32xbf16>
    %cst_183 = arith.constant dense<0.000000e+00> : vector<10x64xf32>
    %248 = tpu.matmul %247, %246, %cst_183 {dimension_numbers = #tpu.dot_dimension_numbers<[1], [0], [0], [1], [0, 0, 1, 1], [], []>} : vector<10x32xbf16>, vector<32x64xbf16>, vector<10x64xf32> -> vector<10x64xf32>
    %249 = arith.addf %244, %248 : vector<10x64xf32>
    %c35 = arith.constant 35 : index
    %c0_184 = arith.constant 0 : index
    %250 = tpu.strided_load %arg25[%c35, %c0_184] {strides = array<i32: 3, 1>} : memref<66x32xf32, #tpu.memory_space<vmem>>, vector<10x32xf32>
    %c64_185 = arith.constant 64 : index
    %c0_186 = arith.constant 0 : index
    %251 = vector.load %arg9[%c64_185, %c0_186] : memref<160x64xbf16, #tpu.memory_space<vmem>>, vector<32x64xbf16>
    %252 = arith.truncf %250 : vector<10x32xf32> to vector<10x32xbf16>
    %cst_187 = arith.constant dense<0.000000e+00> : vector<10x64xf32>
    %253 = tpu.matmul %252, %251, %cst_187 {dimension_numbers = #tpu.dot_dimension_numbers<[1], [0], [0], [1], [0, 0, 1, 1], [], []>} : vector<10x32xbf16>, vector<32x64xbf16>, vector<10x64xf32> -> vector<10x64xf32>
    %254 = arith.addf %249, %253 : vector<10x64xf32>
    %c36 = arith.constant 36 : index
    %c0_188 = arith.constant 0 : index
    %255 = tpu.strided_load %arg25[%c36, %c0_188] {strides = array<i32: 3, 1>} : memref<66x32xf32, #tpu.memory_space<vmem>>, vector<10x32xf32>
    %c96_189 = arith.constant 96 : index
    %c0_190 = arith.constant 0 : index
    %256 = vector.load %arg9[%c96_189, %c0_190] : memref<160x64xbf16, #tpu.memory_space<vmem>>, vector<32x64xbf16>
    %257 = arith.truncf %255 : vector<10x32xf32> to vector<10x32xbf16>
    %cst_191 = arith.constant dense<0.000000e+00> : vector<10x64xf32>
    %258 = tpu.matmul %257, %256, %cst_191 {dimension_numbers = #tpu.dot_dimension_numbers<[1], [0], [0], [1], [0, 0, 1, 1], [], []>} : vector<10x32xbf16>, vector<32x64xbf16>, vector<10x64xf32> -> vector<10x64xf32>
    %259 = arith.addf %254, %258 : vector<10x64xf32>
    %c37 = arith.constant 37 : index
    %c0_192 = arith.constant 0 : index
    %260 = tpu.strided_load %arg25[%c37, %c0_192] {strides = array<i32: 3, 1>} : memref<66x32xf32, #tpu.memory_space<vmem>>, vector<10x32xf32>
    %c128_193 = arith.constant 128 : index
    %c0_194 = arith.constant 0 : index
    %261 = vector.load %arg9[%c128_193, %c0_194] : memref<160x64xbf16, #tpu.memory_space<vmem>>, vector<32x64xbf16>
    %262 = arith.truncf %260 : vector<10x32xf32> to vector<10x32xbf16>
    %cst_195 = arith.constant dense<0.000000e+00> : vector<10x64xf32>
    %263 = tpu.matmul %262, %261, %cst_195 {dimension_numbers = #tpu.dot_dimension_numbers<[1], [0], [0], [1], [0, 0, 1, 1], [], []>} : vector<10x32xbf16>, vector<32x64xbf16>, vector<10x64xf32> -> vector<10x64xf32>
    %264 = arith.addf %259, %263 : vector<10x64xf32>
    %c0_196 = arith.constant 0 : index
    %c0_197 = arith.constant 0 : index
    %265 = vector.load %arg10[%c0_196, %c0_197] : memref<1x64xf32, #tpu.memory_space<vmem>>, vector<1x64xf32>
    %266 = vector.broadcast %265 : vector<1x64xf32> to vector<10x64xf32>
    %267 = arith.addf %264, %266 : vector<10x64xf32>
    %c10 = arith.constant 10 : index
    %c0_198 = arith.constant 0 : index
    %268 = vector.load %arg26[%c10, %c0_198] : memref<20x64xf32, #tpu.memory_space<vmem>>, vector<10x64xf32>
    tpu.vector_store %arg26[%c10, %c0_198], %267 {strides = array<i32>} : memref<20x64xf32, #tpu.memory_space<vmem>>, vector<10x64xf32>,
    %c0_199 = arith.constant 0 : index
    %c0_200 = arith.constant 0 : index
    %269 = vector.load %arg26[%c0_199, %c0_200] : memref<20x64xf32, #tpu.memory_space<vmem>>, vector<20x64xf32>
    %cst_201 = arith.constant dense<0.000000e+00> : vector<64xf32>
    %270 = vector.multi_reduction <add>, %269, %cst_201 [0] : vector<20x64xf32> to vector<64xf32>
    %271 = vector.shape_cast %270 : vector<64xf32> to vector<1x64xf32>
    %cst_202 = arith.constant 5.000000e-02 : f32
    %272 = vector.broadcast %cst_202 : f32 to vector<1x64xf32>
    %273 = arith.mulf %271, %272 : vector<1x64xf32>
    %274 = vector.broadcast %273 : vector<1x64xf32> to vector<20x64xf32>
    %275 = arith.subf %269, %274 : vector<20x64xf32>
    %276 = arith.mulf %275, %275 : vector<20x64xf32>
    %cst_203 = arith.constant dense<0.000000e+00> : vector<64xf32>
    %277 = vector.multi_reduction <add>, %276, %cst_203 [0] : vector<20x64xf32> to vector<64xf32>
    %278 = vector.shape_cast %277 : vector<64xf32> to vector<1x64xf32>
    %cst_204 = arith.constant 5.000000e-02 : f32
    %279 = vector.broadcast %cst_204 : f32 to vector<1x64xf32>
    %280 = arith.mulf %278, %279 : vector<1x64xf32>
    %cst_205 = arith.constant 9.99999974E-6 : f32
    %281 = vector.broadcast %cst_205 : f32 to vector<1x64xf32>
    %282 = arith.addf %280, %281 : vector<1x64xf32>
    %283 = math.rsqrt %282 : vector<1x64xf32>
    %284 = vector.broadcast %283 : vector<1x64xf32> to vector<20x64xf32>
    %285 = arith.mulf %275, %284 : vector<20x64xf32>
    %c0_206 = arith.constant 0 : index
    %c0_207 = arith.constant 0 : index
    %286 = vector.load %arg11[%c0_206, %c0_207] : memref<1x64xf32, #tpu.memory_space<vmem>>, vector<1x64xf32>
    %287 = vector.broadcast %286 : vector<1x64xf32> to vector<20x64xf32>
    %288 = arith.mulf %285, %287 : vector<20x64xf32>
    %c0_208 = arith.constant 0 : index
    %c0_209 = arith.constant 0 : index
    %289 = vector.load %arg12[%c0_208, %c0_209] : memref<1x64xf32, #tpu.memory_space<vmem>>, vector<1x64xf32>
    %290 = vector.broadcast %289 : vector<1x64xf32> to vector<20x64xf32>
    %291 = arith.addf %288, %290 : vector<20x64xf32>
    %cst_210 = arith.constant 0.000000e+00 : f32
    %292 = vector.broadcast %cst_210 : f32 to vector<20x64xf32>
    %293 = arith.maximumf %291, %292 : vector<20x64xf32>
    %c0_211 = arith.constant 0 : index
    %c0_212 = arith.constant 0 : index
    %294 = vector.load %arg26[%c0_211, %c0_212] : memref<20x64xf32, #tpu.memory_space<vmem>>, vector<20x64xf32>
    tpu.vector_store %arg26[%c0_211, %c0_212], %293 {strides = array<i32>} : memref<20x64xf32, #tpu.memory_space<vmem>>, vector<20x64xf32>,
    %cst_213 = arith.constant 0.000000e+00 : f32
    %295 = vector.broadcast %cst_213 : f32 to vector<3x128xf32>
    %c0_214 = arith.constant 0 : index
    %c0_215 = arith.constant 0 : index
    %296 = tpu.strided_load %arg26[%c0_214, %c0_215] {strides = array<i32: 2, 1>} : memref<20x64xf32, #tpu.memory_space<vmem>>, vector<3x64xf32>
    %c0_216 = arith.constant 0 : index
    %c0_217 = arith.constant 0 : index
    %297 = vector.load %arg13[%c0_216, %c0_217] : memref<320x128xbf16, #tpu.memory_space<vmem>>, vector<64x128xbf16>
    %298 = arith.truncf %296 : vector<3x64xf32> to vector<3x64xbf16>
    %cst_218 = arith.constant dense<0.000000e+00> : vector<3x128xf32>
    %299 = tpu.matmul %298, %297, %cst_218 {dimension_numbers = #tpu.dot_dimension_numbers<[1], [0], [0], [1], [0, 0, 1, 1], [], []>} : vector<3x64xbf16>, vector<64x128xbf16>, vector<3x128xf32> -> vector<3x128xf32>
    %300 = arith.addf %295, %299 : vector<3x128xf32>
    %c1_219 = arith.constant 1 : index
    %c0_220 = arith.constant 0 : index
    %301 = tpu.strided_load %arg26[%c1_219, %c0_220] {strides = array<i32: 2, 1>} : memref<20x64xf32, #tpu.memory_space<vmem>>, vector<3x64xf32>
    %c64_221 = arith.constant 64 : index
    %c0_222 = arith.constant 0 : index
    %302 = vector.load %arg13[%c64_221, %c0_222] : memref<320x128xbf16, #tpu.memory_space<vmem>>, vector<64x128xbf16>
    %303 = arith.truncf %301 : vector<3x64xf32> to vector<3x64xbf16>
    %cst_223 = arith.constant dense<0.000000e+00> : vector<3x128xf32>
    %304 = tpu.matmul %303, %302, %cst_223 {dimension_numbers = #tpu.dot_dimension_numbers<[1], [0], [0], [1], [0, 0, 1, 1], [], []>} : vector<3x64xbf16>, vector<64x128xbf16>, vector<3x128xf32> -> vector<3x128xf32>
    %305 = arith.addf %300, %304 : vector<3x128xf32>
    %c2_224 = arith.constant 2 : index
    %c0_225 = arith.constant 0 : index
    %306 = tpu.strided_load %arg26[%c2_224, %c0_225] {strides = array<i32: 2, 1>} : memref<20x64xf32, #tpu.memory_space<vmem>>, vector<3x64xf32>
    %c128_226 = arith.constant 128 : index
    %c0_227 = arith.constant 0 : index
    %307 = vector.load %arg13[%c128_226, %c0_227] : memref<320x128xbf16, #tpu.memory_space<vmem>>, vector<64x128xbf16>
    %308 = arith.truncf %306 : vector<3x64xf32> to vector<3x64xbf16>
    %cst_228 = arith.constant dense<0.000000e+00> : vector<3x128xf32>
    %309 = tpu.matmul %308, %307, %cst_228 {dimension_numbers = #tpu.dot_dimension_numbers<[1], [0], [0], [1], [0, 0, 1, 1], [], []>} : vector<3x64xbf16>, vector<64x128xbf16>, vector<3x128xf32> -> vector<3x128xf32>
    %310 = arith.addf %305, %309 : vector<3x128xf32>
    %c3_229 = arith.constant 3 : index
    %c0_230 = arith.constant 0 : index
    %311 = tpu.strided_load %arg26[%c3_229, %c0_230] {strides = array<i32: 2, 1>} : memref<20x64xf32, #tpu.memory_space<vmem>>, vector<3x64xf32>
    %c192_231 = arith.constant 192 : index
    %c0_232 = arith.constant 0 : index
    %312 = vector.load %arg13[%c192_231, %c0_232] : memref<320x128xbf16, #tpu.memory_space<vmem>>, vector<64x128xbf16>
    %313 = arith.truncf %311 : vector<3x64xf32> to vector<3x64xbf16>
    %cst_233 = arith.constant dense<0.000000e+00> : vector<3x128xf32>
    %314 = tpu.matmul %313, %312, %cst_233 {dimension_numbers = #tpu.dot_dimension_numbers<[1], [0], [0], [1], [0, 0, 1, 1], [], []>} : vector<3x64xbf16>, vector<64x128xbf16>, vector<3x128xf32> -> vector<3x128xf32>
    %315 = arith.addf %310, %314 : vector<3x128xf32>
    %c4_234 = arith.constant 4 : index
    %c0_235 = arith.constant 0 : index
    %316 = tpu.strided_load %arg26[%c4_234, %c0_235] {strides = array<i32: 2, 1>} : memref<20x64xf32, #tpu.memory_space<vmem>>, vector<3x64xf32>
    %c256_236 = arith.constant 256 : index
    %c0_237 = arith.constant 0 : index
    %317 = vector.load %arg13[%c256_236, %c0_237] : memref<320x128xbf16, #tpu.memory_space<vmem>>, vector<64x128xbf16>
    %318 = arith.truncf %316 : vector<3x64xf32> to vector<3x64xbf16>
    %cst_238 = arith.constant dense<0.000000e+00> : vector<3x128xf32>
    %319 = tpu.matmul %318, %317, %cst_238 {dimension_numbers = #tpu.dot_dimension_numbers<[1], [0], [0], [1], [0, 0, 1, 1], [], []>} : vector<3x64xbf16>, vector<64x128xbf16>, vector<3x128xf32> -> vector<3x128xf32>
    %320 = arith.addf %315, %319 : vector<3x128xf32>
    %c0_239 = arith.constant 0 : index
    %c0_240 = arith.constant 0 : index
    %321 = vector.load %arg14[%c0_239, %c0_240] : memref<1x128xf32, #tpu.memory_space<vmem>>, vector<1x128xf32>
    %322 = vector.broadcast %321 : vector<1x128xf32> to vector<3x128xf32>
    %323 = arith.addf %320, %322 : vector<3x128xf32>
    %c0_241 = arith.constant 0 : index
    %c0_242 = arith.constant 0 : index
    %324 = vector.load %arg27[%c0_241, %c0_242] : memref<6x128xf32, #tpu.memory_space<vmem>>, vector<3x128xf32>
    tpu.vector_store %arg27[%c0_241, %c0_242], %323 {strides = array<i32>} : memref<6x128xf32, #tpu.memory_space<vmem>>, vector<3x128xf32>,
    %cst_243 = arith.constant 0.000000e+00 : f32
    %325 = vector.broadcast %cst_243 : f32 to vector<3x128xf32>
    %c10_244 = arith.constant 10 : index
    %c0_245 = arith.constant 0 : index
    %326 = tpu.strided_load %arg26[%c10_244, %c0_245] {strides = array<i32: 2, 1>} : memref<20x64xf32, #tpu.memory_space<vmem>>, vector<3x64xf32>
    %c0_246 = arith.constant 0 : index
    %c0_247 = arith.constant 0 : index
    %327 = vector.load %arg13[%c0_246, %c0_247] : memref<320x128xbf16, #tpu.memory_space<vmem>>, vector<64x128xbf16>
    %328 = arith.truncf %326 : vector<3x64xf32> to vector<3x64xbf16>
    %cst_248 = arith.constant dense<0.000000e+00> : vector<3x128xf32>
    %329 = tpu.matmul %328, %327, %cst_248 {dimension_numbers = #tpu.dot_dimension_numbers<[1], [0], [0], [1], [0, 0, 1, 1], [], []>} : vector<3x64xbf16>, vector<64x128xbf16>, vector<3x128xf32> -> vector<3x128xf32>
    %330 = arith.addf %325, %329 : vector<3x128xf32>
    %c11 = arith.constant 11 : index
    %c0_249 = arith.constant 0 : index
    %331 = tpu.strided_load %arg26[%c11, %c0_249] {strides = array<i32: 2, 1>} : memref<20x64xf32, #tpu.memory_space<vmem>>, vector<3x64xf32>
    %c64_250 = arith.constant 64 : index
    %c0_251 = arith.constant 0 : index
    %332 = vector.load %arg13[%c64_250, %c0_251] : memref<320x128xbf16, #tpu.memory_space<vmem>>, vector<64x128xbf16>
    %333 = arith.truncf %331 : vector<3x64xf32> to vector<3x64xbf16>
    %cst_252 = arith.constant dense<0.000000e+00> : vector<3x128xf32>
    %334 = tpu.matmul %333, %332, %cst_252 {dimension_numbers = #tpu.dot_dimension_numbers<[1], [0], [0], [1], [0, 0, 1, 1], [], []>} : vector<3x64xbf16>, vector<64x128xbf16>, vector<3x128xf32> -> vector<3x128xf32>
    %335 = arith.addf %330, %334 : vector<3x128xf32>
    %c12 = arith.constant 12 : index
    %c0_253 = arith.constant 0 : index
    %336 = tpu.strided_load %arg26[%c12, %c0_253] {strides = array<i32: 2, 1>} : memref<20x64xf32, #tpu.memory_space<vmem>>, vector<3x64xf32>
    %c128_254 = arith.constant 128 : index
    %c0_255 = arith.constant 0 : index
    %337 = vector.load %arg13[%c128_254, %c0_255] : memref<320x128xbf16, #tpu.memory_space<vmem>>, vector<64x128xbf16>
    %338 = arith.truncf %336 : vector<3x64xf32> to vector<3x64xbf16>
    %cst_256 = arith.constant dense<0.000000e+00> : vector<3x128xf32>
    %339 = tpu.matmul %338, %337, %cst_256 {dimension_numbers = #tpu.dot_dimension_numbers<[1], [0], [0], [1], [0, 0, 1, 1], [], []>} : vector<3x64xbf16>, vector<64x128xbf16>, vector<3x128xf32> -> vector<3x128xf32>
    %340 = arith.addf %335, %339 : vector<3x128xf32>
    %c13 = arith.constant 13 : index
    %c0_257 = arith.constant 0 : index
    %341 = tpu.strided_load %arg26[%c13, %c0_257] {strides = array<i32: 2, 1>} : memref<20x64xf32, #tpu.memory_space<vmem>>, vector<3x64xf32>
    %c192_258 = arith.constant 192 : index
    %c0_259 = arith.constant 0 : index
    %342 = vector.load %arg13[%c192_258, %c0_259] : memref<320x128xbf16, #tpu.memory_space<vmem>>, vector<64x128xbf16>
    %343 = arith.truncf %341 : vector<3x64xf32> to vector<3x64xbf16>
    %cst_260 = arith.constant dense<0.000000e+00> : vector<3x128xf32>
    %344 = tpu.matmul %343, %342, %cst_260 {dimension_numbers = #tpu.dot_dimension_numbers<[1], [0], [0], [1], [0, 0, 1, 1], [], []>} : vector<3x64xbf16>, vector<64x128xbf16>, vector<3x128xf32> -> vector<3x128xf32>
    %345 = arith.addf %340, %344 : vector<3x128xf32>
    %c14 = arith.constant 14 : index
    %c0_261 = arith.constant 0 : index
    %346 = tpu.strided_load %arg26[%c14, %c0_261] {strides = array<i32: 2, 1>} : memref<20x64xf32, #tpu.memory_space<vmem>>, vector<3x64xf32>
    %c256_262 = arith.constant 256 : index
    %c0_263 = arith.constant 0 : index
    %347 = vector.load %arg13[%c256_262, %c0_263] : memref<320x128xbf16, #tpu.memory_space<vmem>>, vector<64x128xbf16>
    %348 = arith.truncf %346 : vector<3x64xf32> to vector<3x64xbf16>
    %cst_264 = arith.constant dense<0.000000e+00> : vector<3x128xf32>
    %349 = tpu.matmul %348, %347, %cst_264 {dimension_numbers = #tpu.dot_dimension_numbers<[1], [0], [0], [1], [0, 0, 1, 1], [], []>} : vector<3x64xbf16>, vector<64x128xbf16>, vector<3x128xf32> -> vector<3x128xf32>
    %350 = arith.addf %345, %349 : vector<3x128xf32>
    %c0_265 = arith.constant 0 : index
    %c0_266 = arith.constant 0 : index
    %351 = vector.load %arg14[%c0_265, %c0_266] : memref<1x128xf32, #tpu.memory_space<vmem>>, vector<1x128xf32>
    %352 = vector.broadcast %351 : vector<1x128xf32> to vector<3x128xf32>
    %353 = arith.addf %350, %352 : vector<3x128xf32>
    %c3_267 = arith.constant 3 : index
    %c0_268 = arith.constant 0 : index
    %354 = vector.load %arg27[%c3_267, %c0_268] : memref<6x128xf32, #tpu.memory_space<vmem>>, vector<3x128xf32>
    tpu.vector_store %arg27[%c3_267, %c0_268], %353 {strides = array<i32>} : memref<6x128xf32, #tpu.memory_space<vmem>>, vector<3x128xf32>,
    %c0_269 = arith.constant 0 : index
    %c0_270 = arith.constant 0 : index
    %355 = vector.load %arg27[%c0_269, %c0_270] : memref<6x128xf32, #tpu.memory_space<vmem>>, vector<6x128xf32>
    %cst_271 = arith.constant dense<0.000000e+00> : vector<128xf32>
    %356 = vector.multi_reduction <add>, %355, %cst_271 [0] : vector<6x128xf32> to vector<128xf32>
    %357 = vector.shape_cast %356 : vector<128xf32> to vector<1x128xf32>
    %cst_272 = arith.constant 0.166666672 : f32
    %358 = vector.broadcast %cst_272 : f32 to vector<1x128xf32>
    %359 = arith.mulf %357, %358 : vector<1x128xf32>
    %360 = vector.broadcast %359 : vector<1x128xf32> to vector<6x128xf32>
    %361 = arith.subf %355, %360 : vector<6x128xf32>
    %362 = arith.mulf %361, %361 : vector<6x128xf32>
    %cst_273 = arith.constant dense<0.000000e+00> : vector<128xf32>
    %363 = vector.multi_reduction <add>, %362, %cst_273 [0] : vector<6x128xf32> to vector<128xf32>
    %364 = vector.shape_cast %363 : vector<128xf32> to vector<1x128xf32>
    %cst_274 = arith.constant 0.166666672 : f32
    %365 = vector.broadcast %cst_274 : f32 to vector<1x128xf32>
    %366 = arith.mulf %364, %365 : vector<1x128xf32>
    %cst_275 = arith.constant 9.99999974E-6 : f32
    %367 = vector.broadcast %cst_275 : f32 to vector<1x128xf32>
    %368 = arith.addf %366, %367 : vector<1x128xf32>
    %369 = math.rsqrt %368 : vector<1x128xf32>
    %370 = vector.broadcast %369 : vector<1x128xf32> to vector<6x128xf32>
    %371 = arith.mulf %361, %370 : vector<6x128xf32>
    %c0_276 = arith.constant 0 : index
    %c0_277 = arith.constant 0 : index
    %372 = vector.load %arg15[%c0_276, %c0_277] : memref<1x128xf32, #tpu.memory_space<vmem>>, vector<1x128xf32>
    %373 = vector.broadcast %372 : vector<1x128xf32> to vector<6x128xf32>
    %374 = arith.mulf %371, %373 : vector<6x128xf32>
    %c0_278 = arith.constant 0 : index
    %c0_279 = arith.constant 0 : index
    %375 = vector.load %arg16[%c0_278, %c0_279] : memref<1x128xf32, #tpu.memory_space<vmem>>, vector<1x128xf32>
    %376 = vector.broadcast %375 : vector<1x128xf32> to vector<6x128xf32>
    %377 = arith.addf %374, %376 : vector<6x128xf32>
    %cst_280 = arith.constant 0.000000e+00 : f32
    %378 = vector.broadcast %cst_280 : f32 to vector<6x128xf32>
    %379 = arith.maximumf %377, %378 : vector<6x128xf32>
    %c0_281 = arith.constant 0 : index
    %c0_282 = arith.constant 0 : index
    %380 = vector.load %arg27[%c0_281, %c0_282] : memref<6x128xf32, #tpu.memory_space<vmem>>, vector<6x128xf32>
    tpu.vector_store %arg27[%c0_281, %c0_282], %379 {strides = array<i32>} : memref<6x128xf32, #tpu.memory_space<vmem>>, vector<6x128xf32>,
    %cst_283 = arith.constant 0.000000e+00 : f32
    %381 = vector.broadcast %cst_283 : f32 to vector<1x512xf32>
    %c0_284 = arith.constant 0 : index
    %c0_285 = arith.constant 0 : index
    %382 = vector.load %arg27[%c0_284, %c0_285] : memref<6x128xf32, #tpu.memory_space<vmem>>, vector<1x128xf32>
    %c0_286 = arith.constant 0 : index
    %c0_287 = arith.constant 0 : index
    %383 = vector.load %arg17[%c0_286, %c0_287] : memref<384x512xbf16, #tpu.memory_space<vmem>>, vector<128x512xbf16>
    %384 = arith.truncf %382 : vector<1x128xf32> to vector<1x128xbf16>
    %cst_288 = arith.constant dense<0.000000e+00> : vector<1x512xf32>
    %385 = tpu.matmul %384, %383, %cst_288 {dimension_numbers = #tpu.dot_dimension_numbers<[1], [0], [0], [1], [0, 0, 1, 1], [], []>} : vector<1x128xbf16>, vector<128x512xbf16>, vector<1x512xf32> -> vector<1x512xf32>
    %386 = arith.addf %381, %385 : vector<1x512xf32>
    %c1_289 = arith.constant 1 : index
    %c0_290 = arith.constant 0 : index
    %387 = vector.load %arg27[%c1_289, %c0_290] : memref<6x128xf32, #tpu.memory_space<vmem>>, vector<1x128xf32>
    %c128_291 = arith.constant 128 : index
    %c0_292 = arith.constant 0 : index
    %388 = vector.load %arg17[%c128_291, %c0_292] : memref<384x512xbf16, #tpu.memory_space<vmem>>, vector<128x512xbf16>
    %389 = arith.truncf %387 : vector<1x128xf32> to vector<1x128xbf16>
    %cst_293 = arith.constant dense<0.000000e+00> : vector<1x512xf32>
    %390 = tpu.matmul %389, %388, %cst_293 {dimension_numbers = #tpu.dot_dimension_numbers<[1], [0], [0], [1], [0, 0, 1, 1], [], []>} : vector<1x128xbf16>, vector<128x512xbf16>, vector<1x512xf32> -> vector<1x512xf32>
    %391 = arith.addf %386, %390 : vector<1x512xf32>
    %c2_294 = arith.constant 2 : index
    %c0_295 = arith.constant 0 : index
    %392 = vector.load %arg27[%c2_294, %c0_295] : memref<6x128xf32, #tpu.memory_space<vmem>>, vector<1x128xf32>
    %c256_296 = arith.constant 256 : index
    %c0_297 = arith.constant 0 : index
    %393 = vector.load %arg17[%c256_296, %c0_297] : memref<384x512xbf16, #tpu.memory_space<vmem>>, vector<128x512xbf16>
    %394 = arith.truncf %392 : vector<1x128xf32> to vector<1x128xbf16>
    %cst_298 = arith.constant dense<0.000000e+00> : vector<1x512xf32>
    %395 = tpu.matmul %394, %393, %cst_298 {dimension_numbers = #tpu.dot_dimension_numbers<[1], [0], [0], [1], [0, 0, 1, 1], [], []>} : vector<1x128xbf16>, vector<128x512xbf16>, vector<1x512xf32> -> vector<1x512xf32>
    %396 = arith.addf %391, %395 : vector<1x512xf32>
    %c0_299 = arith.constant 0 : index
    %c0_300 = arith.constant 0 : index
    %397 = vector.load %arg18[%c0_299, %c0_300] : memref<1x512xf32, #tpu.memory_space<vmem>>, vector<1x512xf32>
    %398 = arith.addf %396, %397 : vector<1x512xf32>
    %c0_301 = arith.constant 0 : index
    %c0_302 = arith.constant 0 : index
    %399 = vector.load %arg28[%c0_301, %c0_302] : memref<2x512xf32, #tpu.memory_space<vmem>>, vector<1x512xf32>
    tpu.vector_store %arg28[%c0_301, %c0_302], %398 {strides = array<i32>} : memref<2x512xf32, #tpu.memory_space<vmem>>, vector<1x512xf32>,
    %cst_303 = arith.constant 0.000000e+00 : f32
    %400 = vector.broadcast %cst_303 : f32 to vector<1x512xf32>
    %c3_304 = arith.constant 3 : index
    %c0_305 = arith.constant 0 : index
    %401 = vector.load %arg27[%c3_304, %c0_305] : memref<6x128xf32, #tpu.memory_space<vmem>>, vector<1x128xf32>
    %c0_306 = arith.constant 0 : index
    %c0_307 = arith.constant 0 : index
    %402 = vector.load %arg17[%c0_306, %c0_307] : memref<384x512xbf16, #tpu.memory_space<vmem>>, vector<128x512xbf16>
    %403 = arith.truncf %401 : vector<1x128xf32> to vector<1x128xbf16>
    %cst_308 = arith.constant dense<0.000000e+00> : vector<1x512xf32>
    %404 = tpu.matmul %403, %402, %cst_308 {dimension_numbers = #tpu.dot_dimension_numbers<[1], [0], [0], [1], [0, 0, 1, 1], [], []>} : vector<1x128xbf16>, vector<128x512xbf16>, vector<1x512xf32> -> vector<1x512xf32>
    %405 = arith.addf %400, %404 : vector<1x512xf32>
    %c4_309 = arith.constant 4 : index
    %c0_310 = arith.constant 0 : index
    %406 = vector.load %arg27[%c4_309, %c0_310] : memref<6x128xf32, #tpu.memory_space<vmem>>, vector<1x128xf32>
    %c128_311 = arith.constant 128 : index
    %c0_312 = arith.constant 0 : index
    %407 = vector.load %arg17[%c128_311, %c0_312] : memref<384x512xbf16, #tpu.memory_space<vmem>>, vector<128x512xbf16>
    %408 = arith.truncf %406 : vector<1x128xf32> to vector<1x128xbf16>
    %cst_313 = arith.constant dense<0.000000e+00> : vector<1x512xf32>
    %409 = tpu.matmul %408, %407, %cst_313 {dimension_numbers = #tpu.dot_dimension_numbers<[1], [0], [0], [1], [0, 0, 1, 1], [], []>} : vector<1x128xbf16>, vector<128x512xbf16>, vector<1x512xf32> -> vector<1x512xf32>
    %410 = arith.addf %405, %409 : vector<1x512xf32>
    %c5_314 = arith.constant 5 : index
    %c0_315 = arith.constant 0 : index
    %411 = vector.load %arg27[%c5_314, %c0_315] : memref<6x128xf32, #tpu.memory_space<vmem>>, vector<1x128xf32>
    %c256_316 = arith.constant 256 : index
    %c0_317 = arith.constant 0 : index
    %412 = vector.load %arg17[%c256_316, %c0_317] : memref<384x512xbf16, #tpu.memory_space<vmem>>, vector<128x512xbf16>
    %413 = arith.truncf %411 : vector<1x128xf32> to vector<1x128xbf16>
    %cst_318 = arith.constant dense<0.000000e+00> : vector<1x512xf32>
    %414 = tpu.matmul %413, %412, %cst_318 {dimension_numbers = #tpu.dot_dimension_numbers<[1], [0], [0], [1], [0, 0, 1, 1], [], []>} : vector<1x128xbf16>, vector<128x512xbf16>, vector<1x512xf32> -> vector<1x512xf32>
    %415 = arith.addf %410, %414 : vector<1x512xf32>
    %c0_319 = arith.constant 0 : index
    %c0_320 = arith.constant 0 : index
    %416 = vector.load %arg18[%c0_319, %c0_320] : memref<1x512xf32, #tpu.memory_space<vmem>>, vector<1x512xf32>
    %417 = arith.addf %415, %416 : vector<1x512xf32>
    %c1_321 = arith.constant 1 : index
    %c0_322 = arith.constant 0 : index
    %418 = vector.load %arg28[%c1_321, %c0_322] : memref<2x512xf32, #tpu.memory_space<vmem>>, vector<1x512xf32>
    tpu.vector_store %arg28[%c1_321, %c0_322], %417 {strides = array<i32>} : memref<2x512xf32, #tpu.memory_space<vmem>>, vector<1x512xf32>,
    %c0_323 = arith.constant 0 : index
    %c0_324 = arith.constant 0 : index
    %419 = vector.load %arg28[%c0_323, %c0_324] : memref<2x512xf32, #tpu.memory_space<vmem>>, vector<2x512xf32>
    %cst_325 = arith.constant dense<0.000000e+00> : vector<512xf32>
    %420 = vector.multi_reduction <add>, %419, %cst_325 [0] : vector<2x512xf32> to vector<512xf32>
    %421 = vector.shape_cast %420 : vector<512xf32> to vector<1x512xf32>
    %cst_326 = arith.constant 5.000000e-01 : f32
    %422 = vector.broadcast %cst_326 : f32 to vector<1x512xf32>
    %423 = arith.mulf %421, %422 : vector<1x512xf32>
    %424 = vector.broadcast %423 : vector<1x512xf32> to vector<2x512xf32>
    %425 = arith.subf %419, %424 : vector<2x512xf32>
    %426 = arith.mulf %425, %425 : vector<2x512xf32>
    %cst_327 = arith.constant dense<0.000000e+00> : vector<512xf32>
    %427 = vector.multi_reduction <add>, %426, %cst_327 [0] : vector<2x512xf32> to vector<512xf32>
    %428 = vector.shape_cast %427 : vector<512xf32> to vector<1x512xf32>
    %cst_328 = arith.constant 5.000000e-01 : f32
    %429 = vector.broadcast %cst_328 : f32 to vector<1x512xf32>
    %430 = arith.mulf %428, %429 : vector<1x512xf32>
    %cst_329 = arith.constant 9.99999974E-6 : f32
    %431 = vector.broadcast %cst_329 : f32 to vector<1x512xf32>
    %432 = arith.addf %430, %431 : vector<1x512xf32>
    %433 = math.rsqrt %432 : vector<1x512xf32>
    %434 = vector.broadcast %433 : vector<1x512xf32> to vector<2x512xf32>
    %435 = arith.mulf %425, %434 : vector<2x512xf32>
    %c0_330 = arith.constant 0 : index
    %c0_331 = arith.constant 0 : index
    %436 = vector.load %arg19[%c0_330, %c0_331] : memref<1x512xf32, #tpu.memory_space<vmem>>, vector<1x512xf32>
    %437 = vector.broadcast %436 : vector<1x512xf32> to vector<2x512xf32>
    %438 = arith.mulf %435, %437 : vector<2x512xf32>
    %c0_332 = arith.constant 0 : index
    %c0_333 = arith.constant 0 : index
    %439 = vector.load %arg20[%c0_332, %c0_333] : memref<1x512xf32, #tpu.memory_space<vmem>>, vector<1x512xf32>
    %440 = vector.broadcast %439 : vector<1x512xf32> to vector<2x512xf32>
    %441 = arith.addf %438, %440 : vector<2x512xf32>
    %cst_334 = arith.constant 0.000000e+00 : f32
    %442 = vector.broadcast %cst_334 : f32 to vector<2x512xf32>
    %443 = arith.maximumf %441, %442 : vector<2x512xf32>
    %c0_335 = arith.constant 0 : index
    %c0_336 = arith.constant 0 : index
    %444 = vector.load %arg28[%c0_335, %c0_336] : memref<2x512xf32, #tpu.memory_space<vmem>>, vector<2x512xf32>
    tpu.vector_store %arg28[%c0_335, %c0_336], %443 {strides = array<i32>} : memref<2x512xf32, #tpu.memory_space<vmem>>, vector<2x512xf32>,
    %c0_337 = arith.constant 0 : index
    %c0_338 = arith.constant 0 : index
    %445 = vector.load %arg28[%c0_337, %c0_338] : memref<2x512xf32, #tpu.memory_space<vmem>>, vector<2x512xf32>
    %446 = arith.truncf %445 : vector<2x512xf32> to vector<2x512xbf16>
    %c0_339 = arith.constant 0 : index
    %c0_340 = arith.constant 0 : index
    %447 = vector.load %arg21[%c0_339, %c0_340] : memref<512x64xbf16, #tpu.memory_space<vmem>>, vector<512x64xbf16>
    %cst_341 = arith.constant dense<0.000000e+00> : vector<2x64xf32>
    %448 = tpu.matmul %446, %447, %cst_341 {dimension_numbers = #tpu.dot_dimension_numbers<[1], [0], [0], [1], [0, 0, 1, 1], [], []>} : vector<2x512xbf16>, vector<512x64xbf16>, vector<2x64xf32> -> vector<2x64xf32>
    %c0_342 = arith.constant 0 : index
    %c0_343 = arith.constant 0 : index
    %449 = vector.load %arg22[%c0_342, %c0_343] : memref<1x64xf32, #tpu.memory_space<vmem>>, vector<1x64xf32>
    %450 = vector.broadcast %449 : vector<1x64xf32> to vector<2x64xf32>
    %451 = arith.addf %448, %450 : vector<2x64xf32>
    %c0_344 = arith.constant 0 : index
    %c0_345 = arith.constant 0 : index
    %452 = vector.load %arg23[%c0_344, %c0_345] : memref<2x64xf32, #tpu.memory_space<vmem>>, vector<2x64xf32>
    tpu.vector_store %arg23[%c0_344, %c0_345], %451 {strides = array<i32>} : memref<2x64xf32, #tpu.memory_space<vmem>>, vector<2x64xf32>,
    return
  }
}

</mosaic_0001>

<llo_original>
// kernel: conv_encoder_shar_forward.1
$region0: #{conv_encoder_shar_forward.1}
  #allocation0 [shape = 'u32[]', space=smem, size = 0x4, offset = 0x4, fixed_abs, tag = 'smem constant byte address 0x4 - core index']
  #allocation1 [shape = 'u32[144,128]{1,0:T(1,128)}', space=vmem, size = 0x12000, scoped, tag = 'internal scratch']
  #allocation2 [shape = 'f32[288,32]{1,0:T(8,128)}', space=vmem, size = 0x24000, scoped, tag = 'scratch operand']
  #allocation3 [shape = 'f32[66,32]{1,0:T(8,128)}', space=vmem, size = 0x9000, scoped, tag = 'scratch operand']
  #allocation4 [shape = 'f32[20,64]{1,0:T(8,128)}', space=vmem, size = 0x3000, scoped, tag = 'scratch operand']
  #allocation5 [shape = 'f32[6,128]{1,0:T(8,128)}', space=vmem, size = 0x1000, scoped, tag = 'scratch operand']
  #allocation6 [shape = 'f32[2,512]{1,0:T(2,128)}', space=vmem, size = 0x1000, scoped, tag = 'scratch operand']
  %s0 = inlined_call_operand.vmem [shape: bf16[288,18], index: 0, kind: input, shape index: {}]
  %s1 = inlined_call_operand.vmem [shape: bf16[18,32], index: 1, kind: input, shape index: {}]
  %s2 = inlined_call_operand.vmem [shape: f32[1,32], index: 2, kind: input, shape index: {}]
  %s3 = inlined_call_operand.vmem [shape: f32[1,32], index: 3, kind: input, shape index: {}]
  %s4 = inlined_call_operand.vmem [shape: f32[1,32], index: 4, kind: input, shape index: {}]
  %s5 = inlined_call_operand.vmem [shape: bf16[448,32], index: 5, kind: input, shape index: {}]
  %s6 = inlined_call_operand.vmem [shape: f32[1,32], index: 6, kind: input, shape index: {}]
  %s7 = inlined_call_operand.vmem [shape: f32[1,32], index: 7, kind: input, shape index: {}]
  %s8 = inlined_call_operand.vmem [shape: f32[1,32], index: 8, kind: input, shape index: {}]
  %s9 = inlined_call_operand.vmem [shape: bf16[160,64], index: 9, kind: input, shape index: {}]
  %s10 = inlined_call_operand.vmem [shape: f32[1,64], index: 10, kind: input, shape index: {}]
  %s11 = inlined_call_operand.vmem [shape: f32[1,64], index: 11, kind: input, shape index: {}]
  %s12 = inlined_call_operand.vmem [shape: f32[1,64], index: 12, kind: input, shape index: {}]
  %s13 = inlined_call_operand.vmem [shape: bf16[320,128], index: 13, kind: input, shape index: {}]
  %s14 = inlined_call_operand.vmem [shape: f32[1,128], index: 14, kind: input, shape index: {}]
  %s15 = inlined_call_operand.vmem [shape: f32[1,128], index: 15, kind: input, shape index: {}]
  %s16 = inlined_call_operand.vmem [shape: f32[1,128], index: 16, kind: input, shape index: {}]
  %s17 = inlined_call_operand.vmem [shape: bf16[384,512], index: 17, kind: input, shape index: {}]
  %s18 = inlined_call_operand.vmem [shape: f32[1,512], index: 18, kind: input, shape index: {}]
  %s19 = inlined_call_operand.vmem [shape: f32[1,512], index: 19, kind: input, shape index: {}]
  %s20 = inlined_call_operand.vmem [shape: f32[1,512], index: 20, kind: input, shape index: {}]
  %s21 = inlined_call_operand.vmem [shape: bf16[512,64], index: 21, kind: input, shape index: {}]
  %s22 = inlined_call_operand.vmem [shape: f32[1,64], index: 22, kind: input, shape index: {}]
  %s23 = inlined_call_operand.hbm [shape: f32[2,64], index: 23, kind: output, shape index: {}]
  %s24 = sld [smem:[#allocation0]]
  $region102: #{conv_encoder_shar_forward.1} parent=0
    _
  %s26 = ssub.s32 1, %s24
  %s27 = scalar_select 0, %s26, %s24
  $region1: #{conv_encoder_shar_forward.1} parent=0
    #allocation7 [shape = 'u8[1024]{0}', space=vmem, size = 0x400, scoped, tag = 'output window, operand 0, single buffered']
    #allocation8 [shape = 's32[1]{0}', space=sflag, size = 0x4, scoped, tag = 'scoped memory for conv_encoder_shar_forward.1']
    %28 = vsyncpa [#allocation8], 0
    // Predicated region
    $region2: #{conv_encoder_shar_forward.1} parent=1 // pred_check
      _
    $region3: #{conv_encoder_shar_forward.1} parent=1 // pred_check_branch
      %30 = sbr.rel (0) target = $region5
    $region4: #{conv_encoder_shar_forward.1} parent=1 // pred_region
      _
    $region5: #{conv_encoder_shar_forward.1} parent=1 // pred_fallthru
      _
    // Predicated region
    $region6: #{conv_encoder_shar_forward.1} parent=1 // pred_check
      _
    $region7: #{conv_encoder_shar_forward.1} parent=1 // pred_check_branch
      %32 = sbr.rel (0) target = $region9
    $region8: #{conv_encoder_shar_forward.1} parent=1 // pred_region
      _
    $region9: #{conv_encoder_shar_forward.1} parent=1 // pred_fallthru
      _
    // Predicated region
    $region10: #{conv_encoder_shar_forward.1} parent=1 // pred_check
      _
    $region11: #{conv_encoder_shar_forward.1} parent=1 // pred_check_branch
      %34 = sbr.rel (0) target = $region13
    $region12: #{conv_encoder_shar_forward.1} parent=1 // pred_region
      _
    $region13: #{conv_encoder_shar_forward.1} parent=1 // pred_fallthru
      _
    // Predicated region
    $region14: #{conv_encoder_shar_forward.1} parent=1 // pred_check
      _
    $region15: #{conv_encoder_shar_forward.1} parent=1 // pred_check_branch
      %36 = sbr.rel (0) target = $region17
    $region16: #{conv_encoder_shar_forward.1} parent=1 // pred_region
      _
    $region17: #{conv_encoder_shar_forward.1} parent=1 // pred_fallthru
      _
    // Predicated region
    $region18: #{conv_encoder_shar_forward.1} parent=1 // pred_check
      _
    $region19: #{conv_encoder_shar_forward.1} parent=1 // pred_check_branch
      %38 = sbr.rel (0) target = $region21
    $region20: #{conv_encoder_shar_forward.1} parent=1 // pred_region
      _
    $region21: #{conv_encoder_shar_forward.1} parent=1 // pred_fallthru
      _
    // Predicated region
    $region22: #{conv_encoder_shar_forward.1} parent=1 // pred_check
      _
    $region23: #{conv_encoder_shar_forward.1} parent=1 // pred_check_branch
      %40 = sbr.rel (0) target = $region25
    $region24: #{conv_encoder_shar_forward.1} parent=1 // pred_region
      _
    $region25: #{conv_encoder_shar_forward.1} parent=1 // pred_fallthru
      _
    // Predicated region
    $region26: #{conv_encoder_shar_forward.1} parent=1 // pred_check
      _
    $region27: #{conv_encoder_shar_forward.1} parent=1 // pred_check_branch
      %42 = sbr.rel (0) target = $region29
    $region28: #{conv_encoder_shar_forward.1} parent=1 // pred_region
      _
    $region29: #{conv_encoder_shar_forward.1} parent=1 // pred_fallthru
      _
    // Predicated region
    $region30: #{conv_encoder_shar_forward.1} parent=1 // pred_check
      _
    $region31: #{conv_encoder_shar_forward.1} parent=1 // pred_check_branch
      %44 = sbr.rel (0) target = $region33
    $region32: #{conv_encoder_shar_forward.1} parent=1 // pred_region
      _
    $region33: #{conv_encoder_shar_forward.1} parent=1 // pred_fallthru
      _
    // Predicated region
    $region34: #{conv_encoder_shar_forward.1} parent=1 // pred_check
      _
    $region35: #{conv_encoder_shar_forward.1} parent=1 // pred_check_branch
      %46 = sbr.rel (0) target = $region37
    $region36: #{conv_encoder_shar_forward.1} parent=1 // pred_region
      _
    $region37: #{conv_encoder_shar_forward.1} parent=1 // pred_fallthru
      _
    // Predicated region
    $region38: #{conv_encoder_shar_forward.1} parent=1 // pred_check
      _
    $region39: #{conv_encoder_shar_forward.1} parent=1 // pred_check_branch
      %48 = sbr.rel (0) target = $region41
    $region40: #{conv_encoder_shar_forward.1} parent=1 // pred_region
      _
    $region41: #{conv_encoder_shar_forward.1} parent=1 // pred_fallthru
      _
    // Predicated region
    $region42: #{conv_encoder_shar_forward.1} parent=1 // pred_check
      _
    $region43: #{conv_encoder_shar_forward.1} parent=1 // pred_check_branch
      %50 = sbr.rel (0) target = $region45
    $region44: #{conv_encoder_shar_forward.1} parent=1 // pred_region
      _
    $region45: #{conv_encoder_shar_forward.1} parent=1 // pred_fallthru
      _
    // Predicated region
    $region46: #{conv_encoder_shar_forward.1} parent=1 // pred_check
      _
    $region47: #{conv_encoder_shar_forward.1} parent=1 // pred_check_branch
      %52 = sbr.rel (0) target = $region49
    $region48: #{conv_encoder_shar_forward.1} parent=1 // pred_region
      _
    $region49: #{conv_encoder_shar_forward.1} parent=1 // pred_fallthru
      _
    // Predicated region
    $region50: #{conv_encoder_shar_forward.1} parent=1 // pred_check
      _
    $region51: #{conv_encoder_shar_forward.1} parent=1 // pred_check_branch
      %54 = sbr.rel (0) target = $region53
    $region52: #{conv_encoder_shar_forward.1} parent=1 // pred_region
      _
    $region53: #{conv_encoder_shar_forward.1} parent=1 // pred_fallthru
      _
    // Predicated region
    $region54: #{conv_encoder_shar_forward.1} parent=1 // pred_check
      _
    $region55: #{conv_encoder_shar_forward.1} parent=1 // pred_check_branch
      %56 = sbr.rel (0) target = $region57
    $region56: #{conv_encoder_shar_forward.1} parent=1 // pred_region
      _
    $region57: #{conv_encoder_shar_forward.1} parent=1 // pred_fallthru
      _
    // Predicated region
    $region58: #{conv_encoder_shar_forward.1} parent=1 // pred_check
      _
    $region59: #{conv_encoder_shar_forward.1} parent=1 // pred_check_branch
      %58 = sbr.rel (0) target = $region61
    $region60: #{conv_encoder_shar_forward.1} parent=1 // pred_region
      _
    $region61: #{conv_encoder_shar_forward.1} parent=1 // pred_fallthru
      _
    // Predicated region
    $region62: #{conv_encoder_shar_forward.1} parent=1 // pred_check
      _
    $region63: #{conv_encoder_shar_forward.1} parent=1 // pred_check_branch
      %60 = sbr.rel (0) target = $region65
    $region64: #{conv_encoder_shar_forward.1} parent=1 // pred_region
      _
    $region65: #{conv_encoder_shar_forward.1} parent=1 // pred_fallthru
      _
    // Predicated region
    $region66: #{conv_encoder_shar_forward.1} parent=1 // pred_check
      _
    $region67: #{conv_encoder_shar_forward.1} parent=1 // pred_check_branch
      %62 = sbr.rel (0) target = $region69
    $region68: #{conv_encoder_shar_forward.1} parent=1 // pred_region
      _
    $region69: #{conv_encoder_shar_forward.1} parent=1 // pred_fallthru
      _
    // Predicated region
    $region70: #{conv_encoder_shar_forward.1} parent=1 // pred_check
      _
    $region71: #{conv_encoder_shar_forward.1} parent=1 // pred_check_branch
      %64 = sbr.rel (0) target = $region73
    $region72: #{conv_encoder_shar_forward.1} parent=1 // pred_region
      _
    $region73: #{conv_encoder_shar_forward.1} parent=1 // pred_fallthru
      _
    // Predicated region
    $region74: #{conv_encoder_shar_forward.1} parent=1 // pred_check
      _
    $region75: #{conv_encoder_shar_forward.1} parent=1 // pred_check_branch
      %66 = sbr.rel (0) target = $region77
    $region76: #{conv_encoder_shar_forward.1} parent=1 // pred_region
      _
    $region77: #{conv_encoder_shar_forward.1} parent=1 // pred_fallthru
      _
    // Predicated region
    $region78: #{conv_encoder_shar_forward.1} parent=1 // pred_check
      _
    $region79: #{conv_encoder_shar_forward.1} parent=1 // pred_check_branch
      %68 = sbr.rel (0) target = $region81
    $region80: #{conv_encoder_shar_forward.1} parent=1 // pred_region
      _
    $region81: #{conv_encoder_shar_forward.1} parent=1 // pred_fallthru
      _
    // Predicated region
    $region82: #{conv_encoder_shar_forward.1} parent=1 // pred_check
      _
    $region83: #{conv_encoder_shar_forward.1} parent=1 // pred_check_branch
      %70 = sbr.rel (0) target = $region85
    $region84: #{conv_encoder_shar_forward.1} parent=1 // pred_region
      _
    $region85: #{conv_encoder_shar_forward.1} parent=1 // pred_fallthru
      _
    // Predicated region
    $region86: #{conv_encoder_shar_forward.1} parent=1 // pred_check
      _
    $region87: #{conv_encoder_shar_forward.1} parent=1 // pred_check_branch
      %72 = sbr.rel (0) target = $region89
    $region88: #{conv_encoder_shar_forward.1} parent=1 // pred_region
      _
    $region89: #{conv_encoder_shar_forward.1} parent=1 // pred_fallthru
      _
    // Predicated region
    $region90: #{conv_encoder_shar_forward.1} parent=1 // pred_check
      _
    $region91: #{conv_encoder_shar_forward.1} parent=1 // pred_check_branch
      %74 = sbr.rel (0) target = $region93
    $region92: #{conv_encoder_shar_forward.1} parent=1 // pred_region
      _
    $region93: #{conv_encoder_shar_forward.1} parent=1 // pred_fallthru
      _
    %v76 = vld [vmem:[%s0] sm:$0xf]
    %v77 = vld [vmem:[%s0 + $0x4] sm:$0xf]
    %v78 = vld [vmem:[%s0 + $0x8] sm:$0xf]
    %v79 = vld [vmem:[%s0 + $0xc] sm:$0xf]
    %v80 = vld [vmem:[%s0 + $0x10] sm:$0xf]
    %v81 = vld [vmem:[%s0 + $0x14] sm:$0xf]
    %v82 = vld [vmem:[%s0 + $0x18] sm:$0xf]
    %v83 = vld [vmem:[%s0 + $0x1c] sm:$0xf]
    %v84 = vld [vmem:[%s0 + $0x20] sm:$0xf]
    %v85 = vld [vmem:[%s0 + $0x24] sm:$0xf]
    %v86 = vld [vmem:[%s0 + $0x28] sm:$0xf]
    %v87 = vld [vmem:[%s0 + $0x2c] sm:$0xf]
    %v88 = vld [vmem:[%s0 + $0x30] sm:$0xf]
    %v89 = vld [vmem:[%s0 + $0x34] sm:$0xf]
    %v90 = vld [vmem:[%s0 + $0x38] sm:$0xf]
    %v91 = vld [vmem:[%s0 + $0x3c] sm:$0xf]
    %v92 = vld [vmem:[%s0 + $0x40] sm:$0xf]
    %v93 = vld [vmem:[%s0 + $0x44] sm:$0xf]
    %v94 = vld [vmem:[%s0 + $0x48] sm:$0xf]
    %v95 = vld [vmem:[%s0 + $0x4c] sm:$0xf]
    %v96 = vld [vmem:[%s0 + $0x50] sm:$0xf]
    %v97 = vld [vmem:[%s0 + $0x54] sm:$0xf]
    %v98 = vld [vmem:[%s0 + $0x58] sm:$0xf]
    %v99 = vld [vmem:[%s0 + $0x5c] sm:$0xf]
    %v100 = vld [vmem:[%s0 + $0x60] sm:$0xf]
    %v101 = vld [vmem:[%s0 + $0x64] sm:$0xf]
    %v102 = vld [vmem:[%s0 + $0x68] sm:$0xf]
    %v103 = vld [vmem:[%s0 + $0x6c] sm:$0xf]
    %v104 = vld [vmem:[%s0 + $0x70] sm:$0xf]
    %v105 = vld [vmem:[%s0 + $0x74] sm:$0xf]
    %v106 = vld [vmem:[%s0 + $0x78] sm:$0xf]
    %v107 = vld [vmem:[%s0 + $0x7c] sm:$0xf]
    %v108 = vld [vmem:[%s0 + $0x80] sm:$0xf]
    %v109 = vld [vmem:[%s0 + $0x84] sm:$0xf]
    %v110 = vld [vmem:[%s0 + $0x88] sm:$0xf]
    %v111 = vld [vmem:[%s0 + $0x8c] sm:$0xf]
    %v112 = vld [vmem:[%s1] sm:$0xf]
    %v113 = vld [vmem:[%s1 + $0x4] sm:$0xf]
    %v114 = vld [vmem:[%s1 + $0x8] sm:$0x1]
    %v115 = vld [vmem:[%s2] sm:$0x1]
    %v117 = vlaneseq
    %v118 = vshrl.u32 %v117, 7
    %v119 = vsub.s32 0, %v118
    %v120 = vrot.slane %v115, %v119
    %v158 = vunpack.c.l.b16 %v76
    %v159 = vunpack.c.l.b16 %v77
    %v160 = vunpack.c.l.b16 %v78
    %v161 = vunpack.c.l.b16 %v79
    %v162 = vunpack.c.l.b16 %v80
    %v163 = vunpack.c.l.b16 %v81
    %v164 = vunpack.c.l.b16 %v82
    %v165 = vunpack.c.l.b16 %v83
    %v166 = vunpack.c.l.b16 %v84
    %v167 = vunpack.c.l.b16 %v85
    %v168 = vunpack.c.l.b16 %v86
    %v169 = vunpack.c.l.b16 %v87
    %v170 = vunpack.c.l.b16 %v88
    %v171 = vunpack.c.l.b16 %v89
    %v172 = vunpack.c.l.b16 %v90
    %v173 = vunpack.c.l.b16 %v91
    %v174 = vunpack.c.l.b16 %v92
    %v175 = vunpack.c.l.b16 %v93
    %v176 = vunpack.c.l.b16 %v94
    %v177 = vunpack.c.l.b16 %v95
    %v178 = vunpack.c.l.b16 %v96
    %v179 = vunpack.c.l.b16 %v97
    %v180 = vunpack.c.l.b16 %v98
    %v181 = vunpack.c.l.b16 %v99
    %v182 = vunpack.c.l.b16 %v100
    %v183 = vunpack.c.l.b16 %v101
    %v184 = vunpack.c.l.b16 %v102
    %v185 = vunpack.c.l.b16 %v103
    %v186 = vunpack.c.l.b16 %v104
    %v187 = vunpack.c.l.b16 %v105
    %v188 = vunpack.c.l.b16 %v106
    %v189 = vunpack.c.l.b16 %v107
    %v190 = vunpack.c.l.b16 %v108
    %v191 = vunpack.c.l.b16 %v109
    %v192 = vunpack.c.l.b16 %v110
    %v193 = vunpack.c.l.b16 %v111
    %v194 = vpack.c.b16 %v159, %v158
    %v195 = vpack.c.b16 %v161, %v160
    %v196 = vpack.c.b16 %v163, %v162
    %v197 = vpack.c.b16 %v165, %v164
    %v198 = vpack.c.b16 %v167, %v166
    %v199 = vpack.c.b16 %v169, %v168
    %v200 = vpack.c.b16 %v171, %v170
    %v201 = vpack.c.b16 %v173, %v172
    %v202 = vpack.c.b16 %v175, %v174
    %v203 = vpack.c.b16 %v177, %v176
    %v204 = vpack.c.b16 %v179, %v178
    %v205 = vpack.c.b16 %v181, %v180
    %v206 = vpack.c.b16 %v183, %v182
    %v207 = vpack.c.b16 %v185, %v184
    %v208 = vpack.c.b16 %v187, %v186
    %v209 = vpack.c.b16 %v189, %v188
    %v210 = vpack.c.b16 %v191, %v190
    %v211 = vpack.c.b16 %v193, %v192
    %v215 = vunpack.c.l.b16 %v112
    %v216 = vunpack.c.l.b16 %v113
    %v217 = vunpack.c.l.b16 %v114
    %v218 = vpack.c.b16 %v216, %v215
    %v219 = vpack.c.b16 %v217, %v217
    %vm221 = vcmask 146432
    %v223 = vsel %vm221, %v194, 0
    %v226 = vsel %vm221, %v195, 0
    %v229 = vsel %vm221, %v196, 0
    %v232 = vsel %vm221, %v197, 0
    %v235 = vsel %vm221, %v198, 0
    %v238 = vsel %vm221, %v199, 0
    %v241 = vsel %vm221, %v200, 0
    %v244 = vsel %vm221, %v201, 0
    %v247 = vsel %vm221, %v202, 0
    %v250 = vsel %vm221, %v203, 0
    %v253 = vsel %vm221, %v204, 0
    %v256 = vsel %vm221, %v205, 0
    %v259 = vsel %vm221, %v206, 0
    %v262 = vsel %vm221, %v207, 0
    %v265 = vsel %vm221, %v208, 0
    %v268 = vsel %vm221, %v209, 0
    %v271 = vsel %vm221, %v210, 0
    %v274 = vsel %vm221, %v211, 0
    %vm276 = vcmask 1040384
    %v278 = vsel %vm276, %v219, 0
    %280 = vmatprep.subr.bf16.mxu0 0
    %281 = vmatpush1.bf16.msra.mxu0 %v218
    %282 = vmatprep.subr.bf16.mxu0 0
    %283 = vmatpush1.bf16.msra.mxu0 %v278
    %284 = vmatprep.subr.bf16.mxu0 0
    %285 = vmatpush1.bf16.msra.mxu0 0
    %286 = vmatprep.subr.bf16.mxu0 0
    %287 = vmatpush1.bf16.msra.mxu0 0
    %288 = vmatprep.subr.bf16.mxu0 0
    %289 = vmatpush1.bf16.msra.mxu0 0
    %290 = vmatprep.subr.bf16.mxu0 0
    %291 = vmatpush1.bf16.msra.mxu0 0
    %292 = vmatprep.subr.bf16.mxu0 0
    %293 = vmatpush1.bf16.msra.mxu0 0
    %294 = vmatprep.subr.bf16.mxu0 0
    %295 = vmatpush1.bf16.msra.mxu0 0
    %296 = vmatprep.subr.bf16.mxu0 0
    %297 = vmatpush1.bf16.msra.mxu0 0
    %298 = vmatprep.subr.bf16.mxu0 0
    %299 = vmatpush1.bf16.msra.mxu0 0
    %300 = vmatprep.subr.bf16.mxu0 0
    %301 = vmatpush1.bf16.msra.mxu0 0
    %302 = vmatprep.subr.bf16.mxu0 0
    %303 = vmatpush1.bf16.msra.mxu0 0
    %304 = vmatprep.subr.bf16.mxu0 0
    %305 = vmatpush1.bf16.msra.mxu0 0
    %306 = vmatprep.subr.bf16.mxu0 0
    %307 = vmatpush1.bf16.msra.mxu0 0
    %308 = vmatprep.subr.bf16.mxu0 0
    %309 = vmatpush1.bf16.msra.mxu0 0
    %310 = vmatprep.subr.bf16.mxu0 0
    %311 = vmatpush1.bf16.msra.mxu0 0
    %312 = vmatprep.mubr.bf16.mxu0 0
    %313 = vmatmul.mubr.bf16.gmra.mrb[0].mxu0 %v223
    %v314 = vpop.f32.mrb[0].mxu0
    %v315 = vadd.f32 %v120, %v314
    %v316 = vpop.f32.mrb[0].mxu0
    %v317 = vpop.f32.mrb[0].mxu0
    %v318 = vadd.f32 %v120, %v317
    %v319 = vpop.f32.mrb[0].mxu0
    %320 = vmatprep.mubr.bf16.mxu0 0
    %321 = vmatmul.mubr.bf16.gmra.mrb[0].mxu0 %v226
    %v322 = vpop.f32.mrb[0].mxu0
    %v323 = vadd.f32 %v120, %v322
    %v324 = vpop.f32.mrb[0].mxu0
    %v325 = vpop.f32.mrb[0].mxu0
    %v326 = vadd.f32 %v120, %v325
    %v327 = vpop.f32.mrb[0].mxu0
    %328 = vmatprep.mubr.bf16.mxu0 0
    %329 = vmatmul.mubr.bf16.gmra.mrb[0].mxu0 %v229
    %v330 = vpop.f32.mrb[0].mxu0
    %v331 = vadd.f32 %v120, %v330
    %v332 = vpop.f32.mrb[0].mxu0
    %v333 = vpop.f32.mrb[0].mxu0
    %v334 = vadd.f32 %v120, %v333
    %v335 = vpop.f32.mrb[0].mxu0
    %336 = vmatprep.mubr.bf16.mxu0 0
    %337 = vmatmul.mubr.bf16.gmra.mrb[0].mxu0 %v232
    %v338 = vpop.f32.mrb[0].mxu0
    %v339 = vadd.f32 %v120, %v338
    %v340 = vpop.f32.mrb[0].mxu0
    %v341 = vpop.f32.mrb[0].mxu0
    %v342 = vadd.f32 %v120, %v341
    %v343 = vpop.f32.mrb[0].mxu0
    %344 = vmatprep.mubr.bf16.mxu0 0
    %345 = vmatmul.mubr.bf16.gmra.mrb[0].mxu0 %v235
    %v346 = vpop.f32.mrb[0].mxu0
    %v347 = vadd.f32 %v120, %v346
    %v348 = vpop.f32.mrb[0].mxu0
    %v349 = vpop.f32.mrb[0].mxu0
    %v350 = vadd.f32 %v120, %v349
    %v351 = vpop.f32.mrb[0].mxu0
    %352 = vmatprep.mubr.bf16.mxu0 0
    %353 = vmatmul.mubr.bf16.gmra.mrb[0].mxu0 %v238
    %v354 = vpop.f32.mrb[0].mxu0
    %v355 = vadd.f32 %v120, %v354
    %v356 = vpop.f32.mrb[0].mxu0
    %v357 = vpop.f32.mrb[0].mxu0
    %v358 = vadd.f32 %v120, %v357
    %v359 = vpop.f32.mrb[0].mxu0
    %360 = vmatprep.mubr.bf16.mxu0 0
    %361 = vmatmul.mubr.bf16.gmra.mrb[0].mxu0 %v241
    %v362 = vpop.f32.mrb[0].mxu0
    %v363 = vadd.f32 %v120, %v362
    %v364 = vpop.f32.mrb[0].mxu0
    %v365 = vpop.f32.mrb[0].mxu0
    %v366 = vadd.f32 %v120, %v365
    %v367 = vpop.f32.mrb[0].mxu0
    %368 = vmatprep.mubr.bf16.mxu0 0
    %369 = vmatmul.mubr.bf16.gmra.mrb[0].mxu0 %v244
    %v370 = vpop.f32.mrb[0].mxu0
    %v371 = vadd.f32 %v120, %v370
    %v372 = vpop.f32.mrb[0].mxu0
    %v373 = vpop.f32.mrb[0].mxu0
    %v374 = vadd.f32 %v120, %v373
    %v375 = vpop.f32.mrb[0].mxu0
    %376 = vmatprep.mubr.bf16.mxu0 0
    %377 = vmatmul.mubr.bf16.gmra.mrb[0].mxu0 %v247
    %v378 = vpop.f32.mrb[0].mxu0
    %v379 = vadd.f32 %v120, %v378
    %v380 = vpop.f32.mrb[0].mxu0
    %v381 = vpop.f32.mrb[0].mxu0
    %v382 = vadd.f32 %v120, %v381
    %v383 = vpop.f32.mrb[0].mxu0
    %384 = vmatprep.mubr.bf16.mxu0 0
    %385 = vmatmul.mubr.bf16.gmra.mrb[0].mxu0 %v250
    %v386 = vpop.f32.mrb[0].mxu0
    %v387 = vadd.f32 %v120, %v386
    %v388 = vpop.f32.mrb[0].mxu0
    %v389 = vpop.f32.mrb[0].mxu0
    %v390 = vadd.f32 %v120, %v389
    %v391 = vpop.f32.mrb[0].mxu0
    %392 = vmatprep.mubr.bf16.mxu0 0
    %393 = vmatmul.mubr.bf16.gmra.mrb[0].mxu0 %v253
    %v394 = vpop.f32.mrb[0].mxu0
    %v395 = vadd.f32 %v120, %v394
    %v396 = vpop.f32.mrb[0].mxu0
    %v397 = vpop.f32.mrb[0].mxu0
    %v398 = vadd.f32 %v120, %v397
    %v399 = vpop.f32.mrb[0].mxu0
    %400 = vmatprep.mubr.bf16.mxu0 0
    %401 = vmatmul.mubr.bf16.gmra.mrb[0].mxu0 %v256
    %v402 = vpop.f32.mrb[0].mxu0
    %v403 = vadd.f32 %v120, %v402
    %v404 = vpop.f32.mrb[0].mxu0
    %v405 = vpop.f32.mrb[0].mxu0
    %v406 = vadd.f32 %v120, %v405
    %v407 = vpop.f32.mrb[0].mxu0
    %408 = vmatprep.mubr.bf16.mxu0 0
    %409 = vmatmul.mubr.bf16.gmra.mrb[0].mxu0 %v259
    %v410 = vpop.f32.mrb[0].mxu0
    %v411 = vadd.f32 %v120, %v410
    %v412 = vpop.f32.mrb[0].mxu0
    %v413 = vpop.f32.mrb[0].mxu0
    %v414 = vadd.f32 %v120, %v413
    %v415 = vpop.f32.mrb[0].mxu0
    %416 = vmatprep.mubr.bf16.mxu0 0
    %417 = vmatmul.mubr.bf16.gmra.mrb[0].mxu0 %v262
    %v418 = vpop.f32.mrb[0].mxu0
    %v419 = vadd.f32 %v120, %v418
    %v420 = vpop.f32.mrb[0].mxu0
    %v421 = vpop.f32.mrb[0].mxu0
    %v422 = vadd.f32 %v120, %v421
    %v423 = vpop.f32.mrb[0].mxu0
    %424 = vmatprep.mubr.bf16.mxu0 0
    %425 = vmatmul.mubr.bf16.gmra.mrb[0].mxu0 %v265
    %v426 = vpop.f32.mrb[0].mxu0
    %v427 = vadd.f32 %v120, %v426
    %v428 = vpop.f32.mrb[0].mxu0
    %v429 = vpop.f32.mrb[0].mxu0
    %v430 = vadd.f32 %v120, %v429
    %v431 = vpop.f32.mrb[0].mxu0
    %432 = vmatprep.mubr.bf16.mxu0 0
    %433 = vmatmul.mubr.bf16.gmra.mrb[0].mxu0 %v268
    %v434 = vpop.f32.mrb[0].mxu0
    %v435 = vadd.f32 %v120, %v434
    %v436 = vpop.f32.mrb[0].mxu0
    %v437 = vpop.f32.mrb[0].mxu0
    %v438 = vadd.f32 %v120, %v437
    %v439 = vpop.f32.mrb[0].mxu0
    %440 = vmatprep.mubr.bf16.mxu0 0
    %441 = vmatmul.mubr.bf16.gmra.mrb[0].mxu0 %v271
    %v442 = vpop.f32.mrb[0].mxu0
    %v443 = vadd.f32 %v120, %v442
    %v444 = vpop.f32.mrb[0].mxu0
    %v445 = vpop.f32.mrb[0].mxu0
    %v446 = vadd.f32 %v120, %v445
    %v447 = vpop.f32.mrb[0].mxu0
    %448 = vmatprep.mubr.bf16.mxu0 0
    %449 = vmatmul.mubr.bf16.gmra.mrb[0].mxu0 %v274
    %v450 = vpop.f32.mrb[0].mxu0
    %v451 = vadd.f32 %v120, %v450
    %v452 = vpop.f32.mrb[0].mxu0
    %v453 = vpop.f32.mrb[0].mxu0
    %v454 = vadd.f32 %v120, %v453
    %v455 = vpop.f32.mrb[0].mxu0
    %456 = vdwg.mxu0
    %vm457 = vcmask 261120
    %458 = vst.msk [vmem:[#allocation2] sm:$0xff] %vm457, %v315
    %459 = vst.msk [vmem:[#allocation2 + $0x8] sm:$0xff] %vm457, %v318
    %460 = vst.msk [vmem:[#allocation2 + $0x10] sm:$0xff] %vm457, %v323
    %461 = vst.msk [vmem:[#allocation2 + $0x18] sm:$0xff] %vm457, %v326
    %462 = vst.msk [vmem:[#allocation2 + $0x20] sm:$0xff] %vm457, %v331
    %463 = vst.msk [vmem:[#allocation2 + $0x28] sm:$0xff] %vm457, %v334
    %464 = vst.msk [vmem:[#allocation2 + $0x30] sm:$0xff] %vm457, %v339
    %465 = vst.msk [vmem:[#allocation2 + $0x38] sm:$0xff] %vm457, %v342
    %466 = vst.msk [vmem:[#allocation2 + $0x40] sm:$0xff] %vm457, %v347
    %467 = vst.msk [vmem:[#allocation2 + $0x48] sm:$0xff] %vm457, %v350
    %468 = vst.msk [vmem:[#allocation2 + $0x50] sm:$0xff] %vm457, %v355
    %469 = vst.msk [vmem:[#allocation2 + $0x58] sm:$0xff] %vm457, %v358
    %470 = vst.msk [vmem:[#allocation2 + $0x60] sm:$0xff] %vm457, %v363
    %471 = vst.msk [vmem:[#allocation2 + $0x68] sm:$0xff] %vm457, %v366
    %472 = vst.msk [vmem:[#allocation2 + $0x70] sm:$0xff] %vm457, %v371
    %473 = vst.msk [vmem:[#allocation2 + $0x78] sm:$0xff] %vm457, %v374
    %474 = vst.msk [vmem:[#allocation2 + $0x80] sm:$0xff] %vm457, %v379
    %475 = vst.msk [vmem:[#allocation2 + $0x88] sm:$0xff] %vm457, %v382
    %476 = vst.msk [vmem:[#allocation2 + $0x90] sm:$0xff] %vm457, %v387
    %477 = vst.msk [vmem:[#allocation2 + $0x98] sm:$0xff] %vm457, %v390
    %478 = vst.msk [vmem:[#allocation2 + $0xa0] sm:$0xff] %vm457, %v395
    %479 = vst.msk [vmem:[#allocation2 + $0xa8] sm:$0xff] %vm457, %v398
    %480 = vst.msk [vmem:[#allocation2 + $0xb0] sm:$0xff] %vm457, %v403
    %481 = vst.msk [vmem:[#allocation2 + $0xb8] sm:$0xff] %vm457, %v406
    %482 = vst.msk [vmem:[#allocation2 + $0xc0] sm:$0xff] %vm457, %v411
    %483 = vst.msk [vmem:[#allocation2 + $0xc8] sm:$0xff] %vm457, %v414
    %484 = vst.msk [vmem:[#allocation2 + $0xd0] sm:$0xff] %vm457, %v419
    %485 = vst.msk [vmem:[#allocation2 + $0xd8] sm:$0xff] %vm457, %v422
    %486 = vst.msk [vmem:[#allocation2 + $0xe0] sm:$0xff] %vm457, %v427
    %487 = vst.msk [vmem:[#allocation2 + $0xe8] sm:$0xff] %vm457, %v430
    %488 = vst.msk [vmem:[#allocation2 + $0xf0] sm:$0xff] %vm457, %v435
    %489 = vst.msk [vmem:[#allocation2 + $0xf8] sm:$0xff] %vm457, %v438
    %490 = vst.msk [vmem:[#allocation2 + $0x100] sm:$0xff] %vm457, %v443
    %491 = vst.msk [vmem:[#allocation2 + $0x108] sm:$0xff] %vm457, %v446
    %492 = vst.msk [vmem:[#allocation2 + $0x110] sm:$0xff] %vm457, %v451
    %493 = vst.msk [vmem:[#allocation2 + $0x118] sm:$0xff] %vm457, %v454
    %v494 = vld [vmem:[#allocation2] sm:$0xff]
    %v495 = vld [vmem:[#allocation2 + $0x8] sm:$0xff]
    %v496 = vld [vmem:[#allocation2 + $0x10] sm:$0xff]
    %v497 = vld [vmem:[#allocation2 + $0x18] sm:$0xff]
    %v498 = vld [vmem:[#allocation2 + $0x20] sm:$0xff]
    %v499 = vld [vmem:[#allocation2 + $0x28] sm:$0xff]
    %v500 = vld [vmem:[#allocation2 + $0x30] sm:$0xff]
    %v501 = vld [vmem:[#allocation2 + $0x38] sm:$0xff]
    %v502 = vld [vmem:[#allocation2 + $0x40] sm:$0xff]
    %v503 = vld [vmem:[#allocation2 + $0x48] sm:$0xff]
    %v504 = vld [vmem:[#allocation2 + $0x50] sm:$0xff]
    %v505 = vld [vmem:[#allocation2 + $0x58] sm:$0xff]
    %v506 = vld [vmem:[#allocation2 + $0x60] sm:$0xff]
    %v507 = vld [vmem:[#allocation2 + $0x68] sm:$0xff]
    %v508 = vld [vmem:[#allocation2 + $0x70] sm:$0xff]
    %v509 = vld [vmem:[#allocation2 + $0x78] sm:$0xff]
    %v510 = vld [vmem:[#allocation2 + $0x80] sm:$0xff]
    %v511 = vld [vmem:[#allocation2 + $0x88] sm:$0xff]
    %v512 = vld [vmem:[#allocation2 + $0x90] sm:$0xff]
    %v513 = vld [vmem:[#allocation2 + $0x98] sm:$0xff]
    %v514 = vld [vmem:[#allocation2 + $0xa0] sm:$0xff]
    %v515 = vld [vmem:[#allocation2 + $0xa8] sm:$0xff]
    %v516 = vld [vmem:[#allocation2 + $0xb0] sm:$0xff]
    %v517 = vld [vmem:[#allocation2 + $0xb8] sm:$0xff]
    %v518 = vld [vmem:[#allocation2 + $0xc0] sm:$0xff]
    %v519 = vld [vmem:[#allocation2 + $0xc8] sm:$0xff]
    %v520 = vld [vmem:[#allocation2 + $0xd0] sm:$0xff]
    %v521 = vld [vmem:[#allocation2 + $0xd8] sm:$0xff]
    %v522 = vld [vmem:[#allocation2 + $0xe0] sm:$0xff]
    %v523 = vld [vmem:[#allocation2 + $0xe8] sm:$0xff]
    %v524 = vld [vmem:[#allocation2 + $0xf0] sm:$0xff]
    %v525 = vld [vmem:[#allocation2 + $0xf8] sm:$0xff]
    %v526 = vld [vmem:[#allocation2 + $0x100] sm:$0xff]
    %v527 = vld [vmem:[#allocation2 + $0x108] sm:$0xff]
    %v528 = vld [vmem:[#allocation2 + $0x110] sm:$0xff]
    %v529 = vld [vmem:[#allocation2 + $0x118] sm:$0xff]
    %v530 = vsel %vm457, %v494, 0.0
    %v531 = vsel %vm457, %v495, 0.0
    %v532 = vadd.f32 %v530, %v531
    %v533 = vsel %vm457, %v496, 0.0
    %v534 = vadd.f32 %v532, %v533
    %v535 = vsel %vm457, %v497, 0.0
    %v536 = vadd.f32 %v534, %v535
    %v537 = vsel %vm457, %v498, 0.0
    %v538 = vadd.f32 %v536, %v537
    %v539 = vsel %vm457, %v499, 0.0
    %v540 = vadd.f32 %v538, %v539
    %v541 = vsel %vm457, %v500, 0.0
    %v542 = vadd.f32 %v540, %v541
    %v543 = vsel %vm457, %v501, 0.0
    %v544 = vadd.f32 %v542, %v543
    %v545 = vsel %vm457, %v502, 0.0
    %v546 = vadd.f32 %v544, %v545
    %v547 = vsel %vm457, %v503, 0.0
    %v548 = vadd.f32 %v546, %v547
    %v549 = vsel %vm457, %v504, 0.0
    %v550 = vadd.f32 %v548, %v549
    %v551 = vsel %vm457, %v505, 0.0
    %v552 = vadd.f32 %v550, %v551
    %v553 = vsel %vm457, %v506, 0.0
    %v554 = vadd.f32 %v552, %v553
    %v555 = vsel %vm457, %v507, 0.0
    %v556 = vadd.f32 %v554, %v555
    %v557 = vsel %vm457, %v508, 0.0
    %v558 = vadd.f32 %v556, %v557
    %v559 = vsel %vm457, %v509, 0.0
    %v560 = vadd.f32 %v558, %v559
    %v561 = vsel %vm457, %v510, 0.0
    %v562 = vadd.f32 %v560, %v561
    %v563 = vsel %vm457, %v511, 0.0
    %v564 = vadd.f32 %v562, %v563
    %v565 = vsel %vm457, %v512, 0.0
    %v566 = vadd.f32 %v564, %v565
    %v567 = vsel %vm457, %v513, 0.0
    %v568 = vadd.f32 %v566, %v567
    %v569 = vsel %vm457, %v514, 0.0
    %v570 = vadd.f32 %v568, %v569
    %v571 = vsel %vm457, %v515, 0.0
    %v572 = vadd.f32 %v570, %v571
    %v573 = vsel %vm457, %v516, 0.0
    %v574 = vadd.f32 %v572, %v573
    %v575 = vsel %vm457, %v517, 0.0
    %v576 = vadd.f32 %v574, %v575
    %v577 = vsel %vm457, %v518, 0.0
    %v578 = vadd.f32 %v576, %v577
    %v579 = vsel %vm457, %v519, 0.0
    %v580 = vadd.f32 %v578, %v579
    %v581 = vsel %vm457, %v520, 0.0
    %v582 = vadd.f32 %v580, %v581
    %v583 = vsel %vm457, %v521, 0.0
    %v584 = vadd.f32 %v582, %v583
    %v585 = vsel %vm457, %v522, 0.0
    %v586 = vadd.f32 %v584, %v585
    %v587 = vsel %vm457, %v523, 0.0
    %v588 = vadd.f32 %v586, %v587
    %v589 = vsel %vm457, %v524, 0.0
    %v590 = vadd.f32 %v588, %v589
    %v591 = vsel %vm457, %v525, 0.0
    %v592 = vadd.f32 %v590, %v591
    %v593 = vsel %vm457, %v526, 0.0
    %v594 = vadd.f32 %v592, %v593
    %v595 = vsel %vm457, %v527, 0.0
    %v596 = vadd.f32 %v594, %v595
    %v597 = vsel %vm457, %v528, 0.0
    %v598 = vadd.f32 %v596, %v597
    %v599 = vsel %vm457, %v529, 0.0
    %v600 = vadd.f32 %v598, %v599
    %v601 = vrot.slane %v600, 4
    %v602 = vadd.f32 %v600, %v601
    %v603 = vrot.slane %v602, 2
    %v604 = vadd.f32 %v602, %v603
    %v605 = vrot.slane %v604, 1
    %v606 = vadd.f32 %v604, %v605
    %v607 = vmul.f32 %v606, 0.0034722222
    %v608 = vsub.f32 %v494, %v607
    %v609 = vsub.f32 %v495, %v607
    %v610 = vsub.f32 %v496, %v607
    %v611 = vsub.f32 %v497, %v607
    %v612 = vsub.f32 %v498, %v607
    %v613 = vsub.f32 %v499, %v607
    %v614 = vsub.f32 %v500, %v607
    %v615 = vsub.f32 %v501, %v607
    %v616 = vsub.f32 %v502, %v607
    %v617 = vsub.f32 %v503, %v607
    %v618 = vsub.f32 %v504, %v607
    %v619 = vsub.f32 %v505, %v607
    %v620 = vsub.f32 %v506, %v607
    %v621 = vsub.f32 %v507, %v607
    %v622 = vsub.f32 %v508, %v607
    %v623 = vsub.f32 %v509, %v607
    %v624 = vsub.f32 %v510, %v607
    %v625 = vsub.f32 %v511, %v607
    %v626 = vsub.f32 %v512, %v607
    %v627 = vsub.f32 %v513, %v607
    %v628 = vsub.f32 %v514, %v607
    %v629 = vsub.f32 %v515, %v607
    %v630 = vsub.f32 %v516, %v607
    %v631 = vsub.f32 %v517, %v607
    %v632 = vsub.f32 %v518, %v607
    %v633 = vsub.f32 %v519, %v607
    %v634 = vsub.f32 %v520, %v607
    %v635 = vsub.f32 %v521, %v607
    %v636 = vsub.f32 %v522, %v607
    %v637 = vsub.f32 %v523, %v607
    %v638 = vsub.f32 %v524, %v607
    %v639 = vsub.f32 %v525, %v607
    %v640 = vsub.f32 %v526, %v607
    %v641 = vsub.f32 %v527, %v607
    %v642 = vsub.f32 %v528, %v607
    %v643 = vsub.f32 %v529, %v607
    %v644 = vmul.f32 %v608, %v608
    %v645 = vmul.f32 %v609, %v609
    %v646 = vmul.f32 %v610, %v610
    %v647 = vmul.f32 %v611, %v611
    %v648 = vmul.f32 %v612, %v612
    %v649 = vmul.f32 %v613, %v613
    %v650 = vmul.f32 %v614, %v614
    %v651 = vmul.f32 %v615, %v615
    %v652 = vmul.f32 %v616, %v616
    %v653 = vmul.f32 %v617, %v617
    %v654 = vmul.f32 %v618, %v618
    %v655 = vmul.f32 %v619, %v619
    %v656 = vmul.f32 %v620, %v620
    %v657 = vmul.f32 %v621, %v621
    %v658 = vmul.f32 %v622, %v622
    %v659 = vmul.f32 %v623, %v623
    %v660 = vmul.f32 %v624, %v624
    %v661 = vmul.f32 %v625, %v625
    %v662 = vmul.f32 %v626, %v626
    %v663 = vmul.f32 %v627, %v627
    %v664 = vmul.f32 %v628, %v628
    %v665 = vmul.f32 %v629, %v629
    %v666 = vmul.f32 %v630, %v630
    %v667 = vmul.f32 %v631, %v631
    %v668 = vmul.f32 %v632, %v632
    %v669 = vmul.f32 %v633, %v633
    %v670 = vmul.f32 %v634, %v634
    %v671 = vmul.f32 %v635, %v635
    %v672 = vmul.f32 %v636, %v636
    %v673 = vmul.f32 %v637, %v637
    %v674 = vmul.f32 %v638, %v638
    %v675 = vmul.f32 %v639, %v639
    %v676 = vmul.f32 %v640, %v640
    %v677 = vmul.f32 %v641, %v641
    %v678 = vmul.f32 %v642, %v642
    %v679 = vmul.f32 %v643, %v643
    %v680 = vsel %vm457, %v644, 0.0
    %v681 = vsel %vm457, %v645, 0.0
    %v682 = vadd.f32 %v680, %v681
    %v683 = vsel %vm457, %v646, 0.0
    %v684 = vadd.f32 %v682, %v683
    %v685 = vsel %vm457, %v647, 0.0
    %v686 = vadd.f32 %v684, %v685
    %v687 = vsel %vm457, %v648, 0.0
    %v688 = vadd.f32 %v686, %v687
    %v689 = vsel %vm457, %v649, 0.0
    %v690 = vadd.f32 %v688, %v689
    %v691 = vsel %vm457, %v650, 0.0
    %v692 = vadd.f32 %v690, %v691
    %v693 = vsel %vm457, %v651, 0.0
    %v694 = vadd.f32 %v692, %v693
    %v695 = vsel %vm457, %v652, 0.0
    %v696 = vadd.f32 %v694, %v695
    %v697 = vsel %vm457, %v653, 0.0
    %v698 = vadd.f32 %v696, %v697
    %v699 = vsel %vm457, %v654, 0.0
    %v700 = vadd.f32 %v698, %v699
    %v701 = vsel %vm457, %v655, 0.0
    %v702 = vadd.f32 %v700, %v701
    %v703 = vsel %vm457, %v656, 0.0
    %v704 = vadd.f32 %v702, %v703
    %v705 = vsel %vm457, %v657, 0.0
    %v706 = vadd.f32 %v704, %v705
    %v707 = vsel %vm457, %v658, 0.0
    %v708 = vadd.f32 %v706, %v707
    %v709 = vsel %vm457, %v659, 0.0
    %v710 = vadd.f32 %v708, %v709
    %v711 = vsel %vm457, %v660, 0.0
    %v712 = vadd.f32 %v710, %v711
    %v713 = vsel %vm457, %v661, 0.0
    %v714 = vadd.f32 %v712, %v713
    %v715 = vsel %vm457, %v662, 0.0
    %v716 = vadd.f32 %v714, %v715
    %v717 = vsel %vm457, %v663, 0.0
    %v718 = vadd.f32 %v716, %v717
    %v719 = vsel %vm457, %v664, 0.0
    %v720 = vadd.f32 %v718, %v719
    %v721 = vsel %vm457, %v665, 0.0
    %v722 = vadd.f32 %v720, %v721
    %v723 = vsel %vm457, %v666, 0.0
    %v724 = vadd.f32 %v722, %v723
    %v725 = vsel %vm457, %v667, 0.0
    %v726 = vadd.f32 %v724, %v725
    %v727 = vsel %vm457, %v668, 0.0
    %v728 = vadd.f32 %v726, %v727
    %v729 = vsel %vm457, %v669, 0.0
    %v730 = vadd.f32 %v728, %v729
    %v731 = vsel %vm457, %v670, 0.0
    %v732 = vadd.f32 %v730, %v731
    %v733 = vsel %vm457, %v671, 0.0
    %v734 = vadd.f32 %v732, %v733
    %v735 = vsel %vm457, %v672, 0.0
    %v736 = vadd.f32 %v734, %v735
    %v737 = vsel %vm457, %v673, 0.0
    %v738 = vadd.f32 %v736, %v737
    %v739 = vsel %vm457, %v674, 0.0
    %v740 = vadd.f32 %v738, %v739
    %v741 = vsel %vm457, %v675, 0.0
    %v742 = vadd.f32 %v740, %v741
    %v743 = vsel %vm457, %v676, 0.0
    %v744 = vadd.f32 %v742, %v743
    %v745 = vsel %vm457, %v677, 0.0
    %v746 = vadd.f32 %v744, %v745
    %v747 = vsel %vm457, %v678, 0.0
    %v748 = vadd.f32 %v746, %v747
    %v749 = vsel %vm457, %v679, 0.0
    %v750 = vadd.f32 %v748, %v749
    %v751 = vrot.slane %v750, 4
    %v752 = vadd.f32 %v750, %v751
    %v753 = vrot.slane %v752, 2
    %v754 = vadd.f32 %v752, %v753
    %v755 = vrot.slane %v754, 1
    %v756 = vadd.f32 %v754, %v755
    %v757 = vmul.f32 %v756, 0.0034722222
    %v758 = vadd.f32 %v757, 1e-05
    %v759 = vrsqrt.pop %v758
    %v760 = vmul.f32 %v608, %v759
    %v761 = vmul.f32 %v609, %v759
    %v762 = vmul.f32 %v610, %v759
    %v763 = vmul.f32 %v611, %v759
    %v764 = vmul.f32 %v612, %v759
    %v765 = vmul.f32 %v613, %v759
    %v766 = vmul.f32 %v614, %v759
    %v767 = vmul.f32 %v615, %v759
    %v768 = vmul.f32 %v616, %v759
    %v769 = vmul.f32 %v617, %v759
    %v770 = vmul.f32 %v618, %v759
    %v771 = vmul.f32 %v619, %v759
    %v772 = vmul.f32 %v620, %v759
    %v773 = vmul.f32 %v621, %v759
    %v774 = vmul.f32 %v622, %v759
    %v775 = vmul.f32 %v623, %v759
    %v776 = vmul.f32 %v624, %v759
    %v777 = vmul.f32 %v625, %v759
    %v778 = vmul.f32 %v626, %v759
    %v779 = vmul.f32 %v627, %v759
    %v780 = vmul.f32 %v628, %v759
    %v781 = vmul.f32 %v629, %v759
    %v782 = vmul.f32 %v630, %v759
    %v783 = vmul.f32 %v631, %v759
    %v784 = vmul.f32 %v632, %v759
    %v785 = vmul.f32 %v633, %v759
    %v786 = vmul.f32 %v634, %v759
    %v787 = vmul.f32 %v635, %v759
    %v788 = vmul.f32 %v636, %v759
    %v789 = vmul.f32 %v637, %v759
    %v790 = vmul.f32 %v638, %v759
    %v791 = vmul.f32 %v639, %v759
    %v792 = vmul.f32 %v640, %v759
    %v793 = vmul.f32 %v641, %v759
    %v794 = vmul.f32 %v642, %v759
    %v795 = vmul.f32 %v643, %v759
    %v796 = vld [vmem:[%s3] sm:$0x1]
    %v798 = vlaneseq
    %v799 = vshrl.u32 %v798, 7
    %v800 = vsub.s32 0, %v799
    %v801 = vrot.slane %v796, %v800
    %v803 = vmul.f32 %v760, %v801
    %v804 = vmul.f32 %v761, %v801
    %v805 = vmul.f32 %v762, %v801
    %v806 = vmul.f32 %v763, %v801
    %v807 = vmul.f32 %v764, %v801
    %v808 = vmul.f32 %v765, %v801
    %v809 = vmul.f32 %v766, %v801
    %v810 = vmul.f32 %v767, %v801
    %v811 = vmul.f32 %v768, %v801
    %v812 = vmul.f32 %v769, %v801
    %v813 = vmul.f32 %v770, %v801
    %v814 = vmul.f32 %v771, %v801
    %v815 = vmul.f32 %v772, %v801
    %v816 = vmul.f32 %v773, %v801
    %v817 = vmul.f32 %v774, %v801
    %v818 = vmul.f32 %v775, %v801
    %v819 = vmul.f32 %v776, %v801
    %v820 = vmul.f32 %v777, %v801
    %v821 = vmul.f32 %v778, %v801
    %v822 = vmul.f32 %v779, %v801
    %v823 = vmul.f32 %v780, %v801
    %v824 = vmul.f32 %v781, %v801
    %v825 = vmul.f32 %v782, %v801
    %v826 = vmul.f32 %v783, %v801
    %v827 = vmul.f32 %v784, %v801
    %v828 = vmul.f32 %v785, %v801
    %v829 = vmul.f32 %v786, %v801
    %v830 = vmul.f32 %v787, %v801
    %v831 = vmul.f32 %v788, %v801
    %v832 = vmul.f32 %v789, %v801
    %v833 = vmul.f32 %v790, %v801
    %v834 = vmul.f32 %v791, %v801
    %v835 = vmul.f32 %v792, %v801
    %v836 = vmul.f32 %v793, %v801
    %v837 = vmul.f32 %v794, %v801
    %v838 = vmul.f32 %v795, %v801
    %v839 = vld [vmem:[%s4] sm:$0x1]
    %v841 = vlaneseq
    %v842 = vshrl.u32 %v841, 7
    %v843 = vsub.s32 0, %v842
    %v844 = vrot.slane %v839, %v843
    %v846 = vadd.f32 %v803, %v844
    %v847 = vadd.f32 %v804, %v844
    %v848 = vadd.f32 %v805, %v844
    %v849 = vadd.f32 %v806, %v844
    %v850 = vadd.f32 %v807, %v844
    %v851 = vadd.f32 %v808, %v844
    %v852 = vadd.f32 %v809, %v844
    %v853 = vadd.f32 %v810, %v844
    %v854 = vadd.f32 %v811, %v844
    %v855 = vadd.f32 %v812, %v844
    %v856 = vadd.f32 %v813, %v844
    %v857 = vadd.f32 %v814, %v844
    %v858 = vadd.f32 %v815, %v844
    %v859 = vadd.f32 %v816, %v844
    %v860 = vadd.f32 %v817, %v844
    %v861 = vadd.f32 %v818, %v844
    %v862 = vadd.f32 %v819, %v844
    %v863 = vadd.f32 %v820, %v844
    %v864 = vadd.f32 %v821, %v844
    %v865 = vadd.f32 %v822, %v844
    %v866 = vadd.f32 %v823, %v844
    %v867 = vadd.f32 %v824, %v844
    %v868 = vadd.f32 %v825, %v844
    %v869 = vadd.f32 %v826, %v844
    %v870 = vadd.f32 %v827, %v844
    %v871 = vadd.f32 %v828, %v844
    %v872 = vadd.f32 %v829, %v844
    %v873 = vadd.f32 %v830, %v844
    %v874 = vadd.f32 %v831, %v844
    %v875 = vadd.f32 %v832, %v844
    %v876 = vadd.f32 %v833, %v844
    %v877 = vadd.f32 %v834, %v844
    %v878 = vadd.f32 %v835, %v844
    %v879 = vadd.f32 %v836, %v844
    %v880 = vadd.f32 %v837, %v844
    %v881 = vadd.f32 %v838, %v844
    %v882 = vmax.f32 %v846, 0.0
    %v883 = vmax.f32 %v847, 0.0
    %v884 = vmax.f32 %v848, 0.0
    %v885 = vmax.f32 %v849, 0.0
    %v886 = vmax.f32 %v850, 0.0
    %v887 = vmax.f32 %v851, 0.0
    %v888 = vmax.f32 %v852, 0.0
    %v889 = vmax.f32 %v853, 0.0
    %v890 = vmax.f32 %v854, 0.0
    %v891 = vmax.f32 %v855, 0.0
    %v892 = vmax.f32 %v856, 0.0
    %v893 = vmax.f32 %v857, 0.0
    %v894 = vmax.f32 %v858, 0.0
    %v895 = vmax.f32 %v859, 0.0
    %v896 = vmax.f32 %v860, 0.0
    %v897 = vmax.f32 %v861, 0.0
    %v898 = vmax.f32 %v862, 0.0
    %v899 = vmax.f32 %v863, 0.0
    %v900 = vmax.f32 %v864, 0.0
    %v901 = vmax.f32 %v865, 0.0
    %v902 = vmax.f32 %v866, 0.0
    %v903 = vmax.f32 %v867, 0.0
    %v904 = vmax.f32 %v868, 0.0
    %v905 = vmax.f32 %v869, 0.0
    %v906 = vmax.f32 %v870, 0.0
    %v907 = vmax.f32 %v871, 0.0
    %v908 = vmax.f32 %v872, 0.0
    %v909 = vmax.f32 %v873, 0.0
    %v910 = vmax.f32 %v874, 0.0
    %v911 = vmax.f32 %v875, 0.0
    %v912 = vmax.f32 %v876, 0.0
    %v913 = vmax.f32 %v877, 0.0
    %v914 = vmax.f32 %v878, 0.0
    %v915 = vmax.f32 %v879, 0.0
    %v916 = vmax.f32 %v880, 0.0
    %v917 = vmax.f32 %v881, 0.0
    %918 = vst.msk [vmem:[#allocation2] sm:$0xff] %vm457, %v882
    %919 = vst.msk [vmem:[#allocation2 + $0x8] sm:$0xff] %vm457, %v883
    %920 = vst.msk [vmem:[#allocation2 + $0x10] sm:$0xff] %vm457, %v884
    %921 = vst.msk [vmem:[#allocation2 + $0x18] sm:$0xff] %vm457, %v885
    %922 = vst.msk [vmem:[#allocation2 + $0x20] sm:$0xff] %vm457, %v886
    %923 = vst.msk [vmem:[#allocation2 + $0x28] sm:$0xff] %vm457, %v887
    %924 = vst.msk [vmem:[#allocation2 + $0x30] sm:$0xff] %vm457, %v888
    %925 = vst.msk [vmem:[#allocation2 + $0x38] sm:$0xff] %vm457, %v889
    %926 = vst.msk [vmem:[#allocation2 + $0x40] sm:$0xff] %vm457, %v890
    %927 = vst.msk [vmem:[#allocation2 + $0x48] sm:$0xff] %vm457, %v891
    %928 = vst.msk [vmem:[#allocation2 + $0x50] sm:$0xff] %vm457, %v892
    %929 = vst.msk [vmem:[#allocation2 + $0x58] sm:$0xff] %vm457, %v893
    %930 = vst.msk [vmem:[#allocation2 + $0x60] sm:$0xff] %vm457, %v894
    %931 = vst.msk [vmem:[#allocation2 + $0x68] sm:$0xff] %vm457, %v895
    %932 = vst.msk [vmem:[#allocation2 + $0x70] sm:$0xff] %vm457, %v896
    %933 = vst.msk [vmem:[#allocation2 + $0x78] sm:$0xff] %vm457, %v897
    %934 = vst.msk [vmem:[#allocation2 + $0x80] sm:$0xff] %vm457, %v898
    %935 = vst.msk [vmem:[#allocation2 + $0x88] sm:$0xff] %vm457, %v899
    %936 = vst.msk [vmem:[#allocation2 + $0x90] sm:$0xff] %vm457, %v900
    %937 = vst.msk [vmem:[#allocation2 + $0x98] sm:$0xff] %vm457, %v901
    %938 = vst.msk [vmem:[#allocation2 + $0xa0] sm:$0xff] %vm457, %v902
    %939 = vst.msk [vmem:[#allocation2 + $0xa8] sm:$0xff] %vm457, %v903
    %940 = vst.msk [vmem:[#allocation2 + $0xb0] sm:$0xff] %vm457, %v904
    %941 = vst.msk [vmem:[#allocation2 + $0xb8] sm:$0xff] %vm457, %v905
    %942 = vst.msk [vmem:[#allocation2 + $0xc0] sm:$0xff] %vm457, %v906
    %943 = vst.msk [vmem:[#allocation2 + $0xc8] sm:$0xff] %vm457, %v907
    %944 = vst.msk [vmem:[#allocation2 + $0xd0] sm:$0xff] %vm457, %v908
    %945 = vst.msk [vmem:[#allocation2 + $0xd8] sm:$0xff] %vm457, %v909
    %946 = vst.msk [vmem:[#allocation2 + $0xe0] sm:$0xff] %vm457, %v910
    %947 = vst.msk [vmem:[#allocation2 + $0xe8] sm:$0xff] %vm457, %v911
    %948 = vst.msk [vmem:[#allocation2 + $0xf0] sm:$0xff] %vm457, %v912
    %949 = vst.msk [vmem:[#allocation2 + $0xf8] sm:$0xff] %vm457, %v913
    %950 = vst.msk [vmem:[#allocation2 + $0x100] sm:$0xff] %vm457, %v914
    %951 = vst.msk [vmem:[#allocation2 + $0x108] sm:$0xff] %vm457, %v915
    %952 = vst.msk [vmem:[#allocation2 + $0x110] sm:$0xff] %vm457, %v916
    %953 = vst.msk [vmem:[#allocation2 + $0x118] sm:$0xff] %vm457, %v917
    %v954 = vld [vmem:[#allocation2] ss:$2 sm:$0xff]
    %s955 = scalar_lea.vmem [#allocation2], 16
    %v956 = vld [vmem:[%s955] ss:$2 sm:$0xff]
    %s957 = scalar_lea.vmem [#allocation2], 32
    %v958 = vld [vmem:[%s957] ss:$2 sm:$0xff]
    %s959 = scalar_lea.vmem [#allocation2], 48
    %v960 = vld [vmem:[%s959] ss:$2 sm:$0xff]
    %s961 = scalar_lea.vmem [#allocation2], 64
    %v962 = vld [vmem:[%s961] ss:$2 sm:$0x1]
    %v963 = vld [vmem:[%s5] sm:$0xf]
    %v964 = vld [vmem:[%s5 + $0x4] sm:$0xf]
    %v965 = vld [vmem:[%s5 + $0x8] sm:$0xf]
    %v966 = vld [vmem:[%s5 + $0xc] sm:$0xf]
    %v967 = vpack.c.bf16 %v956, %v954
    %v968 = vpack.c.bf16 %v960, %v958
    %v969 = vpack.c.bf16 %v962, %v962
    %s970 = scalar_lea.vmem [#allocation2], 72
    %v971 = vld [vmem:[%s970] ss:$2 sm:$0xff]
    %s972 = scalar_lea.vmem [#allocation2], 88
    %v973 = vld [vmem:[%s972] ss:$2 sm:$0xff]
    %s974 = scalar_lea.vmem [#allocation2], 104
    %v975 = vld [vmem:[%s974] ss:$2 sm:$0xff]
    %s976 = scalar_lea.vmem [#allocation2], 120
    %v977 = vld [vmem:[%s976] ss:$2 sm:$0xff]
    %s978 = scalar_lea.vmem [#allocation2], 136
    %v979 = vld [vmem:[%s978] ss:$2 sm:$0x1]
    %v980 = vld [vmem:[%s5 + $0x10] sm:$0xf]
    %v981 = vld [vmem:[%s5 + $0x14] sm:$0xf]
    %v982 = vld [vmem:[%s5 + $0x18] sm:$0xf]
    %v983 = vld [vmem:[%s5 + $0x1c] sm:$0xf]
    %v984 = vpack.c.bf16 %v973, %v971
    %v985 = vpack.c.bf16 %v977, %v975
    %v986 = vpack.c.bf16 %v979, %v979
    %v991 = vunpack.c.l.b16 %v980
    %v992 = vunpack.c.l.b16 %v981
    %v993 = vunpack.c.l.b16 %v982
    %v994 = vunpack.c.l.b16 %v983
    %v995 = vpack.c.b16 %v992, %v991
    %v996 = vpack.c.b16 %v994, %v993
    %v1000 = vsel %vm457, %v984, 0
    %v1003 = vsel %vm457, %v985, 0
    %v1006 = vsel %vm457, %v986, 0
    %1008 = vmatprep.subr.bf16.mxu0 0
    %1009 = vmatpush1.bf16.msra.mxu0 %v995
    %1010 = vmatprep.subr.bf16.mxu0 0
    %1011 = vmatpush1.bf16.msra.mxu0 %v996
    %1012 = vmatprep.subr.bf16.mxu0 0
    %1013 = vmatpush1.bf16.msra.mxu0 0
    %1014 = vmatprep.subr.bf16.mxu0 0
    %1015 = vmatpush1.bf16.msra.mxu0 0
    %1016 = vmatprep.subr.bf16.mxu0 0
    %1017 = vmatpush1.bf16.msra.mxu0 0
    %1018 = vmatprep.subr.bf16.mxu0 0
    %1019 = vmatpush1.bf16.msra.mxu0 0
    %1020 = vmatprep.subr.bf16.mxu0 0
    %1021 = vmatpush1.bf16.msra.mxu0 0
    %1022 = vmatprep.subr.bf16.mxu0 0
    %1023 = vmatpush1.bf16.msra.mxu0 0
    %1024 = vmatprep.subr.bf16.mxu0 0
    %1025 = vmatpush1.bf16.msra.mxu0 0
    %1026 = vmatprep.subr.bf16.mxu0 0
    %1027 = vmatpush1.bf16.msra.mxu0 0
    %1028 = vmatprep.subr.bf16.mxu0 0
    %1029 = vmatpush1.bf16.msra.mxu0 0
    %1030 = vmatprep.subr.bf16.mxu0 0
    %1031 = vmatpush1.bf16.msra.mxu0 0
    %1032 = vmatprep.subr.bf16.mxu0 0
    %1033 = vmatpush1.bf16.msra.mxu0 0
    %1034 = vmatprep.subr.bf16.mxu0 0
    %1035 = vmatpush1.bf16.msra.mxu0 0
    %1036 = vmatprep.subr.bf16.mxu0 0
    %1037 = vmatpush1.bf16.msra.mxu0 0
    %1038 = vmatprep.subr.bf16.mxu0 0
    %1039 = vmatpush1.bf16.msra.mxu0 0
    %1040 = vmatprep.mubr.bf16.mxu0 0
    %1041 = vmatmul.mubr.bf16.gmra.mrb[0].mxu0 %v1000
    %v1042 = vpop.f32.mrb[0].mxu0
    %v1043 = vadd.f32 0.0, %v1042
    %v1044 = vpop.f32.mrb[0].mxu0
    %v1045 = vpop.f32.mrb[0].mxu0
    %v1046 = vadd.f32 0.0, %v1045
    %v1047 = vpop.f32.mrb[0].mxu0
    %1048 = vmatprep.mubr.bf16.mxu0 0
    %1049 = vmatmul.mubr.bf16.gmra.mrb[0].mxu0 %v1003
    %v1050 = vpop.f32.mrb[0].mxu0
    %v1051 = vadd.f32 0.0, %v1050
    %v1052 = vpop.f32.mrb[0].mxu0
    %v1053 = vpop.f32.mrb[0].mxu0
    %v1054 = vadd.f32 0.0, %v1053
    %v1055 = vpop.f32.mrb[0].mxu0
    %1056 = vmatprep.mubr.bf16.mxu0 0
    %1057 = vmatmul.mubr.bf16.gmra.mrb[0].mxu0 %v1006
    %v1058 = vpop.f32.mrb[0].mxu0
    %v1059 = vadd.f32 0.0, %v1058
    %v1060 = vpop.f32.mrb[0].mxu0
    %v1061 = vpop.f32.mrb[0].mxu0
    %v1062 = vpop.f32.mrb[0].mxu0
    %1063 = vdwg.mxu0
    %v1068 = vunpack.c.l.b16 %v963
    %v1069 = vunpack.c.l.b16 %v964
    %v1070 = vunpack.c.l.b16 %v965
    %v1071 = vunpack.c.l.b16 %v966
    %v1072 = vpack.c.b16 %v1069, %v1068
    %v1073 = vpack.c.b16 %v1071, %v1070
    %v1077 = vsel %vm457, %v967, 0
    %v1080 = vsel %vm457, %v968, 0
    %v1083 = vsel %vm457, %v969, 0
    %1085 = vmatprep.subr.bf16.mxu0 0
    %1086 = vmatpush1.bf16.msra.mxu0 %v1072
    %1087 = vmatprep.subr.bf16.mxu0 0
    %1088 = vmatpush1.bf16.msra.mxu0 %v1073
    %1089 = vmatprep.subr.bf16.mxu0 0
    %1090 = vmatpush1.bf16.msra.mxu0 0
    %1091 = vmatprep.subr.bf16.mxu0 0
    %1092 = vmatpush1.bf16.msra.mxu0 0
    %1093 = vmatprep.subr.bf16.mxu0 0
    %1094 = vmatpush1.bf16.msra.mxu0 0
    %1095 = vmatprep.subr.bf16.mxu0 0
    %1096 = vmatpush1.bf16.msra.mxu0 0
    %1097 = vmatprep.subr.bf16.mxu0 0
    %1098 = vmatpush1.bf16.msra.mxu0 0
    %1099 = vmatprep.subr.bf16.mxu0 0
    %1100 = vmatpush1.bf16.msra.mxu0 0
    %1101 = vmatprep.subr.bf16.mxu0 0
    %1102 = vmatpush1.bf16.msra.mxu0 0
    %1103 = vmatprep.subr.bf16.mxu0 0
    %1104 = vmatpush1.bf16.msra.mxu0 0
    %1105 = vmatprep.subr.bf16.mxu0 0
    %1106 = vmatpush1.bf16.msra.mxu0 0
    %1107 = vmatprep.subr.bf16.mxu0 0
    %1108 = vmatpush1.bf16.msra.mxu0 0
    %1109 = vmatprep.subr.bf16.mxu0 0
    %1110 = vmatpush1.bf16.msra.mxu0 0
    %1111 = vmatprep.subr.bf16.mxu0 0
    %1112 = vmatpush1.bf16.msra.mxu0 0
    %1113 = vmatprep.subr.bf16.mxu0 0
    %1114 = vmatpush1.bf16.msra.mxu0 0
    %1115 = vmatprep.subr.bf16.mxu0 0
    %1116 = vmatpush1.bf16.msra.mxu0 0
    %1117 = vmatprep.mubr.bf16.mxu0 0
    %1118 = vmatmul.mubr.bf16.gmra.mrb[0].mxu0 %v1077
    %v1119 = vpop.f32.mrb[0].mxu0
    %v1120 = vadd.f32 %v1043, %v1119
    %v1121 = vpop.f32.mrb[0].mxu0
    %v1122 = vpop.f32.mrb[0].mxu0
    %v1123 = vadd.f32 %v1046, %v1122
    %v1124 = vpop.f32.mrb[0].mxu0
    %1125 = vmatprep.mubr.bf16.mxu0 0
    %1126 = vmatmul.mubr.bf16.gmra.mrb[0].mxu0 %v1080
    %v1127 = vpop.f32.mrb[0].mxu0
    %v1128 = vadd.f32 %v1051, %v1127
    %v1129 = vpop.f32.mrb[0].mxu0
    %v1130 = vpop.f32.mrb[0].mxu0
    %v1131 = vadd.f32 %v1054, %v1130
    %v1132 = vpop.f32.mrb[0].mxu0
    %1133 = vmatprep.mubr.bf16.mxu0 0
    %1134 = vmatmul.mubr.bf16.gmra.mrb[0].mxu0 %v1083
    %v1135 = vpop.f32.mrb[0].mxu0
    %v1136 = vadd.f32 %v1059, %v1135
    %v1137 = vpop.f32.mrb[0].mxu0
    %v1138 = vpop.f32.mrb[0].mxu0
    %v1139 = vpop.f32.mrb[0].mxu0
    %1140 = vdwg.mxu0
    %s1141 = scalar_lea.vmem [#allocation2], 1
    %v1142 = vld [vmem:[%s1141] ss:$2 sm:$0xff]
    %s1143 = scalar_lea.vmem [#allocation2], 17
    %v1144 = vld [vmem:[%s1143] ss:$2 sm:$0xff]
    %s1145 = scalar_lea.vmem [#allocation2], 33
    %v1146 = vld [vmem:[%s1145] ss:$2 sm:$0xff]
    %s1147 = scalar_lea.vmem [#allocation2], 49
    %v1148 = vld [vmem:[%s1147] ss:$2 sm:$0xff]
    %s1149 = scalar_lea.vmem [#allocation2], 65
    %v1150 = vld [vmem:[%s1149] ss:$2 sm:$0x1]
    %v1151 = vld [vmem:[%s5 + $0x20] sm:$0xf]
    %v1152 = vld [vmem:[%s5 + $0x24] sm:$0xf]
    %v1153 = vld [vmem:[%s5 + $0x28] sm:$0xf]
    %v1154 = vld [vmem:[%s5 + $0x2c] sm:$0xf]
    %v1155 = vpack.c.bf16 %v1144, %v1142
    %v1156 = vpack.c.bf16 %v1148, %v1146
    %v1157 = vpack.c.bf16 %v1150, %v1150
    %v1162 = vunpack.c.l.b16 %v1151
    %v1163 = vunpack.c.l.b16 %v1152
    %v1164 = vunpack.c.l.b16 %v1153
    %v1165 = vunpack.c.l.b16 %v1154
    %v1166 = vpack.c.b16 %v1163, %v1162
    %v1167 = vpack.c.b16 %v1165, %v1164
    %v1171 = vsel %vm457, %v1155, 0
    %v1174 = vsel %vm457, %v1156, 0
    %v1177 = vsel %vm457, %v1157, 0
    %1179 = vmatprep.subr.bf16.mxu0 0
    %1180 = vmatpush1.bf16.msra.mxu0 %v1166
    %1181 = vmatprep.subr.bf16.mxu0 0
    %1182 = vmatpush1.bf16.msra.mxu0 %v1167
    %1183 = vmatprep.subr.bf16.mxu0 0
    %1184 = vmatpush1.bf16.msra.mxu0 0
    %1185 = vmatprep.subr.bf16.mxu0 0
    %1186 = vmatpush1.bf16.msra.mxu0 0
    %1187 = vmatprep.subr.bf16.mxu0 0
    %1188 = vmatpush1.bf16.msra.mxu0 0
    %1189 = vmatprep.subr.bf16.mxu0 0
    %1190 = vmatpush1.bf16.msra.mxu0 0
    %1191 = vmatprep.subr.bf16.mxu0 0
    %1192 = vmatpush1.bf16.msra.mxu0 0
    %1193 = vmatprep.subr.bf16.mxu0 0
    %1194 = vmatpush1.bf16.msra.mxu0 0
    %1195 = vmatprep.subr.bf16.mxu0 0
    %1196 = vmatpush1.bf16.msra.mxu0 0
    %1197 = vmatprep.subr.bf16.mxu0 0
    %1198 = vmatpush1.bf16.msra.mxu0 0
    %1199 = vmatprep.subr.bf16.mxu0 0
    %1200 = vmatpush1.bf16.msra.mxu0 0
    %1201 = vmatprep.subr.bf16.mxu0 0
    %1202 = vmatpush1.bf16.msra.mxu0 0
    %1203 = vmatprep.subr.bf16.mxu0 0
    %1204 = vmatpush1.bf16.msra.mxu0 0
    %1205 = vmatprep.subr.bf16.mxu0 0
    %1206 = vmatpush1.bf16.msra.mxu0 0
    %1207 = vmatprep.subr.bf16.mxu0 0
    %1208 = vmatpush1.bf16.msra.mxu0 0
    %1209 = vmatprep.subr.bf16.mxu0 0
    %1210 = vmatpush1.bf16.msra.mxu0 0
    %1211 = vmatprep.mubr.bf16.mxu0 0
    %1212 = vmatmul.mubr.bf16.gmra.mrb[0].mxu0 %v1171
    %v1213 = vpop.f32.mrb[0].mxu0
    %v1214 = vadd.f32 0.0, %v1213
    %v1215 = vpop.f32.mrb[0].mxu0
    %v1216 = vpop.f32.mrb[0].mxu0
    %v1217 = vadd.f32 0.0, %v1216
    %v1218 = vpop.f32.mrb[0].mxu0
    %1219 = vmatprep.mubr.bf16.mxu0 0
    %1220 = vmatmul.mubr.bf16.gmra.mrb[0].mxu0 %v1174
    %v1221 = vpop.f32.mrb[0].mxu0
    %v1222 = vadd.f32 0.0, %v1221
    %v1223 = vpop.f32.mrb[0].mxu0
    %v1224 = vpop.f32.mrb[0].mxu0
    %v1225 = vadd.f32 0.0, %v1224
    %v1226 = vpop.f32.mrb[0].mxu0
    %1227 = vmatprep.mubr.bf16.mxu0 0
    %1228 = vmatmul.mubr.bf16.gmra.mrb[0].mxu0 %v1177
    %v1229 = vpop.f32.mrb[0].mxu0
    %v1230 = vadd.f32 0.0, %v1229
    %v1231 = vpop.f32.mrb[0].mxu0
    %v1232 = vpop.f32.mrb[0].mxu0
    %v1233 = vpop.f32.mrb[0].mxu0
    %1234 = vdwg.mxu0
    %v1235 = vadd.f32 %v1120, %v1214
    %v1236 = vadd.f32 %v1123, %v1217
    %v1237 = vadd.f32 %v1128, %v1222
    %v1238 = vadd.f32 %v1131, %v1225
    %v1239 = vadd.f32 %v1136, %v1230
    %s1240 = scalar_lea.vmem [#allocation2], 73
    %v1241 = vld [vmem:[%s1240] ss:$2 sm:$0xff]
    %s1242 = scalar_lea.vmem [#allocation2], 89
    %v1243 = vld [vmem:[%s1242] ss:$2 sm:$0xff]
    %s1244 = scalar_lea.vmem [#allocation2], 105
    %v1245 = vld [vmem:[%s1244] ss:$2 sm:$0xff]
    %s1246 = scalar_lea.vmem [#allocation2], 121
    %v1247 = vld [vmem:[%s1246] ss:$2 sm:$0xff]
    %s1248 = scalar_lea.vmem [#allocation2], 137
    %v1249 = vld [vmem:[%s1248] ss:$2 sm:$0x1]
    %v1250 = vld [vmem:[%s5 + $0x30] sm:$0xf]
    %v1251 = vld [vmem:[%s5 + $0x34] sm:$0xf]
    %v1252 = vld [vmem:[%s5 + $0x38] sm:$0xf]
    %v1253 = vld [vmem:[%s5 + $0x3c] sm:$0xf]
    %v1254 = vpack.c.bf16 %v1243, %v1241
    %v1255 = vpack.c.bf16 %v1247, %v1245
    %v1256 = vpack.c.bf16 %v1249, %v1249
    %v1261 = vunpack.c.l.b16 %v1250
    %v1262 = vunpack.c.l.b16 %v1251
    %v1263 = vunpack.c.l.b16 %v1252
    %v1264 = vunpack.c.l.b16 %v1253
    %v1265 = vpack.c.b16 %v1262, %v1261
    %v1266 = vpack.c.b16 %v1264, %v1263
    %v1270 = vsel %vm457, %v1254, 0
    %v1273 = vsel %vm457, %v1255, 0
    %v1276 = vsel %vm457, %v1256, 0
    %1278 = vmatprep.subr.bf16.mxu0 0
    %1279 = vmatpush1.bf16.msra.mxu0 %v1265
    %1280 = vmatprep.subr.bf16.mxu0 0
    %1281 = vmatpush1.bf16.msra.mxu0 %v1266
    %1282 = vmatprep.subr.bf16.mxu0 0
    %1283 = vmatpush1.bf16.msra.mxu0 0
    %1284 = vmatprep.subr.bf16.mxu0 0
    %1285 = vmatpush1.bf16.msra.mxu0 0
    %1286 = vmatprep.subr.bf16.mxu0 0
    %1287 = vmatpush1.bf16.msra.mxu0 0
    %1288 = vmatprep.subr.bf16.mxu0 0
    %1289 = vmatpush1.bf16.msra.mxu0 0
    %1290 = vmatprep.subr.bf16.mxu0 0
    %1291 = vmatpush1.bf16.msra.mxu0 0
    %1292 = vmatprep.subr.bf16.mxu0 0
    %1293 = vmatpush1.bf16.msra.mxu0 0
    %1294 = vmatprep.subr.bf16.mxu0 0
    %1295 = vmatpush1.bf16.msra.mxu0 0
    %1296 = vmatprep.subr.bf16.mxu0 0
    %1297 = vmatpush1.bf16.msra.mxu0 0
    %1298 = vmatprep.subr.bf16.mxu0 0
    %1299 = vmatpush1.bf16.msra.mxu0 0
    %1300 = vmatprep.subr.bf16.mxu0 0
    %1301 = vmatpush1.bf16.msra.mxu0 0
    %1302 = vmatprep.subr.bf16.mxu0 0
    %1303 = vmatpush1.bf16.msra.mxu0 0
    %1304 = vmatprep.subr.bf16.mxu0 0
    %1305 = vmatpush1.bf16.msra.mxu0 0
    %1306 = vmatprep.subr.bf16.mxu0 0
    %1307 = vmatpush1.bf16.msra.mxu0 0
    %1308 = vmatprep.subr.bf16.mxu0 0
    %1309 = vmatpush1.bf16.msra.mxu0 0
    %1310 = vmatprep.mubr.bf16.mxu0 0
    %1311 = vmatmul.mubr.bf16.gmra.mrb[0].mxu0 %v1270
    %v1312 = vpop.f32.mrb[0].mxu0
    %v1313 = vadd.f32 0.0, %v1312
    %v1314 = vpop.f32.mrb[0].mxu0
    %v1315 = vpop.f32.mrb[0].mxu0
    %v1316 = vadd.f32 0.0, %v1315
    %v1317 = vpop.f32.mrb[0].mxu0
    %1318 = vmatprep.mubr.bf16.mxu0 0
    %1319 = vmatmul.mubr.bf16.gmra.mrb[0].mxu0 %v1273
    %v1320 = vpop.f32.mrb[0].mxu0
    %v1321 = vadd.f32 0.0, %v1320
    %v1322 = vpop.f32.mrb[0].mxu0
    %v1323 = vpop.f32.mrb[0].mxu0
    %v1324 = vadd.f32 0.0, %v1323
    %v1325 = vpop.f32.mrb[0].mxu0
    %1326 = vmatprep.mubr.bf16.mxu0 0
    %1327 = vmatmul.mubr.bf16.gmra.mrb[0].mxu0 %v1276
    %v1328 = vpop.f32.mrb[0].mxu0
    %v1329 = vadd.f32 0.0, %v1328
    %v1330 = vpop.f32.mrb[0].mxu0
    %v1331 = vpop.f32.mrb[0].mxu0
    %v1332 = vpop.f32.mrb[0].mxu0
    %1333 = vdwg.mxu0
    %v1334 = vadd.f32 %v1235, %v1313
    %v1335 = vadd.f32 %v1236, %v1316
    %v1336 = vadd.f32 %v1237, %v1321
    %v1337 = vadd.f32 %v1238, %v1324
    %v1338 = vadd.f32 %v1239, %v1329
    %s1339 = scalar_lea.vmem [#allocation2], 2
    %v1340 = vld [vmem:[%s1339] ss:$2 sm:$0xff]
    %s1341 = scalar_lea.vmem [#allocation2], 18
    %v1342 = vld [vmem:[%s1341] ss:$2 sm:$0xff]
    %s1343 = scalar_lea.vmem [#allocation2], 34
    %v1344 = vld [vmem:[%s1343] ss:$2 sm:$0xff]
    %s1345 = scalar_lea.vmem [#allocation2], 50
    %v1346 = vld [vmem:[%s1345] ss:$2 sm:$0xff]
    %s1347 = scalar_lea.vmem [#allocation2], 66
    %v1348 = vld [vmem:[%s1347] ss:$2 sm:$0x1]
    %v1349 = vld [vmem:[%s5 + $0x40] sm:$0xf]
    %v1350 = vld [vmem:[%s5 + $0x44] sm:$0xf]
    %v1351 = vld [vmem:[%s5 + $0x48] sm:$0xf]
    %v1352 = vld [vmem:[%s5 + $0x4c] sm:$0xf]
    %v1353 = vpack.c.bf16 %v1342, %v1340
    %v1354 = vpack.c.bf16 %v1346, %v1344
    %v1355 = vpack.c.bf16 %v1348, %v1348
    %v1360 = vunpack.c.l.b16 %v1349
    %v1361 = vunpack.c.l.b16 %v1350
    %v1362 = vunpack.c.l.b16 %v1351
    %v1363 = vunpack.c.l.b16 %v1352
    %v1364 = vpack.c.b16 %v1361, %v1360
    %v1365 = vpack.c.b16 %v1363, %v1362
    %v1369 = vsel %vm457, %v1353, 0
    %v1372 = vsel %vm457, %v1354, 0
    %v1375 = vsel %vm457, %v1355, 0
    %1377 = vmatprep.subr.bf16.mxu0 0
    %1378 = vmatpush1.bf16.msra.mxu0 %v1364
    %1379 = vmatprep.subr.bf16.mxu0 0
    %1380 = vmatpush1.bf16.msra.mxu0 %v1365
    %1381 = vmatprep.subr.bf16.mxu0 0
    %1382 = vmatpush1.bf16.msra.mxu0 0
    %1383 = vmatprep.subr.bf16.mxu0 0
    %1384 = vmatpush1.bf16.msra.mxu0 0
    %1385 = vmatprep.subr.bf16.mxu0 0
    %1386 = vmatpush1.bf16.msra.mxu0 0
    %1387 = vmatprep.subr.bf16.mxu0 0
    %1388 = vmatpush1.bf16.msra.mxu0 0
    %1389 = vmatprep.subr.bf16.mxu0 0
    %1390 = vmatpush1.bf16.msra.mxu0 0
    %1391 = vmatprep.subr.bf16.mxu0 0
    %1392 = vmatpush1.bf16.msra.mxu0 0
    %1393 = vmatprep.subr.bf16.mxu0 0
    %1394 = vmatpush1.bf16.msra.mxu0 0
    %1395 = vmatprep.subr.bf16.mxu0 0
    %1396 = vmatpush1.bf16.msra.mxu0 0
    %1397 = vmatprep.subr.bf16.mxu0 0
    %1398 = vmatpush1.bf16.msra.mxu0 0
    %1399 = vmatprep.subr.bf16.mxu0 0
    %1400 = vmatpush1.bf16.msra.mxu0 0
    %1401 = vmatprep.subr.bf16.mxu0 0
    %1402 = vmatpush1.bf16.msra.mxu0 0
    %1403 = vmatprep.subr.bf16.mxu0 0
    %1404 = vmatpush1.bf16.msra.mxu0 0
    %1405 = vmatprep.subr.bf16.mxu0 0
    %1406 = vmatpush1.bf16.msra.mxu0 0
    %1407 = vmatprep.subr.bf16.mxu0 0
    %1408 = vmatpush1.bf16.msra.mxu0 0
    %1409 = vmatprep.mubr.bf16.mxu0 0
    %1410 = vmatmul.mubr.bf16.gmra.mrb[0].mxu0 %v1369
    %v1411 = vpop.f32.mrb[0].mxu0
    %v1412 = vadd.f32 0.0, %v1411
    %v1413 = vpop.f32.mrb[0].mxu0
    %v1414 = vpop.f32.mrb[0].mxu0
    %v1415 = vadd.f32 0.0, %v1414
    %v1416 = vpop.f32.mrb[0].mxu0
    %1417 = vmatprep.mubr.bf16.mxu0 0
    %1418 = vmatmul.mubr.bf16.gmra.mrb[0].mxu0 %v1372
    %v1419 = vpop.f32.mrb[0].mxu0
    %v1420 = vadd.f32 0.0, %v1419
    %v1421 = vpop.f32.mrb[0].mxu0
    %v1422 = vpop.f32.mrb[0].mxu0
    %v1423 = vadd.f32 0.0, %v1422
    %v1424 = vpop.f32.mrb[0].mxu0
    %1425 = vmatprep.mubr.bf16.mxu0 0
    %1426 = vmatmul.mubr.bf16.gmra.mrb[0].mxu0 %v1375
    %v1427 = vpop.f32.mrb[0].mxu0
    %v1428 = vadd.f32 0.0, %v1427
    %v1429 = vpop.f32.mrb[0].mxu0
    %v1430 = vpop.f32.mrb[0].mxu0
    %v1431 = vpop.f32.mrb[0].mxu0
    %1432 = vdwg.mxu0
    %v1433 = vadd.f32 %v1334, %v1412
    %v1434 = vadd.f32 %v1335, %v1415
    %v1435 = vadd.f32 %v1336, %v1420
    %v1436 = vadd.f32 %v1337, %v1423
    %v1437 = vadd.f32 %v1338, %v1428
    %s1438 = scalar_lea.vmem [#allocation2], 74
    %v1439 = vld [vmem:[%s1438] ss:$2 sm:$0xff]
    %s1440 = scalar_lea.vmem [#allocation2], 90
    %v1441 = vld [vmem:[%s1440] ss:$2 sm:$0xff]
    %s1442 = scalar_lea.vmem [#allocation2], 106
    %v1443 = vld [vmem:[%s1442] ss:$2 sm:$0xff]
    %s1444 = scalar_lea.vmem [#allocation2], 122
    %v1445 = vld [vmem:[%s1444] ss:$2 sm:$0xff]
    %s1446 = scalar_lea.vmem [#allocation2], 138
    %v1447 = vld [vmem:[%s1446] ss:$2 sm:$0x1]
    %v1448 = vld [vmem:[%s5 + $0x50] sm:$0xf]
    %v1449 = vld [vmem:[%s5 + $0x54] sm:$0xf]
    %v1450 = vld [vmem:[%s5 + $0x58] sm:$0xf]
    %v1451 = vld [vmem:[%s5 + $0x5c] sm:$0xf]
    %v1452 = vpack.c.bf16 %v1441, %v1439
    %v1453 = vpack.c.bf16 %v1445, %v1443
    %v1454 = vpack.c.bf16 %v1447, %v1447
    %v1459 = vunpack.c.l.b16 %v1448
    %v1460 = vunpack.c.l.b16 %v1449
    %v1461 = vunpack.c.l.b16 %v1450
    %v1462 = vunpack.c.l.b16 %v1451
    %v1463 = vpack.c.b16 %v1460, %v1459
    %v1464 = vpack.c.b16 %v1462, %v1461
    %v1468 = vsel %vm457, %v1452, 0
    %v1471 = vsel %vm457, %v1453, 0
    %v1474 = vsel %vm457, %v1454, 0
    %1476 = vmatprep.subr.bf16.mxu0 0
    %1477 = vmatpush1.bf16.msra.mxu0 %v1463
    %1478 = vmatprep.subr.bf16.mxu0 0
    %1479 = vmatpush1.bf16.msra.mxu0 %v1464
    %1480 = vmatprep.subr.bf16.mxu0 0
    %1481 = vmatpush1.bf16.msra.mxu0 0
    %1482 = vmatprep.subr.bf16.mxu0 0
    %1483 = vmatpush1.bf16.msra.mxu0 0
    %1484 = vmatprep.subr.bf16.mxu0 0
    %1485 = vmatpush1.bf16.msra.mxu0 0
    %1486 = vmatprep.subr.bf16.mxu0 0
    %1487 = vmatpush1.bf16.msra.mxu0 0
    %1488 = vmatprep.subr.bf16.mxu0 0
    %1489 = vmatpush1.bf16.msra.mxu0 0
    %1490 = vmatprep.subr.bf16.mxu0 0
    %1491 = vmatpush1.bf16.msra.mxu0 0
    %1492 = vmatprep.subr.bf16.mxu0 0
    %1493 = vmatpush1.bf16.msra.mxu0 0
    %1494 = vmatprep.subr.bf16.mxu0 0
    %1495 = vmatpush1.bf16.msra.mxu0 0
    %1496 = vmatprep.subr.bf16.mxu0 0
    %1497 = vmatpush1.bf16.msra.mxu0 0
    %1498 = vmatprep.subr.bf16.mxu0 0
    %1499 = vmatpush1.bf16.msra.mxu0 0
    %1500 = vmatprep.subr.bf16.mxu0 0
    %1501 = vmatpush1.bf16.msra.mxu0 0
    %1502 = vmatprep.subr.bf16.mxu0 0
    %1503 = vmatpush1.bf16.msra.mxu0 0
    %1504 = vmatprep.subr.bf16.mxu0 0
    %1505 = vmatpush1.bf16.msra.mxu0 0
    %1506 = vmatprep.subr.bf16.mxu0 0
    %1507 = vmatpush1.bf16.msra.mxu0 0
    %1508 = vmatprep.mubr.bf16.mxu0 0
    %1509 = vmatmul.mubr.bf16.gmra.mrb[0].mxu0 %v1468
    %v1510 = vpop.f32.mrb[0].mxu0
    %v1511 = vadd.f32 0.0, %v1510
    %v1512 = vpop.f32.mrb[0].mxu0
    %v1513 = vpop.f32.mrb[0].mxu0
    %v1514 = vadd.f32 0.0, %v1513
    %v1515 = vpop.f32.mrb[0].mxu0
    %1516 = vmatprep.mubr.bf16.mxu0 0
    %1517 = vmatmul.mubr.bf16.gmra.mrb[0].mxu0 %v1471
    %v1518 = vpop.f32.mrb[0].mxu0
    %v1519 = vadd.f32 0.0, %v1518
    %v1520 = vpop.f32.mrb[0].mxu0
    %v1521 = vpop.f32.mrb[0].mxu0
    %v1522 = vadd.f32 0.0, %v1521
    %v1523 = vpop.f32.mrb[0].mxu0
    %1524 = vmatprep.mubr.bf16.mxu0 0
    %1525 = vmatmul.mubr.bf16.gmra.mrb[0].mxu0 %v1474
    %v1526 = vpop.f32.mrb[0].mxu0
    %v1527 = vadd.f32 0.0, %v1526
    %v1528 = vpop.f32.mrb[0].mxu0
    %v1529 = vpop.f32.mrb[0].mxu0
    %v1530 = vpop.f32.mrb[0].mxu0
    %1531 = vdwg.mxu0
    %v1532 = vadd.f32 %v1433, %v1511
    %v1533 = vadd.f32 %v1434, %v1514
    %v1534 = vadd.f32 %v1435, %v1519
    %v1535 = vadd.f32 %v1436, %v1522
    %v1536 = vadd.f32 %v1437, %v1527
    %s1537 = scalar_lea.vmem [#allocation2], 3
    %v1538 = vld [vmem:[%s1537] ss:$2 sm:$0xff]
    %s1539 = scalar_lea.vmem [#allocation2], 19
    %v1540 = vld [vmem:[%s1539] ss:$2 sm:$0xff]
    %s1541 = scalar_lea.vmem [#allocation2], 35
    %v1542 = vld [vmem:[%s1541] ss:$2 sm:$0xff]
    %s1543 = scalar_lea.vmem [#allocation2], 51
    %v1544 = vld [vmem:[%s1543] ss:$2 sm:$0xff]
    %s1545 = scalar_lea.vmem [#allocation2], 67
    %v1546 = vld [vmem:[%s1545] ss:$2 sm:$0x1]
    %v1547 = vld [vmem:[%s5 + $0x60] sm:$0xf]
    %v1548 = vld [vmem:[%s5 + $0x64] sm:$0xf]
    %v1549 = vld [vmem:[%s5 + $0x68] sm:$0xf]
    %v1550 = vld [vmem:[%s5 + $0x6c] sm:$0xf]
    %v1551 = vpack.c.bf16 %v1540, %v1538
    %v1552 = vpack.c.bf16 %v1544, %v1542
    %v1553 = vpack.c.bf16 %v1546, %v1546
    %v1558 = vunpack.c.l.b16 %v1547
    %v1559 = vunpack.c.l.b16 %v1548
    %v1560 = vunpack.c.l.b16 %v1549
    %v1561 = vunpack.c.l.b16 %v1550
    %v1562 = vpack.c.b16 %v1559, %v1558
    %v1563 = vpack.c.b16 %v1561, %v1560
    %v1567 = vsel %vm457, %v1551, 0
    %v1570 = vsel %vm457, %v1552, 0
    %v1573 = vsel %vm457, %v1553, 0
    %1575 = vmatprep.subr.bf16.mxu0 0
    %1576 = vmatpush1.bf16.msra.mxu0 %v1562
    %1577 = vmatprep.subr.bf16.mxu0 0
    %1578 = vmatpush1.bf16.msra.mxu0 %v1563
    %1579 = vmatprep.subr.bf16.mxu0 0
    %1580 = vmatpush1.bf16.msra.mxu0 0
    %1581 = vmatprep.subr.bf16.mxu0 0
    %1582 = vmatpush1.bf16.msra.mxu0 0
    %1583 = vmatprep.subr.bf16.mxu0 0
    %1584 = vmatpush1.bf16.msra.mxu0 0
    %1585 = vmatprep.subr.bf16.mxu0 0
    %1586 = vmatpush1.bf16.msra.mxu0 0
    %1587 = vmatprep.subr.bf16.mxu0 0
    %1588 = vmatpush1.bf16.msra.mxu0 0
    %1589 = vmatprep.subr.bf16.mxu0 0
    %1590 = vmatpush1.bf16.msra.mxu0 0
    %1591 = vmatprep.subr.bf16.mxu0 0
    %1592 = vmatpush1.bf16.msra.mxu0 0
    %1593 = vmatprep.subr.bf16.mxu0 0
    %1594 = vmatpush1.bf16.msra.mxu0 0
    %1595 = vmatprep.subr.bf16.mxu0 0
    %1596 = vmatpush1.bf16.msra.mxu0 0
    %1597 = vmatprep.subr.bf16.mxu0 0
    %1598 = vmatpush1.bf16.msra.mxu0 0
    %1599 = vmatprep.subr.bf16.mxu0 0
    %1600 = vmatpush1.bf16.msra.mxu0 0
    %1601 = vmatprep.subr.bf16.mxu0 0
    %1602 = vmatpush1.bf16.msra.mxu0 0
    %1603 = vmatprep.subr.bf16.mxu0 0
    %1604 = vmatpush1.bf16.msra.mxu0 0
    %1605 = vmatprep.subr.bf16.mxu0 0
    %1606 = vmatpush1.bf16.msra.mxu0 0
    %1607 = vmatprep.mubr.bf16.mxu0 0
    %1608 = vmatmul.mubr.bf16.gmra.mrb[0].mxu0 %v1567
    %v1609 = vpop.f32.mrb[0].mxu0
    %v1610 = vadd.f32 0.0, %v1609
    %v1611 = vpop.f32.mrb[0].mxu0
    %v1612 = vpop.f32.mrb[0].mxu0
    %v1613 = vadd.f32 0.0, %v1612
    %v1614 = vpop.f32.mrb[0].mxu0
    %1615 = vmatprep.mubr.bf16.mxu0 0
    %1616 = vmatmul.mubr.bf16.gmra.mrb[0].mxu0 %v1570
    %v1617 = vpop.f32.mrb[0].mxu0
    %v1618 = vadd.f32 0.0, %v1617
    %v1619 = vpop.f32.mrb[0].mxu0
    %v1620 = vpop.f32.mrb[0].mxu0
    %v1621 = vadd.f32 0.0, %v1620
    %v1622 = vpop.f32.mrb[0].mxu0
    %1623 = vmatprep.mubr.bf16.mxu0 0
    %1624 = vmatmul.mubr.bf16.gmra.mrb[0].mxu0 %v1573
    %v1625 = vpop.f32.mrb[0].mxu0
    %v1626 = vadd.f32 0.0, %v1625
    %v1627 = vpop.f32.mrb[0].mxu0
    %v1628 = vpop.f32.mrb[0].mxu0
    %v1629 = vpop.f32.mrb[0].mxu0
    %1630 = vdwg.mxu0
    %v1631 = vadd.f32 %v1532, %v1610
    %v1632 = vadd.f32 %v1533, %v1613
    %v1633 = vadd.f32 %v1534, %v1618
    %v1634 = vadd.f32 %v1535, %v1621
    %v1635 = vadd.f32 %v1536, %v1626
    %s1636 = scalar_lea.vmem [#allocation2], 75
    %v1637 = vld [vmem:[%s1636] ss:$2 sm:$0xff]
    %s1638 = scalar_lea.vmem [#allocation2], 91
    %v1639 = vld [vmem:[%s1638] ss:$2 sm:$0xff]
    %s1640 = scalar_lea.vmem [#allocation2], 107
    %v1641 = vld [vmem:[%s1640] ss:$2 sm:$0xff]
    %s1642 = scalar_lea.vmem [#allocation2], 123
    %v1643 = vld [vmem:[%s1642] ss:$2 sm:$0xff]
    %s1644 = scalar_lea.vmem [#allocation2], 139
    %v1645 = vld [vmem:[%s1644] ss:$2 sm:$0x1]
    %v1646 = vld [vmem:[%s5 + $0x70] sm:$0xf]
    %v1647 = vld [vmem:[%s5 + $0x74] sm:$0xf]
    %v1648 = vld [vmem:[%s5 + $0x78] sm:$0xf]
    %v1649 = vld [vmem:[%s5 + $0x7c] sm:$0xf]
    %v1650 = vpack.c.bf16 %v1639, %v1637
    %v1651 = vpack.c.bf16 %v1643, %v1641
    %v1652 = vpack.c.bf16 %v1645, %v1645
    %v1657 = vunpack.c.l.b16 %v1646
    %v1658 = vunpack.c.l.b16 %v1647
    %v1659 = vunpack.c.l.b16 %v1648
    %v1660 = vunpack.c.l.b16 %v1649
    %v1661 = vpack.c.b16 %v1658, %v1657
    %v1662 = vpack.c.b16 %v1660, %v1659
    %v1666 = vsel %vm457, %v1650, 0
    %v1669 = vsel %vm457, %v1651, 0
    %v1672 = vsel %vm457, %v1652, 0
    %1674 = vmatprep.subr.bf16.mxu0 0
    %1675 = vmatpush1.bf16.msra.mxu0 %v1661
    %1676 = vmatprep.subr.bf16.mxu0 0
    %1677 = vmatpush1.bf16.msra.mxu0 %v1662
    %1678 = vmatprep.subr.bf16.mxu0 0
    %1679 = vmatpush1.bf16.msra.mxu0 0
    %1680 = vmatprep.subr.bf16.mxu0 0
    %1681 = vmatpush1.bf16.msra.mxu0 0
    %1682 = vmatprep.subr.bf16.mxu0 0
    %1683 = vmatpush1.bf16.msra.mxu0 0
    %1684 = vmatprep.subr.bf16.mxu0 0
    %1685 = vmatpush1.bf16.msra.mxu0 0
    %1686 = vmatprep.subr.bf16.mxu0 0
    %1687 = vmatpush1.bf16.msra.mxu0 0
    %1688 = vmatprep.subr.bf16.mxu0 0
    %1689 = vmatpush1.bf16.msra.mxu0 0
    %1690 = vmatprep.subr.bf16.mxu0 0
    %1691 = vmatpush1.bf16.msra.mxu0 0
    %1692 = vmatprep.subr.bf16.mxu0 0
    %1693 = vmatpush1.bf16.msra.mxu0 0
    %1694 = vmatprep.subr.bf16.mxu0 0
    %1695 = vmatpush1.bf16.msra.mxu0 0
    %1696 = vmatprep.subr.bf16.mxu0 0
    %1697 = vmatpush1.bf16.msra.mxu0 0
    %1698 = vmatprep.subr.bf16.mxu0 0
    %1699 = vmatpush1.bf16.msra.mxu0 0
    %1700 = vmatprep.subr.bf16.mxu0 0
    %1701 = vmatpush1.bf16.msra.mxu0 0
    %1702 = vmatprep.subr.bf16.mxu0 0
    %1703 = vmatpush1.bf16.msra.mxu0 0
    %1704 = vmatprep.subr.bf16.mxu0 0
    %1705 = vmatpush1.bf16.msra.mxu0 0
    %1706 = vmatprep.mubr.bf16.mxu0 0
    %1707 = vmatmul.mubr.bf16.gmra.mrb[0].mxu0 %v1666
    %v1708 = vpop.f32.mrb[0].mxu0
    %v1709 = vadd.f32 0.0, %v1708
    %v1710 = vpop.f32.mrb[0].mxu0
    %v1711 = vpop.f32.mrb[0].mxu0
    %v1712 = vadd.f32 0.0, %v1711
    %v1713 = vpop.f32.mrb[0].mxu0
    %1714 = vmatprep.mubr.bf16.mxu0 0
    %1715 = vmatmul.mubr.bf16.gmra.mrb[0].mxu0 %v1669
    %v1716 = vpop.f32.mrb[0].mxu0
    %v1717 = vadd.f32 0.0, %v1716
    %v1718 = vpop.f32.mrb[0].mxu0
    %v1719 = vpop.f32.mrb[0].mxu0
    %v1720 = vadd.f32 0.0, %v1719
    %v1721 = vpop.f32.mrb[0].mxu0
    %1722 = vmatprep.mubr.bf16.mxu0 0
    %1723 = vmatmul.mubr.bf16.gmra.mrb[0].mxu0 %v1672
    %v1724 = vpop.f32.mrb[0].mxu0
    %v1725 = vadd.f32 0.0, %v1724
    %v1726 = vpop.f32.mrb[0].mxu0
    %v1727 = vpop.f32.mrb[0].mxu0
    %v1728 = vpop.f32.mrb[0].mxu0
    %1729 = vdwg.mxu0
    %v1730 = vadd.f32 %v1631, %v1709
    %v1731 = vadd.f32 %v1632, %v1712
    %v1732 = vadd.f32 %v1633, %v1717
    %v1733 = vadd.f32 %v1634, %v1720
    %v1734 = vadd.f32 %v1635, %v1725
    %s1735 = scalar_lea.vmem [#allocation2], 4
    %v1736 = vld [vmem:[%s1735] ss:$2 sm:$0xff]
    %s1737 = scalar_lea.vmem [#allocation2], 20
    %v1738 = vld [vmem:[%s1737] ss:$2 sm:$0xff]
    %s1739 = scalar_lea.vmem [#allocation2], 36
    %v1740 = vld [vmem:[%s1739] ss:$2 sm:$0xff]
    %s1741 = scalar_lea.vmem [#allocation2], 52
    %v1742 = vld [vmem:[%s1741] ss:$2 sm:$0xff]
    %s1743 = scalar_lea.vmem [#allocation2], 68
    %v1744 = vld [vmem:[%s1743] ss:$2 sm:$0x1]
    %v1745 = vld [vmem:[%s5 + $0x80] sm:$0xf]
    %v1746 = vld [vmem:[%s5 + $0x84] sm:$0xf]
    %v1747 = vld [vmem:[%s5 + $0x88] sm:$0xf]
    %v1748 = vld [vmem:[%s5 + $0x8c] sm:$0xf]
    %v1749 = vpack.c.bf16 %v1738, %v1736
    %v1750 = vpack.c.bf16 %v1742, %v1740
    %v1751 = vpack.c.bf16 %v1744, %v1744
    %v1756 = vunpack.c.l.b16 %v1745
    %v1757 = vunpack.c.l.b16 %v1746
    %v1758 = vunpack.c.l.b16 %v1747
    %v1759 = vunpack.c.l.b16 %v1748
    %v1760 = vpack.c.b16 %v1757, %v1756
    %v1761 = vpack.c.b16 %v1759, %v1758
    %v1765 = vsel %vm457, %v1749, 0
    %v1768 = vsel %vm457, %v1750, 0
    %v1771 = vsel %vm457, %v1751, 0
    %1773 = vmatprep.subr.bf16.mxu0 0
    %1774 = vmatpush1.bf16.msra.mxu0 %v1760
    %1775 = vmatprep.subr.bf16.mxu0 0
    %1776 = vmatpush1.bf16.msra.mxu0 %v1761
    %1777 = vmatprep.subr.bf16.mxu0 0
    %1778 = vmatpush1.bf16.msra.mxu0 0
    %1779 = vmatprep.subr.bf16.mxu0 0
    %1780 = vmatpush1.bf16.msra.mxu0 0
    %1781 = vmatprep.subr.bf16.mxu0 0
    %1782 = vmatpush1.bf16.msra.mxu0 0
    %1783 = vmatprep.subr.bf16.mxu0 0
    %1784 = vmatpush1.bf16.msra.mxu0 0
    %1785 = vmatprep.subr.bf16.mxu0 0
    %1786 = vmatpush1.bf16.msra.mxu0 0
    %1787 = vmatprep.subr.bf16.mxu0 0
    %1788 = vmatpush1.bf16.msra.mxu0 0
    %1789 = vmatprep.subr.bf16.mxu0 0
    %1790 = vmatpush1.bf16.msra.mxu0 0
    %1791 = vmatprep.subr.bf16.mxu0 0
    %1792 = vmatpush1.bf16.msra.mxu0 0
    %1793 = vmatprep.subr.bf16.mxu0 0
    %1794 = vmatpush1.bf16.msra.mxu0 0
    %1795 = vmatprep.subr.bf16.mxu0 0
    %1796 = vmatpush1.bf16.msra.mxu0 0
    %1797 = vmatprep.subr.bf16.mxu0 0
    %1798 = vmatpush1.bf16.msra.mxu0 0
    %1799 = vmatprep.subr.bf16.mxu0 0
    %1800 = vmatpush1.bf16.msra.mxu0 0
    %1801 = vmatprep.subr.bf16.mxu0 0
    %1802 = vmatpush1.bf16.msra.mxu0 0
    %1803 = vmatprep.subr.bf16.mxu0 0
    %1804 = vmatpush1.bf16.msra.mxu0 0
    %1805 = vmatprep.mubr.bf16.mxu0 0
    %1806 = vmatmul.mubr.bf16.gmra.mrb[0].mxu0 %v1765
    %v1807 = vpop.f32.mrb[0].mxu0
    %v1808 = vadd.f32 0.0, %v1807
    %v1809 = vpop.f32.mrb[0].mxu0
    %v1810 = vpop.f32.mrb[0].mxu0
    %v1811 = vadd.f32 0.0, %v1810
    %v1812 = vpop.f32.mrb[0].mxu0
    %1813 = vmatprep.mubr.bf16.mxu0 0
    %1814 = vmatmul.mubr.bf16.gmra.mrb[0].mxu0 %v1768
    %v1815 = vpop.f32.mrb[0].mxu0
    %v1816 = vadd.f32 0.0, %v1815
    %v1817 = vpop.f32.mrb[0].mxu0
    %v1818 = vpop.f32.mrb[0].mxu0
    %v1819 = vadd.f32 0.0, %v1818
    %v1820 = vpop.f32.mrb[0].mxu0
    %1821 = vmatprep.mubr.bf16.mxu0 0
    %1822 = vmatmul.mubr.bf16.gmra.mrb[0].mxu0 %v1771
    %v1823 = vpop.f32.mrb[0].mxu0
    %v1824 = vadd.f32 0.0, %v1823
    %v1825 = vpop.f32.mrb[0].mxu0
    %v1826 = vpop.f32.mrb[0].mxu0
    %v1827 = vpop.f32.mrb[0].mxu0
    %1828 = vdwg.mxu0
    %v1829 = vadd.f32 %v1730, %v1808
    %v1830 = vadd.f32 %v1731, %v1811
    %v1831 = vadd.f32 %v1732, %v1816
    %v1832 = vadd.f32 %v1733, %v1819
    %v1833 = vadd.f32 %v1734, %v1824
    %s1834 = scalar_lea.vmem [#allocation2], 76
    %v1835 = vld [vmem:[%s1834] ss:$2 sm:$0xff]
    %s1836 = scalar_lea.vmem [#allocation2], 92
    %v1837 = vld [vmem:[%s1836] ss:$2 sm:$0xff]
    %s1838 = scalar_lea.vmem [#allocation2], 108
    %v1839 = vld [vmem:[%s1838] ss:$2 sm:$0xff]
    %s1840 = scalar_lea.vmem [#allocation2], 124
    %v1841 = vld [vmem:[%s1840] ss:$2 sm:$0xff]
    %s1842 = scalar_lea.vmem [#allocation2], 140
    %v1843 = vld [vmem:[%s1842] ss:$2 sm:$0x1]
    %v1844 = vld [vmem:[%s5 + $0x90] sm:$0xf]
    %v1845 = vld [vmem:[%s5 + $0x94] sm:$0xf]
    %v1846 = vld [vmem:[%s5 + $0x98] sm:$0xf]
    %v1847 = vld [vmem:[%s5 + $0x9c] sm:$0xf]
    %v1848 = vpack.c.bf16 %v1837, %v1835
    %v1849 = vpack.c.bf16 %v1841, %v1839
    %v1850 = vpack.c.bf16 %v1843, %v1843
    %v1855 = vunpack.c.l.b16 %v1844
    %v1856 = vunpack.c.l.b16 %v1845
    %v1857 = vunpack.c.l.b16 %v1846
    %v1858 = vunpack.c.l.b16 %v1847
    %v1859 = vpack.c.b16 %v1856, %v1855
    %v1860 = vpack.c.b16 %v1858, %v1857
    %v1864 = vsel %vm457, %v1848, 0
    %v1867 = vsel %vm457, %v1849, 0
    %v1870 = vsel %vm457, %v1850, 0
    %1872 = vmatprep.subr.bf16.mxu0 0
    %1873 = vmatpush1.bf16.msra.mxu0 %v1859
    %1874 = vmatprep.subr.bf16.mxu0 0
    %1875 = vmatpush1.bf16.msra.mxu0 %v1860
    %1876 = vmatprep.subr.bf16.mxu0 0
    %1877 = vmatpush1.bf16.msra.mxu0 0
    %1878 = vmatprep.subr.bf16.mxu0 0
    %1879 = vmatpush1.bf16.msra.mxu0 0
    %1880 = vmatprep.subr.bf16.mxu0 0
    %1881 = vmatpush1.bf16.msra.mxu0 0
    %1882 = vmatprep.subr.bf16.mxu0 0
    %1883 = vmatpush1.bf16.msra.mxu0 0
    %1884 = vmatprep.subr.bf16.mxu0 0
    %1885 = vmatpush1.bf16.msra.mxu0 0
    %1886 = vmatprep.subr.bf16.mxu0 0
    %1887 = vmatpush1.bf16.msra.mxu0 0
    %1888 = vmatprep.subr.bf16.mxu0 0
    %1889 = vmatpush1.bf16.msra.mxu0 0
    %1890 = vmatprep.subr.bf16.mxu0 0
    %1891 = vmatpush1.bf16.msra.mxu0 0
    %1892 = vmatprep.subr.bf16.mxu0 0
    %1893 = vmatpush1.bf16.msra.mxu0 0
    %1894 = vmatprep.subr.bf16.mxu0 0
    %1895 = vmatpush1.bf16.msra.mxu0 0
    %1896 = vmatprep.subr.bf16.mxu0 0
    %1897 = vmatpush1.bf16.msra.mxu0 0
    %1898 = vmatprep.subr.bf16.mxu0 0
    %1899 = vmatpush1.bf16.msra.mxu0 0
    %1900 = vmatprep.subr.bf16.mxu0 0
    %1901 = vmatpush1.bf16.msra.mxu0 0
    %1902 = vmatprep.subr.bf16.mxu0 0
    %1903 = vmatpush1.bf16.msra.mxu0 0
    %1904 = vmatprep.mubr.bf16.mxu0 0
    %1905 = vmatmul.mubr.bf16.gmra.mrb[0].mxu0 %v1864
    %v1906 = vpop.f32.mrb[0].mxu0
    %v1907 = vadd.f32 0.0, %v1906
    %v1908 = vpop.f32.mrb[0].mxu0
    %v1909 = vpop.f32.mrb[0].mxu0
    %v1910 = vadd.f32 0.0, %v1909
    %v1911 = vpop.f32.mrb[0].mxu0
    %1912 = vmatprep.mubr.bf16.mxu0 0
    %1913 = vmatmul.mubr.bf16.gmra.mrb[0].mxu0 %v1867
    %v1914 = vpop.f32.mrb[0].mxu0
    %v1915 = vadd.f32 0.0, %v1914
    %v1916 = vpop.f32.mrb[0].mxu0
    %v1917 = vpop.f32.mrb[0].mxu0
    %v1918 = vadd.f32 0.0, %v1917
    %v1919 = vpop.f32.mrb[0].mxu0
    %1920 = vmatprep.mubr.bf16.mxu0 0
    %1921 = vmatmul.mubr.bf16.gmra.mrb[0].mxu0 %v1870
    %v1922 = vpop.f32.mrb[0].mxu0
    %v1923 = vadd.f32 0.0, %v1922
    %v1924 = vpop.f32.mrb[0].mxu0
    %v1925 = vpop.f32.mrb[0].mxu0
    %v1926 = vpop.f32.mrb[0].mxu0
    %1927 = vdwg.mxu0
    %v1928 = vadd.f32 %v1829, %v1907
    %v1929 = vadd.f32 %v1830, %v1910
    %v1930 = vadd.f32 %v1831, %v1915
    %v1931 = vadd.f32 %v1832, %v1918
    %v1932 = vadd.f32 %v1833, %v1923
    %s1933 = scalar_lea.vmem [#allocation2], 5
    %v1934 = vld [vmem:[%s1933] ss:$2 sm:$0xff]
    %s1935 = scalar_lea.vmem [#allocation2], 21
    %v1936 = vld [vmem:[%s1935] ss:$2 sm:$0xff]
    %s1937 = scalar_lea.vmem [#allocation2], 37
    %v1938 = vld [vmem:[%s1937] ss:$2 sm:$0xff]
    %s1939 = scalar_lea.vmem [#allocation2], 53
    %v1940 = vld [vmem:[%s1939] ss:$2 sm:$0xff]
    %s1941 = scalar_lea.vmem [#allocation2], 69
    %v1942 = vld [vmem:[%s1941] ss:$2 sm:$0x1]
    %v1943 = vld [vmem:[%s5 + $0xa0] sm:$0xf]
    %v1944 = vld [vmem:[%s5 + $0xa4] sm:$0xf]
    %v1945 = vld [vmem:[%s5 + $0xa8] sm:$0xf]
    %v1946 = vld [vmem:[%s5 + $0xac] sm:$0xf]
    %v1947 = vpack.c.bf16 %v1936, %v1934
    %v1948 = vpack.c.bf16 %v1940, %v1938
    %v1949 = vpack.c.bf16 %v1942, %v1942
    %v1954 = vunpack.c.l.b16 %v1943
    %v1955 = vunpack.c.l.b16 %v1944
    %v1956 = vunpack.c.l.b16 %v1945
    %v1957 = vunpack.c.l.b16 %v1946
    %v1958 = vpack.c.b16 %v1955, %v1954
    %v1959 = vpack.c.b16 %v1957, %v1956
    %v1963 = vsel %vm457, %v1947, 0
    %v1966 = vsel %vm457, %v1948, 0
    %v1969 = vsel %vm457, %v1949, 0
    %1971 = vmatprep.subr.bf16.mxu0 0
    %1972 = vmatpush1.bf16.msra.mxu0 %v1958
    %1973 = vmatprep.subr.bf16.mxu0 0
    %1974 = vmatpush1.bf16.msra.mxu0 %v1959
    %1975 = vmatprep.subr.bf16.mxu0 0
    %1976 = vmatpush1.bf16.msra.mxu0 0
    %1977 = vmatprep.subr.bf16.mxu0 0
    %1978 = vmatpush1.bf16.msra.mxu0 0
    %1979 = vmatprep.subr.bf16.mxu0 0
    %1980 = vmatpush1.bf16.msra.mxu0 0
    %1981 = vmatprep.subr.bf16.mxu0 0
    %1982 = vmatpush1.bf16.msra.mxu0 0
    %1983 = vmatprep.subr.bf16.mxu0 0
    %1984 = vmatpush1.bf16.msra.mxu0 0
    %1985 = vmatprep.subr.bf16.mxu0 0
    %1986 = vmatpush1.bf16.msra.mxu0 0
    %1987 = vmatprep.subr.bf16.mxu0 0
    %1988 = vmatpush1.bf16.msra.mxu0 0
    %1989 = vmatprep.subr.bf16.mxu0 0
    %1990 = vmatpush1.bf16.msra.mxu0 0
    %1991 = vmatprep.subr.bf16.mxu0 0
    %1992 = vmatpush1.bf16.msra.mxu0 0
    %1993 = vmatprep.subr.bf16.mxu0 0
    %1994 = vmatpush1.bf16.msra.mxu0 0
    %1995 = vmatprep.subr.bf16.mxu0 0
    %1996 = vmatpush1.bf16.msra.mxu0 0
    %1997 = vmatprep.subr.bf16.mxu0 0
    %1998 = vmatpush1.bf16.msra.mxu0 0
    %1999 = vmatprep.subr.bf16.mxu0 0
    %2000 = vmatpush1.bf16.msra.mxu0 0
    %2001 = vmatprep.subr.bf16.mxu0 0
    %2002 = vmatpush1.bf16.msra.mxu0 0
    %2003 = vmatprep.mubr.bf16.mxu0 0
    %2004 = vmatmul.mubr.bf16.gmra.mrb[0].mxu0 %v1963
    %v2005 = vpop.f32.mrb[0].mxu0
    %v2006 = vadd.f32 0.0, %v2005
    %v2007 = vpop.f32.mrb[0].mxu0
    %v2008 = vpop.f32.mrb[0].mxu0
    %v2009 = vadd.f32 0.0, %v2008
    %v2010 = vpop.f32.mrb[0].mxu0
    %2011 = vmatprep.mubr.bf16.mxu0 0
    %2012 = vmatmul.mubr.bf16.gmra.mrb[0].mxu0 %v1966
    %v2013 = vpop.f32.mrb[0].mxu0
    %v2014 = vadd.f32 0.0, %v2013
    %v2015 = vpop.f32.mrb[0].mxu0
    %v2016 = vpop.f32.mrb[0].mxu0
    %v2017 = vadd.f32 0.0, %v2016
    %v2018 = vpop.f32.mrb[0].mxu0
    %2019 = vmatprep.mubr.bf16.mxu0 0
    %2020 = vmatmul.mubr.bf16.gmra.mrb[0].mxu0 %v1969
    %v2021 = vpop.f32.mrb[0].mxu0
    %v2022 = vadd.f32 0.0, %v2021
    %v2023 = vpop.f32.mrb[0].mxu0
    %v2024 = vpop.f32.mrb[0].mxu0
    %v2025 = vpop.f32.mrb[0].mxu0
    %2026 = vdwg.mxu0
    %v2027 = vadd.f32 %v1928, %v2006
    %v2028 = vadd.f32 %v1929, %v2009
    %v2029 = vadd.f32 %v1930, %v2014
    %v2030 = vadd.f32 %v1931, %v2017
    %v2031 = vadd.f32 %v1932, %v2022
    %s2032 = scalar_lea.vmem [#allocation2], 77
    %v2033 = vld [vmem:[%s2032] ss:$2 sm:$0xff]
    %s2034 = scalar_lea.vmem [#allocation2], 93
    %v2035 = vld [vmem:[%s2034] ss:$2 sm:$0xff]
    %s2036 = scalar_lea.vmem [#allocation2], 109
    %v2037 = vld [vmem:[%s2036] ss:$2 sm:$0xff]
    %s2038 = scalar_lea.vmem [#allocation2], 125
    %v2039 = vld [vmem:[%s2038] ss:$2 sm:$0xff]
    %s2040 = scalar_lea.vmem [#allocation2], 141
    %v2041 = vld [vmem:[%s2040] ss:$2 sm:$0x1]
    %v2042 = vld [vmem:[%s5 + $0xb0] sm:$0xf]
    %v2043 = vld [vmem:[%s5 + $0xb4] sm:$0xf]
    %v2044 = vld [vmem:[%s5 + $0xb8] sm:$0xf]
    %v2045 = vld [vmem:[%s5 + $0xbc] sm:$0xf]
    %v2046 = vpack.c.bf16 %v2035, %v2033
    %v2047 = vpack.c.bf16 %v2039, %v2037
    %v2048 = vpack.c.bf16 %v2041, %v2041
    %v2053 = vunpack.c.l.b16 %v2042
    %v2054 = vunpack.c.l.b16 %v2043
    %v2055 = vunpack.c.l.b16 %v2044
    %v2056 = vunpack.c.l.b16 %v2045
    %v2057 = vpack.c.b16 %v2054, %v2053
    %v2058 = vpack.c.b16 %v2056, %v2055
    %v2062 = vsel %vm457, %v2046, 0
    %v2065 = vsel %vm457, %v2047, 0
    %v2068 = vsel %vm457, %v2048, 0
    %2070 = vmatprep.subr.bf16.mxu0 0
    %2071 = vmatpush1.bf16.msra.mxu0 %v2057
    %2072 = vmatprep.subr.bf16.mxu0 0
    %2073 = vmatpush1.bf16.msra.mxu0 %v2058
    %2074 = vmatprep.subr.bf16.mxu0 0
    %2075 = vmatpush1.bf16.msra.mxu0 0
    %2076 = vmatprep.subr.bf16.mxu0 0
    %2077 = vmatpush1.bf16.msra.mxu0 0
    %2078 = vmatprep.subr.bf16.mxu0 0
    %2079 = vmatpush1.bf16.msra.mxu0 0
    %2080 = vmatprep.subr.bf16.mxu0 0
    %2081 = vmatpush1.bf16.msra.mxu0 0
    %2082 = vmatprep.subr.bf16.mxu0 0
    %2083 = vmatpush1.bf16.msra.mxu0 0
    %2084 = vmatprep.subr.bf16.mxu0 0
    %2085 = vmatpush1.bf16.msra.mxu0 0
    %2086 = vmatprep.subr.bf16.mxu0 0
    %2087 = vmatpush1.bf16.msra.mxu0 0
    %2088 = vmatprep.subr.bf16.mxu0 0
    %2089 = vmatpush1.bf16.msra.mxu0 0
    %2090 = vmatprep.subr.bf16.mxu0 0
    %2091 = vmatpush1.bf16.msra.mxu0 0
    %2092 = vmatprep.subr.bf16.mxu0 0
    %2093 = vmatpush1.bf16.msra.mxu0 0
    %2094 = vmatprep.subr.bf16.mxu0 0
    %2095 = vmatpush1.bf16.msra.mxu0 0
    %2096 = vmatprep.subr.bf16.mxu0 0
    %2097 = vmatpush1.bf16.msra.mxu0 0
    %2098 = vmatprep.subr.bf16.mxu0 0
    %2099 = vmatpush1.bf16.msra.mxu0 0
    %2100 = vmatprep.subr.bf16.mxu0 0
    %2101 = vmatpush1.bf16.msra.mxu0 0
    %2102 = vmatprep.mubr.bf16.mxu0 0
    %2103 = vmatmul.mubr.bf16.gmra.mrb[0].mxu0 %v2062
    %v2104 = vpop.f32.mrb[0].mxu0
    %v2105 = vadd.f32 0.0, %v2104
    %v2106 = vpop.f32.mrb[0].mxu0
    %v2107 = vpop.f32.mrb[0].mxu0
    %v2108 = vadd.f32 0.0, %v2107
    %v2109 = vpop.f32.mrb[0].mxu0
    %2110 = vmatprep.mubr.bf16.mxu0 0
    %2111 = vmatmul.mubr.bf16.gmra.mrb[0].mxu0 %v2065
    %v2112 = vpop.f32.mrb[0].mxu0
    %v2113 = vadd.f32 0.0, %v2112
    %v2114 = vpop.f32.mrb[0].mxu0
    %v2115 = vpop.f32.mrb[0].mxu0
    %v2116 = vadd.f32 0.0, %v2115
    %v2117 = vpop.f32.mrb[0].mxu0
    %2118 = vmatprep.mubr.bf16.mxu0 0
    %2119 = vmatmul.mubr.bf16.gmra.mrb[0].mxu0 %v2068
    %v2120 = vpop.f32.mrb[0].mxu0
    %v2121 = vadd.f32 0.0, %v2120
    %v2122 = vpop.f32.mrb[0].mxu0
    %v2123 = vpop.f32.mrb[0].mxu0
    %v2124 = vpop.f32.mrb[0].mxu0
    %2125 = vdwg.mxu0
    %v2126 = vadd.f32 %v2027, %v2105
    %v2127 = vadd.f32 %v2028, %v2108
    %v2128 = vadd.f32 %v2029, %v2113
    %v2129 = vadd.f32 %v2030, %v2116
    %v2130 = vadd.f32 %v2031, %v2121
    %s2131 = scalar_lea.vmem [#allocation2], 6
    %v2132 = vld [vmem:[%s2131] ss:$2 sm:$0xff]
    %s2133 = scalar_lea.vmem [#allocation2], 22
    %v2134 = vld [vmem:[%s2133] ss:$2 sm:$0xff]
    %s2135 = scalar_lea.vmem [#allocation2], 38
    %v2136 = vld [vmem:[%s2135] ss:$2 sm:$0xff]
    %s2137 = scalar_lea.vmem [#allocation2], 54
    %v2138 = vld [vmem:[%s2137] ss:$2 sm:$0xff]
    %s2139 = scalar_lea.vmem [#allocation2], 70
    %v2140 = vld [vmem:[%s2139] ss:$2 sm:$0x1]
    %v2141 = vld [vmem:[%s5 + $0xc0] sm:$0xf]
    %v2142 = vld [vmem:[%s5 + $0xc4] sm:$0xf]
    %v2143 = vld [vmem:[%s5 + $0xc8] sm:$0xf]
    %v2144 = vld [vmem:[%s5 + $0xcc] sm:$0xf]
    %v2145 = vpack.c.bf16 %v2134, %v2132
    %v2146 = vpack.c.bf16 %v2138, %v2136
    %v2147 = vpack.c.bf16 %v2140, %v2140
    %v2152 = vunpack.c.l.b16 %v2141
    %v2153 = vunpack.c.l.b16 %v2142
    %v2154 = vunpack.c.l.b16 %v2143
    %v2155 = vunpack.c.l.b16 %v2144
    %v2156 = vpack.c.b16 %v2153, %v2152
    %v2157 = vpack.c.b16 %v2155, %v2154
    %v2161 = vsel %vm457, %v2145, 0
    %v2164 = vsel %vm457, %v2146, 0
    %v2167 = vsel %vm457, %v2147, 0
    %2169 = vmatprep.subr.bf16.mxu0 0
    %2170 = vmatpush1.bf16.msra.mxu0 %v2156
    %2171 = vmatprep.subr.bf16.mxu0 0
    %2172 = vmatpush1.bf16.msra.mxu0 %v2157
    %2173 = vmatprep.subr.bf16.mxu0 0
    %2174 = vmatpush1.bf16.msra.mxu0 0
    %2175 = vmatprep.subr.bf16.mxu0 0
    %2176 = vmatpush1.bf16.msra.mxu0 0
    %2177 = vmatprep.subr.bf16.mxu0 0
    %2178 = vmatpush1.bf16.msra.mxu0 0
    %2179 = vmatprep.subr.bf16.mxu0 0
    %2180 = vmatpush1.bf16.msra.mxu0 0
    %2181 = vmatprep.subr.bf16.mxu0 0
    %2182 = vmatpush1.bf16.msra.mxu0 0
    %2183 = vmatprep.subr.bf16.mxu0 0
    %2184 = vmatpush1.bf16.msra.mxu0 0
    %2185 = vmatprep.subr.bf16.mxu0 0
    %2186 = vmatpush1.bf16.msra.mxu0 0
    %2187 = vmatprep.subr.bf16.mxu0 0
    %2188 = vmatpush1.bf16.msra.mxu0 0
    %2189 = vmatprep.subr.bf16.mxu0 0
    %2190 = vmatpush1.bf16.msra.mxu0 0
    %2191 = vmatprep.subr.bf16.mxu0 0
    %2192 = vmatpush1.bf16.msra.mxu0 0
    %2193 = vmatprep.subr.bf16.mxu0 0
    %2194 = vmatpush1.bf16.msra.mxu0 0
    %2195 = vmatprep.subr.bf16.mxu0 0
    %2196 = vmatpush1.bf16.msra.mxu0 0
    %2197 = vmatprep.subr.bf16.mxu0 0
    %2198 = vmatpush1.bf16.msra.mxu0 0
    %2199 = vmatprep.subr.bf16.mxu0 0
    %2200 = vmatpush1.bf16.msra.mxu0 0
    %2201 = vmatprep.mubr.bf16.mxu0 0
    %2202 = vmatmul.mubr.bf16.gmra.mrb[0].mxu0 %v2161
    %v2203 = vpop.f32.mrb[0].mxu0
    %v2204 = vadd.f32 0.0, %v2203
    %v2205 = vpop.f32.mrb[0].mxu0
    %v2206 = vpop.f32.mrb[0].mxu0
    %v2207 = vadd.f32 0.0, %v2206
    %v2208 = vpop.f32.mrb[0].mxu0
    %2209 = vmatprep.mubr.bf16.mxu0 0
    %2210 = vmatmul.mubr.bf16.gmra.mrb[0].mxu0 %v2164
    %v2211 = vpop.f32.mrb[0].mxu0
    %v2212 = vadd.f32 0.0, %v2211
    %v2213 = vpop.f32.mrb[0].mxu0
    %v2214 = vpop.f32.mrb[0].mxu0
    %v2215 = vadd.f32 0.0, %v2214
    %v2216 = vpop.f32.mrb[0].mxu0
    %2217 = vmatprep.mubr.bf16.mxu0 0
    %2218 = vmatmul.mubr.bf16.gmra.mrb[0].mxu0 %v2167
    %v2219 = vpop.f32.mrb[0].mxu0
    %v2220 = vadd.f32 0.0, %v2219
    %v2221 = vpop.f32.mrb[0].mxu0
    %v2222 = vpop.f32.mrb[0].mxu0
    %v2223 = vpop.f32.mrb[0].mxu0
    %2224 = vdwg.mxu0
    %v2225 = vadd.f32 %v2126, %v2204
    %v2226 = vadd.f32 %v2127, %v2207
    %v2227 = vadd.f32 %v2128, %v2212
    %v2228 = vadd.f32 %v2129, %v2215
    %v2229 = vadd.f32 %v2130, %v2220
    %s2230 = scalar_lea.vmem [#allocation2], 78
    %v2231 = vld [vmem:[%s2230] ss:$2 sm:$0xff]
    %s2232 = scalar_lea.vmem [#allocation2], 94
    %v2233 = vld [vmem:[%s2232] ss:$2 sm:$0xff]
    %s2234 = scalar_lea.vmem [#allocation2], 110
    %v2235 = vld [vmem:[%s2234] ss:$2 sm:$0xff]
    %s2236 = scalar_lea.vmem [#allocation2], 126
    %v2237 = vld [vmem:[%s2236] ss:$2 sm:$0xff]
    %s2238 = scalar_lea.vmem [#allocation2], 142
    %v2239 = vld [vmem:[%s2238] ss:$2 sm:$0x1]
    %v2240 = vld [vmem:[%s5 + $0xd0] sm:$0xf]
    %v2241 = vld [vmem:[%s5 + $0xd4] sm:$0xf]
    %v2242 = vld [vmem:[%s5 + $0xd8] sm:$0xf]
    %v2243 = vld [vmem:[%s5 + $0xdc] sm:$0xf]
    %v2244 = vpack.c.bf16 %v2233, %v2231
    %v2245 = vpack.c.bf16 %v2237, %v2235
    %v2246 = vpack.c.bf16 %v2239, %v2239
    %v2251 = vunpack.c.l.b16 %v2240
    %v2252 = vunpack.c.l.b16 %v2241
    %v2253 = vunpack.c.l.b16 %v2242
    %v2254 = vunpack.c.l.b16 %v2243
    %v2255 = vpack.c.b16 %v2252, %v2251
    %v2256 = vpack.c.b16 %v2254, %v2253
    %v2260 = vsel %vm457, %v2244, 0
    %v2263 = vsel %vm457, %v2245, 0
    %v2266 = vsel %vm457, %v2246, 0
    %2268 = vmatprep.subr.bf16.mxu0 0
    %2269 = vmatpush1.bf16.msra.mxu0 %v2255
    %2270 = vmatprep.subr.bf16.mxu0 0
    %2271 = vmatpush1.bf16.msra.mxu0 %v2256
    %2272 = vmatprep.subr.bf16.mxu0 0
    %2273 = vmatpush1.bf16.msra.mxu0 0
    %2274 = vmatprep.subr.bf16.mxu0 0
    %2275 = vmatpush1.bf16.msra.mxu0 0
    %2276 = vmatprep.subr.bf16.mxu0 0
    %2277 = vmatpush1.bf16.msra.mxu0 0
    %2278 = vmatprep.subr.bf16.mxu0 0
    %2279 = vmatpush1.bf16.msra.mxu0 0
    %2280 = vmatprep.subr.bf16.mxu0 0
    %2281 = vmatpush1.bf16.msra.mxu0 0
    %2282 = vmatprep.subr.bf16.mxu0 0
    %2283 = vmatpush1.bf16.msra.mxu0 0
    %2284 = vmatprep.subr.bf16.mxu0 0
    %2285 = vmatpush1.bf16.msra.mxu0 0
    %2286 = vmatprep.subr.bf16.mxu0 0
    %2287 = vmatpush1.bf16.msra.mxu0 0
    %2288 = vmatprep.subr.bf16.mxu0 0
    %2289 = vmatpush1.bf16.msra.mxu0 0
    %2290 = vmatprep.subr.bf16.mxu0 0
    %2291 = vmatpush1.bf16.msra.mxu0 0
    %2292 = vmatprep.subr.bf16.mxu0 0
    %2293 = vmatpush1.bf16.msra.mxu0 0
    %2294 = vmatprep.subr.bf16.mxu0 0
    %2295 = vmatpush1.bf16.msra.mxu0 0
    %2296 = vmatprep.subr.bf16.mxu0 0
    %2297 = vmatpush1.bf16.msra.mxu0 0
    %2298 = vmatprep.subr.bf16.mxu0 0
    %2299 = vmatpush1.bf16.msra.mxu0 0
    %2300 = vmatprep.mubr.bf16.mxu0 0
    %2301 = vmatmul.mubr.bf16.gmra.mrb[0].mxu0 %v2260
    %v2302 = vpop.f32.mrb[0].mxu0
    %v2303 = vadd.f32 0.0, %v2302
    %v2304 = vpop.f32.mrb[0].mxu0
    %v2305 = vpop.f32.mrb[0].mxu0
    %v2306 = vadd.f32 0.0, %v2305
    %v2307 = vpop.f32.mrb[0].mxu0
    %2308 = vmatprep.mubr.bf16.mxu0 0
    %2309 = vmatmul.mubr.bf16.gmra.mrb[0].mxu0 %v2263
    %v2310 = vpop.f32.mrb[0].mxu0
    %v2311 = vadd.f32 0.0, %v2310
    %v2312 = vpop.f32.mrb[0].mxu0
    %v2313 = vpop.f32.mrb[0].mxu0
    %v2314 = vadd.f32 0.0, %v2313
    %v2315 = vpop.f32.mrb[0].mxu0
    %2316 = vmatprep.mubr.bf16.mxu0 0
    %2317 = vmatmul.mubr.bf16.gmra.mrb[0].mxu0 %v2266
    %v2318 = vpop.f32.mrb[0].mxu0
    %v2319 = vadd.f32 0.0, %v2318
    %v2320 = vpop.f32.mrb[0].mxu0
    %v2321 = vpop.f32.mrb[0].mxu0
    %v2322 = vpop.f32.mrb[0].mxu0
    %2323 = vdwg.mxu0
    %v2324 = vadd.f32 %v2225, %v2303
    %v2325 = vadd.f32 %v2226, %v2306
    %v2326 = vadd.f32 %v2227, %v2311
    %v2327 = vadd.f32 %v2228, %v2314
    %v2328 = vadd.f32 %v2229, %v2319
    %v2329 = vld [vmem:[%s6] sm:$0x1]
    %v2331 = vlaneseq
    %v2332 = vshrl.u32 %v2331, 7
    %v2333 = vsub.s32 0, %v2332
    %v2334 = vrot.slane %v2329, %v2333
    %v2336 = vadd.f32 %v2324, %v2334
    %v2337 = vadd.f32 %v2325, %v2334
    %v2338 = vadd.f32 %v2326, %v2334
    %v2339 = vadd.f32 %v2327, %v2334
    %v2340 = vadd.f32 %v2328, %v2334
    %2341 = vst.msk [vmem:[#allocation3] sm:$0xff] %vm457, %v2336
    %2342 = vst.msk [vmem:[#allocation3 + $0x8] sm:$0xff] %vm457, %v2337
    %2343 = vst.msk [vmem:[#allocation3 + $0x10] sm:$0xff] %vm457, %v2338
    %2344 = vst.msk [vmem:[#allocation3 + $0x18] sm:$0xff] %vm457, %v2339
    %vm2345 = vcmask 253952
    %2346 = vst.msk [vmem:[#allocation3 + $0x20] sm:$0x1] %vm2345, %v2340
    %s2347 = scalar_lea.vmem [#allocation2], 144
    %v2348 = vld [vmem:[%s2347] ss:$2 sm:$0xff]
    %s2349 = scalar_lea.vmem [#allocation2], 160
    %v2350 = vld [vmem:[%s2349] ss:$2 sm:$0xff]
    %s2351 = scalar_lea.vmem [#allocation2], 176
    %v2352 = vld [vmem:[%s2351] ss:$2 sm:$0xff]
    %s2353 = scalar_lea.vmem [#allocation2], 192
    %v2354 = vld [vmem:[%s2353] ss:$2 sm:$0xff]
    %s2355 = scalar_lea.vmem [#allocation2], 208
    %v2356 = vld [vmem:[%s2355] ss:$2 sm:$0x1]
    %v2357 = vld [vmem:[%s5] sm:$0xf]
    %v2358 = vld [vmem:[%s5 + $0x4] sm:$0xf]
    %v2359 = vld [vmem:[%s5 + $0x8] sm:$0xf]
    %v2360 = vld [vmem:[%s5 + $0xc] sm:$0xf]
    %v2361 = vpack.c.bf16 %v2350, %v2348
    %v2362 = vpack.c.bf16 %v2354, %v2352
    %v2363 = vpack.c.bf16 %v2356, %v2356
    %s2364 = scalar_lea.vmem [#allocation2], 216
    %v2365 = vld [vmem:[%s2364] ss:$2 sm:$0xff]
    %s2366 = scalar_lea.vmem [#allocation2], 232
    %v2367 = vld [vmem:[%s2366] ss:$2 sm:$0xff]
    %s2368 = scalar_lea.vmem [#allocation2], 248
    %v2369 = vld [vmem:[%s2368] ss:$2 sm:$0xff]
    %s2370 = scalar_lea.vmem [#allocation2], 264
    %v2371 = vld [vmem:[%s2370] ss:$2 sm:$0xff]
    %s2372 = scalar_lea.vmem [#allocation2], 280
    %v2373 = vld [vmem:[%s2372] ss:$2 sm:$0x1]
    %v2374 = vld [vmem:[%s5 + $0x10] sm:$0xf]
    %v2375 = vld [vmem:[%s5 + $0x14] sm:$0xf]
    %v2376 = vld [vmem:[%s5 + $0x18] sm:$0xf]
    %v2377 = vld [vmem:[%s5 + $0x1c] sm:$0xf]
    %v2378 = vpack.c.bf16 %v2367, %v2365
    %v2379 = vpack.c.bf16 %v2371, %v2369
    %v2380 = vpack.c.bf16 %v2373, %v2373
    %v2385 = vunpack.c.l.b16 %v2374
    %v2386 = vunpack.c.l.b16 %v2375
    %v2387 = vunpack.c.l.b16 %v2376
    %v2388 = vunpack.c.l.b16 %v2377
    %v2389 = vpack.c.b16 %v2386, %v2385
    %v2390 = vpack.c.b16 %v2388, %v2387
    %v2394 = vsel %vm457, %v2378, 0
    %v2397 = vsel %vm457, %v2379, 0
    %v2400 = vsel %vm457, %v2380, 0
    %2402 = vmatprep.subr.bf16.mxu0 0
    %2403 = vmatpush1.bf16.msra.mxu0 %v2389
    %2404 = vmatprep.subr.bf16.mxu0 0
    %2405 = vmatpush1.bf16.msra.mxu0 %v2390
    %2406 = vmatprep.subr.bf16.mxu0 0
    %2407 = vmatpush1.bf16.msra.mxu0 0
    %2408 = vmatprep.subr.bf16.mxu0 0
    %2409 = vmatpush1.bf16.msra.mxu0 0
    %2410 = vmatprep.subr.bf16.mxu0 0
    %2411 = vmatpush1.bf16.msra.mxu0 0
    %2412 = vmatprep.subr.bf16.mxu0 0
    %2413 = vmatpush1.bf16.msra.mxu0 0
    %2414 = vmatprep.subr.bf16.mxu0 0
    %2415 = vmatpush1.bf16.msra.mxu0 0
    %2416 = vmatprep.subr.bf16.mxu0 0
    %2417 = vmatpush1.bf16.msra.mxu0 0
    %2418 = vmatprep.subr.bf16.mxu0 0
    %2419 = vmatpush1.bf16.msra.mxu0 0
    %2420 = vmatprep.subr.bf16.mxu0 0
    %2421 = vmatpush1.bf16.msra.mxu0 0
    %2422 = vmatprep.subr.bf16.mxu0 0
    %2423 = vmatpush1.bf16.msra.mxu0 0
    %2424 = vmatprep.subr.bf16.mxu0 0
    %2425 = vmatpush1.bf16.msra.mxu0 0
    %2426 = vmatprep.subr.bf16.mxu0 0
    %2427 = vmatpush1.bf16.msra.mxu0 0
    %2428 = vmatprep.subr.bf16.mxu0 0
    %2429 = vmatpush1.bf16.msra.mxu0 0
    %2430 = vmatprep.subr.bf16.mxu0 0
    %2431 = vmatpush1.bf16.msra.mxu0 0
    %2432 = vmatprep.subr.bf16.mxu0 0
    %2433 = vmatpush1.bf16.msra.mxu0 0
    %2434 = vmatprep.mubr.bf16.mxu0 0
    %2435 = vmatmul.mubr.bf16.gmra.mrb[0].mxu0 %v2394
    %v2436 = vpop.f32.mrb[0].mxu0
    %v2437 = vadd.f32 0.0, %v2436
    %v2438 = vpop.f32.mrb[0].mxu0
    %v2439 = vpop.f32.mrb[0].mxu0
    %v2440 = vadd.f32 0.0, %v2439
    %v2441 = vpop.f32.mrb[0].mxu0
    %2442 = vmatprep.mubr.bf16.mxu0 0
    %2443 = vmatmul.mubr.bf16.gmra.mrb[0].mxu0 %v2397
    %v2444 = vpop.f32.mrb[0].mxu0
    %v2445 = vadd.f32 0.0, %v2444
    %v2446 = vpop.f32.mrb[0].mxu0
    %v2447 = vpop.f32.mrb[0].mxu0
    %v2448 = vadd.f32 0.0, %v2447
    %v2449 = vpop.f32.mrb[0].mxu0
    %2450 = vmatprep.mubr.bf16.mxu0 0
    %2451 = vmatmul.mubr.bf16.gmra.mrb[0].mxu0 %v2400
    %v2452 = vpop.f32.mrb[0].mxu0
    %v2453 = vadd.f32 0.0, %v2452
    %v2454 = vpop.f32.mrb[0].mxu0
    %v2455 = vpop.f32.mrb[0].mxu0
    %v2456 = vpop.f32.mrb[0].mxu0
    %2457 = vdwg.mxu0
    %v2462 = vunpack.c.l.b16 %v2357
    %v2463 = vunpack.c.l.b16 %v2358
    %v2464 = vunpack.c.l.b16 %v2359
    %v2465 = vunpack.c.l.b16 %v2360
    %v2466 = vpack.c.b16 %v2463, %v2462
    %v2467 = vpack.c.b16 %v2465, %v2464
    %v2471 = vsel %vm457, %v2361, 0
    %v2474 = vsel %vm457, %v2362, 0
    %v2477 = vsel %vm457, %v2363, 0
    %2479 = vmatprep.subr.bf16.mxu0 0
    %2480 = vmatpush1.bf16.msra.mxu0 %v2466
    %2481 = vmatprep.subr.bf16.mxu0 0
    %2482 = vmatpush1.bf16.msra.mxu0 %v2467
    %2483 = vmatprep.subr.bf16.mxu0 0
    %2484 = vmatpush1.bf16.msra.mxu0 0
    %2485 = vmatprep.subr.bf16.mxu0 0
    %2486 = vmatpush1.bf16.msra.mxu0 0
    %2487 = vmatprep.subr.bf16.mxu0 0
    %2488 = vmatpush1.bf16.msra.mxu0 0
    %2489 = vmatprep.subr.bf16.mxu0 0
    %2490 = vmatpush1.bf16.msra.mxu0 0
    %2491 = vmatprep.subr.bf16.mxu0 0
    %2492 = vmatpush1.bf16.msra.mxu0 0
    %2493 = vmatprep.subr.bf16.mxu0 0
    %2494 = vmatpush1.bf16.msra.mxu0 0
    %2495 = vmatprep.subr.bf16.mxu0 0
    %2496 = vmatpush1.bf16.msra.mxu0 0
    %2497 = vmatprep.subr.bf16.mxu0 0
    %2498 = vmatpush1.bf16.msra.mxu0 0
    %2499 = vmatprep.subr.bf16.mxu0 0
    %2500 = vmatpush1.bf16.msra.mxu0 0
    %2501 = vmatprep.subr.bf16.mxu0 0
    %2502 = vmatpush1.bf16.msra.mxu0 0
    %2503 = vmatprep.subr.bf16.mxu0 0
    %2504 = vmatpush1.bf16.msra.mxu0 0
    %2505 = vmatprep.subr.bf16.mxu0 0
    %2506 = vmatpush1.bf16.msra.mxu0 0
    %2507 = vmatprep.subr.bf16.mxu0 0
    %2508 = vmatpush1.bf16.msra.mxu0 0
    %2509 = vmatprep.subr.bf16.mxu0 0
    %2510 = vmatpush1.bf16.msra.mxu0 0
    %2511 = vmatprep.mubr.bf16.mxu0 0
    %2512 = vmatmul.mubr.bf16.gmra.mrb[0].mxu0 %v2471
    %v2513 = vpop.f32.mrb[0].mxu0
    %v2514 = vadd.f32 %v2437, %v2513
    %v2515 = vpop.f32.mrb[0].mxu0
    %v2516 = vpop.f32.mrb[0].mxu0
    %v2517 = vadd.f32 %v2440, %v2516
    %v2518 = vpop.f32.mrb[0].mxu0
    %2519 = vmatprep.mubr.bf16.mxu0 0
    %2520 = vmatmul.mubr.bf16.gmra.mrb[0].mxu0 %v2474
    %v2521 = vpop.f32.mrb[0].mxu0
    %v2522 = vadd.f32 %v2445, %v2521
    %v2523 = vpop.f32.mrb[0].mxu0
    %v2524 = vpop.f32.mrb[0].mxu0
    %v2525 = vadd.f32 %v2448, %v2524
    %v2526 = vpop.f32.mrb[0].mxu0
    %2527 = vmatprep.mubr.bf16.mxu0 0
    %2528 = vmatmul.mubr.bf16.gmra.mrb[0].mxu0 %v2477
    %v2529 = vpop.f32.mrb[0].mxu0
    %v2530 = vadd.f32 %v2453, %v2529
    %v2531 = vpop.f32.mrb[0].mxu0
    %v2532 = vpop.f32.mrb[0].mxu0
    %v2533 = vpop.f32.mrb[0].mxu0
    %2534 = vdwg.mxu0
    %s2535 = scalar_lea.vmem [#allocation2], 145
    %v2536 = vld [vmem:[%s2535] ss:$2 sm:$0xff]
    %s2537 = scalar_lea.vmem [#allocation2], 161
    %v2538 = vld [vmem:[%s2537] ss:$2 sm:$0xff]
    %s2539 = scalar_lea.vmem [#allocation2], 177
    %v2540 = vld [vmem:[%s2539] ss:$2 sm:$0xff]
    %s2541 = scalar_lea.vmem [#allocation2], 193
    %v2542 = vld [vmem:[%s2541] ss:$2 sm:$0xff]
    %s2543 = scalar_lea.vmem [#allocation2], 209
    %v2544 = vld [vmem:[%s2543] ss:$2 sm:$0x1]
    %v2545 = vld [vmem:[%s5 + $0x20] sm:$0xf]
    %v2546 = vld [vmem:[%s5 + $0x24] sm:$0xf]
    %v2547 = vld [vmem:[%s5 + $0x28] sm:$0xf]
    %v2548 = vld [vmem:[%s5 + $0x2c] sm:$0xf]
    %v2549 = vpack.c.bf16 %v2538, %v2536
    %v2550 = vpack.c.bf16 %v2542, %v2540
    %v2551 = vpack.c.bf16 %v2544, %v2544
    %v2556 = vunpack.c.l.b16 %v2545
    %v2557 = vunpack.c.l.b16 %v2546
    %v2558 = vunpack.c.l.b16 %v2547
    %v2559 = vunpack.c.l.b16 %v2548
    %v2560 = vpack.c.b16 %v2557, %v2556
    %v2561 = vpack.c.b16 %v2559, %v2558
    %v2565 = vsel %vm457, %v2549, 0
    %v2568 = vsel %vm457, %v2550, 0
    %v2571 = vsel %vm457, %v2551, 0
    %2573 = vmatprep.subr.bf16.mxu0 0
    %2574 = vmatpush1.bf16.msra.mxu0 %v2560
    %2575 = vmatprep.subr.bf16.mxu0 0
    %2576 = vmatpush1.bf16.msra.mxu0 %v2561
    %2577 = vmatprep.subr.bf16.mxu0 0
    %2578 = vmatpush1.bf16.msra.mxu0 0
    %2579 = vmatprep.subr.bf16.mxu0 0
    %2580 = vmatpush1.bf16.msra.mxu0 0
    %2581 = vmatprep.subr.bf16.mxu0 0
    %2582 = vmatpush1.bf16.msra.mxu0 0
    %2583 = vmatprep.subr.bf16.mxu0 0
    %2584 = vmatpush1.bf16.msra.mxu0 0
    %2585 = vmatprep.subr.bf16.mxu0 0
    %2586 = vmatpush1.bf16.msra.mxu0 0
    %2587 = vmatprep.subr.bf16.mxu0 0
    %2588 = vmatpush1.bf16.msra.mxu0 0
    %2589 = vmatprep.subr.bf16.mxu0 0
    %2590 = vmatpush1.bf16.msra.mxu0 0
    %2591 = vmatprep.subr.bf16.mxu0 0
    %2592 = vmatpush1.bf16.msra.mxu0 0
    %2593 = vmatprep.subr.bf16.mxu0 0
    %2594 = vmatpush1.bf16.msra.mxu0 0
    %2595 = vmatprep.subr.bf16.mxu0 0
    %2596 = vmatpush1.bf16.msra.mxu0 0
    %2597 = vmatprep.subr.bf16.mxu0 0
    %2598 = vmatpush1.bf16.msra.mxu0 0
    %2599 = vmatprep.subr.bf16.mxu0 0
    %2600 = vmatpush1.bf16.msra.mxu0 0
    %2601 = vmatprep.subr.bf16.mxu0 0
    %2602 = vmatpush1.bf16.msra.mxu0 0
    %2603 = vmatprep.subr.bf16.mxu0 0
    %2604 = vmatpush1.bf16.msra.mxu0 0
    %2605 = vmatprep.mubr.bf16.mxu0 0
    %2606 = vmatmul.mubr.bf16.gmra.mrb[0].mxu0 %v2565
    %v2607 = vpop.f32.mrb[0].mxu0
    %v2608 = vadd.f32 0.0, %v2607
    %v2609 = vpop.f32.mrb[0].mxu0
    %v2610 = vpop.f32.mrb[0].mxu0
    %v2611 = vadd.f32 0.0, %v2610
    %v2612 = vpop.f32.mrb[0].mxu0
    %2613 = vmatprep.mubr.bf16.mxu0 0
    %2614 = vmatmul.mubr.bf16.gmra.mrb[0].mxu0 %v2568
    %v2615 = vpop.f32.mrb[0].mxu0
    %v2616 = vadd.f32 0.0, %v2615
    %v2617 = vpop.f32.mrb[0].mxu0
    %v2618 = vpop.f32.mrb[0].mxu0
    %v2619 = vadd.f32 0.0, %v2618
    %v2620 = vpop.f32.mrb[0].mxu0
    %2621 = vmatprep.mubr.bf16.mxu0 0
    %2622 = vmatmul.mubr.bf16.gmra.mrb[0].mxu0 %v2571
    %v2623 = vpop.f32.mrb[0].mxu0
    %v2624 = vadd.f32 0.0, %v2623
    %v2625 = vpop.f32.mrb[0].mxu0
    %v2626 = vpop.f32.mrb[0].mxu0
    %v2627 = vpop.f32.mrb[0].mxu0
    %2628 = vdwg.mxu0
    %v2629 = vadd.f32 %v2514, %v2608
    %v2630 = vadd.f32 %v2517, %v2611
    %v2631 = vadd.f32 %v2522, %v2616
    %v2632 = vadd.f32 %v2525, %v2619
    %v2633 = vadd.f32 %v2530, %v2624
    %s2634 = scalar_lea.vmem [#allocation2], 217
    %v2635 = vld [vmem:[%s2634] ss:$2 sm:$0xff]
    %s2636 = scalar_lea.vmem [#allocation2], 233
    %v2637 = vld [vmem:[%s2636] ss:$2 sm:$0xff]
    %s2638 = scalar_lea.vmem [#allocation2], 249
    %v2639 = vld [vmem:[%s2638] ss:$2 sm:$0xff]
    %s2640 = scalar_lea.vmem [#allocation2], 265
    %v2641 = vld [vmem:[%s2640] ss:$2 sm:$0xff]
    %s2642 = scalar_lea.vmem [#allocation2], 281
    %v2643 = vld [vmem:[%s2642] ss:$2 sm:$0x1]
    %v2644 = vld [vmem:[%s5 + $0x30] sm:$0xf]
    %v2645 = vld [vmem:[%s5 + $0x34] sm:$0xf]
    %v2646 = vld [vmem:[%s5 + $0x38] sm:$0xf]
    %v2647 = vld [vmem:[%s5 + $0x3c] sm:$0xf]
    %v2648 = vpack.c.bf16 %v2637, %v2635
    %v2649 = vpack.c.bf16 %v2641, %v2639
    %v2650 = vpack.c.bf16 %v2643, %v2643
    %v2655 = vunpack.c.l.b16 %v2644
    %v2656 = vunpack.c.l.b16 %v2645
    %v2657 = vunpack.c.l.b16 %v2646
    %v2658 = vunpack.c.l.b16 %v2647
    %v2659 = vpack.c.b16 %v2656, %v2655
    %v2660 = vpack.c.b16 %v2658, %v2657
    %v2664 = vsel %vm457, %v2648, 0
    %v2667 = vsel %vm457, %v2649, 0
    %v2670 = vsel %vm457, %v2650, 0
    %2672 = vmatprep.subr.bf16.mxu0 0
    %2673 = vmatpush1.bf16.msra.mxu0 %v2659
    %2674 = vmatprep.subr.bf16.mxu0 0
    %2675 = vmatpush1.bf16.msra.mxu0 %v2660
    %2676 = vmatprep.subr.bf16.mxu0 0
    %2677 = vmatpush1.bf16.msra.mxu0 0
    %2678 = vmatprep.subr.bf16.mxu0 0
    %2679 = vmatpush1.bf16.msra.mxu0 0
    %2680 = vmatprep.subr.bf16.mxu0 0
    %2681 = vmatpush1.bf16.msra.mxu0 0
    %2682 = vmatprep.subr.bf16.mxu0 0
    %2683 = vmatpush1.bf16.msra.mxu0 0
    %2684 = vmatprep.subr.bf16.mxu0 0
    %2685 = vmatpush1.bf16.msra.mxu0 0
    %2686 = vmatprep.subr.bf16.mxu0 0
    %2687 = vmatpush1.bf16.msra.mxu0 0
    %2688 = vmatprep.subr.bf16.mxu0 0
    %2689 = vmatpush1.bf16.msra.mxu0 0
    %2690 = vmatprep.subr.bf16.mxu0 0
    %2691 = vmatpush1.bf16.msra.mxu0 0
    %2692 = vmatprep.subr.bf16.mxu0 0
    %2693 = vmatpush1.bf16.msra.mxu0 0
    %2694 = vmatprep.subr.bf16.mxu0 0
    %2695 = vmatpush1.bf16.msra.mxu0 0
    %2696 = vmatprep.subr.bf16.mxu0 0
    %2697 = vmatpush1.bf16.msra.mxu0 0
    %2698 = vmatprep.subr.bf16.mxu0 0
    %2699 = vmatpush1.bf16.msra.mxu0 0
    %2700 = vmatprep.subr.bf16.mxu0 0
    %2701 = vmatpush1.bf16.msra.mxu0 0
    %2702 = vmatprep.subr.bf16.mxu0 0
    %2703 = vmatpush1.bf16.msra.mxu0 0
    %2704 = vmatprep.mubr.bf16.mxu0 0
    %2705 = vmatmul.mubr.bf16.gmra.mrb[0].mxu0 %v2664
    %v2706 = vpop.f32.mrb[0].mxu0
    %v2707 = vadd.f32 0.0, %v2706
    %v2708 = vpop.f32.mrb[0].mxu0
    %v2709 = vpop.f32.mrb[0].mxu0
    %v2710 = vadd.f32 0.0, %v2709
    %v2711 = vpop.f32.mrb[0].mxu0
    %2712 = vmatprep.mubr.bf16.mxu0 0
    %2713 = vmatmul.mubr.bf16.gmra.mrb[0].mxu0 %v2667
    %v2714 = vpop.f32.mrb[0].mxu0
    %v2715 = vadd.f32 0.0, %v2714
    %v2716 = vpop.f32.mrb[0].mxu0
    %v2717 = vpop.f32.mrb[0].mxu0
    %v2718 = vadd.f32 0.0, %v2717
    %v2719 = vpop.f32.mrb[0].mxu0
    %2720 = vmatprep.mubr.bf16.mxu0 0
    %2721 = vmatmul.mubr.bf16.gmra.mrb[0].mxu0 %v2670
    %v2722 = vpop.f32.mrb[0].mxu0
    %v2723 = vadd.f32 0.0, %v2722
    %v2724 = vpop.f32.mrb[0].mxu0
    %v2725 = vpop.f32.mrb[0].mxu0
    %v2726 = vpop.f32.mrb[0].mxu0
    %2727 = vdwg.mxu0
    %v2728 = vadd.f32 %v2629, %v2707
    %v2729 = vadd.f32 %v2630, %v2710
    %v2730 = vadd.f32 %v2631, %v2715
    %v2731 = vadd.f32 %v2632, %v2718
    %v2732 = vadd.f32 %v2633, %v2723
    %s2733 = scalar_lea.vmem [#allocation2], 146
    %v2734 = vld [vmem:[%s2733] ss:$2 sm:$0xff]
    %s2735 = scalar_lea.vmem [#allocation2], 162
    %v2736 = vld [vmem:[%s2735] ss:$2 sm:$0xff]
    %s2737 = scalar_lea.vmem [#allocation2], 178
    %v2738 = vld [vmem:[%s2737] ss:$2 sm:$0xff]
    %s2739 = scalar_lea.vmem [#allocation2], 194
    %v2740 = vld [vmem:[%s2739] ss:$2 sm:$0xff]
    %s2741 = scalar_lea.vmem [#allocation2], 210
    %v2742 = vld [vmem:[%s2741] ss:$2 sm:$0x1]
    %v2743 = vld [vmem:[%s5 + $0x40] sm:$0xf]
    %v2744 = vld [vmem:[%s5 + $0x44] sm:$0xf]
    %v2745 = vld [vmem:[%s5 + $0x48] sm:$0xf]
    %v2746 = vld [vmem:[%s5 + $0x4c] sm:$0xf]
    %v2747 = vpack.c.bf16 %v2736, %v2734
    %v2748 = vpack.c.bf16 %v2740, %v2738
    %v2749 = vpack.c.bf16 %v2742, %v2742
    %v2754 = vunpack.c.l.b16 %v2743
    %v2755 = vunpack.c.l.b16 %v2744
    %v2756 = vunpack.c.l.b16 %v2745
    %v2757 = vunpack.c.l.b16 %v2746
    %v2758 = vpack.c.b16 %v2755, %v2754
    %v2759 = vpack.c.b16 %v2757, %v2756
    %v2763 = vsel %vm457, %v2747, 0
    %v2766 = vsel %vm457, %v2748, 0
    %v2769 = vsel %vm457, %v2749, 0
    %2771 = vmatprep.subr.bf16.mxu0 0
    %2772 = vmatpush1.bf16.msra.mxu0 %v2758
    %2773 = vmatprep.subr.bf16.mxu0 0
    %2774 = vmatpush1.bf16.msra.mxu0 %v2759
    %2775 = vmatprep.subr.bf16.mxu0 0
    %2776 = vmatpush1.bf16.msra.mxu0 0
    %2777 = vmatprep.subr.bf16.mxu0 0
    %2778 = vmatpush1.bf16.msra.mxu0 0
    %2779 = vmatprep.subr.bf16.mxu0 0
    %2780 = vmatpush1.bf16.msra.mxu0 0
    %2781 = vmatprep.subr.bf16.mxu0 0
    %2782 = vmatpush1.bf16.msra.mxu0 0
    %2783 = vmatprep.subr.bf16.mxu0 0
    %2784 = vmatpush1.bf16.msra.mxu0 0
    %2785 = vmatprep.subr.bf16.mxu0 0
    %2786 = vmatpush1.bf16.msra.mxu0 0
    %2787 = vmatprep.subr.bf16.mxu0 0
    %2788 = vmatpush1.bf16.msra.mxu0 0
    %2789 = vmatprep.subr.bf16.mxu0 0
    %2790 = vmatpush1.bf16.msra.mxu0 0
    %2791 = vmatprep.subr.bf16.mxu0 0
    %2792 = vmatpush1.bf16.msra.mxu0 0
    %2793 = vmatprep.subr.bf16.mxu0 0
    %2794 = vmatpush1.bf16.msra.mxu0 0
    %2795 = vmatprep.subr.bf16.mxu0 0
    %2796 = vmatpush1.bf16.msra.mxu0 0
    %2797 = vmatprep.subr.bf16.mxu0 0
    %2798 = vmatpush1.bf16.msra.mxu0 0
    %2799 = vmatprep.subr.bf16.mxu0 0
    %2800 = vmatpush1.bf16.msra.mxu0 0
    %2801 = vmatprep.subr.bf16.mxu0 0
    %2802 = vmatpush1.bf16.msra.mxu0 0
    %2803 = vmatprep.mubr.bf16.mxu0 0
    %2804 = vmatmul.mubr.bf16.gmra.mrb[0].mxu0 %v2763
    %v2805 = vpop.f32.mrb[0].mxu0
    %v2806 = vadd.f32 0.0, %v2805
    %v2807 = vpop.f32.mrb[0].mxu0
    %v2808 = vpop.f32.mrb[0].mxu0
    %v2809 = vadd.f32 0.0, %v2808
    %v2810 = vpop.f32.mrb[0].mxu0
    %2811 = vmatprep.mubr.bf16.mxu0 0
    %2812 = vmatmul.mubr.bf16.gmra.mrb[0].mxu0 %v2766
    %v2813 = vpop.f32.mrb[0].mxu0
    %v2814 = vadd.f32 0.0, %v2813
    %v2815 = vpop.f32.mrb[0].mxu0
    %v2816 = vpop.f32.mrb[0].mxu0
    %v2817 = vadd.f32 0.0, %v2816
    %v2818 = vpop.f32.mrb[0].mxu0
    %2819 = vmatprep.mubr.bf16.mxu0 0
    %2820 = vmatmul.mubr.bf16.gmra.mrb[0].mxu0 %v2769
    %v2821 = vpop.f32.mrb[0].mxu0
    %v2822 = vadd.f32 0.0, %v2821
    %v2823 = vpop.f32.mrb[0].mxu0
    %v2824 = vpop.f32.mrb[0].mxu0
    %v2825 = vpop.f32.mrb[0].mxu0
    %2826 = vdwg.mxu0
    %v2827 = vadd.f32 %v2728, %v2806
    %v2828 = vadd.f32 %v2729, %v2809
    %v2829 = vadd.f32 %v2730, %v2814
    %v2830 = vadd.f32 %v2731, %v2817
    %v2831 = vadd.f32 %v2732, %v2822
    %s2832 = scalar_lea.vmem [#allocation2], 218
    %v2833 = vld [vmem:[%s2832] ss:$2 sm:$0xff]
    %s2834 = scalar_lea.vmem [#allocation2], 234
    %v2835 = vld [vmem:[%s2834] ss:$2 sm:$0xff]
    %s2836 = scalar_lea.vmem [#allocation2], 250
    %v2837 = vld [vmem:[%s2836] ss:$2 sm:$0xff]
    %s2838 = scalar_lea.vmem [#allocation2], 266
    %v2839 = vld [vmem:[%s2838] ss:$2 sm:$0xff]
    %s2840 = scalar_lea.vmem [#allocation2], 282
    %v2841 = vld [vmem:[%s2840] ss:$2 sm:$0x1]
    %v2842 = vld [vmem:[%s5 + $0x50] sm:$0xf]
    %v2843 = vld [vmem:[%s5 + $0x54] sm:$0xf]
    %v2844 = vld [vmem:[%s5 + $0x58] sm:$0xf]
    %v2845 = vld [vmem:[%s5 + $0x5c] sm:$0xf]
    %v2846 = vpack.c.bf16 %v2835, %v2833
    %v2847 = vpack.c.bf16 %v2839, %v2837
    %v2848 = vpack.c.bf16 %v2841, %v2841
    %v2853 = vunpack.c.l.b16 %v2842
    %v2854 = vunpack.c.l.b16 %v2843
    %v2855 = vunpack.c.l.b16 %v2844
    %v2856 = vunpack.c.l.b16 %v2845
    %v2857 = vpack.c.b16 %v2854, %v2853
    %v2858 = vpack.c.b16 %v2856, %v2855
    %v2862 = vsel %vm457, %v2846, 0
    %v2865 = vsel %vm457, %v2847, 0
    %v2868 = vsel %vm457, %v2848, 0
    %2870 = vmatprep.subr.bf16.mxu0 0
    %2871 = vmatpush1.bf16.msra.mxu0 %v2857
    %2872 = vmatprep.subr.bf16.mxu0 0
    %2873 = vmatpush1.bf16.msra.mxu0 %v2858
    %2874 = vmatprep.subr.bf16.mxu0 0
    %2875 = vmatpush1.bf16.msra.mxu0 0
    %2876 = vmatprep.subr.bf16.mxu0 0
    %2877 = vmatpush1.bf16.msra.mxu0 0
    %2878 = vmatprep.subr.bf16.mxu0 0
    %2879 = vmatpush1.bf16.msra.mxu0 0
    %2880 = vmatprep.subr.bf16.mxu0 0
    %2881 = vmatpush1.bf16.msra.mxu0 0
    %2882 = vmatprep.subr.bf16.mxu0 0
    %2883 = vmatpush1.bf16.msra.mxu0 0
    %2884 = vmatprep.subr.bf16.mxu0 0
    %2885 = vmatpush1.bf16.msra.mxu0 0
    %2886 = vmatprep.subr.bf16.mxu0 0
    %2887 = vmatpush1.bf16.msra.mxu0 0
    %2888 = vmatprep.subr.bf16.mxu0 0
    %2889 = vmatpush1.bf16.msra.mxu0 0
    %2890 = vmatprep.subr.bf16.mxu0 0
    %2891 = vmatpush1.bf16.msra.mxu0 0
    %2892 = vmatprep.subr.bf16.mxu0 0
    %2893 = vmatpush1.bf16.msra.mxu0 0
    %2894 = vmatprep.subr.bf16.mxu0 0
    %2895 = vmatpush1.bf16.msra.mxu0 0
    %2896 = vmatprep.subr.bf16.mxu0 0
    %2897 = vmatpush1.bf16.msra.mxu0 0
    %2898 = vmatprep.subr.bf16.mxu0 0
    %2899 = vmatpush1.bf16.msra.mxu0 0
    %2900 = vmatprep.subr.bf16.mxu0 0
    %2901 = vmatpush1.bf16.msra.mxu0 0
    %2902 = vmatprep.mubr.bf16.mxu0 0
    %2903 = vmatmul.mubr.bf16.gmra.mrb[0].mxu0 %v2862
    %v2904 = vpop.f32.mrb[0].mxu0
    %v2905 = vadd.f32 0.0, %v2904
    %v2906 = vpop.f32.mrb[0].mxu0
    %v2907 = vpop.f32.mrb[0].mxu0
    %v2908 = vadd.f32 0.0, %v2907
    %v2909 = vpop.f32.mrb[0].mxu0
    %2910 = vmatprep.mubr.bf16.mxu0 0
    %2911 = vmatmul.mubr.bf16.gmra.mrb[0].mxu0 %v2865
    %v2912 = vpop.f32.mrb[0].mxu0
    %v2913 = vadd.f32 0.0, %v2912
    %v2914 = vpop.f32.mrb[0].mxu0
    %v2915 = vpop.f32.mrb[0].mxu0
    %v2916 = vadd.f32 0.0, %v2915
    %v2917 = vpop.f32.mrb[0].mxu0
    %2918 = vmatprep.mubr.bf16.mxu0 0
    %2919 = vmatmul.mubr.bf16.gmra.mrb[0].mxu0 %v2868
    %v2920 = vpop.f32.mrb[0].mxu0
    %v2921 = vadd.f32 0.0, %v2920
    %v2922 = vpop.f32.mrb[0].mxu0
    %v2923 = vpop.f32.mrb[0].mxu0
    %v2924 = vpop.f32.mrb[0].mxu0
    %2925 = vdwg.mxu0
    %v2926 = vadd.f32 %v2827, %v2905
    %v2927 = vadd.f32 %v2828, %v2908
    %v2928 = vadd.f32 %v2829, %v2913
    %v2929 = vadd.f32 %v2830, %v2916
    %v2930 = vadd.f32 %v2831, %v2921
    %s2931 = scalar_lea.vmem [#allocation2], 147
    %v2932 = vld [vmem:[%s2931] ss:$2 sm:$0xff]
    %s2933 = scalar_lea.vmem [#allocation2], 163
    %v2934 = vld [vmem:[%s2933] ss:$2 sm:$0xff]
    %s2935 = scalar_lea.vmem [#allocation2], 179
    %v2936 = vld [vmem:[%s2935] ss:$2 sm:$0xff]
    %s2937 = scalar_lea.vmem [#allocation2], 195
    %v2938 = vld [vmem:[%s2937] ss:$2 sm:$0xff]
    %s2939 = scalar_lea.vmem [#allocation2], 211
    %v2940 = vld [vmem:[%s2939] ss:$2 sm:$0x1]
    %v2941 = vld [vmem:[%s5 + $0x60] sm:$0xf]
    %v2942 = vld [vmem:[%s5 + $0x64] sm:$0xf]
    %v2943 = vld [vmem:[%s5 + $0x68] sm:$0xf]
    %v2944 = vld [vmem:[%s5 + $0x6c] sm:$0xf]
    %v2945 = vpack.c.bf16 %v2934, %v2932
    %v2946 = vpack.c.bf16 %v2938, %v2936
    %v2947 = vpack.c.bf16 %v2940, %v2940
    %v2952 = vunpack.c.l.b16 %v2941
    %v2953 = vunpack.c.l.b16 %v2942
    %v2954 = vunpack.c.l.b16 %v2943
    %v2955 = vunpack.c.l.b16 %v2944
    %v2956 = vpack.c.b16 %v2953, %v2952
    %v2957 = vpack.c.b16 %v2955, %v2954
    %v2961 = vsel %vm457, %v2945, 0
    %v2964 = vsel %vm457, %v2946, 0
    %v2967 = vsel %vm457, %v2947, 0
    %2969 = vmatprep.subr.bf16.mxu0 0
    %2970 = vmatpush1.bf16.msra.mxu0 %v2956
    %2971 = vmatprep.subr.bf16.mxu0 0
    %2972 = vmatpush1.bf16.msra.mxu0 %v2957
    %2973 = vmatprep.subr.bf16.mxu0 0
    %2974 = vmatpush1.bf16.msra.mxu0 0
    %2975 = vmatprep.subr.bf16.mxu0 0
    %2976 = vmatpush1.bf16.msra.mxu0 0
    %2977 = vmatprep.subr.bf16.mxu0 0
    %2978 = vmatpush1.bf16.msra.mxu0 0
    %2979 = vmatprep.subr.bf16.mxu0 0
    %2980 = vmatpush1.bf16.msra.mxu0 0
    %2981 = vmatprep.subr.bf16.mxu0 0
    %2982 = vmatpush1.bf16.msra.mxu0 0
    %2983 = vmatprep.subr.bf16.mxu0 0
    %2984 = vmatpush1.bf16.msra.mxu0 0
    %2985 = vmatprep.subr.bf16.mxu0 0
    %2986 = vmatpush1.bf16.msra.mxu0 0
    %2987 = vmatprep.subr.bf16.mxu0 0
    %2988 = vmatpush1.bf16.msra.mxu0 0
    %2989 = vmatprep.subr.bf16.mxu0 0
    %2990 = vmatpush1.bf16.msra.mxu0 0
    %2991 = vmatprep.subr.bf16.mxu0 0
    %2992 = vmatpush1.bf16.msra.mxu0 0
    %2993 = vmatprep.subr.bf16.mxu0 0
    %2994 = vmatpush1.bf16.msra.mxu0 0
    %2995 = vmatprep.subr.bf16.mxu0 0
    %2996 = vmatpush1.bf16.msra.mxu0 0
    %2997 = vmatprep.subr.bf16.mxu0 0
    %2998 = vmatpush1.bf16.msra.mxu0 0
    %2999 = vmatprep.subr.bf16.mxu0 0
    %3000 = vmatpush1.bf16.msra.mxu0 0
    %3001 = vmatprep.mubr.bf16.mxu0 0
    %3002 = vmatmul.mubr.bf16.gmra.mrb[0].mxu0 %v2961
    %v3003 = vpop.f32.mrb[0].mxu0
    %v3004 = vadd.f32 0.0, %v3003
    %v3005 = vpop.f32.mrb[0].mxu0
    %v3006 = vpop.f32.mrb[0].mxu0
    %v3007 = vadd.f32 0.0, %v3006
    %v3008 = vpop.f32.mrb[0].mxu0
    %3009 = vmatprep.mubr.bf16.mxu0 0
    %3010 = vmatmul.mubr.bf16.gmra.mrb[0].mxu0 %v2964
    %v3011 = vpop.f32.mrb[0].mxu0
    %v3012 = vadd.f32 0.0, %v3011
    %v3013 = vpop.f32.mrb[0].mxu0
    %v3014 = vpop.f32.mrb[0].mxu0
    %v3015 = vadd.f32 0.0, %v3014
    %v3016 = vpop.f32.mrb[0].mxu0
    %3017 = vmatprep.mubr.bf16.mxu0 0
    %3018 = vmatmul.mubr.bf16.gmra.mrb[0].mxu0 %v2967
    %v3019 = vpop.f32.mrb[0].mxu0
    %v3020 = vadd.f32 0.0, %v3019
    %v3021 = vpop.f32.mrb[0].mxu0
    %v3022 = vpop.f32.mrb[0].mxu0
    %v3023 = vpop.f32.mrb[0].mxu0
    %3024 = vdwg.mxu0
    %v3025 = vadd.f32 %v2926, %v3004
    %v3026 = vadd.f32 %v2927, %v3007
    %v3027 = vadd.f32 %v2928, %v3012
    %v3028 = vadd.f32 %v2929, %v3015
    %v3029 = vadd.f32 %v2930, %v3020
    %s3030 = scalar_lea.vmem [#allocation2], 219
    %v3031 = vld [vmem:[%s3030] ss:$2 sm:$0xff]
    %s3032 = scalar_lea.vmem [#allocation2], 235
    %v3033 = vld [vmem:[%s3032] ss:$2 sm:$0xff]
    %s3034 = scalar_lea.vmem [#allocation2], 251
    %v3035 = vld [vmem:[%s3034] ss:$2 sm:$0xff]
    %s3036 = scalar_lea.vmem [#allocation2], 267
    %v3037 = vld [vmem:[%s3036] ss:$2 sm:$0xff]
    %s3038 = scalar_lea.vmem [#allocation2], 283
    %v3039 = vld [vmem:[%s3038] ss:$2 sm:$0x1]
    %v3040 = vld [vmem:[%s5 + $0x70] sm:$0xf]
    %v3041 = vld [vmem:[%s5 + $0x74] sm:$0xf]
    %v3042 = vld [vmem:[%s5 + $0x78] sm:$0xf]
    %v3043 = vld [vmem:[%s5 + $0x7c] sm:$0xf]
    %v3044 = vpack.c.bf16 %v3033, %v3031
    %v3045 = vpack.c.bf16 %v3037, %v3035
    %v3046 = vpack.c.bf16 %v3039, %v3039
    %v3051 = vunpack.c.l.b16 %v3040
    %v3052 = vunpack.c.l.b16 %v3041
    %v3053 = vunpack.c.l.b16 %v3042
    %v3054 = vunpack.c.l.b16 %v3043
    %v3055 = vpack.c.b16 %v3052, %v3051
    %v3056 = vpack.c.b16 %v3054, %v3053
    %v3060 = vsel %vm457, %v3044, 0
    %v3063 = vsel %vm457, %v3045, 0
    %v3066 = vsel %vm457, %v3046, 0
    %3068 = vmatprep.subr.bf16.mxu0 0
    %3069 = vmatpush1.bf16.msra.mxu0 %v3055
    %3070 = vmatprep.subr.bf16.mxu0 0
    %3071 = vmatpush1.bf16.msra.mxu0 %v3056
    %3072 = vmatprep.subr.bf16.mxu0 0
    %3073 = vmatpush1.bf16.msra.mxu0 0
    %3074 = vmatprep.subr.bf16.mxu0 0
    %3075 = vmatpush1.bf16.msra.mxu0 0
    %3076 = vmatprep.subr.bf16.mxu0 0
    %3077 = vmatpush1.bf16.msra.mxu0 0
    %3078 = vmatprep.subr.bf16.mxu0 0
    %3079 = vmatpush1.bf16.msra.mxu0 0
    %3080 = vmatprep.subr.bf16.mxu0 0
    %3081 = vmatpush1.bf16.msra.mxu0 0
    %3082 = vmatprep.subr.bf16.mxu0 0
    %3083 = vmatpush1.bf16.msra.mxu0 0
    %3084 = vmatprep.subr.bf16.mxu0 0
    %3085 = vmatpush1.bf16.msra.mxu0 0
    %3086 = vmatprep.subr.bf16.mxu0 0
    %3087 = vmatpush1.bf16.msra.mxu0 0
    %3088 = vmatprep.subr.bf16.mxu0 0
    %3089 = vmatpush1.bf16.msra.mxu0 0
    %3090 = vmatprep.subr.bf16.mxu0 0
    %3091 = vmatpush1.bf16.msra.mxu0 0
    %3092 = vmatprep.subr.bf16.mxu0 0
    %3093 = vmatpush1.bf16.msra.mxu0 0
    %3094 = vmatprep.subr.bf16.mxu0 0
    %3095 = vmatpush1.bf16.msra.mxu0 0
    %3096 = vmatprep.subr.bf16.mxu0 0
    %3097 = vmatpush1.bf16.msra.mxu0 0
    %3098 = vmatprep.subr.bf16.mxu0 0
    %3099 = vmatpush1.bf16.msra.mxu0 0
    %3100 = vmatprep.mubr.bf16.mxu0 0
    %3101 = vmatmul.mubr.bf16.gmra.mrb[0].mxu0 %v3060
    %v3102 = vpop.f32.mrb[0].mxu0
    %v3103 = vadd.f32 0.0, %v3102
    %v3104 = vpop.f32.mrb[0].mxu0
    %v3105 = vpop.f32.mrb[0].mxu0
    %v3106 = vadd.f32 0.0, %v3105
    %v3107 = vpop.f32.mrb[0].mxu0
    %3108 = vmatprep.mubr.bf16.mxu0 0
    %3109 = vmatmul.mubr.bf16.gmra.mrb[0].mxu0 %v3063
    %v3110 = vpop.f32.mrb[0].mxu0
    %v3111 = vadd.f32 0.0, %v3110
    %v3112 = vpop.f32.mrb[0].mxu0
    %v3113 = vpop.f32.mrb[0].mxu0
    %v3114 = vadd.f32 0.0, %v3113
    %v3115 = vpop.f32.mrb[0].mxu0
    %3116 = vmatprep.mubr.bf16.mxu0 0
    %3117 = vmatmul.mubr.bf16.gmra.mrb[0].mxu0 %v3066
    %v3118 = vpop.f32.mrb[0].mxu0
    %v3119 = vadd.f32 0.0, %v3118
    %v3120 = vpop.f32.mrb[0].mxu0
    %v3121 = vpop.f32.mrb[0].mxu0
    %v3122 = vpop.f32.mrb[0].mxu0
    %3123 = vdwg.mxu0
    %v3124 = vadd.f32 %v3025, %v3103
    %v3125 = vadd.f32 %v3026, %v3106
    %v3126 = vadd.f32 %v3027, %v3111
    %v3127 = vadd.f32 %v3028, %v3114
    %v3128 = vadd.f32 %v3029, %v3119
    %s3129 = scalar_lea.vmem [#allocation2], 148
    %v3130 = vld [vmem:[%s3129] ss:$2 sm:$0xff]
    %s3131 = scalar_lea.vmem [#allocation2], 164
    %v3132 = vld [vmem:[%s3131] ss:$2 sm:$0xff]
    %s3133 = scalar_lea.vmem [#allocation2], 180
    %v3134 = vld [vmem:[%s3133] ss:$2 sm:$0xff]
    %s3135 = scalar_lea.vmem [#allocation2], 196
    %v3136 = vld [vmem:[%s3135] ss:$2 sm:$0xff]
    %s3137 = scalar_lea.vmem [#allocation2], 212
    %v3138 = vld [vmem:[%s3137] ss:$2 sm:$0x1]
    %v3139 = vld [vmem:[%s5 + $0x80] sm:$0xf]
    %v3140 = vld [vmem:[%s5 + $0x84] sm:$0xf]
    %v3141 = vld [vmem:[%s5 + $0x88] sm:$0xf]
    %v3142 = vld [vmem:[%s5 + $0x8c] sm:$0xf]
    %v3143 = vpack.c.bf16 %v3132, %v3130
    %v3144 = vpack.c.bf16 %v3136, %v3134
    %v3145 = vpack.c.bf16 %v3138, %v3138
    %v3150 = vunpack.c.l.b16 %v3139
    %v3151 = vunpack.c.l.b16 %v3140
    %v3152 = vunpack.c.l.b16 %v3141
    %v3153 = vunpack.c.l.b16 %v3142
    %v3154 = vpack.c.b16 %v3151, %v3150
    %v3155 = vpack.c.b16 %v3153, %v3152
    %v3159 = vsel %vm457, %v3143, 0
    %v3162 = vsel %vm457, %v3144, 0
    %v3165 = vsel %vm457, %v3145, 0
    %3167 = vmatprep.subr.bf16.mxu0 0
    %3168 = vmatpush1.bf16.msra.mxu0 %v3154
    %3169 = vmatprep.subr.bf16.mxu0 0
    %3170 = vmatpush1.bf16.msra.mxu0 %v3155
    %3171 = vmatprep.subr.bf16.mxu0 0
    %3172 = vmatpush1.bf16.msra.mxu0 0
    %3173 = vmatprep.subr.bf16.mxu0 0
    %3174 = vmatpush1.bf16.msra.mxu0 0
    %3175 = vmatprep.subr.bf16.mxu0 0
    %3176 = vmatpush1.bf16.msra.mxu0 0
    %3177 = vmatprep.subr.bf16.mxu0 0
    %3178 = vmatpush1.bf16.msra.mxu0 0
    %3179 = vmatprep.subr.bf16.mxu0 0
    %3180 = vmatpush1.bf16.msra.mxu0 0
    %3181 = vmatprep.subr.bf16.mxu0 0
    %3182 = vmatpush1.bf16.msra.mxu0 0
    %3183 = vmatprep.subr.bf16.mxu0 0
    %3184 = vmatpush1.bf16.msra.mxu0 0
    %3185 = vmatprep.subr.bf16.mxu0 0
    %3186 = vmatpush1.bf16.msra.mxu0 0
    %3187 = vmatprep.subr.bf16.mxu0 0
    %3188 = vmatpush1.bf16.msra.mxu0 0
    %3189 = vmatprep.subr.bf16.mxu0 0
    %3190 = vmatpush1.bf16.msra.mxu0 0
    %3191 = vmatprep.subr.bf16.mxu0 0
    %3192 = vmatpush1.bf16.msra.mxu0 0
    %3193 = vmatprep.subr.bf16.mxu0 0
    %3194 = vmatpush1.bf16.msra.mxu0 0
    %3195 = vmatprep.subr.bf16.mxu0 0
    %3196 = vmatpush1.bf16.msra.mxu0 0
    %3197 = vmatprep.subr.bf16.mxu0 0
    %3198 = vmatpush1.bf16.msra.mxu0 0
    %3199 = vmatprep.mubr.bf16.mxu0 0
    %3200 = vmatmul.mubr.bf16.gmra.mrb[0].mxu0 %v3159
    %v3201 = vpop.f32.mrb[0].mxu0
    %v3202 = vadd.f32 0.0, %v3201
    %v3203 = vpop.f32.mrb[0].mxu0
    %v3204 = vpop.f32.mrb[0].mxu0
    %v3205 = vadd.f32 0.0, %v3204
    %v3206 = vpop.f32.mrb[0].mxu0
    %3207 = vmatprep.mubr.bf16.mxu0 0
    %3208 = vmatmul.mubr.bf16.gmra.mrb[0].mxu0 %v3162
    %v3209 = vpop.f32.mrb[0].mxu0
    %v3210 = vadd.f32 0.0, %v3209
    %v3211 = vpop.f32.mrb[0].mxu0
    %v3212 = vpop.f32.mrb[0].mxu0
    %v3213 = vadd.f32 0.0, %v3212
    %v3214 = vpop.f32.mrb[0].mxu0
    %3215 = vmatprep.mubr.bf16.mxu0 0
    %3216 = vmatmul.mubr.bf16.gmra.mrb[0].mxu0 %v3165
    %v3217 = vpop.f32.mrb[0].mxu0
    %v3218 = vadd.f32 0.0, %v3217
    %v3219 = vpop.f32.mrb[0].mxu0
    %v3220 = vpop.f32.mrb[0].mxu0
    %v3221 = vpop.f32.mrb[0].mxu0
    %3222 = vdwg.mxu0
    %v3223 = vadd.f32 %v3124, %v3202
    %v3224 = vadd.f32 %v3125, %v3205
    %v3225 = vadd.f32 %v3126, %v3210
    %v3226 = vadd.f32 %v3127, %v3213
    %v3227 = vadd.f32 %v3128, %v3218
    %s3228 = scalar_lea.vmem [#allocation2], 220
    %v3229 = vld [vmem:[%s3228] ss:$2 sm:$0xff]
    %s3230 = scalar_lea.vmem [#allocation2], 236
    %v3231 = vld [vmem:[%s3230] ss:$2 sm:$0xff]
    %s3232 = scalar_lea.vmem [#allocation2], 252
    %v3233 = vld [vmem:[%s3232] ss:$2 sm:$0xff]
    %s3234 = scalar_lea.vmem [#allocation2], 268
    %v3235 = vld [vmem:[%s3234] ss:$2 sm:$0xff]
    %s3236 = scalar_lea.vmem [#allocation2], 284
    %v3237 = vld [vmem:[%s3236] ss:$2 sm:$0x1]
    %v3238 = vld [vmem:[%s5 + $0x90] sm:$0xf]
    %v3239 = vld [vmem:[%s5 + $0x94] sm:$0xf]
    %v3240 = vld [vmem:[%s5 + $0x98] sm:$0xf]
    %v3241 = vld [vmem:[%s5 + $0x9c] sm:$0xf]
    %v3242 = vpack.c.bf16 %v3231, %v3229
    %v3243 = vpack.c.bf16 %v3235, %v3233
    %v3244 = vpack.c.bf16 %v3237, %v3237
    %v3249 = vunpack.c.l.b16 %v3238
    %v3250 = vunpack.c.l.b16 %v3239
    %v3251 = vunpack.c.l.b16 %v3240
    %v3252 = vunpack.c.l.b16 %v3241
    %v3253 = vpack.c.b16 %v3250, %v3249
    %v3254 = vpack.c.b16 %v3252, %v3251
    %v3258 = vsel %vm457, %v3242, 0
    %v3261 = vsel %vm457, %v3243, 0
    %v3264 = vsel %vm457, %v3244, 0
    %3266 = vmatprep.subr.bf16.mxu0 0
    %3267 = vmatpush1.bf16.msra.mxu0 %v3253
    %3268 = vmatprep.subr.bf16.mxu0 0
    %3269 = vmatpush1.bf16.msra.mxu0 %v3254
    %3270 = vmatprep.subr.bf16.mxu0 0
    %3271 = vmatpush1.bf16.msra.mxu0 0
    %3272 = vmatprep.subr.bf16.mxu0 0
    %3273 = vmatpush1.bf16.msra.mxu0 0
    %3274 = vmatprep.subr.bf16.mxu0 0
    %3275 = vmatpush1.bf16.msra.mxu0 0
    %3276 = vmatprep.subr.bf16.mxu0 0
    %3277 = vmatpush1.bf16.msra.mxu0 0
    %3278 = vmatprep.subr.bf16.mxu0 0
    %3279 = vmatpush1.bf16.msra.mxu0 0
    %3280 = vmatprep.subr.bf16.mxu0 0
    %3281 = vmatpush1.bf16.msra.mxu0 0
    %3282 = vmatprep.subr.bf16.mxu0 0
    %3283 = vmatpush1.bf16.msra.mxu0 0
    %3284 = vmatprep.subr.bf16.mxu0 0
    %3285 = vmatpush1.bf16.msra.mxu0 0
    %3286 = vmatprep.subr.bf16.mxu0 0
    %3287 = vmatpush1.bf16.msra.mxu0 0
    %3288 = vmatprep.subr.bf16.mxu0 0
    %3289 = vmatpush1.bf16.msra.mxu0 0
    %3290 = vmatprep.subr.bf16.mxu0 0
    %3291 = vmatpush1.bf16.msra.mxu0 0
    %3292 = vmatprep.subr.bf16.mxu0 0
    %3293 = vmatpush1.bf16.msra.mxu0 0
    %3294 = vmatprep.subr.bf16.mxu0 0
    %3295 = vmatpush1.bf16.msra.mxu0 0
    %3296 = vmatprep.subr.bf16.mxu0 0
    %3297 = vmatpush1.bf16.msra.mxu0 0
    %3298 = vmatprep.mubr.bf16.mxu0 0
    %3299 = vmatmul.mubr.bf16.gmra.mrb[0].mxu0 %v3258
    %v3300 = vpop.f32.mrb[0].mxu0
    %v3301 = vadd.f32 0.0, %v3300
    %v3302 = vpop.f32.mrb[0].mxu0
    %v3303 = vpop.f32.mrb[0].mxu0
    %v3304 = vadd.f32 0.0, %v3303
    %v3305 = vpop.f32.mrb[0].mxu0
    %3306 = vmatprep.mubr.bf16.mxu0 0
    %3307 = vmatmul.mubr.bf16.gmra.mrb[0].mxu0 %v3261
    %v3308 = vpop.f32.mrb[0].mxu0
    %v3309 = vadd.f32 0.0, %v3308
    %v3310 = vpop.f32.mrb[0].mxu0
    %v3311 = vpop.f32.mrb[0].mxu0
    %v3312 = vadd.f32 0.0, %v3311
    %v3313 = vpop.f32.mrb[0].mxu0
    %3314 = vmatprep.mubr.bf16.mxu0 0
    %3315 = vmatmul.mubr.bf16.gmra.mrb[0].mxu0 %v3264
    %v3316 = vpop.f32.mrb[0].mxu0
    %v3317 = vadd.f32 0.0, %v3316
    %v3318 = vpop.f32.mrb[0].mxu0
    %v3319 = vpop.f32.mrb[0].mxu0
    %v3320 = vpop.f32.mrb[0].mxu0
    %3321 = vdwg.mxu0
    %v3322 = vadd.f32 %v3223, %v3301
    %v3323 = vadd.f32 %v3224, %v3304
    %v3324 = vadd.f32 %v3225, %v3309
    %v3325 = vadd.f32 %v3226, %v3312
    %v3326 = vadd.f32 %v3227, %v3317
    %s3327 = scalar_lea.vmem [#allocation2], 149
    %v3328 = vld [vmem:[%s3327] ss:$2 sm:$0xff]
    %s3329 = scalar_lea.vmem [#allocation2], 165
    %v3330 = vld [vmem:[%s3329] ss:$2 sm:$0xff]
    %s3331 = scalar_lea.vmem [#allocation2], 181
    %v3332 = vld [vmem:[%s3331] ss:$2 sm:$0xff]
    %s3333 = scalar_lea.vmem [#allocation2], 197
    %v3334 = vld [vmem:[%s3333] ss:$2 sm:$0xff]
    %s3335 = scalar_lea.vmem [#allocation2], 213
    %v3336 = vld [vmem:[%s3335] ss:$2 sm:$0x1]
    %v3337 = vld [vmem:[%s5 + $0xa0] sm:$0xf]
    %v3338 = vld [vmem:[%s5 + $0xa4] sm:$0xf]
    %v3339 = vld [vmem:[%s5 + $0xa8] sm:$0xf]
    %v3340 = vld [vmem:[%s5 + $0xac] sm:$0xf]
    %v3341 = vpack.c.bf16 %v3330, %v3328
    %v3342 = vpack.c.bf16 %v3334, %v3332
    %v3343 = vpack.c.bf16 %v3336, %v3336
    %v3348 = vunpack.c.l.b16 %v3337
    %v3349 = vunpack.c.l.b16 %v3338
    %v3350 = vunpack.c.l.b16 %v3339
    %v3351 = vunpack.c.l.b16 %v3340
    %v3352 = vpack.c.b16 %v3349, %v3348
    %v3353 = vpack.c.b16 %v3351, %v3350
    %v3357 = vsel %vm457, %v3341, 0
    %v3360 = vsel %vm457, %v3342, 0
    %v3363 = vsel %vm457, %v3343, 0
    %3365 = vmatprep.subr.bf16.mxu0 0
    %3366 = vmatpush1.bf16.msra.mxu0 %v3352
    %3367 = vmatprep.subr.bf16.mxu0 0
    %3368 = vmatpush1.bf16.msra.mxu0 %v3353
    %3369 = vmatprep.subr.bf16.mxu0 0
    %3370 = vmatpush1.bf16.msra.mxu0 0
    %3371 = vmatprep.subr.bf16.mxu0 0
    %3372 = vmatpush1.bf16.msra.mxu0 0
    %3373 = vmatprep.subr.bf16.mxu0 0
    %3374 = vmatpush1.bf16.msra.mxu0 0
    %3375 = vmatprep.subr.bf16.mxu0 0
    %3376 = vmatpush1.bf16.msra.mxu0 0
    %3377 = vmatprep.subr.bf16.mxu0 0
    %3378 = vmatpush1.bf16.msra.mxu0 0
    %3379 = vmatprep.subr.bf16.mxu0 0
    %3380 = vmatpush1.bf16.msra.mxu0 0
    %3381 = vmatprep.subr.bf16.mxu0 0
    %3382 = vmatpush1.bf16.msra.mxu0 0
    %3383 = vmatprep.subr.bf16.mxu0 0
    %3384 = vmatpush1.bf16.msra.mxu0 0
    %3385 = vmatprep.subr.bf16.mxu0 0
    %3386 = vmatpush1.bf16.msra.mxu0 0
    %3387 = vmatprep.subr.bf16.mxu0 0
    %3388 = vmatpush1.bf16.msra.mxu0 0
    %3389 = vmatprep.subr.bf16.mxu0 0
    %3390 = vmatpush1.bf16.msra.mxu0 0
    %3391 = vmatprep.subr.bf16.mxu0 0
    %3392 = vmatpush1.bf16.msra.mxu0 0
    %3393 = vmatprep.subr.bf16.mxu0 0
    %3394 = vmatpush1.bf16.msra.mxu0 0
    %3395 = vmatprep.subr.bf16.mxu0 0
    %3396 = vmatpush1.bf16.msra.mxu0 0
    %3397 = vmatprep.mubr.bf16.mxu0 0
    %3398 = vmatmul.mubr.bf16.gmra.mrb[0].mxu0 %v3357
    %v3399 = vpop.f32.mrb[0].mxu0
    %v3400 = vadd.f32 0.0, %v3399
    %v3401 = vpop.f32.mrb[0].mxu0
    %v3402 = vpop.f32.mrb[0].mxu0
    %v3403 = vadd.f32 0.0, %v3402
    %v3404 = vpop.f32.mrb[0].mxu0
    %3405 = vmatprep.mubr.bf16.mxu0 0
    %3406 = vmatmul.mubr.bf16.gmra.mrb[0].mxu0 %v3360
    %v3407 = vpop.f32.mrb[0].mxu0
    %v3408 = vadd.f32 0.0, %v3407
    %v3409 = vpop.f32.mrb[0].mxu0
    %v3410 = vpop.f32.mrb[0].mxu0
    %v3411 = vadd.f32 0.0, %v3410
    %v3412 = vpop.f32.mrb[0].mxu0
    %3413 = vmatprep.mubr.bf16.mxu0 0
    %3414 = vmatmul.mubr.bf16.gmra.mrb[0].mxu0 %v3363
    %v3415 = vpop.f32.mrb[0].mxu0
    %v3416 = vadd.f32 0.0, %v3415
    %v3417 = vpop.f32.mrb[0].mxu0
    %v3418 = vpop.f32.mrb[0].mxu0
    %v3419 = vpop.f32.mrb[0].mxu0
    %3420 = vdwg.mxu0
    %v3421 = vadd.f32 %v3322, %v3400
    %v3422 = vadd.f32 %v3323, %v3403
    %v3423 = vadd.f32 %v3324, %v3408
    %v3424 = vadd.f32 %v3325, %v3411
    %v3425 = vadd.f32 %v3326, %v3416
    %s3426 = scalar_lea.vmem [#allocation2], 221
    %v3427 = vld [vmem:[%s3426] ss:$2 sm:$0xff]
    %s3428 = scalar_lea.vmem [#allocation2], 237
    %v3429 = vld [vmem:[%s3428] ss:$2 sm:$0xff]
    %s3430 = scalar_lea.vmem [#allocation2], 253
    %v3431 = vld [vmem:[%s3430] ss:$2 sm:$0xff]
    %s3432 = scalar_lea.vmem [#allocation2], 269
    %v3433 = vld [vmem:[%s3432] ss:$2 sm:$0xff]
    %s3434 = scalar_lea.vmem [#allocation2], 285
    %v3435 = vld [vmem:[%s3434] ss:$2 sm:$0x1]
    %v3436 = vld [vmem:[%s5 + $0xb0] sm:$0xf]
    %v3437 = vld [vmem:[%s5 + $0xb4] sm:$0xf]
    %v3438 = vld [vmem:[%s5 + $0xb8] sm:$0xf]
    %v3439 = vld [vmem:[%s5 + $0xbc] sm:$0xf]
    %v3440 = vpack.c.bf16 %v3429, %v3427
    %v3441 = vpack.c.bf16 %v3433, %v3431
    %v3442 = vpack.c.bf16 %v3435, %v3435
    %v3447 = vunpack.c.l.b16 %v3436
    %v3448 = vunpack.c.l.b16 %v3437
    %v3449 = vunpack.c.l.b16 %v3438
    %v3450 = vunpack.c.l.b16 %v3439
    %v3451 = vpack.c.b16 %v3448, %v3447
    %v3452 = vpack.c.b16 %v3450, %v3449
    %v3456 = vsel %vm457, %v3440, 0
    %v3459 = vsel %vm457, %v3441, 0
    %v3462 = vsel %vm457, %v3442, 0
    %3464 = vmatprep.subr.bf16.mxu0 0
    %3465 = vmatpush1.bf16.msra.mxu0 %v3451
    %3466 = vmatprep.subr.bf16.mxu0 0
    %3467 = vmatpush1.bf16.msra.mxu0 %v3452
    %3468 = vmatprep.subr.bf16.mxu0 0
    %3469 = vmatpush1.bf16.msra.mxu0 0
    %3470 = vmatprep.subr.bf16.mxu0 0
    %3471 = vmatpush1.bf16.msra.mxu0 0
    %3472 = vmatprep.subr.bf16.mxu0 0
    %3473 = vmatpush1.bf16.msra.mxu0 0
    %3474 = vmatprep.subr.bf16.mxu0 0
    %3475 = vmatpush1.bf16.msra.mxu0 0
    %3476 = vmatprep.subr.bf16.mxu0 0
    %3477 = vmatpush1.bf16.msra.mxu0 0
    %3478 = vmatprep.subr.bf16.mxu0 0
    %3479 = vmatpush1.bf16.msra.mxu0 0
    %3480 = vmatprep.subr.bf16.mxu0 0
    %3481 = vmatpush1.bf16.msra.mxu0 0
    %3482 = vmatprep.subr.bf16.mxu0 0
    %3483 = vmatpush1.bf16.msra.mxu0 0
    %3484 = vmatprep.subr.bf16.mxu0 0
    %3485 = vmatpush1.bf16.msra.mxu0 0
    %3486 = vmatprep.subr.bf16.mxu0 0
    %3487 = vmatpush1.bf16.msra.mxu0 0
    %3488 = vmatprep.subr.bf16.mxu0 0
    %3489 = vmatpush1.bf16.msra.mxu0 0
    %3490 = vmatprep.subr.bf16.mxu0 0
    %3491 = vmatpush1.bf16.msra.mxu0 0
    %3492 = vmatprep.subr.bf16.mxu0 0
    %3493 = vmatpush1.bf16.msra.mxu0 0
    %3494 = vmatprep.subr.bf16.mxu0 0
    %3495 = vmatpush1.bf16.msra.mxu0 0
    %3496 = vmatprep.mubr.bf16.mxu0 0
    %3497 = vmatmul.mubr.bf16.gmra.mrb[0].mxu0 %v3456
    %v3498 = vpop.f32.mrb[0].mxu0
    %v3499 = vadd.f32 0.0, %v3498
    %v3500 = vpop.f32.mrb[0].mxu0
    %v3501 = vpop.f32.mrb[0].mxu0
    %v3502 = vadd.f32 0.0, %v3501
    %v3503 = vpop.f32.mrb[0].mxu0
    %3504 = vmatprep.mubr.bf16.mxu0 0
    %3505 = vmatmul.mubr.bf16.gmra.mrb[0].mxu0 %v3459
    %v3506 = vpop.f32.mrb[0].mxu0
    %v3507 = vadd.f32 0.0, %v3506
    %v3508 = vpop.f32.mrb[0].mxu0
    %v3509 = vpop.f32.mrb[0].mxu0
    %v3510 = vadd.f32 0.0, %v3509
    %v3511 = vpop.f32.mrb[0].mxu0
    %3512 = vmatprep.mubr.bf16.mxu0 0
    %3513 = vmatmul.mubr.bf16.gmra.mrb[0].mxu0 %v3462
    %v3514 = vpop.f32.mrb[0].mxu0
    %v3515 = vadd.f32 0.0, %v3514
    %v3516 = vpop.f32.mrb[0].mxu0
    %v3517 = vpop.f32.mrb[0].mxu0
    %v3518 = vpop.f32.mrb[0].mxu0
    %3519 = vdwg.mxu0
    %v3520 = vadd.f32 %v3421, %v3499
    %v3521 = vadd.f32 %v3422, %v3502
    %v3522 = vadd.f32 %v3423, %v3507
    %v3523 = vadd.f32 %v3424, %v3510
    %v3524 = vadd.f32 %v3425, %v3515
    %s3525 = scalar_lea.vmem [#allocation2], 150
    %v3526 = vld [vmem:[%s3525] ss:$2 sm:$0xff]
    %s3527 = scalar_lea.vmem [#allocation2], 166
    %v3528 = vld [vmem:[%s3527] ss:$2 sm:$0xff]
    %s3529 = scalar_lea.vmem [#allocation2], 182
    %v3530 = vld [vmem:[%s3529] ss:$2 sm:$0xff]
    %s3531 = scalar_lea.vmem [#allocation2], 198
    %v3532 = vld [vmem:[%s3531] ss:$2 sm:$0xff]
    %s3533 = scalar_lea.vmem [#allocation2], 214
    %v3534 = vld [vmem:[%s3533] ss:$2 sm:$0x1]
    %v3535 = vld [vmem:[%s5 + $0xc0] sm:$0xf]
    %v3536 = vld [vmem:[%s5 + $0xc4] sm:$0xf]
    %v3537 = vld [vmem:[%s5 + $0xc8] sm:$0xf]
    %v3538 = vld [vmem:[%s5 + $0xcc] sm:$0xf]
    %v3539 = vpack.c.bf16 %v3528, %v3526
    %v3540 = vpack.c.bf16 %v3532, %v3530
    %v3541 = vpack.c.bf16 %v3534, %v3534
    %v3546 = vunpack.c.l.b16 %v3535
    %v3547 = vunpack.c.l.b16 %v3536
    %v3548 = vunpack.c.l.b16 %v3537
    %v3549 = vunpack.c.l.b16 %v3538
    %v3550 = vpack.c.b16 %v3547, %v3546
    %v3551 = vpack.c.b16 %v3549, %v3548
    %v3555 = vsel %vm457, %v3539, 0
    %v3558 = vsel %vm457, %v3540, 0
    %v3561 = vsel %vm457, %v3541, 0
    %3563 = vmatprep.subr.bf16.mxu0 0
    %3564 = vmatpush1.bf16.msra.mxu0 %v3550
    %3565 = vmatprep.subr.bf16.mxu0 0
    %3566 = vmatpush1.bf16.msra.mxu0 %v3551
    %3567 = vmatprep.subr.bf16.mxu0 0
    %3568 = vmatpush1.bf16.msra.mxu0 0
    %3569 = vmatprep.subr.bf16.mxu0 0
    %3570 = vmatpush1.bf16.msra.mxu0 0
    %3571 = vmatprep.subr.bf16.mxu0 0
    %3572 = vmatpush1.bf16.msra.mxu0 0
    %3573 = vmatprep.subr.bf16.mxu0 0
    %3574 = vmatpush1.bf16.msra.mxu0 0
    %3575 = vmatprep.subr.bf16.mxu0 0
    %3576 = vmatpush1.bf16.msra.mxu0 0
    %3577 = vmatprep.subr.bf16.mxu0 0
    %3578 = vmatpush1.bf16.msra.mxu0 0
    %3579 = vmatprep.subr.bf16.mxu0 0
    %3580 = vmatpush1.bf16.msra.mxu0 0
    %3581 = vmatprep.subr.bf16.mxu0 0
    %3582 = vmatpush1.bf16.msra.mxu0 0
    %3583 = vmatprep.subr.bf16.mxu0 0
    %3584 = vmatpush1.bf16.msra.mxu0 0
    %3585 = vmatprep.subr.bf16.mxu0 0
    %3586 = vmatpush1.bf16.msra.mxu0 0
    %3587 = vmatprep.subr.bf16.mxu0 0
    %3588 = vmatpush1.bf16.msra.mxu0 0
    %3589 = vmatprep.subr.bf16.mxu0 0
    %3590 = vmatpush1.bf16.msra.mxu0 0
    %3591 = vmatprep.subr.bf16.mxu0 0
    %3592 = vmatpush1.bf16.msra.mxu0 0
    %3593 = vmatprep.subr.bf16.mxu0 0
    %3594 = vmatpush1.bf16.msra.mxu0 0
    %3595 = vmatprep.mubr.bf16.mxu0 0
    %3596 = vmatmul.mubr.bf16.gmra.mrb[0].mxu0 %v3555
    %v3597 = vpop.f32.mrb[0].mxu0
    %v3598 = vadd.f32 0.0, %v3597
    %v3599 = vpop.f32.mrb[0].mxu0
    %v3600 = vpop.f32.mrb[0].mxu0
    %v3601 = vadd.f32 0.0, %v3600
    %v3602 = vpop.f32.mrb[0].mxu0
    %3603 = vmatprep.mubr.bf16.mxu0 0
    %3604 = vmatmul.mubr.bf16.gmra.mrb[0].mxu0 %v3558
    %v3605 = vpop.f32.mrb[0].mxu0
    %v3606 = vadd.f32 0.0, %v3605
    %v3607 = vpop.f32.mrb[0].mxu0
    %v3608 = vpop.f32.mrb[0].mxu0
    %v3609 = vadd.f32 0.0, %v3608
    %v3610 = vpop.f32.mrb[0].mxu0
    %3611 = vmatprep.mubr.bf16.mxu0 0
    %3612 = vmatmul.mubr.bf16.gmra.mrb[0].mxu0 %v3561
    %v3613 = vpop.f32.mrb[0].mxu0
    %v3614 = vadd.f32 0.0, %v3613
    %v3615 = vpop.f32.mrb[0].mxu0
    %v3616 = vpop.f32.mrb[0].mxu0
    %v3617 = vpop.f32.mrb[0].mxu0
    %3618 = vdwg.mxu0
    %v3619 = vadd.f32 %v3520, %v3598
    %v3620 = vadd.f32 %v3521, %v3601
    %v3621 = vadd.f32 %v3522, %v3606
    %v3622 = vadd.f32 %v3523, %v3609
    %v3623 = vadd.f32 %v3524, %v3614
    %s3624 = scalar_lea.vmem [#allocation2], 222
    %v3625 = vld [vmem:[%s3624] ss:$2 sm:$0xff]
    %s3626 = scalar_lea.vmem [#allocation2], 238
    %v3627 = vld [vmem:[%s3626] ss:$2 sm:$0xff]
    %s3628 = scalar_lea.vmem [#allocation2], 254
    %v3629 = vld [vmem:[%s3628] ss:$2 sm:$0xff]
    %s3630 = scalar_lea.vmem [#allocation2], 270
    %v3631 = vld [vmem:[%s3630] ss:$2 sm:$0xff]
    %s3632 = scalar_lea.vmem [#allocation2], 286
    %v3633 = vld [vmem:[%s3632] ss:$2 sm:$0x1]
    %v3634 = vld [vmem:[%s5 + $0xd0] sm:$0xf]
    %v3635 = vld [vmem:[%s5 + $0xd4] sm:$0xf]
    %v3636 = vld [vmem:[%s5 + $0xd8] sm:$0xf]
    %v3637 = vld [vmem:[%s5 + $0xdc] sm:$0xf]
    %v3638 = vpack.c.bf16 %v3627, %v3625
    %v3639 = vpack.c.bf16 %v3631, %v3629
    %v3640 = vpack.c.bf16 %v3633, %v3633
    %v3645 = vunpack.c.l.b16 %v3634
    %v3646 = vunpack.c.l.b16 %v3635
    %v3647 = vunpack.c.l.b16 %v3636
    %v3648 = vunpack.c.l.b16 %v3637
    %v3649 = vpack.c.b16 %v3646, %v3645
    %v3650 = vpack.c.b16 %v3648, %v3647
    %v3654 = vsel %vm457, %v3638, 0
    %v3657 = vsel %vm457, %v3639, 0
    %v3660 = vsel %vm457, %v3640, 0
    %3662 = vmatprep.subr.bf16.mxu0 0
    %3663 = vmatpush1.bf16.msra.mxu0 %v3649
    %3664 = vmatprep.subr.bf16.mxu0 0
    %3665 = vmatpush1.bf16.msra.mxu0 %v3650
    %3666 = vmatprep.subr.bf16.mxu0 0
    %3667 = vmatpush1.bf16.msra.mxu0 0
    %3668 = vmatprep.subr.bf16.mxu0 0
    %3669 = vmatpush1.bf16.msra.mxu0 0
    %3670 = vmatprep.subr.bf16.mxu0 0
    %3671 = vmatpush1.bf16.msra.mxu0 0
    %3672 = vmatprep.subr.bf16.mxu0 0
    %3673 = vmatpush1.bf16.msra.mxu0 0
    %3674 = vmatprep.subr.bf16.mxu0 0
    %3675 = vmatpush1.bf16.msra.mxu0 0
    %3676 = vmatprep.subr.bf16.mxu0 0
    %3677 = vmatpush1.bf16.msra.mxu0 0
    %3678 = vmatprep.subr.bf16.mxu0 0
    %3679 = vmatpush1.bf16.msra.mxu0 0
    %3680 = vmatprep.subr.bf16.mxu0 0
    %3681 = vmatpush1.bf16.msra.mxu0 0
    %3682 = vmatprep.subr.bf16.mxu0 0
    %3683 = vmatpush1.bf16.msra.mxu0 0
    %3684 = vmatprep.subr.bf16.mxu0 0
    %3685 = vmatpush1.bf16.msra.mxu0 0
    %3686 = vmatprep.subr.bf16.mxu0 0
    %3687 = vmatpush1.bf16.msra.mxu0 0
    %3688 = vmatprep.subr.bf16.mxu0 0
    %3689 = vmatpush1.bf16.msra.mxu0 0
    %3690 = vmatprep.subr.bf16.mxu0 0
    %3691 = vmatpush1.bf16.msra.mxu0 0
    %3692 = vmatprep.subr.bf16.mxu0 0
    %3693 = vmatpush1.bf16.msra.mxu0 0
    %3694 = vmatprep.mubr.bf16.mxu0 0
    %3695 = vmatmul.mubr.bf16.gmra.mrb[0].mxu0 %v3654
    %v3696 = vpop.f32.mrb[0].mxu0
    %v3697 = vadd.f32 0.0, %v3696
    %v3698 = vpop.f32.mrb[0].mxu0
    %v3699 = vpop.f32.mrb[0].mxu0
    %v3700 = vadd.f32 0.0, %v3699
    %v3701 = vpop.f32.mrb[0].mxu0
    %3702 = vmatprep.mubr.bf16.mxu0 0
    %3703 = vmatmul.mubr.bf16.gmra.mrb[0].mxu0 %v3657
    %v3704 = vpop.f32.mrb[0].mxu0
    %v3705 = vadd.f32 0.0, %v3704
    %v3706 = vpop.f32.mrb[0].mxu0
    %v3707 = vpop.f32.mrb[0].mxu0
    %v3708 = vadd.f32 0.0, %v3707
    %v3709 = vpop.f32.mrb[0].mxu0
    %3710 = vmatprep.mubr.bf16.mxu0 0
    %3711 = vmatmul.mubr.bf16.gmra.mrb[0].mxu0 %v3660
    %v3712 = vpop.f32.mrb[0].mxu0
    %v3713 = vadd.f32 0.0, %v3712
    %v3714 = vpop.f32.mrb[0].mxu0
    %v3715 = vpop.f32.mrb[0].mxu0
    %v3716 = vpop.f32.mrb[0].mxu0
    %3717 = vdwg.mxu0
    %v3718 = vadd.f32 %v3619, %v3697
    %v3719 = vadd.f32 %v3620, %v3700
    %v3720 = vadd.f32 %v3621, %v3705
    %v3721 = vadd.f32 %v3622, %v3708
    %v3722 = vadd.f32 %v3623, %v3713
    %v3723 = vld [vmem:[%s6] sm:$0x1]
    %v3725 = vlaneseq
    %v3726 = vshrl.u32 %v3725, 7
    %v3727 = vsub.s32 0, %v3726
    %v3728 = vrot.slane %v3723, %v3727
    %v3730 = vadd.f32 %v3718, %v3728
    %v3731 = vadd.f32 %v3719, %v3728
    %v3732 = vadd.f32 %v3720, %v3728
    %v3733 = vadd.f32 %v3721, %v3728
    %v3734 = vadd.f32 %v3722, %v3728
    %3735 = vst.msk [vmem:[#allocation3 + $0x21] sm:$0xff] %vm457, %v3730
    %3736 = vst.msk [vmem:[#allocation3 + $0x29] sm:$0xff] %vm457, %v3731
    %3737 = vst.msk [vmem:[#allocation3 + $0x31] sm:$0xff] %vm457, %v3732
    %3738 = vst.msk [vmem:[#allocation3 + $0x39] sm:$0xff] %vm457, %v3733
    %3739 = vst.msk [vmem:[#allocation3 + $0x41] sm:$0x1] %vm2345, %v3734
    %v3740 = vld [vmem:[#allocation3] sm:$0xff]
    %v3741 = vld [vmem:[#allocation3 + $0x8] sm:$0xff]
    %v3742 = vld [vmem:[#allocation3 + $0x10] sm:$0xff]
    %v3743 = vld [vmem:[#allocation3 + $0x18] sm:$0xff]
    %v3744 = vld [vmem:[#allocation3 + $0x20] sm:$0xff]
    %v3745 = vld [vmem:[#allocation3 + $0x28] sm:$0xff]
    %v3746 = vld [vmem:[#allocation3 + $0x30] sm:$0xff]
    %v3747 = vld [vmem:[#allocation3 + $0x38] sm:$0xff]
    %v3748 = vld [vmem:[#allocation3 + $0x40] sm:$0x3]
    %v3749 = vsel %vm457, %v3740, 0.0
    %v3750 = vsel %vm457, %v3741, 0.0
    %v3751 = vadd.f32 %v3749, %v3750
    %v3752 = vsel %vm457, %v3742, 0.0
    %v3753 = vadd.f32 %v3751, %v3752
    %v3754 = vsel %vm457, %v3743, 0.0
    %v3755 = vadd.f32 %v3753, %v3754
    %v3756 = vsel %vm457, %v3744, 0.0
    %v3757 = vadd.f32 %v3755, %v3756
    %v3758 = vsel %vm457, %v3745, 0.0
    %v3759 = vadd.f32 %v3757, %v3758
    %v3760 = vsel %vm457, %v3746, 0.0
    %v3761 = vadd.f32 %v3759, %v3760
    %v3762 = vsel %vm457, %v3747, 0.0
    %v3763 = vadd.f32 %v3761, %v3762
    %vm3764 = vcmask 254976
    %v3765 = vsel %vm3764, %v3748, 0.0
    %v3766 = vadd.f32 %v3763, %v3765
    %v3767 = vrot.slane %v3766, 4
    %v3768 = vadd.f32 %v3766, %v3767
    %v3769 = vrot.slane %v3768, 2
    %v3770 = vadd.f32 %v3768, %v3769
    %v3771 = vrot.slane %v3770, 1
    %v3772 = vadd.f32 %v3770, %v3771
    %v3773 = vmul.f32 %v3772, 0.015151516
    %v3774 = vsub.f32 %v3740, %v3773
    %v3775 = vsub.f32 %v3741, %v3773
    %v3776 = vsub.f32 %v3742, %v3773
    %v3777 = vsub.f32 %v3743, %v3773
    %v3778 = vsub.f32 %v3744, %v3773
    %v3779 = vsub.f32 %v3745, %v3773
    %v3780 = vsub.f32 %v3746, %v3773
    %v3781 = vsub.f32 %v3747, %v3773
    %v3782 = vsub.f32 %v3748, %v3773
    %v3783 = vmul.f32 %v3774, %v3774
    %v3784 = vmul.f32 %v3775, %v3775
    %v3785 = vmul.f32 %v3776, %v3776
    %v3786 = vmul.f32 %v3777, %v3777
    %v3787 = vmul.f32 %v3778, %v3778
    %v3788 = vmul.f32 %v3779, %v3779
    %v3789 = vmul.f32 %v3780, %v3780
    %v3790 = vmul.f32 %v3781, %v3781
    %v3791 = vmul.f32 %v3782, %v3782
    %v3792 = vsel %vm457, %v3783, 0.0
    %v3793 = vsel %vm457, %v3784, 0.0
    %v3794 = vadd.f32 %v3792, %v3793
    %v3795 = vsel %vm457, %v3785, 0.0
    %v3796 = vadd.f32 %v3794, %v3795
    %v3797 = vsel %vm457, %v3786, 0.0
    %v3798 = vadd.f32 %v3796, %v3797
    %v3799 = vsel %vm457, %v3787, 0.0
    %v3800 = vadd.f32 %v3798, %v3799
    %v3801 = vsel %vm457, %v3788, 0.0
    %v3802 = vadd.f32 %v3800, %v3801
    %v3803 = vsel %vm457, %v3789, 0.0
    %v3804 = vadd.f32 %v3802, %v3803
    %v3805 = vsel %vm457, %v3790, 0.0
    %v3806 = vadd.f32 %v3804, %v3805
    %v3807 = vsel %vm3764, %v3791, 0.0
    %v3808 = vadd.f32 %v3806, %v3807
    %v3809 = vrot.slane %v3808, 4
    %v3810 = vadd.f32 %v3808, %v3809
    %v3811 = vrot.slane %v3810, 2
    %v3812 = vadd.f32 %v3810, %v3811
    %v3813 = vrot.slane %v3812, 1
    %v3814 = vadd.f32 %v3812, %v3813
    %v3815 = vmul.f32 %v3814, 0.015151516
    %v3816 = vadd.f32 %v3815, 1e-05
    %v3817 = vrsqrt.pop %v3816
    %v3818 = vmul.f32 %v3774, %v3817
    %v3819 = vmul.f32 %v3775, %v3817
    %v3820 = vmul.f32 %v3776, %v3817
    %v3821 = vmul.f32 %v3777, %v3817
    %v3822 = vmul.f32 %v3778, %v3817
    %v3823 = vmul.f32 %v3779, %v3817
    %v3824 = vmul.f32 %v3780, %v3817
    %v3825 = vmul.f32 %v3781, %v3817
    %v3826 = vmul.f32 %v3782, %v3817
    %v3827 = vld [vmem:[%s7] sm:$0x1]
    %v3829 = vlaneseq
    %v3830 = vshrl.u32 %v3829, 7
    %v3831 = vsub.s32 0, %v3830
    %v3832 = vrot.slane %v3827, %v3831
    %v3834 = vmul.f32 %v3818, %v3832
    %v3835 = vmul.f32 %v3819, %v3832
    %v3836 = vmul.f32 %v3820, %v3832
    %v3837 = vmul.f32 %v3821, %v3832
    %v3838 = vmul.f32 %v3822, %v3832
    %v3839 = vmul.f32 %v3823, %v3832
    %v3840 = vmul.f32 %v3824, %v3832
    %v3841 = vmul.f32 %v3825, %v3832
    %v3842 = vmul.f32 %v3826, %v3832
    %v3843 = vld [vmem:[%s8] sm:$0x1]
    %v3845 = vlaneseq
    %v3846 = vshrl.u32 %v3845, 7
    %v3847 = vsub.s32 0, %v3846
    %v3848 = vrot.slane %v3843, %v3847
    %v3850 = vadd.f32 %v3834, %v3848
    %v3851 = vadd.f32 %v3835, %v3848
    %v3852 = vadd.f32 %v3836, %v3848
    %v3853 = vadd.f32 %v3837, %v3848
    %v3854 = vadd.f32 %v3838, %v3848
    %v3855 = vadd.f32 %v3839, %v3848
    %v3856 = vadd.f32 %v3840, %v3848
    %v3857 = vadd.f32 %v3841, %v3848
    %v3858 = vadd.f32 %v3842, %v3848
    %v3859 = vmax.f32 %v3850, 0.0
    %v3860 = vmax.f32 %v3851, 0.0
    %v3861 = vmax.f32 %v3852, 0.0
    %v3862 = vmax.f32 %v3853, 0.0
    %v3863 = vmax.f32 %v3854, 0.0
    %v3864 = vmax.f32 %v3855, 0.0
    %v3865 = vmax.f32 %v3856, 0.0
    %v3866 = vmax.f32 %v3857, 0.0
    %v3867 = vmax.f32 %v3858, 0.0
    %3868 = vst.msk [vmem:[#allocation3] sm:$0xff] %vm457, %v3859
    %3869 = vst.msk [vmem:[#allocation3 + $0x8] sm:$0xff] %vm457, %v3860
    %3870 = vst.msk [vmem:[#allocation3 + $0x10] sm:$0xff] %vm457, %v3861
    %3871 = vst.msk [vmem:[#allocation3 + $0x18] sm:$0xff] %vm457, %v3862
    %3872 = vst.msk [vmem:[#allocation3 + $0x20] sm:$0xff] %vm457, %v3863
    %3873 = vst.msk [vmem:[#allocation3 + $0x28] sm:$0xff] %vm457, %v3864
    %3874 = vst.msk [vmem:[#allocation3 + $0x30] sm:$0xff] %vm457, %v3865
    %3875 = vst.msk [vmem:[#allocation3 + $0x38] sm:$0xff] %vm457, %v3866
    %3876 = vst.msk [vmem:[#allocation3 + $0x40] sm:$0x3] %vm3764, %v3867
    %v3877 = vld [vmem:[#allocation3] ss:$3 sm:$0xff]
    %s3878 = scalar_lea.vmem [#allocation3], 24
    %v3879 = vld [vmem:[%s3878] ss:$3 sm:$0x3]
    %v3880 = vld [vmem:[%s9] sm:$0xf]
    %v3881 = vld [vmem:[%s9 + $0x4] sm:$0xf]
    %v3882 = vld [vmem:[%s9 + $0x8] sm:$0xf]
    %v3883 = vld [vmem:[%s9 + $0xc] sm:$0xf]
    %v3884 = vpack.c.bf16 %v3879, %v3877
    %s3885 = scalar_lea.vmem [#allocation3], 1
    %v3886 = vld [vmem:[%s3885] ss:$3 sm:$0xff]
    %s3887 = scalar_lea.vmem [#allocation3], 25
    %v3888 = vld [vmem:[%s3887] ss:$3 sm:$0x3]
    %v3889 = vld [vmem:[%s9 + $0x10] sm:$0xf]
    %v3890 = vld [vmem:[%s9 + $0x14] sm:$0xf]
    %v3891 = vld [vmem:[%s9 + $0x18] sm:$0xf]
    %v3892 = vld [vmem:[%s9 + $0x1c] sm:$0xf]
    %v3893 = vpack.c.bf16 %v3888, %v3886
    %v3898 = vunpack.c.l.b16 %v3889
    %v3899 = vunpack.c.l.b16 %v3890
    %v3900 = vunpack.c.l.b16 %v3891
    %v3901 = vunpack.c.l.b16 %v3892
    %v3902 = vpack.c.b16 %v3899, %v3898
    %v3903 = vpack.c.b16 %v3901, %v3900
    %v3907 = vsel %vm457, %v3893, 0
    %3909 = vmatprep.subr.bf16.mxu0 0
    %3910 = vmatpush1.bf16.msra.mxu0 %v3902
    %3911 = vmatprep.subr.bf16.mxu0 0
    %3912 = vmatpush1.bf16.msra.mxu0 %v3903
    %3913 = vmatprep.subr.bf16.mxu0 0
    %3914 = vmatpush1.bf16.msra.mxu0 0
    %3915 = vmatprep.subr.bf16.mxu0 0
    %3916 = vmatpush1.bf16.msra.mxu0 0
    %3917 = vmatprep.subr.bf16.mxu0 0
    %3918 = vmatpush1.bf16.msra.mxu0 0
    %3919 = vmatprep.subr.bf16.mxu0 0
    %3920 = vmatpush1.bf16.msra.mxu0 0
    %3921 = vmatprep.subr.bf16.mxu0 0
    %3922 = vmatpush1.bf16.msra.mxu0 0
    %3923 = vmatprep.subr.bf16.mxu0 0
    %3924 = vmatpush1.bf16.msra.mxu0 0
    %3925 = vmatprep.subr.bf16.mxu0 0
    %3926 = vmatpush1.bf16.msra.mxu0 0
    %3927 = vmatprep.subr.bf16.mxu0 0
    %3928 = vmatpush1.bf16.msra.mxu0 0
    %3929 = vmatprep.subr.bf16.mxu0 0
    %3930 = vmatpush1.bf16.msra.mxu0 0
    %3931 = vmatprep.subr.bf16.mxu0 0
    %3932 = vmatpush1.bf16.msra.mxu0 0
    %3933 = vmatprep.subr.bf16.mxu0 0
    %3934 = vmatpush1.bf16.msra.mxu0 0
    %3935 = vmatprep.subr.bf16.mxu0 0
    %3936 = vmatpush1.bf16.msra.mxu0 0
    %3937 = vmatprep.subr.bf16.mxu0 0
    %3938 = vmatpush1.bf16.msra.mxu0 0
    %3939 = vmatprep.subr.bf16.mxu0 0
    %3940 = vmatpush1.bf16.msra.mxu0 0
    %3941 = vmatprep.mubr.bf16.mxu0 0
    %3942 = vmatmul.mubr.bf16.gmra.mrb[0].mxu0 %v3907
    %v3943 = vpop.f32.mrb[0].mxu0
    %v3944 = vadd.f32 0.0, %v3943
    %v3945 = vpop.f32.mrb[0].mxu0
    %v3946 = vpop.f32.mrb[0].mxu0
    %v3947 = vadd.f32 0.0, %v3946
    %v3948 = vpop.f32.mrb[0].mxu0
    %3949 = vdwg.mxu0
    %v3954 = vunpack.c.l.b16 %v3880
    %v3955 = vunpack.c.l.b16 %v3881
    %v3956 = vunpack.c.l.b16 %v3882
    %v3957 = vunpack.c.l.b16 %v3883
    %v3958 = vpack.c.b16 %v3955, %v3954
    %v3959 = vpack.c.b16 %v3957, %v3956
    %v3963 = vsel %vm457, %v3884, 0
    %3965 = vmatprep.subr.bf16.mxu0 0
    %3966 = vmatpush1.bf16.msra.mxu0 %v3958
    %3967 = vmatprep.subr.bf16.mxu0 0
    %3968 = vmatpush1.bf16.msra.mxu0 %v3959
    %3969 = vmatprep.subr.bf16.mxu0 0
    %3970 = vmatpush1.bf16.msra.mxu0 0
    %3971 = vmatprep.subr.bf16.mxu0 0
    %3972 = vmatpush1.bf16.msra.mxu0 0
    %3973 = vmatprep.subr.bf16.mxu0 0
    %3974 = vmatpush1.bf16.msra.mxu0 0
    %3975 = vmatprep.subr.bf16.mxu0 0
    %3976 = vmatpush1.bf16.msra.mxu0 0
    %3977 = vmatprep.subr.bf16.mxu0 0
    %3978 = vmatpush1.bf16.msra.mxu0 0
    %3979 = vmatprep.subr.bf16.mxu0 0
    %3980 = vmatpush1.bf16.msra.mxu0 0
    %3981 = vmatprep.subr.bf16.mxu0 0
    %3982 = vmatpush1.bf16.msra.mxu0 0
    %3983 = vmatprep.subr.bf16.mxu0 0
    %3984 = vmatpush1.bf16.msra.mxu0 0
    %3985 = vmatprep.subr.bf16.mxu0 0
    %3986 = vmatpush1.bf16.msra.mxu0 0
    %3987 = vmatprep.subr.bf16.mxu0 0
    %3988 = vmatpush1.bf16.msra.mxu0 0
    %3989 = vmatprep.subr.bf16.mxu0 0
    %3990 = vmatpush1.bf16.msra.mxu0 0
    %3991 = vmatprep.subr.bf16.mxu0 0
    %3992 = vmatpush1.bf16.msra.mxu0 0
    %3993 = vmatprep.subr.bf16.mxu0 0
    %3994 = vmatpush1.bf16.msra.mxu0 0
    %3995 = vmatprep.subr.bf16.mxu0 0
    %3996 = vmatpush1.bf16.msra.mxu0 0
    %3997 = vmatprep.mubr.bf16.mxu0 0
    %3998 = vmatmul.mubr.bf16.gmra.mrb[0].mxu0 %v3963
    %v3999 = vpop.f32.mrb[0].mxu0
    %v4000 = vadd.f32 %v3944, %v3999
    %v4001 = vpop.f32.mrb[0].mxu0
    %v4002 = vpop.f32.mrb[0].mxu0
    %v4003 = vadd.f32 %v3947, %v4002
    %v4004 = vpop.f32.mrb[0].mxu0
    %4005 = vdwg.mxu0
    %s4006 = scalar_lea.vmem [#allocation3], 2
    %v4007 = vld [vmem:[%s4006] ss:$3 sm:$0xff]
    %s4008 = scalar_lea.vmem [#allocation3], 26
    %v4009 = vld [vmem:[%s4008] ss:$3 sm:$0x3]
    %v4010 = vld [vmem:[%s9 + $0x20] sm:$0xf]
    %v4011 = vld [vmem:[%s9 + $0x24] sm:$0xf]
    %v4012 = vld [vmem:[%s9 + $0x28] sm:$0xf]
    %v4013 = vld [vmem:[%s9 + $0x2c] sm:$0xf]
    %v4014 = vpack.c.bf16 %v4009, %v4007
    %v4019 = vunpack.c.l.b16 %v4010
    %v4020 = vunpack.c.l.b16 %v4011
    %v4021 = vunpack.c.l.b16 %v4012
    %v4022 = vunpack.c.l.b16 %v4013
    %v4023 = vpack.c.b16 %v4020, %v4019
    %v4024 = vpack.c.b16 %v4022, %v4021
    %v4028 = vsel %vm457, %v4014, 0
    %4030 = vmatprep.subr.bf16.mxu0 0
    %4031 = vmatpush1.bf16.msra.mxu0 %v4023
    %4032 = vmatprep.subr.bf16.mxu0 0
    %4033 = vmatpush1.bf16.msra.mxu0 %v4024
    %4034 = vmatprep.subr.bf16.mxu0 0
    %4035 = vmatpush1.bf16.msra.mxu0 0
    %4036 = vmatprep.subr.bf16.mxu0 0
    %4037 = vmatpush1.bf16.msra.mxu0 0
    %4038 = vmatprep.subr.bf16.mxu0 0
    %4039 = vmatpush1.bf16.msra.mxu0 0
    %4040 = vmatprep.subr.bf16.mxu0 0
    %4041 = vmatpush1.bf16.msra.mxu0 0
    %4042 = vmatprep.subr.bf16.mxu0 0
    %4043 = vmatpush1.bf16.msra.mxu0 0
    %4044 = vmatprep.subr.bf16.mxu0 0
    %4045 = vmatpush1.bf16.msra.mxu0 0
    %4046 = vmatprep.subr.bf16.mxu0 0
    %4047 = vmatpush1.bf16.msra.mxu0 0
    %4048 = vmatprep.subr.bf16.mxu0 0
    %4049 = vmatpush1.bf16.msra.mxu0 0
    %4050 = vmatprep.subr.bf16.mxu0 0
    %4051 = vmatpush1.bf16.msra.mxu0 0
    %4052 = vmatprep.subr.bf16.mxu0 0
    %4053 = vmatpush1.bf16.msra.mxu0 0
    %4054 = vmatprep.subr.bf16.mxu0 0
    %4055 = vmatpush1.bf16.msra.mxu0 0
    %4056 = vmatprep.subr.bf16.mxu0 0
    %4057 = vmatpush1.bf16.msra.mxu0 0
    %4058 = vmatprep.subr.bf16.mxu0 0
    %4059 = vmatpush1.bf16.msra.mxu0 0
    %4060 = vmatprep.subr.bf16.mxu0 0
    %4061 = vmatpush1.bf16.msra.mxu0 0
    %4062 = vmatprep.mubr.bf16.mxu0 0
    %4063 = vmatmul.mubr.bf16.gmra.mrb[0].mxu0 %v4028
    %v4064 = vpop.f32.mrb[0].mxu0
    %v4065 = vadd.f32 0.0, %v4064
    %v4066 = vpop.f32.mrb[0].mxu0
    %v4067 = vpop.f32.mrb[0].mxu0
    %v4068 = vadd.f32 0.0, %v4067
    %v4069 = vpop.f32.mrb[0].mxu0
    %4070 = vdwg.mxu0
    %v4071 = vadd.f32 %v4000, %v4065
    %v4072 = vadd.f32 %v4003, %v4068
    %s4073 = scalar_lea.vmem [#allocation3], 3
    %v4074 = vld [vmem:[%s4073] ss:$3 sm:$0xff]
    %s4075 = scalar_lea.vmem [#allocation3], 27
    %v4076 = vld [vmem:[%s4075] ss:$3 sm:$0x3]
    %v4077 = vld [vmem:[%s9 + $0x30] sm:$0xf]
    %v4078 = vld [vmem:[%s9 + $0x34] sm:$0xf]
    %v4079 = vld [vmem:[%s9 + $0x38] sm:$0xf]
    %v4080 = vld [vmem:[%s9 + $0x3c] sm:$0xf]
    %v4081 = vpack.c.bf16 %v4076, %v4074
    %v4086 = vunpack.c.l.b16 %v4077
    %v4087 = vunpack.c.l.b16 %v4078
    %v4088 = vunpack.c.l.b16 %v4079
    %v4089 = vunpack.c.l.b16 %v4080
    %v4090 = vpack.c.b16 %v4087, %v4086
    %v4091 = vpack.c.b16 %v4089, %v4088
    %v4095 = vsel %vm457, %v4081, 0
    %4097 = vmatprep.subr.bf16.mxu0 0
    %4098 = vmatpush1.bf16.msra.mxu0 %v4090
    %4099 = vmatprep.subr.bf16.mxu0 0
    %4100 = vmatpush1.bf16.msra.mxu0 %v4091
    %4101 = vmatprep.subr.bf16.mxu0 0
    %4102 = vmatpush1.bf16.msra.mxu0 0
    %4103 = vmatprep.subr.bf16.mxu0 0
    %4104 = vmatpush1.bf16.msra.mxu0 0
    %4105 = vmatprep.subr.bf16.mxu0 0
    %4106 = vmatpush1.bf16.msra.mxu0 0
    %4107 = vmatprep.subr.bf16.mxu0 0
    %4108 = vmatpush1.bf16.msra.mxu0 0
    %4109 = vmatprep.subr.bf16.mxu0 0
    %4110 = vmatpush1.bf16.msra.mxu0 0
    %4111 = vmatprep.subr.bf16.mxu0 0
    %4112 = vmatpush1.bf16.msra.mxu0 0
    %4113 = vmatprep.subr.bf16.mxu0 0
    %4114 = vmatpush1.bf16.msra.mxu0 0
    %4115 = vmatprep.subr.bf16.mxu0 0
    %4116 = vmatpush1.bf16.msra.mxu0 0
    %4117 = vmatprep.subr.bf16.mxu0 0
    %4118 = vmatpush1.bf16.msra.mxu0 0
    %4119 = vmatprep.subr.bf16.mxu0 0
    %4120 = vmatpush1.bf16.msra.mxu0 0
    %4121 = vmatprep.subr.bf16.mxu0 0
    %4122 = vmatpush1.bf16.msra.mxu0 0
    %4123 = vmatprep.subr.bf16.mxu0 0
    %4124 = vmatpush1.bf16.msra.mxu0 0
    %4125 = vmatprep.subr.bf16.mxu0 0
    %4126 = vmatpush1.bf16.msra.mxu0 0
    %4127 = vmatprep.subr.bf16.mxu0 0
    %4128 = vmatpush1.bf16.msra.mxu0 0
    %4129 = vmatprep.mubr.bf16.mxu0 0
    %4130 = vmatmul.mubr.bf16.gmra.mrb[0].mxu0 %v4095
    %v4131 = vpop.f32.mrb[0].mxu0
    %v4132 = vadd.f32 0.0, %v4131
    %v4133 = vpop.f32.mrb[0].mxu0
    %v4134 = vpop.f32.mrb[0].mxu0
    %v4135 = vadd.f32 0.0, %v4134
    %v4136 = vpop.f32.mrb[0].mxu0
    %4137 = vdwg.mxu0
    %v4138 = vadd.f32 %v4071, %v4132
    %v4139 = vadd.f32 %v4072, %v4135
    %s4140 = scalar_lea.vmem [#allocation3], 4
    %v4141 = vld [vmem:[%s4140] ss:$3 sm:$0xff]
    %s4142 = scalar_lea.vmem [#allocation3], 28
    %v4143 = vld [vmem:[%s4142] ss:$3 sm:$0x3]
    %v4144 = vld [vmem:[%s9 + $0x40] sm:$0xf]
    %v4145 = vld [vmem:[%s9 + $0x44] sm:$0xf]
    %v4146 = vld [vmem:[%s9 + $0x48] sm:$0xf]
    %v4147 = vld [vmem:[%s9 + $0x4c] sm:$0xf]
    %v4148 = vpack.c.bf16 %v4143, %v4141
    %v4153 = vunpack.c.l.b16 %v4144
    %v4154 = vunpack.c.l.b16 %v4145
    %v4155 = vunpack.c.l.b16 %v4146
    %v4156 = vunpack.c.l.b16 %v4147
    %v4157 = vpack.c.b16 %v4154, %v4153
    %v4158 = vpack.c.b16 %v4156, %v4155
    %v4162 = vsel %vm457, %v4148, 0
    %4164 = vmatprep.subr.bf16.mxu0 0
    %4165 = vmatpush1.bf16.msra.mxu0 %v4157
    %4166 = vmatprep.subr.bf16.mxu0 0
    %4167 = vmatpush1.bf16.msra.mxu0 %v4158
    %4168 = vmatprep.subr.bf16.mxu0 0
    %4169 = vmatpush1.bf16.msra.mxu0 0
    %4170 = vmatprep.subr.bf16.mxu0 0
    %4171 = vmatpush1.bf16.msra.mxu0 0
    %4172 = vmatprep.subr.bf16.mxu0 0
    %4173 = vmatpush1.bf16.msra.mxu0 0
    %4174 = vmatprep.subr.bf16.mxu0 0
    %4175 = vmatpush1.bf16.msra.mxu0 0
    %4176 = vmatprep.subr.bf16.mxu0 0
    %4177 = vmatpush1.bf16.msra.mxu0 0
    %4178 = vmatprep.subr.bf16.mxu0 0
    %4179 = vmatpush1.bf16.msra.mxu0 0
    %4180 = vmatprep.subr.bf16.mxu0 0
    %4181 = vmatpush1.bf16.msra.mxu0 0
    %4182 = vmatprep.subr.bf16.mxu0 0
    %4183 = vmatpush1.bf16.msra.mxu0 0
    %4184 = vmatprep.subr.bf16.mxu0 0
    %4185 = vmatpush1.bf16.msra.mxu0 0
    %4186 = vmatprep.subr.bf16.mxu0 0
    %4187 = vmatpush1.bf16.msra.mxu0 0
    %4188 = vmatprep.subr.bf16.mxu0 0
    %4189 = vmatpush1.bf16.msra.mxu0 0
    %4190 = vmatprep.subr.bf16.mxu0 0
    %4191 = vmatpush1.bf16.msra.mxu0 0
    %4192 = vmatprep.subr.bf16.mxu0 0
    %4193 = vmatpush1.bf16.msra.mxu0 0
    %4194 = vmatprep.subr.bf16.mxu0 0
    %4195 = vmatpush1.bf16.msra.mxu0 0
    %4196 = vmatprep.mubr.bf16.mxu0 0
    %4197 = vmatmul.mubr.bf16.gmra.mrb[0].mxu0 %v4162
    %v4198 = vpop.f32.mrb[0].mxu0
    %v4199 = vadd.f32 0.0, %v4198
    %v4200 = vpop.f32.mrb[0].mxu0
    %v4201 = vpop.f32.mrb[0].mxu0
    %v4202 = vadd.f32 0.0, %v4201
    %v4203 = vpop.f32.mrb[0].mxu0
    %4204 = vdwg.mxu0
    %v4205 = vadd.f32 %v4138, %v4199
    %v4206 = vadd.f32 %v4139, %v4202
    %v4207 = vld [vmem:[%s10] sm:$0x1]
    %v4209 = vlaneseq
    %v4210 = vshrl.u32 %v4209, 7
    %v4211 = vsub.s32 0, %v4210
    %v4212 = vrot.slane %v4207, %v4211
    %v4214 = vadd.f32 %v4205, %v4212
    %v4215 = vadd.f32 %v4206, %v4212
    %vm4216 = vcmask 523264
    %4217 = vst.msk [vmem:[#allocation4] sm:$0xff] %vm4216, %v4214
    %vm4218 = vcmask 517120
    %4219 = vst.msk [vmem:[#allocation4 + $0x8] sm:$0x3] %vm4218, %v4215
    %s4220 = scalar_lea.vmem [#allocation3], 33
    %v4221 = vld [vmem:[%s4220] ss:$3 sm:$0xff]
    %s4222 = scalar_lea.vmem [#allocation3], 57
    %v4223 = vld [vmem:[%s4222] ss:$3 sm:$0x3]
    %v4224 = vld [vmem:[%s9] sm:$0xf]
    %v4225 = vld [vmem:[%s9 + $0x4] sm:$0xf]
    %v4226 = vld [vmem:[%s9 + $0x8] sm:$0xf]
    %v4227 = vld [vmem:[%s9 + $0xc] sm:$0xf]
    %v4228 = vpack.c.bf16 %v4223, %v4221
    %s4229 = scalar_lea.vmem [#allocation3], 34
    %v4230 = vld [vmem:[%s4229] ss:$3 sm:$0xff]
    %s4231 = scalar_lea.vmem [#allocation3], 58
    %v4232 = vld [vmem:[%s4231] ss:$3 sm:$0x3]
    %v4233 = vld [vmem:[%s9 + $0x10] sm:$0xf]
    %v4234 = vld [vmem:[%s9 + $0x14] sm:$0xf]
    %v4235 = vld [vmem:[%s9 + $0x18] sm:$0xf]
    %v4236 = vld [vmem:[%s9 + $0x1c] sm:$0xf]
    %v4237 = vpack.c.bf16 %v4232, %v4230
    %v4242 = vunpack.c.l.b16 %v4233
    %v4243 = vunpack.c.l.b16 %v4234
    %v4244 = vunpack.c.l.b16 %v4235
    %v4245 = vunpack.c.l.b16 %v4236
    %v4246 = vpack.c.b16 %v4243, %v4242
    %v4247 = vpack.c.b16 %v4245, %v4244
    %v4251 = vsel %vm457, %v4237, 0
    %4253 = vmatprep.subr.bf16.mxu0 0
    %4254 = vmatpush1.bf16.msra.mxu0 %v4246
    %4255 = vmatprep.subr.bf16.mxu0 0
    %4256 = vmatpush1.bf16.msra.mxu0 %v4247
    %4257 = vmatprep.subr.bf16.mxu0 0
    %4258 = vmatpush1.bf16.msra.mxu0 0
    %4259 = vmatprep.subr.bf16.mxu0 0
    %4260 = vmatpush1.bf16.msra.mxu0 0
    %4261 = vmatprep.subr.bf16.mxu0 0
    %4262 = vmatpush1.bf16.msra.mxu0 0
    %4263 = vmatprep.subr.bf16.mxu0 0
    %4264 = vmatpush1.bf16.msra.mxu0 0
    %4265 = vmatprep.subr.bf16.mxu0 0
    %4266 = vmatpush1.bf16.msra.mxu0 0
    %4267 = vmatprep.subr.bf16.mxu0 0
    %4268 = vmatpush1.bf16.msra.mxu0 0
    %4269 = vmatprep.subr.bf16.mxu0 0
    %4270 = vmatpush1.bf16.msra.mxu0 0
    %4271 = vmatprep.subr.bf16.mxu0 0
    %4272 = vmatpush1.bf16.msra.mxu0 0
    %4273 = vmatprep.subr.bf16.mxu0 0
    %4274 = vmatpush1.bf16.msra.mxu0 0
    %4275 = vmatprep.subr.bf16.mxu0 0
    %4276 = vmatpush1.bf16.msra.mxu0 0
    %4277 = vmatprep.subr.bf16.mxu0 0
    %4278 = vmatpush1.bf16.msra.mxu0 0
    %4279 = vmatprep.subr.bf16.mxu0 0
    %4280 = vmatpush1.bf16.msra.mxu0 0
    %4281 = vmatprep.subr.bf16.mxu0 0
    %4282 = vmatpush1.bf16.msra.mxu0 0
    %4283 = vmatprep.subr.bf16.mxu0 0
    %4284 = vmatpush1.bf16.msra.mxu0 0
    %4285 = vmatprep.mubr.bf16.mxu0 0
    %4286 = vmatmul.mubr.bf16.gmra.mrb[0].mxu0 %v4251
    %v4287 = vpop.f32.mrb[0].mxu0
    %v4288 = vadd.f32 0.0, %v4287
    %v4289 = vpop.f32.mrb[0].mxu0
    %v4290 = vpop.f32.mrb[0].mxu0
    %v4291 = vadd.f32 0.0, %v4290
    %v4292 = vpop.f32.mrb[0].mxu0
    %4293 = vdwg.mxu0
    %v4298 = vunpack.c.l.b16 %v4224
    %v4299 = vunpack.c.l.b16 %v4225
    %v4300 = vunpack.c.l.b16 %v4226
    %v4301 = vunpack.c.l.b16 %v4227
    %v4302 = vpack.c.b16 %v4299, %v4298
    %v4303 = vpack.c.b16 %v4301, %v4300
    %v4307 = vsel %vm457, %v4228, 0
    %4309 = vmatprep.subr.bf16.mxu0 0
    %4310 = vmatpush1.bf16.msra.mxu0 %v4302
    %4311 = vmatprep.subr.bf16.mxu0 0
    %4312 = vmatpush1.bf16.msra.mxu0 %v4303
    %4313 = vmatprep.subr.bf16.mxu0 0
    %4314 = vmatpush1.bf16.msra.mxu0 0
    %4315 = vmatprep.subr.bf16.mxu0 0
    %4316 = vmatpush1.bf16.msra.mxu0 0
    %4317 = vmatprep.subr.bf16.mxu0 0
    %4318 = vmatpush1.bf16.msra.mxu0 0
    %4319 = vmatprep.subr.bf16.mxu0 0
    %4320 = vmatpush1.bf16.msra.mxu0 0
    %4321 = vmatprep.subr.bf16.mxu0 0
    %4322 = vmatpush1.bf16.msra.mxu0 0
    %4323 = vmatprep.subr.bf16.mxu0 0
    %4324 = vmatpush1.bf16.msra.mxu0 0
    %4325 = vmatprep.subr.bf16.mxu0 0
    %4326 = vmatpush1.bf16.msra.mxu0 0
    %4327 = vmatprep.subr.bf16.mxu0 0
    %4328 = vmatpush1.bf16.msra.mxu0 0
    %4329 = vmatprep.subr.bf16.mxu0 0
    %4330 = vmatpush1.bf16.msra.mxu0 0
    %4331 = vmatprep.subr.bf16.mxu0 0
    %4332 = vmatpush1.bf16.msra.mxu0 0
    %4333 = vmatprep.subr.bf16.mxu0 0
    %4334 = vmatpush1.bf16.msra.mxu0 0
    %4335 = vmatprep.subr.bf16.mxu0 0
    %4336 = vmatpush1.bf16.msra.mxu0 0
    %4337 = vmatprep.subr.bf16.mxu0 0
    %4338 = vmatpush1.bf16.msra.mxu0 0
    %4339 = vmatprep.subr.bf16.mxu0 0
    %4340 = vmatpush1.bf16.msra.mxu0 0
    %4341 = vmatprep.mubr.bf16.mxu0 0
    %4342 = vmatmul.mubr.bf16.gmra.mrb[0].mxu0 %v4307
    %v4343 = vpop.f32.mrb[0].mxu0
    %v4344 = vadd.f32 %v4288, %v4343
    %v4345 = vpop.f32.mrb[0].mxu0
    %v4346 = vpop.f32.mrb[0].mxu0
    %v4347 = vadd.f32 %v4291, %v4346
    %v4348 = vpop.f32.mrb[0].mxu0
    %4349 = vdwg.mxu0
    %s4350 = scalar_lea.vmem [#allocation3], 35
    %v4351 = vld [vmem:[%s4350] ss:$3 sm:$0xff]
    %s4352 = scalar_lea.vmem [#allocation3], 59
    %v4353 = vld [vmem:[%s4352] ss:$3 sm:$0x3]
    %v4354 = vld [vmem:[%s9 + $0x20] sm:$0xf]
    %v4355 = vld [vmem:[%s9 + $0x24] sm:$0xf]
    %v4356 = vld [vmem:[%s9 + $0x28] sm:$0xf]
    %v4357 = vld [vmem:[%s9 + $0x2c] sm:$0xf]
    %v4358 = vpack.c.bf16 %v4353, %v4351
    %v4363 = vunpack.c.l.b16 %v4354
    %v4364 = vunpack.c.l.b16 %v4355
    %v4365 = vunpack.c.l.b16 %v4356
    %v4366 = vunpack.c.l.b16 %v4357
    %v4367 = vpack.c.b16 %v4364, %v4363
    %v4368 = vpack.c.b16 %v4366, %v4365
    %v4372 = vsel %vm457, %v4358, 0
    %4374 = vmatprep.subr.bf16.mxu0 0
    %4375 = vmatpush1.bf16.msra.mxu0 %v4367
    %4376 = vmatprep.subr.bf16.mxu0 0
    %4377 = vmatpush1.bf16.msra.mxu0 %v4368
    %4378 = vmatprep.subr.bf16.mxu0 0
    %4379 = vmatpush1.bf16.msra.mxu0 0
    %4380 = vmatprep.subr.bf16.mxu0 0
    %4381 = vmatpush1.bf16.msra.mxu0 0
    %4382 = vmatprep.subr.bf16.mxu0 0
    %4383 = vmatpush1.bf16.msra.mxu0 0
    %4384 = vmatprep.subr.bf16.mxu0 0
    %4385 = vmatpush1.bf16.msra.mxu0 0
    %4386 = vmatprep.subr.bf16.mxu0 0
    %4387 = vmatpush1.bf16.msra.mxu0 0
    %4388 = vmatprep.subr.bf16.mxu0 0
    %4389 = vmatpush1.bf16.msra.mxu0 0
    %4390 = vmatprep.subr.bf16.mxu0 0
    %4391 = vmatpush1.bf16.msra.mxu0 0
    %4392 = vmatprep.subr.bf16.mxu0 0
    %4393 = vmatpush1.bf16.msra.mxu0 0
    %4394 = vmatprep.subr.bf16.mxu0 0
    %4395 = vmatpush1.bf16.msra.mxu0 0
    %4396 = vmatprep.subr.bf16.mxu0 0
    %4397 = vmatpush1.bf16.msra.mxu0 0
    %4398 = vmatprep.subr.bf16.mxu0 0
    %4399 = vmatpush1.bf16.msra.mxu0 0
    %4400 = vmatprep.subr.bf16.mxu0 0
    %4401 = vmatpush1.bf16.msra.mxu0 0
    %4402 = vmatprep.subr.bf16.mxu0 0
    %4403 = vmatpush1.bf16.msra.mxu0 0
    %4404 = vmatprep.subr.bf16.mxu0 0
    %4405 = vmatpush1.bf16.msra.mxu0 0
    %4406 = vmatprep.mubr.bf16.mxu0 0
    %4407 = vmatmul.mubr.bf16.gmra.mrb[0].mxu0 %v4372
    %v4408 = vpop.f32.mrb[0].mxu0
    %v4409 = vadd.f32 0.0, %v4408
    %v4410 = vpop.f32.mrb[0].mxu0
    %v4411 = vpop.f32.mrb[0].mxu0
    %v4412 = vadd.f32 0.0, %v4411
    %v4413 = vpop.f32.mrb[0].mxu0
    %4414 = vdwg.mxu0
    %v4415 = vadd.f32 %v4344, %v4409
    %v4416 = vadd.f32 %v4347, %v4412
    %s4417 = scalar_lea.vmem [#allocation3], 36
    %v4418 = vld [vmem:[%s4417] ss:$3 sm:$0xff]
    %s4419 = scalar_lea.vmem [#allocation3], 60
    %v4420 = vld [vmem:[%s4419] ss:$3 sm:$0x3]
    %v4421 = vld [vmem:[%s9 + $0x30] sm:$0xf]
    %v4422 = vld [vmem:[%s9 + $0x34] sm:$0xf]
    %v4423 = vld [vmem:[%s9 + $0x38] sm:$0xf]
    %v4424 = vld [vmem:[%s9 + $0x3c] sm:$0xf]
    %v4425 = vpack.c.bf16 %v4420, %v4418
    %v4430 = vunpack.c.l.b16 %v4421
    %v4431 = vunpack.c.l.b16 %v4422
    %v4432 = vunpack.c.l.b16 %v4423
    %v4433 = vunpack.c.l.b16 %v4424
    %v4434 = vpack.c.b16 %v4431, %v4430
    %v4435 = vpack.c.b16 %v4433, %v4432
    %v4439 = vsel %vm457, %v4425, 0
    %4441 = vmatprep.subr.bf16.mxu0 0
    %4442 = vmatpush1.bf16.msra.mxu0 %v4434
    %4443 = vmatprep.subr.bf16.mxu0 0
    %4444 = vmatpush1.bf16.msra.mxu0 %v4435
    %4445 = vmatprep.subr.bf16.mxu0 0
    %4446 = vmatpush1.bf16.msra.mxu0 0
    %4447 = vmatprep.subr.bf16.mxu0 0
    %4448 = vmatpush1.bf16.msra.mxu0 0
    %4449 = vmatprep.subr.bf16.mxu0 0
    %4450 = vmatpush1.bf16.msra.mxu0 0
    %4451 = vmatprep.subr.bf16.mxu0 0
    %4452 = vmatpush1.bf16.msra.mxu0 0
    %4453 = vmatprep.subr.bf16.mxu0 0
    %4454 = vmatpush1.bf16.msra.mxu0 0
    %4455 = vmatprep.subr.bf16.mxu0 0
    %4456 = vmatpush1.bf16.msra.mxu0 0
    %4457 = vmatprep.subr.bf16.mxu0 0
    %4458 = vmatpush1.bf16.msra.mxu0 0
    %4459 = vmatprep.subr.bf16.mxu0 0
    %4460 = vmatpush1.bf16.msra.mxu0 0
    %4461 = vmatprep.subr.bf16.mxu0 0
    %4462 = vmatpush1.bf16.msra.mxu0 0
    %4463 = vmatprep.subr.bf16.mxu0 0
    %4464 = vmatpush1.bf16.msra.mxu0 0
    %4465 = vmatprep.subr.bf16.mxu0 0
    %4466 = vmatpush1.bf16.msra.mxu0 0
    %4467 = vmatprep.subr.bf16.mxu0 0
    %4468 = vmatpush1.bf16.msra.mxu0 0
    %4469 = vmatprep.subr.bf16.mxu0 0
    %4470 = vmatpush1.bf16.msra.mxu0 0
    %4471 = vmatprep.subr.bf16.mxu0 0
    %4472 = vmatpush1.bf16.msra.mxu0 0
    %4473 = vmatprep.mubr.bf16.mxu0 0
    %4474 = vmatmul.mubr.bf16.gmra.mrb[0].mxu0 %v4439
    %v4475 = vpop.f32.mrb[0].mxu0
    %v4476 = vadd.f32 0.0, %v4475
    %v4477 = vpop.f32.mrb[0].mxu0
    %v4478 = vpop.f32.mrb[0].mxu0
    %v4479 = vadd.f32 0.0, %v4478
    %v4480 = vpop.f32.mrb[0].mxu0
    %4481 = vdwg.mxu0
    %v4482 = vadd.f32 %v4415, %v4476
    %v4483 = vadd.f32 %v4416, %v4479
    %s4484 = scalar_lea.vmem [#allocation3], 37
    %v4485 = vld [vmem:[%s4484] ss:$3 sm:$0xff]
    %s4486 = scalar_lea.vmem [#allocation3], 61
    %v4487 = vld [vmem:[%s4486] ss:$3 sm:$0x3]
    %v4488 = vld [vmem:[%s9 + $0x40] sm:$0xf]
    %v4489 = vld [vmem:[%s9 + $0x44] sm:$0xf]
    %v4490 = vld [vmem:[%s9 + $0x48] sm:$0xf]
    %v4491 = vld [vmem:[%s9 + $0x4c] sm:$0xf]
    %v4492 = vpack.c.bf16 %v4487, %v4485
    %v4497 = vunpack.c.l.b16 %v4488
    %v4498 = vunpack.c.l.b16 %v4489
    %v4499 = vunpack.c.l.b16 %v4490
    %v4500 = vunpack.c.l.b16 %v4491
    %v4501 = vpack.c.b16 %v4498, %v4497
    %v4502 = vpack.c.b16 %v4500, %v4499
    %v4506 = vsel %vm457, %v4492, 0
    %4508 = vmatprep.subr.bf16.mxu0 0
    %4509 = vmatpush1.bf16.msra.mxu0 %v4501
    %4510 = vmatprep.subr.bf16.mxu0 0
    %4511 = vmatpush1.bf16.msra.mxu0 %v4502
    %4512 = vmatprep.subr.bf16.mxu0 0
    %4513 = vmatpush1.bf16.msra.mxu0 0
    %4514 = vmatprep.subr.bf16.mxu0 0
    %4515 = vmatpush1.bf16.msra.mxu0 0
    %4516 = vmatprep.subr.bf16.mxu0 0
    %4517 = vmatpush1.bf16.msra.mxu0 0
    %4518 = vmatprep.subr.bf16.mxu0 0
    %4519 = vmatpush1.bf16.msra.mxu0 0
    %4520 = vmatprep.subr.bf16.mxu0 0
    %4521 = vmatpush1.bf16.msra.mxu0 0
    %4522 = vmatprep.subr.bf16.mxu0 0
    %4523 = vmatpush1.bf16.msra.mxu0 0
    %4524 = vmatprep.subr.bf16.mxu0 0
    %4525 = vmatpush1.bf16.msra.mxu0 0
    %4526 = vmatprep.subr.bf16.mxu0 0
    %4527 = vmatpush1.bf16.msra.mxu0 0
    %4528 = vmatprep.subr.bf16.mxu0 0
    %4529 = vmatpush1.bf16.msra.mxu0 0
    %4530 = vmatprep.subr.bf16.mxu0 0
    %4531 = vmatpush1.bf16.msra.mxu0 0
    %4532 = vmatprep.subr.bf16.mxu0 0
    %4533 = vmatpush1.bf16.msra.mxu0 0
    %4534 = vmatprep.subr.bf16.mxu0 0
    %4535 = vmatpush1.bf16.msra.mxu0 0
    %4536 = vmatprep.subr.bf16.mxu0 0
    %4537 = vmatpush1.bf16.msra.mxu0 0
    %4538 = vmatprep.subr.bf16.mxu0 0
    %4539 = vmatpush1.bf16.msra.mxu0 0
    %4540 = vmatprep.mubr.bf16.mxu0 0
    %4541 = vmatmul.mubr.bf16.gmra.mrb[0].mxu0 %v4506
    %v4542 = vpop.f32.mrb[0].mxu0
    %v4543 = vadd.f32 0.0, %v4542
    %v4544 = vpop.f32.mrb[0].mxu0
    %v4545 = vpop.f32.mrb[0].mxu0
    %v4546 = vadd.f32 0.0, %v4545
    %v4547 = vpop.f32.mrb[0].mxu0
    %4548 = vdwg.mxu0
    %v4549 = vadd.f32 %v4482, %v4543
    %v4550 = vadd.f32 %v4483, %v4546
    %v4551 = vld [vmem:[%s10] sm:$0x1]
    %v4553 = vlaneseq
    %v4554 = vshrl.u32 %v4553, 7
    %v4555 = vsub.s32 0, %v4554
    %v4556 = vrot.slane %v4551, %v4555
    %v4558 = vadd.f32 %v4549, %v4556
    %v4559 = vadd.f32 %v4550, %v4556
    %4560 = vst.msk [vmem:[#allocation4 + $0xa] sm:$0xff] %vm4216, %v4558
    %4561 = vst.msk [vmem:[#allocation4 + $0x12] sm:$0x3] %vm4218, %v4559
    %v4562 = vld [vmem:[#allocation4] sm:$0xff]
    %v4563 = vld [vmem:[#allocation4 + $0x8] sm:$0xff]
    %v4564 = vld [vmem:[#allocation4 + $0x10] sm:$0xf]
    %v4565 = vsel %vm4216, %v4562, 0.0
    %v4566 = vsel %vm4216, %v4563, 0.0
    %v4567 = vadd.f32 %v4565, %v4566
    %vm4568 = vcmask 519168
    %v4569 = vsel %vm4568, %v4564, 0.0
    %v4570 = vadd.f32 %v4567, %v4569
    %v4571 = vrot.slane %v4570, 4
    %v4572 = vadd.f32 %v4570, %v4571
    %v4573 = vrot.slane %v4572, 2
    %v4574 = vadd.f32 %v4572, %v4573
    %v4575 = vrot.slane %v4574, 1
    %v4576 = vadd.f32 %v4574, %v4575
    %v4577 = vmul.f32 %v4576, 0.05
    %v4578 = vsub.f32 %v4562, %v4577
    %v4579 = vsub.f32 %v4563, %v4577
    %v4580 = vsub.f32 %v4564, %v4577
    %v4581 = vmul.f32 %v4578, %v4578
    %v4582 = vmul.f32 %v4579, %v4579
    %v4583 = vmul.f32 %v4580, %v4580
    %v4584 = vsel %vm4216, %v4581, 0.0
    %v4585 = vsel %vm4216, %v4582, 0.0
    %v4586 = vadd.f32 %v4584, %v4585
    %v4587 = vsel %vm4568, %v4583, 0.0
    %v4588 = vadd.f32 %v4586, %v4587
    %v4589 = vrot.slane %v4588, 4
    %v4590 = vadd.f32 %v4588, %v4589
    %v4591 = vrot.slane %v4590, 2
    %v4592 = vadd.f32 %v4590, %v4591
    %v4593 = vrot.slane %v4592, 1
    %v4594 = vadd.f32 %v4592, %v4593
    %v4595 = vmul.f32 %v4594, 0.05
    %v4596 = vadd.f32 %v4595, 1e-05
    %v4597 = vrsqrt.pop %v4596
    %v4598 = vmul.f32 %v4578, %v4597
    %v4599 = vmul.f32 %v4579, %v4597
    %v4600 = vmul.f32 %v4580, %v4597
    %v4601 = vld [vmem:[%s11] sm:$0x1]
    %v4603 = vlaneseq
    %v4604 = vshrl.u32 %v4603, 7
    %v4605 = vsub.s32 0, %v4604
    %v4606 = vrot.slane %v4601, %v4605
    %v4608 = vmul.f32 %v4598, %v4606
    %v4609 = vmul.f32 %v4599, %v4606
    %v4610 = vmul.f32 %v4600, %v4606
    %v4611 = vld [vmem:[%s12] sm:$0x1]
    %v4613 = vlaneseq
    %v4614 = vshrl.u32 %v4613, 7
    %v4615 = vsub.s32 0, %v4614
    %v4616 = vrot.slane %v4611, %v4615
    %v4618 = vadd.f32 %v4608, %v4616
    %v4619 = vadd.f32 %v4609, %v4616
    %v4620 = vadd.f32 %v4610, %v4616
    %v4621 = vmax.f32 %v4618, 0.0
    %v4622 = vmax.f32 %v4619, 0.0
    %v4623 = vmax.f32 %v4620, 0.0
    %4624 = vst.msk [vmem:[#allocation4] sm:$0xff] %vm4216, %v4621
    %4625 = vst.msk [vmem:[#allocation4 + $0x8] sm:$0xff] %vm4216, %v4622
    %4626 = vst.msk [vmem:[#allocation4 + $0x10] sm:$0xf] %vm4568, %v4623
    %v4627 = vld [vmem:[#allocation4] ss:$2 sm:$0x7]
    %v4628 = vld [vmem:[%s13] sm:$0xf]
    %v4629 = vld [vmem:[%s13 + $0x4] sm:$0xf]
    %v4630 = vld [vmem:[%s13 + $0x8] sm:$0xf]
    %v4631 = vld [vmem:[%s13 + $0xc] sm:$0xf]
    %v4632 = vld [vmem:[%s13 + $0x10] sm:$0xf]
    %v4633 = vld [vmem:[%s13 + $0x14] sm:$0xf]
    %v4634 = vld [vmem:[%s13 + $0x18] sm:$0xf]
    %v4635 = vld [vmem:[%s13 + $0x1c] sm:$0xf]
    %v4636 = vpack.c.bf16 %v4627, %v4627
    %s4637 = scalar_lea.vmem [#allocation4], 1
    %v4638 = vld [vmem:[%s4637] ss:$2 sm:$0x7]
    %v4639 = vld [vmem:[%s13 + $0x20] sm:$0xf]
    %v4640 = vld [vmem:[%s13 + $0x24] sm:$0xf]
    %v4641 = vld [vmem:[%s13 + $0x28] sm:$0xf]
    %v4642 = vld [vmem:[%s13 + $0x2c] sm:$0xf]
    %v4643 = vld [vmem:[%s13 + $0x30] sm:$0xf]
    %v4644 = vld [vmem:[%s13 + $0x34] sm:$0xf]
    %v4645 = vld [vmem:[%s13 + $0x38] sm:$0xf]
    %v4646 = vld [vmem:[%s13 + $0x3c] sm:$0xf]
    %v4647 = vpack.c.bf16 %v4638, %v4638
    %v4656 = vunpack.c.l.b16 %v4639
    %v4657 = vunpack.c.l.b16 %v4640
    %v4658 = vunpack.c.l.b16 %v4641
    %v4659 = vunpack.c.l.b16 %v4642
    %v4660 = vunpack.c.l.b16 %v4643
    %v4661 = vunpack.c.l.b16 %v4644
    %v4662 = vunpack.c.l.b16 %v4645
    %v4663 = vunpack.c.l.b16 %v4646
    %v4664 = vpack.c.b16 %v4657, %v4656
    %v4665 = vpack.c.b16 %v4659, %v4658
    %v4666 = vpack.c.b16 %v4661, %v4660
    %v4667 = vpack.c.b16 %v4663, %v4662
    %v4673 = vsel %vm4216, %v4647, 0
    %4675 = vmatprep.subr.bf16.mxu0 0
    %4676 = vmatpush1.bf16.msra.mxu0 %v4664
    %4677 = vmatprep.subr.bf16.mxu0 0
    %4678 = vmatpush1.bf16.msra.mxu0 %v4665
    %4679 = vmatprep.subr.bf16.mxu0 0
    %4680 = vmatpush1.bf16.msra.mxu0 %v4666
    %4681 = vmatprep.subr.bf16.mxu0 0
    %4682 = vmatpush1.bf16.msra.mxu0 %v4667
    %4683 = vmatprep.subr.bf16.mxu0 0
    %4684 = vmatpush1.bf16.msra.mxu0 0
    %4685 = vmatprep.subr.bf16.mxu0 0
    %4686 = vmatpush1.bf16.msra.mxu0 0
    %4687 = vmatprep.subr.bf16.mxu0 0
    %4688 = vmatpush1.bf16.msra.mxu0 0
    %4689 = vmatprep.subr.bf16.mxu0 0
    %4690 = vmatpush1.bf16.msra.mxu0 0
    %4691 = vmatprep.subr.bf16.mxu0 0
    %4692 = vmatpush1.bf16.msra.mxu0 0
    %4693 = vmatprep.subr.bf16.mxu0 0
    %4694 = vmatpush1.bf16.msra.mxu0 0
    %4695 = vmatprep.subr.bf16.mxu0 0
    %4696 = vmatpush1.bf16.msra.mxu0 0
    %4697 = vmatprep.subr.bf16.mxu0 0
    %4698 = vmatpush1.bf16.msra.mxu0 0
    %4699 = vmatprep.subr.bf16.mxu0 0
    %4700 = vmatpush1.bf16.msra.mxu0 0
    %4701 = vmatprep.subr.bf16.mxu0 0
    %4702 = vmatpush1.bf16.msra.mxu0 0
    %4703 = vmatprep.subr.bf16.mxu0 0
    %4704 = vmatpush1.bf16.msra.mxu0 0
    %4705 = vmatprep.subr.bf16.mxu0 0
    %4706 = vmatpush1.bf16.msra.mxu0 0
    %4707 = vmatprep.mubr.bf16.mxu0 0
    %4708 = vmatmul.mubr.bf16.gmra.mrb[0].mxu0 %v4673
    %v4709 = vpop.f32.mrb[0].mxu0
    %v4710 = vadd.f32 0.0, %v4709
    %v4711 = vpop.f32.mrb[0].mxu0
    %v4712 = vpop.f32.mrb[0].mxu0
    %v4713 = vpop.f32.mrb[0].mxu0
    %4714 = vdwg.mxu0
    %v4723 = vunpack.c.l.b16 %v4628
    %v4724 = vunpack.c.l.b16 %v4629
    %v4725 = vunpack.c.l.b16 %v4630
    %v4726 = vunpack.c.l.b16 %v4631
    %v4727 = vunpack.c.l.b16 %v4632
    %v4728 = vunpack.c.l.b16 %v4633
    %v4729 = vunpack.c.l.b16 %v4634
    %v4730 = vunpack.c.l.b16 %v4635
    %v4731 = vpack.c.b16 %v4724, %v4723
    %v4732 = vpack.c.b16 %v4726, %v4725
    %v4733 = vpack.c.b16 %v4728, %v4727
    %v4734 = vpack.c.b16 %v4730, %v4729
    %v4740 = vsel %vm4216, %v4636, 0
    %4742 = vmatprep.subr.bf16.mxu0 0
    %4743 = vmatpush1.bf16.msra.mxu0 %v4731
    %4744 = vmatprep.subr.bf16.mxu0 0
    %4745 = vmatpush1.bf16.msra.mxu0 %v4732
    %4746 = vmatprep.subr.bf16.mxu0 0
    %4747 = vmatpush1.bf16.msra.mxu0 %v4733
    %4748 = vmatprep.subr.bf16.mxu0 0
    %4749 = vmatpush1.bf16.msra.mxu0 %v4734
    %4750 = vmatprep.subr.bf16.mxu0 0
    %4751 = vmatpush1.bf16.msra.mxu0 0
    %4752 = vmatprep.subr.bf16.mxu0 0
    %4753 = vmatpush1.bf16.msra.mxu0 0
    %4754 = vmatprep.subr.bf16.mxu0 0
    %4755 = vmatpush1.bf16.msra.mxu0 0
    %4756 = vmatprep.subr.bf16.mxu0 0
    %4757 = vmatpush1.bf16.msra.mxu0 0
    %4758 = vmatprep.subr.bf16.mxu0 0
    %4759 = vmatpush1.bf16.msra.mxu0 0
    %4760 = vmatprep.subr.bf16.mxu0 0
    %4761 = vmatpush1.bf16.msra.mxu0 0
    %4762 = vmatprep.subr.bf16.mxu0 0
    %4763 = vmatpush1.bf16.msra.mxu0 0
    %4764 = vmatprep.subr.bf16.mxu0 0
    %4765 = vmatpush1.bf16.msra.mxu0 0
    %4766 = vmatprep.subr.bf16.mxu0 0
    %4767 = vmatpush1.bf16.msra.mxu0 0
    %4768 = vmatprep.subr.bf16.mxu0 0
    %4769 = vmatpush1.bf16.msra.mxu0 0
    %4770 = vmatprep.subr.bf16.mxu0 0
    %4771 = vmatpush1.bf16.msra.mxu0 0
    %4772 = vmatprep.subr.bf16.mxu0 0
    %4773 = vmatpush1.bf16.msra.mxu0 0
    %4774 = vmatprep.mubr.bf16.mxu0 0
    %4775 = vmatmul.mubr.bf16.gmra.mrb[0].mxu0 %v4740
    %v4776 = vpop.f32.mrb[0].mxu0
    %v4777 = vadd.f32 %v4710, %v4776
    %v4778 = vpop.f32.mrb[0].mxu0
    %v4779 = vpop.f32.mrb[0].mxu0
    %v4780 = vpop.f32.mrb[0].mxu0
    %4781 = vdwg.mxu0
    %s4782 = scalar_lea.vmem [#allocation4], 2
    %v4783 = vld [vmem:[%s4782] ss:$2 sm:$0x7]
    %v4784 = vld [vmem:[%s13 + $0x40] sm:$0xf]
    %v4785 = vld [vmem:[%s13 + $0x44] sm:$0xf]
    %v4786 = vld [vmem:[%s13 + $0x48] sm:$0xf]
    %v4787 = vld [vmem:[%s13 + $0x4c] sm:$0xf]
    %v4788 = vld [vmem:[%s13 + $0x50] sm:$0xf]
    %v4789 = vld [vmem:[%s13 + $0x54] sm:$0xf]
    %v4790 = vld [vmem:[%s13 + $0x58] sm:$0xf]
    %v4791 = vld [vmem:[%s13 + $0x5c] sm:$0xf]
    %v4792 = vpack.c.bf16 %v4783, %v4783
    %v4801 = vunpack.c.l.b16 %v4784
    %v4802 = vunpack.c.l.b16 %v4785
    %v4803 = vunpack.c.l.b16 %v4786
    %v4804 = vunpack.c.l.b16 %v4787
    %v4805 = vunpack.c.l.b16 %v4788
    %v4806 = vunpack.c.l.b16 %v4789
    %v4807 = vunpack.c.l.b16 %v4790
    %v4808 = vunpack.c.l.b16 %v4791
    %v4809 = vpack.c.b16 %v4802, %v4801
    %v4810 = vpack.c.b16 %v4804, %v4803
    %v4811 = vpack.c.b16 %v4806, %v4805
    %v4812 = vpack.c.b16 %v4808, %v4807
    %v4818 = vsel %vm4216, %v4792, 0
    %4820 = vmatprep.subr.bf16.mxu0 0
    %4821 = vmatpush1.bf16.msra.mxu0 %v4809
    %4822 = vmatprep.subr.bf16.mxu0 0
    %4823 = vmatpush1.bf16.msra.mxu0 %v4810
    %4824 = vmatprep.subr.bf16.mxu0 0
    %4825 = vmatpush1.bf16.msra.mxu0 %v4811
    %4826 = vmatprep.subr.bf16.mxu0 0
    %4827 = vmatpush1.bf16.msra.mxu0 %v4812
    %4828 = vmatprep.subr.bf16.mxu0 0
    %4829 = vmatpush1.bf16.msra.mxu0 0
    %4830 = vmatprep.subr.bf16.mxu0 0
    %4831 = vmatpush1.bf16.msra.mxu0 0
    %4832 = vmatprep.subr.bf16.mxu0 0
    %4833 = vmatpush1.bf16.msra.mxu0 0
    %4834 = vmatprep.subr.bf16.mxu0 0
    %4835 = vmatpush1.bf16.msra.mxu0 0
    %4836 = vmatprep.subr.bf16.mxu0 0
    %4837 = vmatpush1.bf16.msra.mxu0 0
    %4838 = vmatprep.subr.bf16.mxu0 0
    %4839 = vmatpush1.bf16.msra.mxu0 0
    %4840 = vmatprep.subr.bf16.mxu0 0
    %4841 = vmatpush1.bf16.msra.mxu0 0
    %4842 = vmatprep.subr.bf16.mxu0 0
    %4843 = vmatpush1.bf16.msra.mxu0 0
    %4844 = vmatprep.subr.bf16.mxu0 0
    %4845 = vmatpush1.bf16.msra.mxu0 0
    %4846 = vmatprep.subr.bf16.mxu0 0
    %4847 = vmatpush1.bf16.msra.mxu0 0
    %4848 = vmatprep.subr.bf16.mxu0 0
    %4849 = vmatpush1.bf16.msra.mxu0 0
    %4850 = vmatprep.subr.bf16.mxu0 0
    %4851 = vmatpush1.bf16.msra.mxu0 0
    %4852 = vmatprep.mubr.bf16.mxu0 0
    %4853 = vmatmul.mubr.bf16.gmra.mrb[0].mxu0 %v4818
    %v4854 = vpop.f32.mrb[0].mxu0
    %v4855 = vadd.f32 0.0, %v4854
    %v4856 = vpop.f32.mrb[0].mxu0
    %v4857 = vpop.f32.mrb[0].mxu0
    %v4858 = vpop.f32.mrb[0].mxu0
    %4859 = vdwg.mxu0
    %v4860 = vadd.f32 %v4777, %v4855
    %s4861 = scalar_lea.vmem [#allocation4], 3
    %v4862 = vld [vmem:[%s4861] ss:$2 sm:$0x7]
    %v4863 = vld [vmem:[%s13 + $0x60] sm:$0xf]
    %v4864 = vld [vmem:[%s13 + $0x64] sm:$0xf]
    %v4865 = vld [vmem:[%s13 + $0x68] sm:$0xf]
    %v4866 = vld [vmem:[%s13 + $0x6c] sm:$0xf]
    %v4867 = vld [vmem:[%s13 + $0x70] sm:$0xf]
    %v4868 = vld [vmem:[%s13 + $0x74] sm:$0xf]
    %v4869 = vld [vmem:[%s13 + $0x78] sm:$0xf]
    %v4870 = vld [vmem:[%s13 + $0x7c] sm:$0xf]
    %v4871 = vpack.c.bf16 %v4862, %v4862
    %v4880 = vunpack.c.l.b16 %v4863
    %v4881 = vunpack.c.l.b16 %v4864
    %v4882 = vunpack.c.l.b16 %v4865
    %v4883 = vunpack.c.l.b16 %v4866
    %v4884 = vunpack.c.l.b16 %v4867
    %v4885 = vunpack.c.l.b16 %v4868
    %v4886 = vunpack.c.l.b16 %v4869
    %v4887 = vunpack.c.l.b16 %v4870
    %v4888 = vpack.c.b16 %v4881, %v4880
    %v4889 = vpack.c.b16 %v4883, %v4882
    %v4890 = vpack.c.b16 %v4885, %v4884
    %v4891 = vpack.c.b16 %v4887, %v4886
    %v4897 = vsel %vm4216, %v4871, 0
    %4899 = vmatprep.subr.bf16.mxu0 0
    %4900 = vmatpush1.bf16.msra.mxu0 %v4888
    %4901 = vmatprep.subr.bf16.mxu0 0
    %4902 = vmatpush1.bf16.msra.mxu0 %v4889
    %4903 = vmatprep.subr.bf16.mxu0 0
    %4904 = vmatpush1.bf16.msra.mxu0 %v4890
    %4905 = vmatprep.subr.bf16.mxu0 0
    %4906 = vmatpush1.bf16.msra.mxu0 %v4891
    %4907 = vmatprep.subr.bf16.mxu0 0
    %4908 = vmatpush1.bf16.msra.mxu0 0
    %4909 = vmatprep.subr.bf16.mxu0 0
    %4910 = vmatpush1.bf16.msra.mxu0 0
    %4911 = vmatprep.subr.bf16.mxu0 0
    %4912 = vmatpush1.bf16.msra.mxu0 0
    %4913 = vmatprep.subr.bf16.mxu0 0
    %4914 = vmatpush1.bf16.msra.mxu0 0
    %4915 = vmatprep.subr.bf16.mxu0 0
    %4916 = vmatpush1.bf16.msra.mxu0 0
    %4917 = vmatprep.subr.bf16.mxu0 0
    %4918 = vmatpush1.bf16.msra.mxu0 0
    %4919 = vmatprep.subr.bf16.mxu0 0
    %4920 = vmatpush1.bf16.msra.mxu0 0
    %4921 = vmatprep.subr.bf16.mxu0 0
    %4922 = vmatpush1.bf16.msra.mxu0 0
    %4923 = vmatprep.subr.bf16.mxu0 0
    %4924 = vmatpush1.bf16.msra.mxu0 0
    %4925 = vmatprep.subr.bf16.mxu0 0
    %4926 = vmatpush1.bf16.msra.mxu0 0
    %4927 = vmatprep.subr.bf16.mxu0 0
    %4928 = vmatpush1.bf16.msra.mxu0 0
    %4929 = vmatprep.subr.bf16.mxu0 0
    %4930 = vmatpush1.bf16.msra.mxu0 0
    %4931 = vmatprep.mubr.bf16.mxu0 0
    %4932 = vmatmul.mubr.bf16.gmra.mrb[0].mxu0 %v4897
    %v4933 = vpop.f32.mrb[0].mxu0
    %v4934 = vadd.f32 0.0, %v4933
    %v4935 = vpop.f32.mrb[0].mxu0
    %v4936 = vpop.f32.mrb[0].mxu0
    %v4937 = vpop.f32.mrb[0].mxu0
    %4938 = vdwg.mxu0
    %v4939 = vadd.f32 %v4860, %v4934
    %s4940 = scalar_lea.vmem [#allocation4], 4
    %v4941 = vld [vmem:[%s4940] ss:$2 sm:$0x7]
    %v4942 = vld [vmem:[%s13 + $0x80] sm:$0xf]
    %v4943 = vld [vmem:[%s13 + $0x84] sm:$0xf]
    %v4944 = vld [vmem:[%s13 + $0x88] sm:$0xf]
    %v4945 = vld [vmem:[%s13 + $0x8c] sm:$0xf]
    %v4946 = vld [vmem:[%s13 + $0x90] sm:$0xf]
    %v4947 = vld [vmem:[%s13 + $0x94] sm:$0xf]
    %v4948 = vld [vmem:[%s13 + $0x98] sm:$0xf]
    %v4949 = vld [vmem:[%s13 + $0x9c] sm:$0xf]
    %v4950 = vpack.c.bf16 %v4941, %v4941
    %v4959 = vunpack.c.l.b16 %v4942
    %v4960 = vunpack.c.l.b16 %v4943
    %v4961 = vunpack.c.l.b16 %v4944
    %v4962 = vunpack.c.l.b16 %v4945
    %v4963 = vunpack.c.l.b16 %v4946
    %v4964 = vunpack.c.l.b16 %v4947
    %v4965 = vunpack.c.l.b16 %v4948
    %v4966 = vunpack.c.l.b16 %v4949
    %v4967 = vpack.c.b16 %v4960, %v4959
    %v4968 = vpack.c.b16 %v4962, %v4961
    %v4969 = vpack.c.b16 %v4964, %v4963
    %v4970 = vpack.c.b16 %v4966, %v4965
    %v4976 = vsel %vm4216, %v4950, 0
    %4978 = vmatprep.subr.bf16.mxu0 0
    %4979 = vmatpush1.bf16.msra.mxu0 %v4967
    %4980 = vmatprep.subr.bf16.mxu0 0
    %4981 = vmatpush1.bf16.msra.mxu0 %v4968
    %4982 = vmatprep.subr.bf16.mxu0 0
    %4983 = vmatpush1.bf16.msra.mxu0 %v4969
    %4984 = vmatprep.subr.bf16.mxu0 0
    %4985 = vmatpush1.bf16.msra.mxu0 %v4970
    %4986 = vmatprep.subr.bf16.mxu0 0
    %4987 = vmatpush1.bf16.msra.mxu0 0
    %4988 = vmatprep.subr.bf16.mxu0 0
    %4989 = vmatpush1.bf16.msra.mxu0 0
    %4990 = vmatprep.subr.bf16.mxu0 0
    %4991 = vmatpush1.bf16.msra.mxu0 0
    %4992 = vmatprep.subr.bf16.mxu0 0
    %4993 = vmatpush1.bf16.msra.mxu0 0
    %4994 = vmatprep.subr.bf16.mxu0 0
    %4995 = vmatpush1.bf16.msra.mxu0 0
    %4996 = vmatprep.subr.bf16.mxu0 0
    %4997 = vmatpush1.bf16.msra.mxu0 0
    %4998 = vmatprep.subr.bf16.mxu0 0
    %4999 = vmatpush1.bf16.msra.mxu0 0
    %5000 = vmatprep.subr.bf16.mxu0 0
    %5001 = vmatpush1.bf16.msra.mxu0 0
    %5002 = vmatprep.subr.bf16.mxu0 0
    %5003 = vmatpush1.bf16.msra.mxu0 0
    %5004 = vmatprep.subr.bf16.mxu0 0
    %5005 = vmatpush1.bf16.msra.mxu0 0
    %5006 = vmatprep.subr.bf16.mxu0 0
    %5007 = vmatpush1.bf16.msra.mxu0 0
    %5008 = vmatprep.subr.bf16.mxu0 0
    %5009 = vmatpush1.bf16.msra.mxu0 0
    %5010 = vmatprep.mubr.bf16.mxu0 0
    %5011 = vmatmul.mubr.bf16.gmra.mrb[0].mxu0 %v4976
    %v5012 = vpop.f32.mrb[0].mxu0
    %v5013 = vadd.f32 0.0, %v5012
    %v5014 = vpop.f32.mrb[0].mxu0
    %v5015 = vpop.f32.mrb[0].mxu0
    %v5016 = vpop.f32.mrb[0].mxu0
    %5017 = vdwg.mxu0
    %v5018 = vadd.f32 %v4939, %v5013
    %v5019 = vld [vmem:[%s14] sm:$0x1]
    %v5021 = vlaneseq
    %v5022 = vshrl.u32 %v5021, 7
    %v5023 = vsub.s32 0, %v5022
    %v5024 = vrot.slane %v5019, %v5023
    %v5026 = vadd.f32 %v5018, %v5024
    %5027 = vst [vmem:[#allocation5] sm:$0x7] %v5026
    %s5028 = scalar_lea.vmem [#allocation4], 10
    %v5029 = vld [vmem:[%s5028] ss:$2 sm:$0x7]
    %v5030 = vld [vmem:[%s13] sm:$0xf]
    %v5031 = vld [vmem:[%s13 + $0x4] sm:$0xf]
    %v5032 = vld [vmem:[%s13 + $0x8] sm:$0xf]
    %v5033 = vld [vmem:[%s13 + $0xc] sm:$0xf]
    %v5034 = vld [vmem:[%s13 + $0x10] sm:$0xf]
    %v5035 = vld [vmem:[%s13 + $0x14] sm:$0xf]
    %v5036 = vld [vmem:[%s13 + $0x18] sm:$0xf]
    %v5037 = vld [vmem:[%s13 + $0x1c] sm:$0xf]
    %v5038 = vpack.c.bf16 %v5029, %v5029
    %s5039 = scalar_lea.vmem [#allocation4], 11
    %v5040 = vld [vmem:[%s5039] ss:$2 sm:$0x7]
    %v5041 = vld [vmem:[%s13 + $0x20] sm:$0xf]
    %v5042 = vld [vmem:[%s13 + $0x24] sm:$0xf]
    %v5043 = vld [vmem:[%s13 + $0x28] sm:$0xf]
    %v5044 = vld [vmem:[%s13 + $0x2c] sm:$0xf]
    %v5045 = vld [vmem:[%s13 + $0x30] sm:$0xf]
    %v5046 = vld [vmem:[%s13 + $0x34] sm:$0xf]
    %v5047 = vld [vmem:[%s13 + $0x38] sm:$0xf]
    %v5048 = vld [vmem:[%s13 + $0x3c] sm:$0xf]
    %v5049 = vpack.c.bf16 %v5040, %v5040
    %v5058 = vunpack.c.l.b16 %v5041
    %v5059 = vunpack.c.l.b16 %v5042
    %v5060 = vunpack.c.l.b16 %v5043
    %v5061 = vunpack.c.l.b16 %v5044
    %v5062 = vunpack.c.l.b16 %v5045
    %v5063 = vunpack.c.l.b16 %v5046
    %v5064 = vunpack.c.l.b16 %v5047
    %v5065 = vunpack.c.l.b16 %v5048
    %v5066 = vpack.c.b16 %v5059, %v5058
    %v5067 = vpack.c.b16 %v5061, %v5060
    %v5068 = vpack.c.b16 %v5063, %v5062
    %v5069 = vpack.c.b16 %v5065, %v5064
    %v5075 = vsel %vm4216, %v5049, 0
    %5077 = vmatprep.subr.bf16.mxu0 0
    %5078 = vmatpush1.bf16.msra.mxu0 %v5066
    %5079 = vmatprep.subr.bf16.mxu0 0
    %5080 = vmatpush1.bf16.msra.mxu0 %v5067
    %5081 = vmatprep.subr.bf16.mxu0 0
    %5082 = vmatpush1.bf16.msra.mxu0 %v5068
    %5083 = vmatprep.subr.bf16.mxu0 0
    %5084 = vmatpush1.bf16.msra.mxu0 %v5069
    %5085 = vmatprep.subr.bf16.mxu0 0
    %5086 = vmatpush1.bf16.msra.mxu0 0
    %5087 = vmatprep.subr.bf16.mxu0 0
    %5088 = vmatpush1.bf16.msra.mxu0 0
    %5089 = vmatprep.subr.bf16.mxu0 0
    %5090 = vmatpush1.bf16.msra.mxu0 0
    %5091 = vmatprep.subr.bf16.mxu0 0
    %5092 = vmatpush1.bf16.msra.mxu0 0
    %5093 = vmatprep.subr.bf16.mxu0 0
    %5094 = vmatpush1.bf16.msra.mxu0 0
    %5095 = vmatprep.subr.bf16.mxu0 0
    %5096 = vmatpush1.bf16.msra.mxu0 0
    %5097 = vmatprep.subr.bf16.mxu0 0
    %5098 = vmatpush1.bf16.msra.mxu0 0
    %5099 = vmatprep.subr.bf16.mxu0 0
    %5100 = vmatpush1.bf16.msra.mxu0 0
    %5101 = vmatprep.subr.bf16.mxu0 0
    %5102 = vmatpush1.bf16.msra.mxu0 0
    %5103 = vmatprep.subr.bf16.mxu0 0
    %5104 = vmatpush1.bf16.msra.mxu0 0
    %5105 = vmatprep.subr.bf16.mxu0 0
    %5106 = vmatpush1.bf16.msra.mxu0 0
    %5107 = vmatprep.subr.bf16.mxu0 0
    %5108 = vmatpush1.bf16.msra.mxu0 0
    %5109 = vmatprep.mubr.bf16.mxu0 0
    %5110 = vmatmul.mubr.bf16.gmra.mrb[0].mxu0 %v5075
    %v5111 = vpop.f32.mrb[0].mxu0
    %v5112 = vadd.f32 0.0, %v5111
    %v5113 = vpop.f32.mrb[0].mxu0
    %v5114 = vpop.f32.mrb[0].mxu0
    %v5115 = vpop.f32.mrb[0].mxu0
    %5116 = vdwg.mxu0
    %v5125 = vunpack.c.l.b16 %v5030
    %v5126 = vunpack.c.l.b16 %v5031
    %v5127 = vunpack.c.l.b16 %v5032
    %v5128 = vunpack.c.l.b16 %v5033
    %v5129 = vunpack.c.l.b16 %v5034
    %v5130 = vunpack.c.l.b16 %v5035
    %v5131 = vunpack.c.l.b16 %v5036
    %v5132 = vunpack.c.l.b16 %v5037
    %v5133 = vpack.c.b16 %v5126, %v5125
    %v5134 = vpack.c.b16 %v5128, %v5127
    %v5135 = vpack.c.b16 %v5130, %v5129
    %v5136 = vpack.c.b16 %v5132, %v5131
    %v5142 = vsel %vm4216, %v5038, 0
    %5144 = vmatprep.subr.bf16.mxu0 0
    %5145 = vmatpush1.bf16.msra.mxu0 %v5133
    %5146 = vmatprep.subr.bf16.mxu0 0
    %5147 = vmatpush1.bf16.msra.mxu0 %v5134
    %5148 = vmatprep.subr.bf16.mxu0 0
    %5149 = vmatpush1.bf16.msra.mxu0 %v5135
    %5150 = vmatprep.subr.bf16.mxu0 0
    %5151 = vmatpush1.bf16.msra.mxu0 %v5136
    %5152 = vmatprep.subr.bf16.mxu0 0
    %5153 = vmatpush1.bf16.msra.mxu0 0
    %5154 = vmatprep.subr.bf16.mxu0 0
    %5155 = vmatpush1.bf16.msra.mxu0 0
    %5156 = vmatprep.subr.bf16.mxu0 0
    %5157 = vmatpush1.bf16.msra.mxu0 0
    %5158 = vmatprep.subr.bf16.mxu0 0
    %5159 = vmatpush1.bf16.msra.mxu0 0
    %5160 = vmatprep.subr.bf16.mxu0 0
    %5161 = vmatpush1.bf16.msra.mxu0 0
    %5162 = vmatprep.subr.bf16.mxu0 0
    %5163 = vmatpush1.bf16.msra.mxu0 0
    %5164 = vmatprep.subr.bf16.mxu0 0
    %5165 = vmatpush1.bf16.msra.mxu0 0
    %5166 = vmatprep.subr.bf16.mxu0 0
    %5167 = vmatpush1.bf16.msra.mxu0 0
    %5168 = vmatprep.subr.bf16.mxu0 0
    %5169 = vmatpush1.bf16.msra.mxu0 0
    %5170 = vmatprep.subr.bf16.mxu0 0
    %5171 = vmatpush1.bf16.msra.mxu0 0
    %5172 = vmatprep.subr.bf16.mxu0 0
    %5173 = vmatpush1.bf16.msra.mxu0 0
    %5174 = vmatprep.subr.bf16.mxu0 0
    %5175 = vmatpush1.bf16.msra.mxu0 0
    %5176 = vmatprep.mubr.bf16.mxu0 0
    %5177 = vmatmul.mubr.bf16.gmra.mrb[0].mxu0 %v5142
    %v5178 = vpop.f32.mrb[0].mxu0
    %v5179 = vadd.f32 %v5112, %v5178
    %v5180 = vpop.f32.mrb[0].mxu0
    %v5181 = vpop.f32.mrb[0].mxu0
    %v5182 = vpop.f32.mrb[0].mxu0
    %5183 = vdwg.mxu0
    %s5184 = scalar_lea.vmem [#allocation4], 12
    %v5185 = vld [vmem:[%s5184] ss:$2 sm:$0x7]
    %v5186 = vld [vmem:[%s13 + $0x40] sm:$0xf]
    %v5187 = vld [vmem:[%s13 + $0x44] sm:$0xf]
    %v5188 = vld [vmem:[%s13 + $0x48] sm:$0xf]
    %v5189 = vld [vmem:[%s13 + $0x4c] sm:$0xf]
    %v5190 = vld [vmem:[%s13 + $0x50] sm:$0xf]
    %v5191 = vld [vmem:[%s13 + $0x54] sm:$0xf]
    %v5192 = vld [vmem:[%s13 + $0x58] sm:$0xf]
    %v5193 = vld [vmem:[%s13 + $0x5c] sm:$0xf]
    %v5194 = vpack.c.bf16 %v5185, %v5185
    %v5203 = vunpack.c.l.b16 %v5186
    %v5204 = vunpack.c.l.b16 %v5187
    %v5205 = vunpack.c.l.b16 %v5188
    %v5206 = vunpack.c.l.b16 %v5189
    %v5207 = vunpack.c.l.b16 %v5190
    %v5208 = vunpack.c.l.b16 %v5191
    %v5209 = vunpack.c.l.b16 %v5192
    %v5210 = vunpack.c.l.b16 %v5193
    %v5211 = vpack.c.b16 %v5204, %v5203
    %v5212 = vpack.c.b16 %v5206, %v5205
    %v5213 = vpack.c.b16 %v5208, %v5207
    %v5214 = vpack.c.b16 %v5210, %v5209
    %v5220 = vsel %vm4216, %v5194, 0
    %5222 = vmatprep.subr.bf16.mxu0 0
    %5223 = vmatpush1.bf16.msra.mxu0 %v5211
    %5224 = vmatprep.subr.bf16.mxu0 0
    %5225 = vmatpush1.bf16.msra.mxu0 %v5212
    %5226 = vmatprep.subr.bf16.mxu0 0
    %5227 = vmatpush1.bf16.msra.mxu0 %v5213
    %5228 = vmatprep.subr.bf16.mxu0 0
    %5229 = vmatpush1.bf16.msra.mxu0 %v5214
    %5230 = vmatprep.subr.bf16.mxu0 0
    %5231 = vmatpush1.bf16.msra.mxu0 0
    %5232 = vmatprep.subr.bf16.mxu0 0
    %5233 = vmatpush1.bf16.msra.mxu0 0
    %5234 = vmatprep.subr.bf16.mxu0 0
    %5235 = vmatpush1.bf16.msra.mxu0 0
    %5236 = vmatprep.subr.bf16.mxu0 0
    %5237 = vmatpush1.bf16.msra.mxu0 0
    %5238 = vmatprep.subr.bf16.mxu0 0
    %5239 = vmatpush1.bf16.msra.mxu0 0
    %5240 = vmatprep.subr.bf16.mxu0 0
    %5241 = vmatpush1.bf16.msra.mxu0 0
    %5242 = vmatprep.subr.bf16.mxu0 0
    %5243 = vmatpush1.bf16.msra.mxu0 0
    %5244 = vmatprep.subr.bf16.mxu0 0
    %5245 = vmatpush1.bf16.msra.mxu0 0
    %5246 = vmatprep.subr.bf16.mxu0 0
    %5247 = vmatpush1.bf16.msra.mxu0 0
    %5248 = vmatprep.subr.bf16.mxu0 0
    %5249 = vmatpush1.bf16.msra.mxu0 0
    %5250 = vmatprep.subr.bf16.mxu0 0
    %5251 = vmatpush1.bf16.msra.mxu0 0
    %5252 = vmatprep.subr.bf16.mxu0 0
    %5253 = vmatpush1.bf16.msra.mxu0 0
    %5254 = vmatprep.mubr.bf16.mxu0 0
    %5255 = vmatmul.mubr.bf16.gmra.mrb[0].mxu0 %v5220
    %v5256 = vpop.f32.mrb[0].mxu0
    %v5257 = vadd.f32 0.0, %v5256
    %v5258 = vpop.f32.mrb[0].mxu0
    %v5259 = vpop.f32.mrb[0].mxu0
    %v5260 = vpop.f32.mrb[0].mxu0
    %5261 = vdwg.mxu0
    %v5262 = vadd.f32 %v5179, %v5257
    %s5263 = scalar_lea.vmem [#allocation4], 13
    %v5264 = vld [vmem:[%s5263] ss:$2 sm:$0x7]
    %v5265 = vld [vmem:[%s13 + $0x60] sm:$0xf]
    %v5266 = vld [vmem:[%s13 + $0x64] sm:$0xf]
    %v5267 = vld [vmem:[%s13 + $0x68] sm:$0xf]
    %v5268 = vld [vmem:[%s13 + $0x6c] sm:$0xf]
    %v5269 = vld [vmem:[%s13 + $0x70] sm:$0xf]
    %v5270 = vld [vmem:[%s13 + $0x74] sm:$0xf]
    %v5271 = vld [vmem:[%s13 + $0x78] sm:$0xf]
    %v5272 = vld [vmem:[%s13 + $0x7c] sm:$0xf]
    %v5273 = vpack.c.bf16 %v5264, %v5264
    %v5282 = vunpack.c.l.b16 %v5265
    %v5283 = vunpack.c.l.b16 %v5266
    %v5284 = vunpack.c.l.b16 %v5267
    %v5285 = vunpack.c.l.b16 %v5268
    %v5286 = vunpack.c.l.b16 %v5269
    %v5287 = vunpack.c.l.b16 %v5270
    %v5288 = vunpack.c.l.b16 %v5271
    %v5289 = vunpack.c.l.b16 %v5272
    %v5290 = vpack.c.b16 %v5283, %v5282
    %v5291 = vpack.c.b16 %v5285, %v5284
    %v5292 = vpack.c.b16 %v5287, %v5286
    %v5293 = vpack.c.b16 %v5289, %v5288
    %v5299 = vsel %vm4216, %v5273, 0
    %5301 = vmatprep.subr.bf16.mxu0 0
    %5302 = vmatpush1.bf16.msra.mxu0 %v5290
    %5303 = vmatprep.subr.bf16.mxu0 0
    %5304 = vmatpush1.bf16.msra.mxu0 %v5291
    %5305 = vmatprep.subr.bf16.mxu0 0
    %5306 = vmatpush1.bf16.msra.mxu0 %v5292
    %5307 = vmatprep.subr.bf16.mxu0 0
    %5308 = vmatpush1.bf16.msra.mxu0 %v5293
    %5309 = vmatprep.subr.bf16.mxu0 0
    %5310 = vmatpush1.bf16.msra.mxu0 0
    %5311 = vmatprep.subr.bf16.mxu0 0
    %5312 = vmatpush1.bf16.msra.mxu0 0
    %5313 = vmatprep.subr.bf16.mxu0 0
    %5314 = vmatpush1.bf16.msra.mxu0 0
    %5315 = vmatprep.subr.bf16.mxu0 0
    %5316 = vmatpush1.bf16.msra.mxu0 0
    %5317 = vmatprep.subr.bf16.mxu0 0
    %5318 = vmatpush1.bf16.msra.mxu0 0
    %5319 = vmatprep.subr.bf16.mxu0 0
    %5320 = vmatpush1.bf16.msra.mxu0 0
    %5321 = vmatprep.subr.bf16.mxu0 0
    %5322 = vmatpush1.bf16.msra.mxu0 0
    %5323 = vmatprep.subr.bf16.mxu0 0
    %5324 = vmatpush1.bf16.msra.mxu0 0
    %5325 = vmatprep.subr.bf16.mxu0 0
    %5326 = vmatpush1.bf16.msra.mxu0 0
    %5327 = vmatprep.subr.bf16.mxu0 0
    %5328 = vmatpush1.bf16.msra.mxu0 0
    %5329 = vmatprep.subr.bf16.mxu0 0
    %5330 = vmatpush1.bf16.msra.mxu0 0
    %5331 = vmatprep.subr.bf16.mxu0 0
    %5332 = vmatpush1.bf16.msra.mxu0 0
    %5333 = vmatprep.mubr.bf16.mxu0 0
    %5334 = vmatmul.mubr.bf16.gmra.mrb[0].mxu0 %v5299
    %v5335 = vpop.f32.mrb[0].mxu0
    %v5336 = vadd.f32 0.0, %v5335
    %v5337 = vpop.f32.mrb[0].mxu0
    %v5338 = vpop.f32.mrb[0].mxu0
    %v5339 = vpop.f32.mrb[0].mxu0
    %5340 = vdwg.mxu0
    %v5341 = vadd.f32 %v5262, %v5336
    %s5342 = scalar_lea.vmem [#allocation4], 14
    %v5343 = vld [vmem:[%s5342] ss:$2 sm:$0x7]
    %v5344 = vld [vmem:[%s13 + $0x80] sm:$0xf]
    %v5345 = vld [vmem:[%s13 + $0x84] sm:$0xf]
    %v5346 = vld [vmem:[%s13 + $0x88] sm:$0xf]
    %v5347 = vld [vmem:[%s13 + $0x8c] sm:$0xf]
    %v5348 = vld [vmem:[%s13 + $0x90] sm:$0xf]
    %v5349 = vld [vmem:[%s13 + $0x94] sm:$0xf]
    %v5350 = vld [vmem:[%s13 + $0x98] sm:$0xf]
    %v5351 = vld [vmem:[%s13 + $0x9c] sm:$0xf]
    %v5352 = vpack.c.bf16 %v5343, %v5343
    %v5361 = vunpack.c.l.b16 %v5344
    %v5362 = vunpack.c.l.b16 %v5345
    %v5363 = vunpack.c.l.b16 %v5346
    %v5364 = vunpack.c.l.b16 %v5347
    %v5365 = vunpack.c.l.b16 %v5348
    %v5366 = vunpack.c.l.b16 %v5349
    %v5367 = vunpack.c.l.b16 %v5350
    %v5368 = vunpack.c.l.b16 %v5351
    %v5369 = vpack.c.b16 %v5362, %v5361
    %v5370 = vpack.c.b16 %v5364, %v5363
    %v5371 = vpack.c.b16 %v5366, %v5365
    %v5372 = vpack.c.b16 %v5368, %v5367
    %v5378 = vsel %vm4216, %v5352, 0
    %5380 = vmatprep.subr.bf16.mxu0 0
    %5381 = vmatpush1.bf16.msra.mxu0 %v5369
    %5382 = vmatprep.subr.bf16.mxu0 0
    %5383 = vmatpush1.bf16.msra.mxu0 %v5370
    %5384 = vmatprep.subr.bf16.mxu0 0
    %5385 = vmatpush1.bf16.msra.mxu0 %v5371
    %5386 = vmatprep.subr.bf16.mxu0 0
    %5387 = vmatpush1.bf16.msra.mxu0 %v5372
    %5388 = vmatprep.subr.bf16.mxu0 0
    %5389 = vmatpush1.bf16.msra.mxu0 0
    %5390 = vmatprep.subr.bf16.mxu0 0
    %5391 = vmatpush1.bf16.msra.mxu0 0
    %5392 = vmatprep.subr.bf16.mxu0 0
    %5393 = vmatpush1.bf16.msra.mxu0 0
    %5394 = vmatprep.subr.bf16.mxu0 0
    %5395 = vmatpush1.bf16.msra.mxu0 0
    %5396 = vmatprep.subr.bf16.mxu0 0
    %5397 = vmatpush1.bf16.msra.mxu0 0
    %5398 = vmatprep.subr.bf16.mxu0 0
    %5399 = vmatpush1.bf16.msra.mxu0 0
    %5400 = vmatprep.subr.bf16.mxu0 0
    %5401 = vmatpush1.bf16.msra.mxu0 0
    %5402 = vmatprep.subr.bf16.mxu0 0
    %5403 = vmatpush1.bf16.msra.mxu0 0
    %5404 = vmatprep.subr.bf16.mxu0 0
    %5405 = vmatpush1.bf16.msra.mxu0 0
    %5406 = vmatprep.subr.bf16.mxu0 0
    %5407 = vmatpush1.bf16.msra.mxu0 0
    %5408 = vmatprep.subr.bf16.mxu0 0
    %5409 = vmatpush1.bf16.msra.mxu0 0
    %5410 = vmatprep.subr.bf16.mxu0 0
    %5411 = vmatpush1.bf16.msra.mxu0 0
    %5412 = vmatprep.mubr.bf16.mxu0 0
    %5413 = vmatmul.mubr.bf16.gmra.mrb[0].mxu0 %v5378
    %v5414 = vpop.f32.mrb[0].mxu0
    %v5415 = vadd.f32 0.0, %v5414
    %v5416 = vpop.f32.mrb[0].mxu0
    %v5417 = vpop.f32.mrb[0].mxu0
    %v5418 = vpop.f32.mrb[0].mxu0
    %5419 = vdwg.mxu0
    %v5420 = vadd.f32 %v5341, %v5415
    %v5421 = vld [vmem:[%s14] sm:$0x1]
    %v5423 = vlaneseq
    %v5424 = vshrl.u32 %v5423, 7
    %v5425 = vsub.s32 0, %v5424
    %v5426 = vrot.slane %v5421, %v5425
    %v5428 = vadd.f32 %v5420, %v5426
    %5429 = vst [vmem:[#allocation5 + $0x3] sm:$0x7] %v5428
    %v5430 = vld [vmem:[#allocation5] sm:$0x3f]
    %vm5431 = vcmask 1045504
    %v5432 = vsel %vm5431, %v5430, 0.0
    %v5433 = vrot.slane %v5432, 4
    %v5434 = vadd.f32 %v5432, %v5433
    %v5435 = vrot.slane %v5434, 2
    %v5436 = vadd.f32 %v5434, %v5435
    %v5437 = vrot.slane %v5436, 1
    %v5438 = vadd.f32 %v5436, %v5437
    %v5439 = vmul.f32 %v5438, 0.16666667
    %v5440 = vsub.f32 %v5430, %v5439
    %v5441 = vmul.f32 %v5440, %v5440
    %v5442 = vsel %vm5431, %v5441, 0.0
    %v5443 = vrot.slane %v5442, 4
    %v5444 = vadd.f32 %v5442, %v5443
    %v5445 = vrot.slane %v5444, 2
    %v5446 = vadd.f32 %v5444, %v5445
    %v5447 = vrot.slane %v5446, 1
    %v5448 = vadd.f32 %v5446, %v5447
    %v5449 = vmul.f32 %v5448, 0.16666667
    %v5450 = vadd.f32 %v5449, 1e-05
    %v5451 = vrsqrt.pop %v5450
    %v5452 = vmul.f32 %v5440, %v5451
    %v5453 = vld [vmem:[%s15] sm:$0x1]
    %v5455 = vlaneseq
    %v5456 = vshrl.u32 %v5455, 7
    %v5457 = vsub.s32 0, %v5456
    %v5458 = vrot.slane %v5453, %v5457
    %v5460 = vmul.f32 %v5452, %v5458
    %v5461 = vld [vmem:[%s16] sm:$0x1]
    %v5463 = vlaneseq
    %v5464 = vshrl.u32 %v5463, 7
    %v5465 = vsub.s32 0, %v5464
    %v5466 = vrot.slane %v5461, %v5465
    %v5468 = vadd.f32 %v5460, %v5466
    %v5469 = vmax.f32 %v5468, 0.0
    %5470 = vst [vmem:[#allocation5] sm:$0x3f] %v5469
    %v5471 = vld [vmem:[#allocation5] sm:$0x1]
    %v5472 = vld [vmem:[%s17] sm:$0xff]
    %v5473 = vld [vmem:[%s17 + $0x8] sm:$0xff]
    %v5474 = vld [vmem:[%s17 + $0x10] sm:$0xff]
    %v5475 = vld [vmem:[%s17 + $0x18] sm:$0xff]
    %v5476 = vld [vmem:[%s17 + $0x20] sm:$0xff]
    %v5477 = vld [vmem:[%s17 + $0x28] sm:$0xff]
    %v5478 = vld [vmem:[%s17 + $0x30] sm:$0xff]
    %v5479 = vld [vmem:[%s17 + $0x38] sm:$0xff]
    %v5480 = vld [vmem:[%s17 + $0x40] sm:$0xff]
    %v5481 = vld [vmem:[%s17 + $0x48] sm:$0xff]
    %v5482 = vld [vmem:[%s17 + $0x50] sm:$0xff]
    %v5483 = vld [vmem:[%s17 + $0x58] sm:$0xff]
    %v5484 = vld [vmem:[%s17 + $0x60] sm:$0xff]
    %v5485 = vld [vmem:[%s17 + $0x68] sm:$0xff]
    %v5486 = vld [vmem:[%s17 + $0x70] sm:$0xff]
    %v5487 = vld [vmem:[%s17 + $0x78] sm:$0xff]
    %v5488 = vld [vmem:[%s17 + $0x80] sm:$0xff]
    %v5489 = vld [vmem:[%s17 + $0x88] sm:$0xff]
    %v5490 = vld [vmem:[%s17 + $0x90] sm:$0xff]
    %v5491 = vld [vmem:[%s17 + $0x98] sm:$0xff]
    %v5492 = vld [vmem:[%s17 + $0xa0] sm:$0xff]
    %v5493 = vld [vmem:[%s17 + $0xa8] sm:$0xff]
    %v5494 = vld [vmem:[%s17 + $0xb0] sm:$0xff]
    %v5495 = vld [vmem:[%s17 + $0xb8] sm:$0xff]
    %v5496 = vld [vmem:[%s17 + $0xc0] sm:$0xff]
    %v5497 = vld [vmem:[%s17 + $0xc8] sm:$0xff]
    %v5498 = vld [vmem:[%s17 + $0xd0] sm:$0xff]
    %v5499 = vld [vmem:[%s17 + $0xd8] sm:$0xff]
    %v5500 = vld [vmem:[%s17 + $0xe0] sm:$0xff]
    %v5501 = vld [vmem:[%s17 + $0xe8] sm:$0xff]
    %v5502 = vld [vmem:[%s17 + $0xf0] sm:$0xff]
    %v5503 = vld [vmem:[%s17 + $0xf8] sm:$0xff]
    %v5504 = vpack.c.bf16 %v5471, %v5471
    %v5505 = vld [vmem:[#allocation5 + $0x1] sm:$0x1]
    %v5506 = vld [vmem:[%s17 + $0x100] sm:$0xff]
    %v5507 = vld [vmem:[%s17 + $0x108] sm:$0xff]
    %v5508 = vld [vmem:[%s17 + $0x110] sm:$0xff]
    %v5509 = vld [vmem:[%s17 + $0x118] sm:$0xff]
    %v5510 = vld [vmem:[%s17 + $0x120] sm:$0xff]
    %v5511 = vld [vmem:[%s17 + $0x128] sm:$0xff]
    %v5512 = vld [vmem:[%s17 + $0x130] sm:$0xff]
    %v5513 = vld [vmem:[%s17 + $0x138] sm:$0xff]
    %v5514 = vld [vmem:[%s17 + $0x140] sm:$0xff]
    %v5515 = vld [vmem:[%s17 + $0x148] sm:$0xff]
    %v5516 = vld [vmem:[%s17 + $0x150] sm:$0xff]
    %v5517 = vld [vmem:[%s17 + $0x158] sm:$0xff]
    %v5518 = vld [vmem:[%s17 + $0x160] sm:$0xff]
    %v5519 = vld [vmem:[%s17 + $0x168] sm:$0xff]
    %v5520 = vld [vmem:[%s17 + $0x170] sm:$0xff]
    %v5521 = vld [vmem:[%s17 + $0x178] sm:$0xff]
    %v5522 = vld [vmem:[%s17 + $0x180] sm:$0xff]
    %v5523 = vld [vmem:[%s17 + $0x188] sm:$0xff]
    %v5524 = vld [vmem:[%s17 + $0x190] sm:$0xff]
    %v5525 = vld [vmem:[%s17 + $0x198] sm:$0xff]
    %v5526 = vld [vmem:[%s17 + $0x1a0] sm:$0xff]
    %v5527 = vld [vmem:[%s17 + $0x1a8] sm:$0xff]
    %v5528 = vld [vmem:[%s17 + $0x1b0] sm:$0xff]
    %v5529 = vld [vmem:[%s17 + $0x1b8] sm:$0xff]
    %v5530 = vld [vmem:[%s17 + $0x1c0] sm:$0xff]
    %v5531 = vld [vmem:[%s17 + $0x1c8] sm:$0xff]
    %v5532 = vld [vmem:[%s17 + $0x1d0] sm:$0xff]
    %v5533 = vld [vmem:[%s17 + $0x1d8] sm:$0xff]
    %v5534 = vld [vmem:[%s17 + $0x1e0] sm:$0xff]
    %v5535 = vld [vmem:[%s17 + $0x1e8] sm:$0xff]
    %v5536 = vld [vmem:[%s17 + $0x1f0] sm:$0xff]
    %v5537 = vld [vmem:[%s17 + $0x1f8] sm:$0xff]
    %v5538 = vpack.c.bf16 %v5505, %v5505
    %v5571 = vunpack.c.l.b16 %v5506
    %v5572 = vunpack.c.h.b16 %v5506
    %v5573 = vunpack.c.l.b16 %v5507
    %v5574 = vunpack.c.h.b16 %v5507
    %v5575 = vunpack.c.l.b16 %v5508
    %v5576 = vunpack.c.h.b16 %v5508
    %v5577 = vunpack.c.l.b16 %v5509
    %v5578 = vunpack.c.h.b16 %v5509
    %v5579 = vunpack.c.l.b16 %v5510
    %v5580 = vunpack.c.h.b16 %v5510
    %v5581 = vunpack.c.l.b16 %v5511
    %v5582 = vunpack.c.h.b16 %v5511
    %v5583 = vunpack.c.l.b16 %v5512
    %v5584 = vunpack.c.h.b16 %v5512
    %v5585 = vunpack.c.l.b16 %v5513
    %v5586 = vunpack.c.h.b16 %v5513
    %v5587 = vunpack.c.l.b16 %v5514
    %v5588 = vunpack.c.h.b16 %v5514
    %v5589 = vunpack.c.l.b16 %v5515
    %v5590 = vunpack.c.h.b16 %v5515
    %v5591 = vunpack.c.l.b16 %v5516
    %v5592 = vunpack.c.h.b16 %v5516
    %v5593 = vunpack.c.l.b16 %v5517
    %v5594 = vunpack.c.h.b16 %v5517
    %v5595 = vunpack.c.l.b16 %v5518
    %v5596 = vunpack.c.h.b16 %v5518
    %v5597 = vunpack.c.l.b16 %v5519
    %v5598 = vunpack.c.h.b16 %v5519
    %v5599 = vunpack.c.l.b16 %v5520
    %v5600 = vunpack.c.h.b16 %v5520
    %v5601 = vunpack.c.l.b16 %v5521
    %v5602 = vunpack.c.h.b16 %v5521
    %v5603 = vunpack.c.l.b16 %v5522
    %v5604 = vunpack.c.h.b16 %v5522
    %v5605 = vunpack.c.l.b16 %v5523
    %v5606 = vunpack.c.h.b16 %v5523
    %v5607 = vunpack.c.l.b16 %v5524
    %v5608 = vunpack.c.h.b16 %v5524
    %v5609 = vunpack.c.l.b16 %v5525
    %v5610 = vunpack.c.h.b16 %v5525
    %v5611 = vunpack.c.l.b16 %v5526
    %v5612 = vunpack.c.h.b16 %v5526
    %v5613 = vunpack.c.l.b16 %v5527
    %v5614 = vunpack.c.h.b16 %v5527
    %v5615 = vunpack.c.l.b16 %v5528
    %v5616 = vunpack.c.h.b16 %v5528
    %v5617 = vunpack.c.l.b16 %v5529
    %v5618 = vunpack.c.h.b16 %v5529
    %v5619 = vunpack.c.l.b16 %v5530
    %v5620 = vunpack.c.h.b16 %v5530
    %v5621 = vunpack.c.l.b16 %v5531
    %v5622 = vunpack.c.h.b16 %v5531
    %v5623 = vunpack.c.l.b16 %v5532
    %v5624 = vunpack.c.h.b16 %v5532
    %v5625 = vunpack.c.l.b16 %v5533
    %v5626 = vunpack.c.h.b16 %v5533
    %v5627 = vunpack.c.l.b16 %v5534
    %v5628 = vunpack.c.h.b16 %v5534
    %v5629 = vunpack.c.l.b16 %v5535
    %v5630 = vunpack.c.h.b16 %v5535
    %v5631 = vunpack.c.l.b16 %v5536
    %v5632 = vunpack.c.h.b16 %v5536
    %v5633 = vunpack.c.l.b16 %v5537
    %v5634 = vunpack.c.h.b16 %v5537
    %v5635 = vpack.c.b16 %v5575, %v5571
    %v5636 = vpack.c.b16 %v5576, %v5572
    %v5637 = vpack.c.b16 %v5577, %v5573
    %v5638 = vpack.c.b16 %v5578, %v5574
    %v5639 = vpack.c.b16 %v5583, %v5579
    %v5640 = vpack.c.b16 %v5584, %v5580
    %v5641 = vpack.c.b16 %v5585, %v5581
    %v5642 = vpack.c.b16 %v5586, %v5582
    %v5643 = vpack.c.b16 %v5591, %v5587
    %v5644 = vpack.c.b16 %v5592, %v5588
    %v5645 = vpack.c.b16 %v5593, %v5589
    %v5646 = vpack.c.b16 %v5594, %v5590
    %v5647 = vpack.c.b16 %v5599, %v5595
    %v5648 = vpack.c.b16 %v5600, %v5596
    %v5649 = vpack.c.b16 %v5601, %v5597
    %v5650 = vpack.c.b16 %v5602, %v5598
    %v5651 = vpack.c.b16 %v5607, %v5603
    %v5652 = vpack.c.b16 %v5608, %v5604
    %v5653 = vpack.c.b16 %v5609, %v5605
    %v5654 = vpack.c.b16 %v5610, %v5606
    %v5655 = vpack.c.b16 %v5615, %v5611
    %v5656 = vpack.c.b16 %v5616, %v5612
    %v5657 = vpack.c.b16 %v5617, %v5613
    %v5658 = vpack.c.b16 %v5618, %v5614
    %v5659 = vpack.c.b16 %v5623, %v5619
    %v5660 = vpack.c.b16 %v5624, %v5620
    %v5661 = vpack.c.b16 %v5625, %v5621
    %v5662 = vpack.c.b16 %v5626, %v5622
    %v5663 = vpack.c.b16 %v5631, %v5627
    %v5664 = vpack.c.b16 %v5632, %v5628
    %v5665 = vpack.c.b16 %v5633, %v5629
    %v5666 = vpack.c.b16 %v5634, %v5630
    %5699 = vmatprep.subr.bf16.mxu0 %v5636
    %5700 = vmatpush1.bf16.msra.mxu0 %v5635
    %5701 = vmatprep.subr.bf16.mxu0 %v5640
    %5702 = vmatpush1.bf16.msra.mxu0 %v5639
    %5703 = vmatprep.subr.bf16.mxu0 %v5644
    %5704 = vmatpush1.bf16.msra.mxu0 %v5643
    %5705 = vmatprep.subr.bf16.mxu0 %v5648
    %5706 = vmatpush1.bf16.msra.mxu0 %v5647
    %5707 = vmatprep.subr.bf16.mxu0 %v5652
    %5708 = vmatpush1.bf16.msra.mxu0 %v5651
    %5709 = vmatprep.subr.bf16.mxu0 %v5656
    %5710 = vmatpush1.bf16.msra.mxu0 %v5655
    %5711 = vmatprep.subr.bf16.mxu0 %v5660
    %5712 = vmatpush1.bf16.msra.mxu0 %v5659
    %5713 = vmatprep.subr.bf16.mxu0 %v5664
    %5714 = vmatpush1.bf16.msra.mxu0 %v5663
    %5715 = vmatprep.subr.bf16.mxu0 0
    %5716 = vmatpush1.bf16.msra.mxu0 0
    %5717 = vmatprep.subr.bf16.mxu0 0
    %5718 = vmatpush1.bf16.msra.mxu0 0
    %5719 = vmatprep.subr.bf16.mxu0 0
    %5720 = vmatpush1.bf16.msra.mxu0 0
    %5721 = vmatprep.subr.bf16.mxu0 0
    %5722 = vmatpush1.bf16.msra.mxu0 0
    %5723 = vmatprep.subr.bf16.mxu0 0
    %5724 = vmatpush1.bf16.msra.mxu0 0
    %5725 = vmatprep.subr.bf16.mxu0 0
    %5726 = vmatpush1.bf16.msra.mxu0 0
    %5727 = vmatprep.subr.bf16.mxu0 0
    %5728 = vmatpush1.bf16.msra.mxu0 0
    %5729 = vmatprep.subr.bf16.mxu0 0
    %5730 = vmatpush1.bf16.msra.mxu0 0
    %5731 = vmatprep.mubr.bf16.mxu0 0
    %5732 = vmatmul.mubr.bf16.gmra.mrb[0].mxu0 %v5538
    %v5733 = vpop.f32.mrb[0].mxu0
    %v5734 = vadd.f32 0.0, %v5733
    %v5735 = vpop.f32.mrb[0].mxu0
    %v5736 = vadd.f32 0.0, %v5735
    %v5737 = vpop.f32.mrb[0].mxu0
    %v5738 = vpop.f32.mrb[0].mxu0
    %5739 = vdwg.mxu0
    %5740 = vmatprep.subr.bf16.mxu0 %v5638
    %5741 = vmatpush1.bf16.msra.mxu0 %v5637
    %5742 = vmatprep.subr.bf16.mxu0 %v5642
    %5743 = vmatpush1.bf16.msra.mxu0 %v5641
    %5744 = vmatprep.subr.bf16.mxu0 %v5646
    %5745 = vmatpush1.bf16.msra.mxu0 %v5645
    %5746 = vmatprep.subr.bf16.mxu0 %v5650
    %5747 = vmatpush1.bf16.msra.mxu0 %v5649
    %5748 = vmatprep.subr.bf16.mxu0 %v5654
    %5749 = vmatpush1.bf16.msra.mxu0 %v5653
    %5750 = vmatprep.subr.bf16.mxu0 %v5658
    %5751 = vmatpush1.bf16.msra.mxu0 %v5657
    %5752 = vmatprep.subr.bf16.mxu0 %v5662
    %5753 = vmatpush1.bf16.msra.mxu0 %v5661
    %5754 = vmatprep.subr.bf16.mxu0 %v5666
    %5755 = vmatpush1.bf16.msra.mxu0 %v5665
    %5756 = vmatprep.subr.bf16.mxu0 0
    %5757 = vmatpush1.bf16.msra.mxu0 0
    %5758 = vmatprep.subr.bf16.mxu0 0
    %5759 = vmatpush1.bf16.msra.mxu0 0
    %5760 = vmatprep.subr.bf16.mxu0 0
    %5761 = vmatpush1.bf16.msra.mxu0 0
    %5762 = vmatprep.subr.bf16.mxu0 0
    %5763 = vmatpush1.bf16.msra.mxu0 0
    %5764 = vmatprep.subr.bf16.mxu0 0
    %5765 = vmatpush1.bf16.msra.mxu0 0
    %5766 = vmatprep.subr.bf16.mxu0 0
    %5767 = vmatpush1.bf16.msra.mxu0 0
    %5768 = vmatprep.subr.bf16.mxu0 0
    %5769 = vmatpush1.bf16.msra.mxu0 0
    %5770 = vmatprep.subr.bf16.mxu0 0
    %5771 = vmatpush1.bf16.msra.mxu0 0
    %5772 = vmatprep.mubr.bf16.mxu0 0
    %5773 = vmatmul.mubr.bf16.gmra.mrb[0].mxu0 %v5538
    %v5774 = vpop.f32.mrb[0].mxu0
    %v5775 = vadd.f32 0.0, %v5774
    %v5776 = vpop.f32.mrb[0].mxu0
    %v5777 = vadd.f32 0.0, %v5776
    %v5778 = vpop.f32.mrb[0].mxu0
    %v5779 = vpop.f32.mrb[0].mxu0
    %5780 = vdwg.mxu0
    %v5813 = vunpack.c.l.b16 %v5472
    %v5814 = vunpack.c.h.b16 %v5472
    %v5815 = vunpack.c.l.b16 %v5473
    %v5816 = vunpack.c.h.b16 %v5473
    %v5817 = vunpack.c.l.b16 %v5474
    %v5818 = vunpack.c.h.b16 %v5474
    %v5819 = vunpack.c.l.b16 %v5475
    %v5820 = vunpack.c.h.b16 %v5475
    %v5821 = vunpack.c.l.b16 %v5476
    %v5822 = vunpack.c.h.b16 %v5476
    %v5823 = vunpack.c.l.b16 %v5477
    %v5824 = vunpack.c.h.b16 %v5477
    %v5825 = vunpack.c.l.b16 %v5478
    %v5826 = vunpack.c.h.b16 %v5478
    %v5827 = vunpack.c.l.b16 %v5479
    %v5828 = vunpack.c.h.b16 %v5479
    %v5829 = vunpack.c.l.b16 %v5480
    %v5830 = vunpack.c.h.b16 %v5480
    %v5831 = vunpack.c.l.b16 %v5481
    %v5832 = vunpack.c.h.b16 %v5481
    %v5833 = vunpack.c.l.b16 %v5482
    %v5834 = vunpack.c.h.b16 %v5482
    %v5835 = vunpack.c.l.b16 %v5483
    %v5836 = vunpack.c.h.b16 %v5483
    %v5837 = vunpack.c.l.b16 %v5484
    %v5838 = vunpack.c.h.b16 %v5484
    %v5839 = vunpack.c.l.b16 %v5485
    %v5840 = vunpack.c.h.b16 %v5485
    %v5841 = vunpack.c.l.b16 %v5486
    %v5842 = vunpack.c.h.b16 %v5486
    %v5843 = vunpack.c.l.b16 %v5487
    %v5844 = vunpack.c.h.b16 %v5487
    %v5845 = vunpack.c.l.b16 %v5488
    %v5846 = vunpack.c.h.b16 %v5488
    %v5847 = vunpack.c.l.b16 %v5489
    %v5848 = vunpack.c.h.b16 %v5489
    %v5849 = vunpack.c.l.b16 %v5490
    %v5850 = vunpack.c.h.b16 %v5490
    %v5851 = vunpack.c.l.b16 %v5491
    %v5852 = vunpack.c.h.b16 %v5491
    %v5853 = vunpack.c.l.b16 %v5492
    %v5854 = vunpack.c.h.b16 %v5492
    %v5855 = vunpack.c.l.b16 %v5493
    %v5856 = vunpack.c.h.b16 %v5493
    %v5857 = vunpack.c.l.b16 %v5494
    %v5858 = vunpack.c.h.b16 %v5494
    %v5859 = vunpack.c.l.b16 %v5495
    %v5860 = vunpack.c.h.b16 %v5495
    %v5861 = vunpack.c.l.b16 %v5496
    %v5862 = vunpack.c.h.b16 %v5496
    %v5863 = vunpack.c.l.b16 %v5497
    %v5864 = vunpack.c.h.b16 %v5497
    %v5865 = vunpack.c.l.b16 %v5498
    %v5866 = vunpack.c.h.b16 %v5498
    %v5867 = vunpack.c.l.b16 %v5499
    %v5868 = vunpack.c.h.b16 %v5499
    %v5869 = vunpack.c.l.b16 %v5500
    %v5870 = vunpack.c.h.b16 %v5500
    %v5871 = vunpack.c.l.b16 %v5501
    %v5872 = vunpack.c.h.b16 %v5501
    %v5873 = vunpack.c.l.b16 %v5502
    %v5874 = vunpack.c.h.b16 %v5502
    %v5875 = vunpack.c.l.b16 %v5503
    %v5876 = vunpack.c.h.b16 %v5503
    %v5877 = vpack.c.b16 %v5817, %v5813
    %v5878 = vpack.c.b16 %v5818, %v5814
    %v5879 = vpack.c.b16 %v5819, %v5815
    %v5880 = vpack.c.b16 %v5820, %v5816
    %v5881 = vpack.c.b16 %v5825, %v5821
    %v5882 = vpack.c.b16 %v5826, %v5822
    %v5883 = vpack.c.b16 %v5827, %v5823
    %v5884 = vpack.c.b16 %v5828, %v5824
    %v5885 = vpack.c.b16 %v5833, %v5829
    %v5886 = vpack.c.b16 %v5834, %v5830
    %v5887 = vpack.c.b16 %v5835, %v5831
    %v5888 = vpack.c.b16 %v5836, %v5832
    %v5889 = vpack.c.b16 %v5841, %v5837
    %v5890 = vpack.c.b16 %v5842, %v5838
    %v5891 = vpack.c.b16 %v5843, %v5839
    %v5892 = vpack.c.b16 %v5844, %v5840
    %v5893 = vpack.c.b16 %v5849, %v5845
    %v5894 = vpack.c.b16 %v5850, %v5846
    %v5895 = vpack.c.b16 %v5851, %v5847
    %v5896 = vpack.c.b16 %v5852, %v5848
    %v5897 = vpack.c.b16 %v5857, %v5853
    %v5898 = vpack.c.b16 %v5858, %v5854
    %v5899 = vpack.c.b16 %v5859, %v5855
    %v5900 = vpack.c.b16 %v5860, %v5856
    %v5901 = vpack.c.b16 %v5865, %v5861
    %v5902 = vpack.c.b16 %v5866, %v5862
    %v5903 = vpack.c.b16 %v5867, %v5863
    %v5904 = vpack.c.b16 %v5868, %v5864
    %v5905 = vpack.c.b16 %v5873, %v5869
    %v5906 = vpack.c.b16 %v5874, %v5870
    %v5907 = vpack.c.b16 %v5875, %v5871
    %v5908 = vpack.c.b16 %v5876, %v5872
    %5941 = vmatprep.subr.bf16.mxu0 %v5878
    %5942 = vmatpush1.bf16.msra.mxu0 %v5877
    %5943 = vmatprep.subr.bf16.mxu0 %v5882
    %5944 = vmatpush1.bf16.msra.mxu0 %v5881
    %5945 = vmatprep.subr.bf16.mxu0 %v5886
    %5946 = vmatpush1.bf16.msra.mxu0 %v5885
    %5947 = vmatprep.subr.bf16.mxu0 %v5890
    %5948 = vmatpush1.bf16.msra.mxu0 %v5889
    %5949 = vmatprep.subr.bf16.mxu0 %v5894
    %5950 = vmatpush1.bf16.msra.mxu0 %v5893
    %5951 = vmatprep.subr.bf16.mxu0 %v5898
    %5952 = vmatpush1.bf16.msra.mxu0 %v5897
    %5953 = vmatprep.subr.bf16.mxu0 %v5902
    %5954 = vmatpush1.bf16.msra.mxu0 %v5901
    %5955 = vmatprep.subr.bf16.mxu0 %v5906
    %5956 = vmatpush1.bf16.msra.mxu0 %v5905
    %5957 = vmatprep.subr.bf16.mxu0 0
    %5958 = vmatpush1.bf16.msra.mxu0 0
    %5959 = vmatprep.subr.bf16.mxu0 0
    %5960 = vmatpush1.bf16.msra.mxu0 0
    %5961 = vmatprep.subr.bf16.mxu0 0
    %5962 = vmatpush1.bf16.msra.mxu0 0
    %5963 = vmatprep.subr.bf16.mxu0 0
    %5964 = vmatpush1.bf16.msra.mxu0 0
    %5965 = vmatprep.subr.bf16.mxu0 0
    %5966 = vmatpush1.bf16.msra.mxu0 0
    %5967 = vmatprep.subr.bf16.mxu0 0
    %5968 = vmatpush1.bf16.msra.mxu0 0
    %5969 = vmatprep.subr.bf16.mxu0 0
    %5970 = vmatpush1.bf16.msra.mxu0 0
    %5971 = vmatprep.subr.bf16.mxu0 0
    %5972 = vmatpush1.bf16.msra.mxu0 0
    %5973 = vmatprep.mubr.bf16.mxu0 0
    %5974 = vmatmul.mubr.bf16.gmra.mrb[0].mxu0 %v5504
    %v5975 = vpop.f32.mrb[0].mxu0
    %v5976 = vadd.f32 %v5734, %v5975
    %v5977 = vpop.f32.mrb[0].mxu0
    %v5978 = vadd.f32 %v5736, %v5977
    %v5979 = vpop.f32.mrb[0].mxu0
    %v5980 = vpop.f32.mrb[0].mxu0
    %5981 = vdwg.mxu0
    %5982 = vmatprep.subr.bf16.mxu0 %v5880
    %5983 = vmatpush1.bf16.msra.mxu0 %v5879
    %5984 = vmatprep.subr.bf16.mxu0 %v5884
    %5985 = vmatpush1.bf16.msra.mxu0 %v5883
    %5986 = vmatprep.subr.bf16.mxu0 %v5888
    %5987 = vmatpush1.bf16.msra.mxu0 %v5887
    %5988 = vmatprep.subr.bf16.mxu0 %v5892
    %5989 = vmatpush1.bf16.msra.mxu0 %v5891
    %5990 = vmatprep.subr.bf16.mxu0 %v5896
    %5991 = vmatpush1.bf16.msra.mxu0 %v5895
    %5992 = vmatprep.subr.bf16.mxu0 %v5900
    %5993 = vmatpush1.bf16.msra.mxu0 %v5899
    %5994 = vmatprep.subr.bf16.mxu0 %v5904
    %5995 = vmatpush1.bf16.msra.mxu0 %v5903
    %5996 = vmatprep.subr.bf16.mxu0 %v5908
    %5997 = vmatpush1.bf16.msra.mxu0 %v5907
    %5998 = vmatprep.subr.bf16.mxu0 0
    %5999 = vmatpush1.bf16.msra.mxu0 0
    %6000 = vmatprep.subr.bf16.mxu0 0
    %6001 = vmatpush1.bf16.msra.mxu0 0
    %6002 = vmatprep.subr.bf16.mxu0 0
    %6003 = vmatpush1.bf16.msra.mxu0 0
    %6004 = vmatprep.subr.bf16.mxu0 0
    %6005 = vmatpush1.bf16.msra.mxu0 0
    %6006 = vmatprep.subr.bf16.mxu0 0
    %6007 = vmatpush1.bf16.msra.mxu0 0
    %6008 = vmatprep.subr.bf16.mxu0 0
    %6009 = vmatpush1.bf16.msra.mxu0 0
    %6010 = vmatprep.subr.bf16.mxu0 0
    %6011 = vmatpush1.bf16.msra.mxu0 0
    %6012 = vmatprep.subr.bf16.mxu0 0
    %6013 = vmatpush1.bf16.msra.mxu0 0
    %6014 = vmatprep.mubr.bf16.mxu0 0
    %6015 = vmatmul.mubr.bf16.gmra.mrb[0].mxu0 %v5504
    %v6016 = vpop.f32.mrb[0].mxu0
    %v6017 = vadd.f32 %v5775, %v6016
    %v6018 = vpop.f32.mrb[0].mxu0
    %v6019 = vadd.f32 %v5777, %v6018
    %v6020 = vpop.f32.mrb[0].mxu0
    %v6021 = vpop.f32.mrb[0].mxu0
    %6022 = vdwg.mxu0
    %v6023 = vld [vmem:[#allocation5 + $0x2] sm:$0x1]
    %v6024 = vld [vmem:[%s17 + $0x200] sm:$0xff]
    %v6025 = vld [vmem:[%s17 + $0x208] sm:$0xff]
    %v6026 = vld [vmem:[%s17 + $0x210] sm:$0xff]
    %v6027 = vld [vmem:[%s17 + $0x218] sm:$0xff]
    %v6028 = vld [vmem:[%s17 + $0x220] sm:$0xff]
    %v6029 = vld [vmem:[%s17 + $0x228] sm:$0xff]
    %v6030 = vld [vmem:[%s17 + $0x230] sm:$0xff]
    %v6031 = vld [vmem:[%s17 + $0x238] sm:$0xff]
    %v6032 = vld [vmem:[%s17 + $0x240] sm:$0xff]
    %v6033 = vld [vmem:[%s17 + $0x248] sm:$0xff]
    %v6034 = vld [vmem:[%s17 + $0x250] sm:$0xff]
    %v6035 = vld [vmem:[%s17 + $0x258] sm:$0xff]
    %v6036 = vld [vmem:[%s17 + $0x260] sm:$0xff]
    %v6037 = vld [vmem:[%s17 + $0x268] sm:$0xff]
    %v6038 = vld [vmem:[%s17 + $0x270] sm:$0xff]
    %v6039 = vld [vmem:[%s17 + $0x278] sm:$0xff]
    %v6040 = vld [vmem:[%s17 + $0x280] sm:$0xff]
    %v6041 = vld [vmem:[%s17 + $0x288] sm:$0xff]
    %v6042 = vld [vmem:[%s17 + $0x290] sm:$0xff]
    %v6043 = vld [vmem:[%s17 + $0x298] sm:$0xff]
    %v6044 = vld [vmem:[%s17 + $0x2a0] sm:$0xff]
    %v6045 = vld [vmem:[%s17 + $0x2a8] sm:$0xff]
    %v6046 = vld [vmem:[%s17 + $0x2b0] sm:$0xff]
    %v6047 = vld [vmem:[%s17 + $0x2b8] sm:$0xff]
    %v6048 = vld [vmem:[%s17 + $0x2c0] sm:$0xff]
    %v6049 = vld [vmem:[%s17 + $0x2c8] sm:$0xff]
    %v6050 = vld [vmem:[%s17 + $0x2d0] sm:$0xff]
    %v6051 = vld [vmem:[%s17 + $0x2d8] sm:$0xff]
    %v6052 = vld [vmem:[%s17 + $0x2e0] sm:$0xff]
    %v6053 = vld [vmem:[%s17 + $0x2e8] sm:$0xff]
    %v6054 = vld [vmem:[%s17 + $0x2f0] sm:$0xff]
    %v6055 = vld [vmem:[%s17 + $0x2f8] sm:$0xff]
    %v6056 = vpack.c.bf16 %v6023, %v6023
    %v6089 = vunpack.c.l.b16 %v6024
    %v6090 = vunpack.c.h.b16 %v6024
    %v6091 = vunpack.c.l.b16 %v6025
    %v6092 = vunpack.c.h.b16 %v6025
    %v6093 = vunpack.c.l.b16 %v6026
    %v6094 = vunpack.c.h.b16 %v6026
    %v6095 = vunpack.c.l.b16 %v6027
    %v6096 = vunpack.c.h.b16 %v6027
    %v6097 = vunpack.c.l.b16 %v6028
    %v6098 = vunpack.c.h.b16 %v6028
    %v6099 = vunpack.c.l.b16 %v6029
    %v6100 = vunpack.c.h.b16 %v6029
    %v6101 = vunpack.c.l.b16 %v6030
    %v6102 = vunpack.c.h.b16 %v6030
    %v6103 = vunpack.c.l.b16 %v6031
    %v6104 = vunpack.c.h.b16 %v6031
    %v6105 = vunpack.c.l.b16 %v6032
    %v6106 = vunpack.c.h.b16 %v6032
    %v6107 = vunpack.c.l.b16 %v6033
    %v6108 = vunpack.c.h.b16 %v6033
    %v6109 = vunpack.c.l.b16 %v6034
    %v6110 = vunpack.c.h.b16 %v6034
    %v6111 = vunpack.c.l.b16 %v6035
    %v6112 = vunpack.c.h.b16 %v6035
    %v6113 = vunpack.c.l.b16 %v6036
    %v6114 = vunpack.c.h.b16 %v6036
    %v6115 = vunpack.c.l.b16 %v6037
    %v6116 = vunpack.c.h.b16 %v6037
    %v6117 = vunpack.c.l.b16 %v6038
    %v6118 = vunpack.c.h.b16 %v6038
    %v6119 = vunpack.c.l.b16 %v6039
    %v6120 = vunpack.c.h.b16 %v6039
    %v6121 = vunpack.c.l.b16 %v6040
    %v6122 = vunpack.c.h.b16 %v6040
    %v6123 = vunpack.c.l.b16 %v6041
    %v6124 = vunpack.c.h.b16 %v6041
    %v6125 = vunpack.c.l.b16 %v6042
    %v6126 = vunpack.c.h.b16 %v6042
    %v6127 = vunpack.c.l.b16 %v6043
    %v6128 = vunpack.c.h.b16 %v6043
    %v6129 = vunpack.c.l.b16 %v6044
    %v6130 = vunpack.c.h.b16 %v6044
    %v6131 = vunpack.c.l.b16 %v6045
    %v6132 = vunpack.c.h.b16 %v6045
    %v6133 = vunpack.c.l.b16 %v6046
    %v6134 = vunpack.c.h.b16 %v6046
    %v6135 = vunpack.c.l.b16 %v6047
    %v6136 = vunpack.c.h.b16 %v6047
    %v6137 = vunpack.c.l.b16 %v6048
    %v6138 = vunpack.c.h.b16 %v6048
    %v6139 = vunpack.c.l.b16 %v6049
    %v6140 = vunpack.c.h.b16 %v6049
    %v6141 = vunpack.c.l.b16 %v6050
    %v6142 = vunpack.c.h.b16 %v6050
    %v6143 = vunpack.c.l.b16 %v6051
    %v6144 = vunpack.c.h.b16 %v6051
    %v6145 = vunpack.c.l.b16 %v6052
    %v6146 = vunpack.c.h.b16 %v6052
    %v6147 = vunpack.c.l.b16 %v6053
    %v6148 = vunpack.c.h.b16 %v6053
    %v6149 = vunpack.c.l.b16 %v6054
    %v6150 = vunpack.c.h.b16 %v6054
    %v6151 = vunpack.c.l.b16 %v6055
    %v6152 = vunpack.c.h.b16 %v6055
    %v6153 = vpack.c.b16 %v6093, %v6089
    %v6154 = vpack.c.b16 %v6094, %v6090
    %v6155 = vpack.c.b16 %v6095, %v6091
    %v6156 = vpack.c.b16 %v6096, %v6092
    %v6157 = vpack.c.b16 %v6101, %v6097
    %v6158 = vpack.c.b16 %v6102, %v6098
    %v6159 = vpack.c.b16 %v6103, %v6099
    %v6160 = vpack.c.b16 %v6104, %v6100
    %v6161 = vpack.c.b16 %v6109, %v6105
    %v6162 = vpack.c.b16 %v6110, %v6106
    %v6163 = vpack.c.b16 %v6111, %v6107
    %v6164 = vpack.c.b16 %v6112, %v6108
    %v6165 = vpack.c.b16 %v6117, %v6113
    %v6166 = vpack.c.b16 %v6118, %v6114
    %v6167 = vpack.c.b16 %v6119, %v6115
    %v6168 = vpack.c.b16 %v6120, %v6116
    %v6169 = vpack.c.b16 %v6125, %v6121
    %v6170 = vpack.c.b16 %v6126, %v6122
    %v6171 = vpack.c.b16 %v6127, %v6123
    %v6172 = vpack.c.b16 %v6128, %v6124
    %v6173 = vpack.c.b16 %v6133, %v6129
    %v6174 = vpack.c.b16 %v6134, %v6130
    %v6175 = vpack.c.b16 %v6135, %v6131
    %v6176 = vpack.c.b16 %v6136, %v6132
    %v6177 = vpack.c.b16 %v6141, %v6137
    %v6178 = vpack.c.b16 %v6142, %v6138
    %v6179 = vpack.c.b16 %v6143, %v6139
    %v6180 = vpack.c.b16 %v6144, %v6140
    %v6181 = vpack.c.b16 %v6149, %v6145
    %v6182 = vpack.c.b16 %v6150, %v6146
    %v6183 = vpack.c.b16 %v6151, %v6147
    %v6184 = vpack.c.b16 %v6152, %v6148
    %6217 = vmatprep.subr.bf16.mxu0 %v6154
    %6218 = vmatpush1.bf16.msra.mxu0 %v6153
    %6219 = vmatprep.subr.bf16.mxu0 %v6158
    %6220 = vmatpush1.bf16.msra.mxu0 %v6157
    %6221 = vmatprep.subr.bf16.mxu0 %v6162
    %6222 = vmatpush1.bf16.msra.mxu0 %v6161
    %6223 = vmatprep.subr.bf16.mxu0 %v6166
    %6224 = vmatpush1.bf16.msra.mxu0 %v6165
    %6225 = vmatprep.subr.bf16.mxu0 %v6170
    %6226 = vmatpush1.bf16.msra.mxu0 %v6169
    %6227 = vmatprep.subr.bf16.mxu0 %v6174
    %6228 = vmatpush1.bf16.msra.mxu0 %v6173
    %6229 = vmatprep.subr.bf16.mxu0 %v6178
    %6230 = vmatpush1.bf16.msra.mxu0 %v6177
    %6231 = vmatprep.subr.bf16.mxu0 %v6182
    %6232 = vmatpush1.bf16.msra.mxu0 %v6181
    %6233 = vmatprep.subr.bf16.mxu0 0
    %6234 = vmatpush1.bf16.msra.mxu0 0
    %6235 = vmatprep.subr.bf16.mxu0 0
    %6236 = vmatpush1.bf16.msra.mxu0 0
    %6237 = vmatprep.subr.bf16.mxu0 0
    %6238 = vmatpush1.bf16.msra.mxu0 0
    %6239 = vmatprep.subr.bf16.mxu0 0
    %6240 = vmatpush1.bf16.msra.mxu0 0
    %6241 = vmatprep.subr.bf16.mxu0 0
    %6242 = vmatpush1.bf16.msra.mxu0 0
    %6243 = vmatprep.subr.bf16.mxu0 0
    %6244 = vmatpush1.bf16.msra.mxu0 0
    %6245 = vmatprep.subr.bf16.mxu0 0
    %6246 = vmatpush1.bf16.msra.mxu0 0
    %6247 = vmatprep.subr.bf16.mxu0 0
    %6248 = vmatpush1.bf16.msra.mxu0 0
    %6249 = vmatprep.mubr.bf16.mxu0 0
    %6250 = vmatmul.mubr.bf16.gmra.mrb[0].mxu0 %v6056
    %v6251 = vpop.f32.mrb[0].mxu0
    %v6252 = vadd.f32 0.0, %v6251
    %v6253 = vpop.f32.mrb[0].mxu0
    %v6254 = vadd.f32 0.0, %v6253
    %v6255 = vpop.f32.mrb[0].mxu0
    %v6256 = vpop.f32.mrb[0].mxu0
    %6257 = vdwg.mxu0
    %6258 = vmatprep.subr.bf16.mxu0 %v6156
    %6259 = vmatpush1.bf16.msra.mxu0 %v6155
    %6260 = vmatprep.subr.bf16.mxu0 %v6160
    %6261 = vmatpush1.bf16.msra.mxu0 %v6159
    %6262 = vmatprep.subr.bf16.mxu0 %v6164
    %6263 = vmatpush1.bf16.msra.mxu0 %v6163
    %6264 = vmatprep.subr.bf16.mxu0 %v6168
    %6265 = vmatpush1.bf16.msra.mxu0 %v6167
    %6266 = vmatprep.subr.bf16.mxu0 %v6172
    %6267 = vmatpush1.bf16.msra.mxu0 %v6171
    %6268 = vmatprep.subr.bf16.mxu0 %v6176
    %6269 = vmatpush1.bf16.msra.mxu0 %v6175
    %6270 = vmatprep.subr.bf16.mxu0 %v6180
    %6271 = vmatpush1.bf16.msra.mxu0 %v6179
    %6272 = vmatprep.subr.bf16.mxu0 %v6184
    %6273 = vmatpush1.bf16.msra.mxu0 %v6183
    %6274 = vmatprep.subr.bf16.mxu0 0
    %6275 = vmatpush1.bf16.msra.mxu0 0
    %6276 = vmatprep.subr.bf16.mxu0 0
    %6277 = vmatpush1.bf16.msra.mxu0 0
    %6278 = vmatprep.subr.bf16.mxu0 0
    %6279 = vmatpush1.bf16.msra.mxu0 0
    %6280 = vmatprep.subr.bf16.mxu0 0
    %6281 = vmatpush1.bf16.msra.mxu0 0
    %6282 = vmatprep.subr.bf16.mxu0 0
    %6283 = vmatpush1.bf16.msra.mxu0 0
    %6284 = vmatprep.subr.bf16.mxu0 0
    %6285 = vmatpush1.bf16.msra.mxu0 0
    %6286 = vmatprep.subr.bf16.mxu0 0
    %6287 = vmatpush1.bf16.msra.mxu0 0
    %6288 = vmatprep.subr.bf16.mxu0 0
    %6289 = vmatpush1.bf16.msra.mxu0 0
    %6290 = vmatprep.mubr.bf16.mxu0 0
    %6291 = vmatmul.mubr.bf16.gmra.mrb[0].mxu0 %v6056
    %v6292 = vpop.f32.mrb[0].mxu0
    %v6293 = vadd.f32 0.0, %v6292
    %v6294 = vpop.f32.mrb[0].mxu0
    %v6295 = vadd.f32 0.0, %v6294
    %v6296 = vpop.f32.mrb[0].mxu0
    %v6297 = vpop.f32.mrb[0].mxu0
    %6298 = vdwg.mxu0
    %v6299 = vadd.f32 %v5976, %v6252
    %v6300 = vadd.f32 %v5978, %v6254
    %v6301 = vadd.f32 %v6017, %v6293
    %v6302 = vadd.f32 %v6019, %v6295
    %v6303 = vld [vmem:[%s18] sm:$0xf]
    %v6305 = vlaneseq
    %v6306 = vshrl.u32 %v6305, 7
    %v6307 = vsub.s32 0, %v6306
    %v6308 = vrot.slane %v6303, %v6307
    %v6309 = vlaneseq
    %v6310 = vshrl.u32 %v6309, 7
    %v6311 = vsub.s32 1, %v6310
    %v6312 = vrot.slane %v6303, %v6311
    %v6313 = vlaneseq
    %v6314 = vshrl.u32 %v6313, 7
    %v6315 = vsub.s32 2, %v6314
    %v6316 = vrot.slane %v6303, %v6315
    %v6317 = vlaneseq
    %v6318 = vshrl.u32 %v6317, 7
    %v6319 = vsub.s32 3, %v6318
    %v6320 = vrot.slane %v6303, %v6319
    %v6325 = vadd.f32 %v6299, %v6308
    %v6326 = vadd.f32 %v6300, %v6312
    %v6327 = vadd.f32 %v6301, %v6316
    %v6328 = vadd.f32 %v6302, %v6320
    %v6333 = vcombine.low %v6325, %v6326
    %v6334 = vcombine.low %v6327, %v6328
    %v6336 = vunpack.c.l.s4 1966171168
    %v6337 = vunpack.c.0.s8 %v6336
    %v6338 = vlaneseq
    %v6339 = vshrl.u32 %v6338, 7
    %v6340 = vsub.s32 %v6337, %v6339
    %v6341 = vrot.slane %v6333, %v6340
    %v6343 = vunpack.c.l.s4 1966171168
    %v6344 = vunpack.c.0.s8 %v6343
    %v6345 = vlaneseq
    %v6346 = vshrl.u32 %v6345, 7
    %v6347 = vsub.s32 %v6344, %v6346
    %v6348 = vrot.slane %v6334, %v6347
    %v6349 = vcombine.low %v6341, %v6348
    %v6351 = vunpack.c.l.s4 1966171168
    %v6352 = vunpack.c.0.s8 %v6351
    %v6353 = vlaneseq
    %v6354 = vshrl.u32 %v6353, 7
    %v6355 = vsub.s32 %v6352, %v6354
    %v6356 = vrot.slane %v6349, %v6355
    %v6358 = vlaneseq
    %vm6359 = vcmp.ge.s32.totalorder %v6358, 0
    %vm6360 = vcmp.lt.s32.totalorder %v6358, 512
    %vm6361 = vmand %vm6359, %vm6360
    %6362 = vst.msk [vmem:[#allocation6] ss:$2 sm:$0xf] %vm6361, %v6356
    %v6363 = vld [vmem:[#allocation5 + $0x3] sm:$0x1]
    %v6364 = vld [vmem:[%s17] sm:$0xff]
    %v6365 = vld [vmem:[%s17 + $0x8] sm:$0xff]
    %v6366 = vld [vmem:[%s17 + $0x10] sm:$0xff]
    %v6367 = vld [vmem:[%s17 + $0x18] sm:$0xff]
    %v6368 = vld [vmem:[%s17 + $0x20] sm:$0xff]
    %v6369 = vld [vmem:[%s17 + $0x28] sm:$0xff]
    %v6370 = vld [vmem:[%s17 + $0x30] sm:$0xff]
    %v6371 = vld [vmem:[%s17 + $0x38] sm:$0xff]
    %v6372 = vld [vmem:[%s17 + $0x40] sm:$0xff]
    %v6373 = vld [vmem:[%s17 + $0x48] sm:$0xff]
    %v6374 = vld [vmem:[%s17 + $0x50] sm:$0xff]
    %v6375 = vld [vmem:[%s17 + $0x58] sm:$0xff]
    %v6376 = vld [vmem:[%s17 + $0x60] sm:$0xff]
    %v6377 = vld [vmem:[%s17 + $0x68] sm:$0xff]
    %v6378 = vld [vmem:[%s17 + $0x70] sm:$0xff]
    %v6379 = vld [vmem:[%s17 + $0x78] sm:$0xff]
    %v6380 = vld [vmem:[%s17 + $0x80] sm:$0xff]
    %v6381 = vld [vmem:[%s17 + $0x88] sm:$0xff]
    %v6382 = vld [vmem:[%s17 + $0x90] sm:$0xff]
    %v6383 = vld [vmem:[%s17 + $0x98] sm:$0xff]
    %v6384 = vld [vmem:[%s17 + $0xa0] sm:$0xff]
    %v6385 = vld [vmem:[%s17 + $0xa8] sm:$0xff]
    %v6386 = vld [vmem:[%s17 + $0xb0] sm:$0xff]
    %v6387 = vld [vmem:[%s17 + $0xb8] sm:$0xff]
    %v6388 = vld [vmem:[%s17 + $0xc0] sm:$0xff]
    %v6389 = vld [vmem:[%s17 + $0xc8] sm:$0xff]
    %v6390 = vld [vmem:[%s17 + $0xd0] sm:$0xff]
    %v6391 = vld [vmem:[%s17 + $0xd8] sm:$0xff]
    %v6392 = vld [vmem:[%s17 + $0xe0] sm:$0xff]
    %v6393 = vld [vmem:[%s17 + $0xe8] sm:$0xff]
    %v6394 = vld [vmem:[%s17 + $0xf0] sm:$0xff]
    %v6395 = vld [vmem:[%s17 + $0xf8] sm:$0xff]
    %v6396 = vpack.c.bf16 %v6363, %v6363
    %v6397 = vld [vmem:[#allocation5 + $0x4] sm:$0x1]
    %v6398 = vld [vmem:[%s17 + $0x100] sm:$0xff]
    %v6399 = vld [vmem:[%s17 + $0x108] sm:$0xff]
    %v6400 = vld [vmem:[%s17 + $0x110] sm:$0xff]
    %v6401 = vld [vmem:[%s17 + $0x118] sm:$0xff]
    %v6402 = vld [vmem:[%s17 + $0x120] sm:$0xff]
    %v6403 = vld [vmem:[%s17 + $0x128] sm:$0xff]
    %v6404 = vld [vmem:[%s17 + $0x130] sm:$0xff]
    %v6405 = vld [vmem:[%s17 + $0x138] sm:$0xff]
    %v6406 = vld [vmem:[%s17 + $0x140] sm:$0xff]
    %v6407 = vld [vmem:[%s17 + $0x148] sm:$0xff]
    %v6408 = vld [vmem:[%s17 + $0x150] sm:$0xff]
    %v6409 = vld [vmem:[%s17 + $0x158] sm:$0xff]
    %v6410 = vld [vmem:[%s17 + $0x160] sm:$0xff]
    %v6411 = vld [vmem:[%s17 + $0x168] sm:$0xff]
    %v6412 = vld [vmem:[%s17 + $0x170] sm:$0xff]
    %v6413 = vld [vmem:[%s17 + $0x178] sm:$0xff]
    %v6414 = vld [vmem:[%s17 + $0x180] sm:$0xff]
    %v6415 = vld [vmem:[%s17 + $0x188] sm:$0xff]
    %v6416 = vld [vmem:[%s17 + $0x190] sm:$0xff]
    %v6417 = vld [vmem:[%s17 + $0x198] sm:$0xff]
    %v6418 = vld [vmem:[%s17 + $0x1a0] sm:$0xff]
    %v6419 = vld [vmem:[%s17 + $0x1a8] sm:$0xff]
    %v6420 = vld [vmem:[%s17 + $0x1b0] sm:$0xff]
    %v6421 = vld [vmem:[%s17 + $0x1b8] sm:$0xff]
    %v6422 = vld [vmem:[%s17 + $0x1c0] sm:$0xff]
    %v6423 = vld [vmem:[%s17 + $0x1c8] sm:$0xff]
    %v6424 = vld [vmem:[%s17 + $0x1d0] sm:$0xff]
    %v6425 = vld [vmem:[%s17 + $0x1d8] sm:$0xff]
    %v6426 = vld [vmem:[%s17 + $0x1e0] sm:$0xff]
    %v6427 = vld [vmem:[%s17 + $0x1e8] sm:$0xff]
    %v6428 = vld [vmem:[%s17 + $0x1f0] sm:$0xff]
    %v6429 = vld [vmem:[%s17 + $0x1f8] sm:$0xff]
    %v6430 = vpack.c.bf16 %v6397, %v6397
    %v6463 = vunpack.c.l.b16 %v6398
    %v6464 = vunpack.c.h.b16 %v6398
    %v6465 = vunpack.c.l.b16 %v6399
    %v6466 = vunpack.c.h.b16 %v6399
    %v6467 = vunpack.c.l.b16 %v6400
    %v6468 = vunpack.c.h.b16 %v6400
    %v6469 = vunpack.c.l.b16 %v6401
    %v6470 = vunpack.c.h.b16 %v6401
    %v6471 = vunpack.c.l.b16 %v6402
    %v6472 = vunpack.c.h.b16 %v6402
    %v6473 = vunpack.c.l.b16 %v6403
    %v6474 = vunpack.c.h.b16 %v6403
    %v6475 = vunpack.c.l.b16 %v6404
    %v6476 = vunpack.c.h.b16 %v6404
    %v6477 = vunpack.c.l.b16 %v6405
    %v6478 = vunpack.c.h.b16 %v6405
    %v6479 = vunpack.c.l.b16 %v6406
    %v6480 = vunpack.c.h.b16 %v6406
    %v6481 = vunpack.c.l.b16 %v6407
    %v6482 = vunpack.c.h.b16 %v6407
    %v6483 = vunpack.c.l.b16 %v6408
    %v6484 = vunpack.c.h.b16 %v6408
    %v6485 = vunpack.c.l.b16 %v6409
    %v6486 = vunpack.c.h.b16 %v6409
    %v6487 = vunpack.c.l.b16 %v6410
    %v6488 = vunpack.c.h.b16 %v6410
    %v6489 = vunpack.c.l.b16 %v6411
    %v6490 = vunpack.c.h.b16 %v6411
    %v6491 = vunpack.c.l.b16 %v6412
    %v6492 = vunpack.c.h.b16 %v6412
    %v6493 = vunpack.c.l.b16 %v6413
    %v6494 = vunpack.c.h.b16 %v6413
    %v6495 = vunpack.c.l.b16 %v6414
    %v6496 = vunpack.c.h.b16 %v6414
    %v6497 = vunpack.c.l.b16 %v6415
    %v6498 = vunpack.c.h.b16 %v6415
    %v6499 = vunpack.c.l.b16 %v6416
    %v6500 = vunpack.c.h.b16 %v6416
    %v6501 = vunpack.c.l.b16 %v6417
    %v6502 = vunpack.c.h.b16 %v6417
    %v6503 = vunpack.c.l.b16 %v6418
    %v6504 = vunpack.c.h.b16 %v6418
    %v6505 = vunpack.c.l.b16 %v6419
    %v6506 = vunpack.c.h.b16 %v6419
    %v6507 = vunpack.c.l.b16 %v6420
    %v6508 = vunpack.c.h.b16 %v6420
    %v6509 = vunpack.c.l.b16 %v6421
    %v6510 = vunpack.c.h.b16 %v6421
    %v6511 = vunpack.c.l.b16 %v6422
    %v6512 = vunpack.c.h.b16 %v6422
    %v6513 = vunpack.c.l.b16 %v6423
    %v6514 = vunpack.c.h.b16 %v6423
    %v6515 = vunpack.c.l.b16 %v6424
    %v6516 = vunpack.c.h.b16 %v6424
    %v6517 = vunpack.c.l.b16 %v6425
    %v6518 = vunpack.c.h.b16 %v6425
    %v6519 = vunpack.c.l.b16 %v6426
    %v6520 = vunpack.c.h.b16 %v6426
    %v6521 = vunpack.c.l.b16 %v6427
    %v6522 = vunpack.c.h.b16 %v6427
    %v6523 = vunpack.c.l.b16 %v6428
    %v6524 = vunpack.c.h.b16 %v6428
    %v6525 = vunpack.c.l.b16 %v6429
    %v6526 = vunpack.c.h.b16 %v6429
    %v6527 = vpack.c.b16 %v6467, %v6463
    %v6528 = vpack.c.b16 %v6468, %v6464
    %v6529 = vpack.c.b16 %v6469, %v6465
    %v6530 = vpack.c.b16 %v6470, %v6466
    %v6531 = vpack.c.b16 %v6475, %v6471
    %v6532 = vpack.c.b16 %v6476, %v6472
    %v6533 = vpack.c.b16 %v6477, %v6473
    %v6534 = vpack.c.b16 %v6478, %v6474
    %v6535 = vpack.c.b16 %v6483, %v6479
    %v6536 = vpack.c.b16 %v6484, %v6480
    %v6537 = vpack.c.b16 %v6485, %v6481
    %v6538 = vpack.c.b16 %v6486, %v6482
    %v6539 = vpack.c.b16 %v6491, %v6487
    %v6540 = vpack.c.b16 %v6492, %v6488
    %v6541 = vpack.c.b16 %v6493, %v6489
    %v6542 = vpack.c.b16 %v6494, %v6490
    %v6543 = vpack.c.b16 %v6499, %v6495
    %v6544 = vpack.c.b16 %v6500, %v6496
    %v6545 = vpack.c.b16 %v6501, %v6497
    %v6546 = vpack.c.b16 %v6502, %v6498
    %v6547 = vpack.c.b16 %v6507, %v6503
    %v6548 = vpack.c.b16 %v6508, %v6504
    %v6549 = vpack.c.b16 %v6509, %v6505
    %v6550 = vpack.c.b16 %v6510, %v6506
    %v6551 = vpack.c.b16 %v6515, %v6511
    %v6552 = vpack.c.b16 %v6516, %v6512
    %v6553 = vpack.c.b16 %v6517, %v6513
    %v6554 = vpack.c.b16 %v6518, %v6514
    %v6555 = vpack.c.b16 %v6523, %v6519
    %v6556 = vpack.c.b16 %v6524, %v6520
    %v6557 = vpack.c.b16 %v6525, %v6521
    %v6558 = vpack.c.b16 %v6526, %v6522
    %6591 = vmatprep.subr.bf16.mxu0 %v6528
    %6592 = vmatpush1.bf16.msra.mxu0 %v6527
    %6593 = vmatprep.subr.bf16.mxu0 %v6532
    %6594 = vmatpush1.bf16.msra.mxu0 %v6531
    %6595 = vmatprep.subr.bf16.mxu0 %v6536
    %6596 = vmatpush1.bf16.msra.mxu0 %v6535
    %6597 = vmatprep.subr.bf16.mxu0 %v6540
    %6598 = vmatpush1.bf16.msra.mxu0 %v6539
    %6599 = vmatprep.subr.bf16.mxu0 %v6544
    %6600 = vmatpush1.bf16.msra.mxu0 %v6543
    %6601 = vmatprep.subr.bf16.mxu0 %v6548
    %6602 = vmatpush1.bf16.msra.mxu0 %v6547
    %6603 = vmatprep.subr.bf16.mxu0 %v6552
    %6604 = vmatpush1.bf16.msra.mxu0 %v6551
    %6605 = vmatprep.subr.bf16.mxu0 %v6556
    %6606 = vmatpush1.bf16.msra.mxu0 %v6555
    %6607 = vmatprep.subr.bf16.mxu0 0
    %6608 = vmatpush1.bf16.msra.mxu0 0
    %6609 = vmatprep.subr.bf16.mxu0 0
    %6610 = vmatpush1.bf16.msra.mxu0 0
    %6611 = vmatprep.subr.bf16.mxu0 0
    %6612 = vmatpush1.bf16.msra.mxu0 0
    %6613 = vmatprep.subr.bf16.mxu0 0
    %6614 = vmatpush1.bf16.msra.mxu0 0
    %6615 = vmatprep.subr.bf16.mxu0 0
    %6616 = vmatpush1.bf16.msra.mxu0 0
    %6617 = vmatprep.subr.bf16.mxu0 0
    %6618 = vmatpush1.bf16.msra.mxu0 0
    %6619 = vmatprep.subr.bf16.mxu0 0
    %6620 = vmatpush1.bf16.msra.mxu0 0
    %6621 = vmatprep.subr.bf16.mxu0 0
    %6622 = vmatpush1.bf16.msra.mxu0 0
    %6623 = vmatprep.mubr.bf16.mxu0 0
    %6624 = vmatmul.mubr.bf16.gmra.mrb[0].mxu0 %v6430
    %v6625 = vpop.f32.mrb[0].mxu0
    %v6626 = vadd.f32 0.0, %v6625
    %v6627 = vpop.f32.mrb[0].mxu0
    %v6628 = vadd.f32 0.0, %v6627
    %v6629 = vpop.f32.mrb[0].mxu0
    %v6630 = vpop.f32.mrb[0].mxu0
    %6631 = vdwg.mxu0
    %6632 = vmatprep.subr.bf16.mxu0 %v6530
    %6633 = vmatpush1.bf16.msra.mxu0 %v6529
    %6634 = vmatprep.subr.bf16.mxu0 %v6534
    %6635 = vmatpush1.bf16.msra.mxu0 %v6533
    %6636 = vmatprep.subr.bf16.mxu0 %v6538
    %6637 = vmatpush1.bf16.msra.mxu0 %v6537
    %6638 = vmatprep.subr.bf16.mxu0 %v6542
    %6639 = vmatpush1.bf16.msra.mxu0 %v6541
    %6640 = vmatprep.subr.bf16.mxu0 %v6546
    %6641 = vmatpush1.bf16.msra.mxu0 %v6545
    %6642 = vmatprep.subr.bf16.mxu0 %v6550
    %6643 = vmatpush1.bf16.msra.mxu0 %v6549
    %6644 = vmatprep.subr.bf16.mxu0 %v6554
    %6645 = vmatpush1.bf16.msra.mxu0 %v6553
    %6646 = vmatprep.subr.bf16.mxu0 %v6558
    %6647 = vmatpush1.bf16.msra.mxu0 %v6557
    %6648 = vmatprep.subr.bf16.mxu0 0
    %6649 = vmatpush1.bf16.msra.mxu0 0
    %6650 = vmatprep.subr.bf16.mxu0 0
    %6651 = vmatpush1.bf16.msra.mxu0 0
    %6652 = vmatprep.subr.bf16.mxu0 0
    %6653 = vmatpush1.bf16.msra.mxu0 0
    %6654 = vmatprep.subr.bf16.mxu0 0
    %6655 = vmatpush1.bf16.msra.mxu0 0
    %6656 = vmatprep.subr.bf16.mxu0 0
    %6657 = vmatpush1.bf16.msra.mxu0 0
    %6658 = vmatprep.subr.bf16.mxu0 0
    %6659 = vmatpush1.bf16.msra.mxu0 0
    %6660 = vmatprep.subr.bf16.mxu0 0
    %6661 = vmatpush1.bf16.msra.mxu0 0
    %6662 = vmatprep.subr.bf16.mxu0 0
    %6663 = vmatpush1.bf16.msra.mxu0 0
    %6664 = vmatprep.mubr.bf16.mxu0 0
    %6665 = vmatmul.mubr.bf16.gmra.mrb[0].mxu0 %v6430
    %v6666 = vpop.f32.mrb[0].mxu0
    %v6667 = vadd.f32 0.0, %v6666
    %v6668 = vpop.f32.mrb[0].mxu0
    %v6669 = vadd.f32 0.0, %v6668
    %v6670 = vpop.f32.mrb[0].mxu0
    %v6671 = vpop.f32.mrb[0].mxu0
    %6672 = vdwg.mxu0
    %v6705 = vunpack.c.l.b16 %v6364
    %v6706 = vunpack.c.h.b16 %v6364
    %v6707 = vunpack.c.l.b16 %v6365
    %v6708 = vunpack.c.h.b16 %v6365
    %v6709 = vunpack.c.l.b16 %v6366
    %v6710 = vunpack.c.h.b16 %v6366
    %v6711 = vunpack.c.l.b16 %v6367
    %v6712 = vunpack.c.h.b16 %v6367
    %v6713 = vunpack.c.l.b16 %v6368
    %v6714 = vunpack.c.h.b16 %v6368
    %v6715 = vunpack.c.l.b16 %v6369
    %v6716 = vunpack.c.h.b16 %v6369
    %v6717 = vunpack.c.l.b16 %v6370
    %v6718 = vunpack.c.h.b16 %v6370
    %v6719 = vunpack.c.l.b16 %v6371
    %v6720 = vunpack.c.h.b16 %v6371
    %v6721 = vunpack.c.l.b16 %v6372
    %v6722 = vunpack.c.h.b16 %v6372
    %v6723 = vunpack.c.l.b16 %v6373
    %v6724 = vunpack.c.h.b16 %v6373
    %v6725 = vunpack.c.l.b16 %v6374
    %v6726 = vunpack.c.h.b16 %v6374
    %v6727 = vunpack.c.l.b16 %v6375
    %v6728 = vunpack.c.h.b16 %v6375
    %v6729 = vunpack.c.l.b16 %v6376
    %v6730 = vunpack.c.h.b16 %v6376
    %v6731 = vunpack.c.l.b16 %v6377
    %v6732 = vunpack.c.h.b16 %v6377
    %v6733 = vunpack.c.l.b16 %v6378
    %v6734 = vunpack.c.h.b16 %v6378
    %v6735 = vunpack.c.l.b16 %v6379
    %v6736 = vunpack.c.h.b16 %v6379
    %v6737 = vunpack.c.l.b16 %v6380
    %v6738 = vunpack.c.h.b16 %v6380
    %v6739 = vunpack.c.l.b16 %v6381
    %v6740 = vunpack.c.h.b16 %v6381
    %v6741 = vunpack.c.l.b16 %v6382
    %v6742 = vunpack.c.h.b16 %v6382
    %v6743 = vunpack.c.l.b16 %v6383
    %v6744 = vunpack.c.h.b16 %v6383
    %v6745 = vunpack.c.l.b16 %v6384
    %v6746 = vunpack.c.h.b16 %v6384
    %v6747 = vunpack.c.l.b16 %v6385
    %v6748 = vunpack.c.h.b16 %v6385
    %v6749 = vunpack.c.l.b16 %v6386
    %v6750 = vunpack.c.h.b16 %v6386
    %v6751 = vunpack.c.l.b16 %v6387
    %v6752 = vunpack.c.h.b16 %v6387
    %v6753 = vunpack.c.l.b16 %v6388
    %v6754 = vunpack.c.h.b16 %v6388
    %v6755 = vunpack.c.l.b16 %v6389
    %v6756 = vunpack.c.h.b16 %v6389
    %v6757 = vunpack.c.l.b16 %v6390
    %v6758 = vunpack.c.h.b16 %v6390
    %v6759 = vunpack.c.l.b16 %v6391
    %v6760 = vunpack.c.h.b16 %v6391
    %v6761 = vunpack.c.l.b16 %v6392
    %v6762 = vunpack.c.h.b16 %v6392
    %v6763 = vunpack.c.l.b16 %v6393
    %v6764 = vunpack.c.h.b16 %v6393
    %v6765 = vunpack.c.l.b16 %v6394
    %v6766 = vunpack.c.h.b16 %v6394
    %v6767 = vunpack.c.l.b16 %v6395
    %v6768 = vunpack.c.h.b16 %v6395
    %v6769 = vpack.c.b16 %v6709, %v6705
    %v6770 = vpack.c.b16 %v6710, %v6706
    %v6771 = vpack.c.b16 %v6711, %v6707
    %v6772 = vpack.c.b16 %v6712, %v6708
    %v6773 = vpack.c.b16 %v6717, %v6713
    %v6774 = vpack.c.b16 %v6718, %v6714
    %v6775 = vpack.c.b16 %v6719, %v6715
    %v6776 = vpack.c.b16 %v6720, %v6716
    %v6777 = vpack.c.b16 %v6725, %v6721
    %v6778 = vpack.c.b16 %v6726, %v6722
    %v6779 = vpack.c.b16 %v6727, %v6723
    %v6780 = vpack.c.b16 %v6728, %v6724
    %v6781 = vpack.c.b16 %v6733, %v6729
    %v6782 = vpack.c.b16 %v6734, %v6730
    %v6783 = vpack.c.b16 %v6735, %v6731
    %v6784 = vpack.c.b16 %v6736, %v6732
    %v6785 = vpack.c.b16 %v6741, %v6737
    %v6786 = vpack.c.b16 %v6742, %v6738
    %v6787 = vpack.c.b16 %v6743, %v6739
    %v6788 = vpack.c.b16 %v6744, %v6740
    %v6789 = vpack.c.b16 %v6749, %v6745
    %v6790 = vpack.c.b16 %v6750, %v6746
    %v6791 = vpack.c.b16 %v6751, %v6747
    %v6792 = vpack.c.b16 %v6752, %v6748
    %v6793 = vpack.c.b16 %v6757, %v6753
    %v6794 = vpack.c.b16 %v6758, %v6754
    %v6795 = vpack.c.b16 %v6759, %v6755
    %v6796 = vpack.c.b16 %v6760, %v6756
    %v6797 = vpack.c.b16 %v6765, %v6761
    %v6798 = vpack.c.b16 %v6766, %v6762
    %v6799 = vpack.c.b16 %v6767, %v6763
    %v6800 = vpack.c.b16 %v6768, %v6764
    %6833 = vmatprep.subr.bf16.mxu0 %v6770
    %6834 = vmatpush1.bf16.msra.mxu0 %v6769
    %6835 = vmatprep.subr.bf16.mxu0 %v6774
    %6836 = vmatpush1.bf16.msra.mxu0 %v6773
    %6837 = vmatprep.subr.bf16.mxu0 %v6778
    %6838 = vmatpush1.bf16.msra.mxu0 %v6777
    %6839 = vmatprep.subr.bf16.mxu0 %v6782
    %6840 = vmatpush1.bf16.msra.mxu0 %v6781
    %6841 = vmatprep.subr.bf16.mxu0 %v6786
    %6842 = vmatpush1.bf16.msra.mxu0 %v6785
    %6843 = vmatprep.subr.bf16.mxu0 %v6790
    %6844 = vmatpush1.bf16.msra.mxu0 %v6789
    %6845 = vmatprep.subr.bf16.mxu0 %v6794
    %6846 = vmatpush1.bf16.msra.mxu0 %v6793
    %6847 = vmatprep.subr.bf16.mxu0 %v6798
    %6848 = vmatpush1.bf16.msra.mxu0 %v6797
    %6849 = vmatprep.subr.bf16.mxu0 0
    %6850 = vmatpush1.bf16.msra.mxu0 0
    %6851 = vmatprep.subr.bf16.mxu0 0
    %6852 = vmatpush1.bf16.msra.mxu0 0
    %6853 = vmatprep.subr.bf16.mxu0 0
    %6854 = vmatpush1.bf16.msra.mxu0 0
    %6855 = vmatprep.subr.bf16.mxu0 0
    %6856 = vmatpush1.bf16.msra.mxu0 0
    %6857 = vmatprep.subr.bf16.mxu0 0
    %6858 = vmatpush1.bf16.msra.mxu0 0
    %6859 = vmatprep.subr.bf16.mxu0 0
    %6860 = vmatpush1.bf16.msra.mxu0 0
    %6861 = vmatprep.subr.bf16.mxu0 0
    %6862 = vmatpush1.bf16.msra.mxu0 0
    %6863 = vmatprep.subr.bf16.mxu0 0
    %6864 = vmatpush1.bf16.msra.mxu0 0
    %6865 = vmatprep.mubr.bf16.mxu0 0
    %6866 = vmatmul.mubr.bf16.gmra.mrb[0].mxu0 %v6396
    %v6867 = vpop.f32.mrb[0].mxu0
    %v6868 = vadd.f32 %v6626, %v6867
    %v6869 = vpop.f32.mrb[0].mxu0
    %v6870 = vadd.f32 %v6628, %v6869
    %v6871 = vpop.f32.mrb[0].mxu0
    %v6872 = vpop.f32.mrb[0].mxu0
    %6873 = vdwg.mxu0
    %6874 = vmatprep.subr.bf16.mxu0 %v6772
    %6875 = vmatpush1.bf16.msra.mxu0 %v6771
    %6876 = vmatprep.subr.bf16.mxu0 %v6776
    %6877 = vmatpush1.bf16.msra.mxu0 %v6775
    %6878 = vmatprep.subr.bf16.mxu0 %v6780
    %6879 = vmatpush1.bf16.msra.mxu0 %v6779
    %6880 = vmatprep.subr.bf16.mxu0 %v6784
    %6881 = vmatpush1.bf16.msra.mxu0 %v6783
    %6882 = vmatprep.subr.bf16.mxu0 %v6788
    %6883 = vmatpush1.bf16.msra.mxu0 %v6787
    %6884 = vmatprep.subr.bf16.mxu0 %v6792
    %6885 = vmatpush1.bf16.msra.mxu0 %v6791
    %6886 = vmatprep.subr.bf16.mxu0 %v6796
    %6887 = vmatpush1.bf16.msra.mxu0 %v6795
    %6888 = vmatprep.subr.bf16.mxu0 %v6800
    %6889 = vmatpush1.bf16.msra.mxu0 %v6799
    %6890 = vmatprep.subr.bf16.mxu0 0
    %6891 = vmatpush1.bf16.msra.mxu0 0
    %6892 = vmatprep.subr.bf16.mxu0 0
    %6893 = vmatpush1.bf16.msra.mxu0 0
    %6894 = vmatprep.subr.bf16.mxu0 0
    %6895 = vmatpush1.bf16.msra.mxu0 0
    %6896 = vmatprep.subr.bf16.mxu0 0
    %6897 = vmatpush1.bf16.msra.mxu0 0
    %6898 = vmatprep.subr.bf16.mxu0 0
    %6899 = vmatpush1.bf16.msra.mxu0 0
    %6900 = vmatprep.subr.bf16.mxu0 0
    %6901 = vmatpush1.bf16.msra.mxu0 0
    %6902 = vmatprep.subr.bf16.mxu0 0
    %6903 = vmatpush1.bf16.msra.mxu0 0
    %6904 = vmatprep.subr.bf16.mxu0 0
    %6905 = vmatpush1.bf16.msra.mxu0 0
    %6906 = vmatprep.mubr.bf16.mxu0 0
    %6907 = vmatmul.mubr.bf16.gmra.mrb[0].mxu0 %v6396
    %v6908 = vpop.f32.mrb[0].mxu0
    %v6909 = vadd.f32 %v6667, %v6908
    %v6910 = vpop.f32.mrb[0].mxu0
    %v6911 = vadd.f32 %v6669, %v6910
    %v6912 = vpop.f32.mrb[0].mxu0
    %v6913 = vpop.f32.mrb[0].mxu0
    %6914 = vdwg.mxu0
    %v6915 = vld [vmem:[#allocation5 + $0x5] sm:$0x1]
    %v6916 = vld [vmem:[%s17 + $0x200] sm:$0xff]
    %v6917 = vld [vmem:[%s17 + $0x208] sm:$0xff]
    %v6918 = vld [vmem:[%s17 + $0x210] sm:$0xff]
    %v6919 = vld [vmem:[%s17 + $0x218] sm:$0xff]
    %v6920 = vld [vmem:[%s17 + $0x220] sm:$0xff]
    %v6921 = vld [vmem:[%s17 + $0x228] sm:$0xff]
    %v6922 = vld [vmem:[%s17 + $0x230] sm:$0xff]
    %v6923 = vld [vmem:[%s17 + $0x238] sm:$0xff]
    %v6924 = vld [vmem:[%s17 + $0x240] sm:$0xff]
    %v6925 = vld [vmem:[%s17 + $0x248] sm:$0xff]
    %v6926 = vld [vmem:[%s17 + $0x250] sm:$0xff]
    %v6927 = vld [vmem:[%s17 + $0x258] sm:$0xff]
    %v6928 = vld [vmem:[%s17 + $0x260] sm:$0xff]
    %v6929 = vld [vmem:[%s17 + $0x268] sm:$0xff]
    %v6930 = vld [vmem:[%s17 + $0x270] sm:$0xff]
    %v6931 = vld [vmem:[%s17 + $0x278] sm:$0xff]
    %v6932 = vld [vmem:[%s17 + $0x280] sm:$0xff]
    %v6933 = vld [vmem:[%s17 + $0x288] sm:$0xff]
    %v6934 = vld [vmem:[%s17 + $0x290] sm:$0xff]
    %v6935 = vld [vmem:[%s17 + $0x298] sm:$0xff]
    %v6936 = vld [vmem:[%s17 + $0x2a0] sm:$0xff]
    %v6937 = vld [vmem:[%s17 + $0x2a8] sm:$0xff]
    %v6938 = vld [vmem:[%s17 + $0x2b0] sm:$0xff]
    %v6939 = vld [vmem:[%s17 + $0x2b8] sm:$0xff]
    %v6940 = vld [vmem:[%s17 + $0x2c0] sm:$0xff]
    %v6941 = vld [vmem:[%s17 + $0x2c8] sm:$0xff]
    %v6942 = vld [vmem:[%s17 + $0x2d0] sm:$0xff]
    %v6943 = vld [vmem:[%s17 + $0x2d8] sm:$0xff]
    %v6944 = vld [vmem:[%s17 + $0x2e0] sm:$0xff]
    %v6945 = vld [vmem:[%s17 + $0x2e8] sm:$0xff]
    %v6946 = vld [vmem:[%s17 + $0x2f0] sm:$0xff]
    %v6947 = vld [vmem:[%s17 + $0x2f8] sm:$0xff]
    %v6948 = vpack.c.bf16 %v6915, %v6915
    %v6981 = vunpack.c.l.b16 %v6916
    %v6982 = vunpack.c.h.b16 %v6916
    %v6983 = vunpack.c.l.b16 %v6917
    %v6984 = vunpack.c.h.b16 %v6917
    %v6985 = vunpack.c.l.b16 %v6918
    %v6986 = vunpack.c.h.b16 %v6918
    %v6987 = vunpack.c.l.b16 %v6919
    %v6988 = vunpack.c.h.b16 %v6919
    %v6989 = vunpack.c.l.b16 %v6920
    %v6990 = vunpack.c.h.b16 %v6920
    %v6991 = vunpack.c.l.b16 %v6921
    %v6992 = vunpack.c.h.b16 %v6921
    %v6993 = vunpack.c.l.b16 %v6922
    %v6994 = vunpack.c.h.b16 %v6922
    %v6995 = vunpack.c.l.b16 %v6923
    %v6996 = vunpack.c.h.b16 %v6923
    %v6997 = vunpack.c.l.b16 %v6924
    %v6998 = vunpack.c.h.b16 %v6924
    %v6999 = vunpack.c.l.b16 %v6925
    %v7000 = vunpack.c.h.b16 %v6925
    %v7001 = vunpack.c.l.b16 %v6926
    %v7002 = vunpack.c.h.b16 %v6926
    %v7003 = vunpack.c.l.b16 %v6927
    %v7004 = vunpack.c.h.b16 %v6927
    %v7005 = vunpack.c.l.b16 %v6928
    %v7006 = vunpack.c.h.b16 %v6928
    %v7007 = vunpack.c.l.b16 %v6929
    %v7008 = vunpack.c.h.b16 %v6929
    %v7009 = vunpack.c.l.b16 %v6930
    %v7010 = vunpack.c.h.b16 %v6930
    %v7011 = vunpack.c.l.b16 %v6931
    %v7012 = vunpack.c.h.b16 %v6931
    %v7013 = vunpack.c.l.b16 %v6932
    %v7014 = vunpack.c.h.b16 %v6932
    %v7015 = vunpack.c.l.b16 %v6933
    %v7016 = vunpack.c.h.b16 %v6933
    %v7017 = vunpack.c.l.b16 %v6934
    %v7018 = vunpack.c.h.b16 %v6934
    %v7019 = vunpack.c.l.b16 %v6935
    %v7020 = vunpack.c.h.b16 %v6935
    %v7021 = vunpack.c.l.b16 %v6936
    %v7022 = vunpack.c.h.b16 %v6936
    %v7023 = vunpack.c.l.b16 %v6937
    %v7024 = vunpack.c.h.b16 %v6937
    %v7025 = vunpack.c.l.b16 %v6938
    %v7026 = vunpack.c.h.b16 %v6938
    %v7027 = vunpack.c.l.b16 %v6939
    %v7028 = vunpack.c.h.b16 %v6939
    %v7029 = vunpack.c.l.b16 %v6940
    %v7030 = vunpack.c.h.b16 %v6940
    %v7031 = vunpack.c.l.b16 %v6941
    %v7032 = vunpack.c.h.b16 %v6941
    %v7033 = vunpack.c.l.b16 %v6942
    %v7034 = vunpack.c.h.b16 %v6942
    %v7035 = vunpack.c.l.b16 %v6943
    %v7036 = vunpack.c.h.b16 %v6943
    %v7037 = vunpack.c.l.b16 %v6944
    %v7038 = vunpack.c.h.b16 %v6944
    %v7039 = vunpack.c.l.b16 %v6945
    %v7040 = vunpack.c.h.b16 %v6945
    %v7041 = vunpack.c.l.b16 %v6946
    %v7042 = vunpack.c.h.b16 %v6946
    %v7043 = vunpack.c.l.b16 %v6947
    %v7044 = vunpack.c.h.b16 %v6947
    %v7045 = vpack.c.b16 %v6985, %v6981
    %v7046 = vpack.c.b16 %v6986, %v6982
    %v7047 = vpack.c.b16 %v6987, %v6983
    %v7048 = vpack.c.b16 %v6988, %v6984
    %v7049 = vpack.c.b16 %v6993, %v6989
    %v7050 = vpack.c.b16 %v6994, %v6990
    %v7051 = vpack.c.b16 %v6995, %v6991
    %v7052 = vpack.c.b16 %v6996, %v6992
    %v7053 = vpack.c.b16 %v7001, %v6997
    %v7054 = vpack.c.b16 %v7002, %v6998
    %v7055 = vpack.c.b16 %v7003, %v6999
    %v7056 = vpack.c.b16 %v7004, %v7000
    %v7057 = vpack.c.b16 %v7009, %v7005
    %v7058 = vpack.c.b16 %v7010, %v7006
    %v7059 = vpack.c.b16 %v7011, %v7007
    %v7060 = vpack.c.b16 %v7012, %v7008
    %v7061 = vpack.c.b16 %v7017, %v7013
    %v7062 = vpack.c.b16 %v7018, %v7014
    %v7063 = vpack.c.b16 %v7019, %v7015
    %v7064 = vpack.c.b16 %v7020, %v7016
    %v7065 = vpack.c.b16 %v7025, %v7021
    %v7066 = vpack.c.b16 %v7026, %v7022
    %v7067 = vpack.c.b16 %v7027, %v7023
    %v7068 = vpack.c.b16 %v7028, %v7024
    %v7069 = vpack.c.b16 %v7033, %v7029
    %v7070 = vpack.c.b16 %v7034, %v7030
    %v7071 = vpack.c.b16 %v7035, %v7031
    %v7072 = vpack.c.b16 %v7036, %v7032
    %v7073 = vpack.c.b16 %v7041, %v7037
    %v7074 = vpack.c.b16 %v7042, %v7038
    %v7075 = vpack.c.b16 %v7043, %v7039
    %v7076 = vpack.c.b16 %v7044, %v7040
    %7109 = vmatprep.subr.bf16.mxu0 %v7046
    %7110 = vmatpush1.bf16.msra.mxu0 %v7045
    %7111 = vmatprep.subr.bf16.mxu0 %v7050
    %7112 = vmatpush1.bf16.msra.mxu0 %v7049
    %7113 = vmatprep.subr.bf16.mxu0 %v7054
    %7114 = vmatpush1.bf16.msra.mxu0 %v7053
    %7115 = vmatprep.subr.bf16.mxu0 %v7058
    %7116 = vmatpush1.bf16.msra.mxu0 %v7057
    %7117 = vmatprep.subr.bf16.mxu0 %v7062
    %7118 = vmatpush1.bf16.msra.mxu0 %v7061
    %7119 = vmatprep.subr.bf16.mxu0 %v7066
    %7120 = vmatpush1.bf16.msra.mxu0 %v7065
    %7121 = vmatprep.subr.bf16.mxu0 %v7070
    %7122 = vmatpush1.bf16.msra.mxu0 %v7069
    %7123 = vmatprep.subr.bf16.mxu0 %v7074
    %7124 = vmatpush1.bf16.msra.mxu0 %v7073
    %7125 = vmatprep.subr.bf16.mxu0 0
    %7126 = vmatpush1.bf16.msra.mxu0 0
    %7127 = vmatprep.subr.bf16.mxu0 0
    %7128 = vmatpush1.bf16.msra.mxu0 0
    %7129 = vmatprep.subr.bf16.mxu0 0
    %7130 = vmatpush1.bf16.msra.mxu0 0
    %7131 = vmatprep.subr.bf16.mxu0 0
    %7132 = vmatpush1.bf16.msra.mxu0 0
    %7133 = vmatprep.subr.bf16.mxu0 0
    %7134 = vmatpush1.bf16.msra.mxu0 0
    %7135 = vmatprep.subr.bf16.mxu0 0
    %7136 = vmatpush1.bf16.msra.mxu0 0
    %7137 = vmatprep.subr.bf16.mxu0 0
    %7138 = vmatpush1.bf16.msra.mxu0 0
    %7139 = vmatprep.subr.bf16.mxu0 0
    %7140 = vmatpush1.bf16.msra.mxu0 0
    %7141 = vmatprep.mubr.bf16.mxu0 0
    %7142 = vmatmul.mubr.bf16.gmra.mrb[0].mxu0 %v6948
    %v7143 = vpop.f32.mrb[0].mxu0
    %v7144 = vadd.f32 0.0, %v7143
    %v7145 = vpop.f32.mrb[0].mxu0
    %v7146 = vadd.f32 0.0, %v7145
    %v7147 = vpop.f32.mrb[0].mxu0
    %v7148 = vpop.f32.mrb[0].mxu0
    %7149 = vdwg.mxu0
    %7150 = vmatprep.subr.bf16.mxu0 %v7048
    %7151 = vmatpush1.bf16.msra.mxu0 %v7047
    %7152 = vmatprep.subr.bf16.mxu0 %v7052
    %7153 = vmatpush1.bf16.msra.mxu0 %v7051
    %7154 = vmatprep.subr.bf16.mxu0 %v7056
    %7155 = vmatpush1.bf16.msra.mxu0 %v7055
    %7156 = vmatprep.subr.bf16.mxu0 %v7060
    %7157 = vmatpush1.bf16.msra.mxu0 %v7059
    %7158 = vmatprep.subr.bf16.mxu0 %v7064
    %7159 = vmatpush1.bf16.msra.mxu0 %v7063
    %7160 = vmatprep.subr.bf16.mxu0 %v7068
    %7161 = vmatpush1.bf16.msra.mxu0 %v7067
    %7162 = vmatprep.subr.bf16.mxu0 %v7072
    %7163 = vmatpush1.bf16.msra.mxu0 %v7071
    %7164 = vmatprep.subr.bf16.mxu0 %v7076
    %7165 = vmatpush1.bf16.msra.mxu0 %v7075
    %7166 = vmatprep.subr.bf16.mxu0 0
    %7167 = vmatpush1.bf16.msra.mxu0 0
    %7168 = vmatprep.subr.bf16.mxu0 0
    %7169 = vmatpush1.bf16.msra.mxu0 0
    %7170 = vmatprep.subr.bf16.mxu0 0
    %7171 = vmatpush1.bf16.msra.mxu0 0
    %7172 = vmatprep.subr.bf16.mxu0 0
    %7173 = vmatpush1.bf16.msra.mxu0 0
    %7174 = vmatprep.subr.bf16.mxu0 0
    %7175 = vmatpush1.bf16.msra.mxu0 0
    %7176 = vmatprep.subr.bf16.mxu0 0
    %7177 = vmatpush1.bf16.msra.mxu0 0
    %7178 = vmatprep.subr.bf16.mxu0 0
    %7179 = vmatpush1.bf16.msra.mxu0 0
    %7180 = vmatprep.subr.bf16.mxu0 0
    %7181 = vmatpush1.bf16.msra.mxu0 0
    %7182 = vmatprep.mubr.bf16.mxu0 0
    %7183 = vmatmul.mubr.bf16.gmra.mrb[0].mxu0 %v6948
    %v7184 = vpop.f32.mrb[0].mxu0
    %v7185 = vadd.f32 0.0, %v7184
    %v7186 = vpop.f32.mrb[0].mxu0
    %v7187 = vadd.f32 0.0, %v7186
    %v7188 = vpop.f32.mrb[0].mxu0
    %v7189 = vpop.f32.mrb[0].mxu0
    %7190 = vdwg.mxu0
    %v7191 = vadd.f32 %v6868, %v7144
    %v7192 = vadd.f32 %v6870, %v7146
    %v7193 = vadd.f32 %v6909, %v7185
    %v7194 = vadd.f32 %v6911, %v7187
    %v7195 = vld [vmem:[%s18] sm:$0xf]
    %v7197 = vlaneseq
    %v7198 = vshrl.u32 %v7197, 7
    %v7199 = vsub.s32 0, %v7198
    %v7200 = vrot.slane %v7195, %v7199
    %v7201 = vlaneseq
    %v7202 = vshrl.u32 %v7201, 7
    %v7203 = vsub.s32 1, %v7202
    %v7204 = vrot.slane %v7195, %v7203
    %v7205 = vlaneseq
    %v7206 = vshrl.u32 %v7205, 7
    %v7207 = vsub.s32 2, %v7206
    %v7208 = vrot.slane %v7195, %v7207
    %v7209 = vlaneseq
    %v7210 = vshrl.u32 %v7209, 7
    %v7211 = vsub.s32 3, %v7210
    %v7212 = vrot.slane %v7195, %v7211
    %v7217 = vadd.f32 %v7191, %v7200
    %v7218 = vadd.f32 %v7192, %v7204
    %v7219 = vadd.f32 %v7193, %v7208
    %v7220 = vadd.f32 %v7194, %v7212
    %v7225 = vcombine.low %v7217, %v7218
    %v7226 = vcombine.low %v7219, %v7220
    %v7228 = vunpack.c.l.s4 1966171168
    %v7229 = vunpack.c.0.s8 %v7228
    %v7230 = vlaneseq
    %v7231 = vshrl.u32 %v7230, 7
    %v7232 = vsub.s32 %v7229, %v7231
    %v7233 = vrot.slane %v7225, %v7232
    %v7235 = vunpack.c.l.s4 1966171168
    %v7236 = vunpack.c.0.s8 %v7235
    %v7237 = vlaneseq
    %v7238 = vshrl.u32 %v7237, 7
    %v7239 = vsub.s32 %v7236, %v7238
    %v7240 = vrot.slane %v7226, %v7239
    %v7241 = vcombine.low %v7233, %v7240
    %v7243 = vunpack.c.l.s4 1966171168
    %v7244 = vunpack.c.0.s8 %v7243
    %v7245 = vlaneseq
    %v7246 = vshrl.u32 %v7245, 7
    %v7247 = vsub.s32 %v7244, %v7246
    %v7248 = vrot.slane %v7241, %v7247
    %s7250 = scalar_lea.vmem [#allocation6], 1
    %7251 = vst.msk [vmem:[%s7250] ss:$2 sm:$0xf] %vm6361, %v7248
    %v7252 = vld [vmem:[#allocation6] sm:$0xff]
    %v7254 = vcombine.high %v7252, %v7252
    %v7256 = vunpack.c.l.s4 1983009808
    %v7257 = vunpack.c.0.s8 %v7256
    %v7258 = vlaneseq
    %v7259 = vshrl.u32 %v7258, 7
    %v7260 = vsub.s32 %v7257, %v7259
    %v7261 = vrot.slane %v7252, %v7260
    %v7263 = vunpack.c.l.s4 1983009808
    %v7264 = vunpack.c.0.s8 %v7263
    %v7265 = vlaneseq
    %v7266 = vshrl.u32 %v7265, 7
    %v7267 = vsub.s32 %v7264, %v7266
    %v7268 = vrot.slane %v7254, %v7267
    %v7269 = vcombine.high %v7261, %v7261
    %v7270 = vcombine.high %v7268, %v7268
    %vm7275 = vcmask 1041408
    %v7276 = vsel %vm7275, %v7261, 0.0
    %v7277 = vrot.slane %v7276, 4
    %v7278 = vadd.f32 %v7276, %v7277
    %v7279 = vrot.slane %v7278, 2
    %v7280 = vadd.f32 %v7278, %v7279
    %v7281 = vrot.slane %v7280, 1
    %v7282 = vadd.f32 %v7280, %v7281
    %v7283 = vsel %vm7275, %v7269, 0.0
    %v7284 = vrot.slane %v7283, 4
    %v7285 = vadd.f32 %v7283, %v7284
    %v7286 = vrot.slane %v7285, 2
    %v7287 = vadd.f32 %v7285, %v7286
    %v7288 = vrot.slane %v7287, 1
    %v7289 = vadd.f32 %v7287, %v7288
    %v7290 = vsel %vm7275, %v7268, 0.0
    %v7291 = vrot.slane %v7290, 4
    %v7292 = vadd.f32 %v7290, %v7291
    %v7293 = vrot.slane %v7292, 2
    %v7294 = vadd.f32 %v7292, %v7293
    %v7295 = vrot.slane %v7294, 1
    %v7296 = vadd.f32 %v7294, %v7295
    %v7297 = vsel %vm7275, %v7270, 0.0
    %v7298 = vrot.slane %v7297, 4
    %v7299 = vadd.f32 %v7297, %v7298
    %v7300 = vrot.slane %v7299, 2
    %v7301 = vadd.f32 %v7299, %v7300
    %v7302 = vrot.slane %v7301, 1
    %v7303 = vadd.f32 %v7301, %v7302
    %v7304 = vmul.f32 %v7282, 0.5
    %v7305 = vmul.f32 %v7289, 0.5
    %v7306 = vmul.f32 %v7296, 0.5
    %v7307 = vmul.f32 %v7303, 0.5
    %v7312 = vcombine.low %v7304, %v7305
    %v7313 = vcombine.low %v7306, %v7307
    %v7315 = vunpack.c.l.s4 1983009808
    %v7316 = vunpack.c.0.s8 %v7315
    %v7317 = vlaneseq
    %v7318 = vshrl.u32 %v7317, 7
    %v7319 = vsub.s32 %v7316, %v7318
    %v7320 = vrot.slane %v7312, %v7319
    %v7322 = vunpack.c.l.s4 1983009808
    %v7323 = vunpack.c.0.s8 %v7322
    %v7324 = vlaneseq
    %v7325 = vshrl.u32 %v7324, 7
    %v7326 = vsub.s32 %v7323, %v7325
    %v7327 = vrot.slane %v7313, %v7326
    %v7328 = vcombine.low %v7320, %v7327
    %v7330 = vsub.f32 %v7252, %v7328
    %v7331 = vmul.f32 %v7330, %v7330
    %v7333 = vcombine.high %v7331, %v7331
    %v7335 = vunpack.c.l.s4 1983009808
    %v7336 = vunpack.c.0.s8 %v7335
    %v7337 = vlaneseq
    %v7338 = vshrl.u32 %v7337, 7
    %v7339 = vsub.s32 %v7336, %v7338
    %v7340 = vrot.slane %v7331, %v7339
    %v7342 = vunpack.c.l.s4 1983009808
    %v7343 = vunpack.c.0.s8 %v7342
    %v7344 = vlaneseq
    %v7345 = vshrl.u32 %v7344, 7
    %v7346 = vsub.s32 %v7343, %v7345
    %v7347 = vrot.slane %v7333, %v7346
    %v7348 = vcombine.high %v7340, %v7340
    %v7349 = vcombine.high %v7347, %v7347
    %v7354 = vsel %vm7275, %v7340, 0.0
    %v7355 = vrot.slane %v7354, 4
    %v7356 = vadd.f32 %v7354, %v7355
    %v7357 = vrot.slane %v7356, 2
    %v7358 = vadd.f32 %v7356, %v7357
    %v7359 = vrot.slane %v7358, 1
    %v7360 = vadd.f32 %v7358, %v7359
    %v7361 = vsel %vm7275, %v7348, 0.0
    %v7362 = vrot.slane %v7361, 4
    %v7363 = vadd.f32 %v7361, %v7362
    %v7364 = vrot.slane %v7363, 2
    %v7365 = vadd.f32 %v7363, %v7364
    %v7366 = vrot.slane %v7365, 1
    %v7367 = vadd.f32 %v7365, %v7366
    %v7368 = vsel %vm7275, %v7347, 0.0
    %v7369 = vrot.slane %v7368, 4
    %v7370 = vadd.f32 %v7368, %v7369
    %v7371 = vrot.slane %v7370, 2
    %v7372 = vadd.f32 %v7370, %v7371
    %v7373 = vrot.slane %v7372, 1
    %v7374 = vadd.f32 %v7372, %v7373
    %v7375 = vsel %vm7275, %v7349, 0.0
    %v7376 = vrot.slane %v7375, 4
    %v7377 = vadd.f32 %v7375, %v7376
    %v7378 = vrot.slane %v7377, 2
    %v7379 = vadd.f32 %v7377, %v7378
    %v7380 = vrot.slane %v7379, 1
    %v7381 = vadd.f32 %v7379, %v7380
    %v7382 = vmul.f32 %v7360, 0.5
    %v7383 = vmul.f32 %v7367, 0.5
    %v7384 = vmul.f32 %v7374, 0.5
    %v7385 = vmul.f32 %v7381, 0.5
    %v7386 = vadd.f32 %v7382, 1e-05
    %v7387 = vadd.f32 %v7383, 1e-05
    %v7388 = vadd.f32 %v7384, 1e-05
    %v7389 = vadd.f32 %v7385, 1e-05
    %v7390 = vrsqrt.pop %v7386
    %v7391 = vrsqrt.pop %v7387
    %v7392 = vrsqrt.pop %v7388
    %v7393 = vrsqrt.pop %v7389
    %v7398 = vcombine.low %v7390, %v7391
    %v7399 = vcombine.low %v7392, %v7393
    %v7401 = vunpack.c.l.s4 1983009808
    %v7402 = vunpack.c.0.s8 %v7401
    %v7403 = vlaneseq
    %v7404 = vshrl.u32 %v7403, 7
    %v7405 = vsub.s32 %v7402, %v7404
    %v7406 = vrot.slane %v7398, %v7405
    %v7408 = vunpack.c.l.s4 1983009808
    %v7409 = vunpack.c.0.s8 %v7408
    %v7410 = vlaneseq
    %v7411 = vshrl.u32 %v7410, 7
    %v7412 = vsub.s32 %v7409, %v7411
    %v7413 = vrot.slane %v7399, %v7412
    %v7414 = vcombine.low %v7406, %v7413
    %v7416 = vmul.f32 %v7330, %v7414
    %v7417 = vld [vmem:[%s19] sm:$0xf]
    %v7419 = vlaneseq
    %v7420 = vshrl.u32 %v7419, 7
    %v7421 = vsub.s32 0, %v7420
    %v7422 = vrot.slane %v7417, %v7421
    %v7423 = vlaneseq
    %v7424 = vshrl.u32 %v7423, 7
    %v7425 = vsub.s32 1, %v7424
    %v7426 = vrot.slane %v7417, %v7425
    %v7427 = vlaneseq
    %v7428 = vshrl.u32 %v7427, 7
    %v7429 = vsub.s32 2, %v7428
    %v7430 = vrot.slane %v7417, %v7429
    %v7431 = vlaneseq
    %v7432 = vshrl.u32 %v7431, 7
    %v7433 = vsub.s32 3, %v7432
    %v7434 = vrot.slane %v7417, %v7433
    %v7435 = vcombine.low %v7422, %v7426
    %v7436 = vcombine.low %v7430, %v7434
    %v7438 = vunpack.c.l.s4 1983009808
    %v7439 = vunpack.c.0.s8 %v7438
    %v7440 = vlaneseq
    %v7441 = vshrl.u32 %v7440, 7
    %v7442 = vsub.s32 %v7439, %v7441
    %v7443 = vrot.slane %v7435, %v7442
    %v7445 = vunpack.c.l.s4 1983009808
    %v7446 = vunpack.c.0.s8 %v7445
    %v7447 = vlaneseq
    %v7448 = vshrl.u32 %v7447, 7
    %v7449 = vsub.s32 %v7446, %v7448
    %v7450 = vrot.slane %v7436, %v7449
    %v7451 = vcombine.low %v7443, %v7450
    %v7453 = vmul.f32 %v7416, %v7451
    %v7454 = vld [vmem:[%s20] sm:$0xf]
    %v7456 = vlaneseq
    %v7457 = vshrl.u32 %v7456, 7
    %v7458 = vsub.s32 0, %v7457
    %v7459 = vrot.slane %v7454, %v7458
    %v7460 = vlaneseq
    %v7461 = vshrl.u32 %v7460, 7
    %v7462 = vsub.s32 1, %v7461
    %v7463 = vrot.slane %v7454, %v7462
    %v7464 = vlaneseq
    %v7465 = vshrl.u32 %v7464, 7
    %v7466 = vsub.s32 2, %v7465
    %v7467 = vrot.slane %v7454, %v7466
    %v7468 = vlaneseq
    %v7469 = vshrl.u32 %v7468, 7
    %v7470 = vsub.s32 3, %v7469
    %v7471 = vrot.slane %v7454, %v7470
    %v7472 = vcombine.low %v7459, %v7463
    %v7473 = vcombine.low %v7467, %v7471
    %v7475 = vunpack.c.l.s4 1983009808
    %v7476 = vunpack.c.0.s8 %v7475
    %v7477 = vlaneseq
    %v7478 = vshrl.u32 %v7477, 7
    %v7479 = vsub.s32 %v7476, %v7478
    %v7480 = vrot.slane %v7472, %v7479
    %v7482 = vunpack.c.l.s4 1983009808
    %v7483 = vunpack.c.0.s8 %v7482
    %v7484 = vlaneseq
    %v7485 = vshrl.u32 %v7484, 7
    %v7486 = vsub.s32 %v7483, %v7485
    %v7487 = vrot.slane %v7473, %v7486
    %v7488 = vcombine.low %v7480, %v7487
    %v7490 = vadd.f32 %v7453, %v7488
    %v7491 = vmax.f32 %v7490, 0.0
    %7492 = vst [vmem:[#allocation6] sm:$0xff] %v7491
    %v7493 = vld [vmem:[#allocation6] sm:$0xff]
    %v7495 = vcombine.high %v7493, %v7493
    %v7497 = vunpack.c.l.s4 1983009808
    %v7498 = vunpack.c.0.s8 %v7497
    %v7499 = vlaneseq
    %v7500 = vshrl.u32 %v7499, 7
    %v7501 = vsub.s32 %v7498, %v7500
    %v7502 = vrot.slane %v7493, %v7501
    %v7504 = vunpack.c.l.s4 1983009808
    %v7505 = vunpack.c.0.s8 %v7504
    %v7506 = vlaneseq
    %v7507 = vshrl.u32 %v7506, 7
    %v7508 = vsub.s32 %v7505, %v7507
    %v7509 = vrot.slane %v7495, %v7508
    %v7510 = vcombine.high %v7502, %v7502
    %v7511 = vcombine.high %v7509, %v7509
    %v7516 = vpack.c.bf16 %v7502, %v7502
    %v7517 = vpack.c.bf16 %v7510, %v7510
    %v7518 = vpack.c.bf16 %v7509, %v7509
    %v7519 = vpack.c.bf16 %v7511, %v7511
    %v7520 = vld [vmem:[%s21] sm:$0xf]
    %v7521 = vld [vmem:[%s21 + $0x4] sm:$0xf]
    %v7522 = vld [vmem:[%s21 + $0x8] sm:$0xf]
    %v7523 = vld [vmem:[%s21 + $0xc] sm:$0xf]
    %v7524 = vld [vmem:[%s21 + $0x10] sm:$0xf]
    %v7525 = vld [vmem:[%s21 + $0x14] sm:$0xf]
    %v7526 = vld [vmem:[%s21 + $0x18] sm:$0xf]
    %v7527 = vld [vmem:[%s21 + $0x1c] sm:$0xf]
    %v7528 = vld [vmem:[%s21 + $0x20] sm:$0xf]
    %v7529 = vld [vmem:[%s21 + $0x24] sm:$0xf]
    %v7530 = vld [vmem:[%s21 + $0x28] sm:$0xf]
    %v7531 = vld [vmem:[%s21 + $0x2c] sm:$0xf]
    %v7532 = vld [vmem:[%s21 + $0x30] sm:$0xf]
    %v7533 = vld [vmem:[%s21 + $0x34] sm:$0xf]
    %v7534 = vld [vmem:[%s21 + $0x38] sm:$0xf]
    %v7535 = vld [vmem:[%s21 + $0x3c] sm:$0xf]
    %v7536 = vld [vmem:[%s21 + $0x40] sm:$0xf]
    %v7537 = vld [vmem:[%s21 + $0x44] sm:$0xf]
    %v7538 = vld [vmem:[%s21 + $0x48] sm:$0xf]
    %v7539 = vld [vmem:[%s21 + $0x4c] sm:$0xf]
    %v7540 = vld [vmem:[%s21 + $0x50] sm:$0xf]
    %v7541 = vld [vmem:[%s21 + $0x54] sm:$0xf]
    %v7542 = vld [vmem:[%s21 + $0x58] sm:$0xf]
    %v7543 = vld [vmem:[%s21 + $0x5c] sm:$0xf]
    %v7544 = vld [vmem:[%s21 + $0x60] sm:$0xf]
    %v7545 = vld [vmem:[%s21 + $0x64] sm:$0xf]
    %v7546 = vld [vmem:[%s21 + $0x68] sm:$0xf]
    %v7547 = vld [vmem:[%s21 + $0x6c] sm:$0xf]
    %v7548 = vld [vmem:[%s21 + $0x70] sm:$0xf]
    %v7549 = vld [vmem:[%s21 + $0x74] sm:$0xf]
    %v7550 = vld [vmem:[%s21 + $0x78] sm:$0xf]
    %v7551 = vld [vmem:[%s21 + $0x7c] sm:$0xf]
    %v7552 = vld [vmem:[%s21 + $0x80] sm:$0xf]
    %v7553 = vld [vmem:[%s21 + $0x84] sm:$0xf]
    %v7554 = vld [vmem:[%s21 + $0x88] sm:$0xf]
    %v7555 = vld [vmem:[%s21 + $0x8c] sm:$0xf]
    %v7556 = vld [vmem:[%s21 + $0x90] sm:$0xf]
    %v7557 = vld [vmem:[%s21 + $0x94] sm:$0xf]
    %v7558 = vld [vmem:[%s21 + $0x98] sm:$0xf]
    %v7559 = vld [vmem:[%s21 + $0x9c] sm:$0xf]
    %v7560 = vld [vmem:[%s21 + $0xa0] sm:$0xf]
    %v7561 = vld [vmem:[%s21 + $0xa4] sm:$0xf]
    %v7562 = vld [vmem:[%s21 + $0xa8] sm:$0xf]
    %v7563 = vld [vmem:[%s21 + $0xac] sm:$0xf]
    %v7564 = vld [vmem:[%s21 + $0xb0] sm:$0xf]
    %v7565 = vld [vmem:[%s21 + $0xb4] sm:$0xf]
    %v7566 = vld [vmem:[%s21 + $0xb8] sm:$0xf]
    %v7567 = vld [vmem:[%s21 + $0xbc] sm:$0xf]
    %v7568 = vld [vmem:[%s21 + $0xc0] sm:$0xf]
    %v7569 = vld [vmem:[%s21 + $0xc4] sm:$0xf]
    %v7570 = vld [vmem:[%s21 + $0xc8] sm:$0xf]
    %v7571 = vld [vmem:[%s21 + $0xcc] sm:$0xf]
    %v7572 = vld [vmem:[%s21 + $0xd0] sm:$0xf]
    %v7573 = vld [vmem:[%s21 + $0xd4] sm:$0xf]
    %v7574 = vld [vmem:[%s21 + $0xd8] sm:$0xf]
    %v7575 = vld [vmem:[%s21 + $0xdc] sm:$0xf]
    %v7576 = vld [vmem:[%s21 + $0xe0] sm:$0xf]
    %v7577 = vld [vmem:[%s21 + $0xe4] sm:$0xf]
    %v7578 = vld [vmem:[%s21 + $0xe8] sm:$0xf]
    %v7579 = vld [vmem:[%s21 + $0xec] sm:$0xf]
    %v7580 = vld [vmem:[%s21 + $0xf0] sm:$0xf]
    %v7581 = vld [vmem:[%s21 + $0xf4] sm:$0xf]
    %v7582 = vld [vmem:[%s21 + $0xf8] sm:$0xf]
    %v7583 = vld [vmem:[%s21 + $0xfc] sm:$0xf]
    %v7584 = vld [vmem:[%s22] sm:$0x1]
    %v7586 = vlaneseq
    %v7587 = vshrl.u32 %v7586, 7
    %v7588 = vsub.s32 0, %v7587
    %v7589 = vrot.slane %v7584, %v7588
    %v7655 = vunpack.c.l.b16 %v7520
    %v7656 = vunpack.c.l.b16 %v7521
    %v7657 = vunpack.c.l.b16 %v7522
    %v7658 = vunpack.c.l.b16 %v7523
    %v7659 = vunpack.c.l.b16 %v7524
    %v7660 = vunpack.c.l.b16 %v7525
    %v7661 = vunpack.c.l.b16 %v7526
    %v7662 = vunpack.c.l.b16 %v7527
    %v7663 = vunpack.c.l.b16 %v7528
    %v7664 = vunpack.c.l.b16 %v7529
    %v7665 = vunpack.c.l.b16 %v7530
    %v7666 = vunpack.c.l.b16 %v7531
    %v7667 = vunpack.c.l.b16 %v7532
    %v7668 = vunpack.c.l.b16 %v7533
    %v7669 = vunpack.c.l.b16 %v7534
    %v7670 = vunpack.c.l.b16 %v7535
    %v7671 = vunpack.c.l.b16 %v7536
    %v7672 = vunpack.c.l.b16 %v7537
    %v7673 = vunpack.c.l.b16 %v7538
    %v7674 = vunpack.c.l.b16 %v7539
    %v7675 = vunpack.c.l.b16 %v7540
    %v7676 = vunpack.c.l.b16 %v7541
    %v7677 = vunpack.c.l.b16 %v7542
    %v7678 = vunpack.c.l.b16 %v7543
    %v7679 = vunpack.c.l.b16 %v7544
    %v7680 = vunpack.c.l.b16 %v7545
    %v7681 = vunpack.c.l.b16 %v7546
    %v7682 = vunpack.c.l.b16 %v7547
    %v7683 = vunpack.c.l.b16 %v7548
    %v7684 = vunpack.c.l.b16 %v7549
    %v7685 = vunpack.c.l.b16 %v7550
    %v7686 = vunpack.c.l.b16 %v7551
    %v7687 = vunpack.c.l.b16 %v7552
    %v7688 = vunpack.c.l.b16 %v7553
    %v7689 = vunpack.c.l.b16 %v7554
    %v7690 = vunpack.c.l.b16 %v7555
    %v7691 = vunpack.c.l.b16 %v7556
    %v7692 = vunpack.c.l.b16 %v7557
    %v7693 = vunpack.c.l.b16 %v7558
    %v7694 = vunpack.c.l.b16 %v7559
    %v7695 = vunpack.c.l.b16 %v7560
    %v7696 = vunpack.c.l.b16 %v7561
    %v7697 = vunpack.c.l.b16 %v7562
    %v7698 = vunpack.c.l.b16 %v7563
    %v7699 = vunpack.c.l.b16 %v7564
    %v7700 = vunpack.c.l.b16 %v7565
    %v7701 = vunpack.c.l.b16 %v7566
    %v7702 = vunpack.c.l.b16 %v7567
    %v7703 = vunpack.c.l.b16 %v7568
    %v7704 = vunpack.c.l.b16 %v7569
    %v7705 = vunpack.c.l.b16 %v7570
    %v7706 = vunpack.c.l.b16 %v7571
    %v7707 = vunpack.c.l.b16 %v7572
    %v7708 = vunpack.c.l.b16 %v7573
    %v7709 = vunpack.c.l.b16 %v7574
    %v7710 = vunpack.c.l.b16 %v7575
    %v7711 = vunpack.c.l.b16 %v7576
    %v7712 = vunpack.c.l.b16 %v7577
    %v7713 = vunpack.c.l.b16 %v7578
    %v7714 = vunpack.c.l.b16 %v7579
    %v7715 = vunpack.c.l.b16 %v7580
    %v7716 = vunpack.c.l.b16 %v7581
    %v7717 = vunpack.c.l.b16 %v7582
    %v7718 = vunpack.c.l.b16 %v7583
    %v7719 = vpack.c.b16 %v7656, %v7655
    %v7720 = vpack.c.b16 %v7658, %v7657
    %v7721 = vpack.c.b16 %v7660, %v7659
    %v7722 = vpack.c.b16 %v7662, %v7661
    %v7723 = vpack.c.b16 %v7664, %v7663
    %v7724 = vpack.c.b16 %v7666, %v7665
    %v7725 = vpack.c.b16 %v7668, %v7667
    %v7726 = vpack.c.b16 %v7670, %v7669
    %v7727 = vpack.c.b16 %v7672, %v7671
    %v7728 = vpack.c.b16 %v7674, %v7673
    %v7729 = vpack.c.b16 %v7676, %v7675
    %v7730 = vpack.c.b16 %v7678, %v7677
    %v7731 = vpack.c.b16 %v7680, %v7679
    %v7732 = vpack.c.b16 %v7682, %v7681
    %v7733 = vpack.c.b16 %v7684, %v7683
    %v7734 = vpack.c.b16 %v7686, %v7685
    %v7735 = vpack.c.b16 %v7688, %v7687
    %v7736 = vpack.c.b16 %v7690, %v7689
    %v7737 = vpack.c.b16 %v7692, %v7691
    %v7738 = vpack.c.b16 %v7694, %v7693
    %v7739 = vpack.c.b16 %v7696, %v7695
    %v7740 = vpack.c.b16 %v7698, %v7697
    %v7741 = vpack.c.b16 %v7700, %v7699
    %v7742 = vpack.c.b16 %v7702, %v7701
    %v7743 = vpack.c.b16 %v7704, %v7703
    %v7744 = vpack.c.b16 %v7706, %v7705
    %v7745 = vpack.c.b16 %v7708, %v7707
    %v7746 = vpack.c.b16 %v7710, %v7709
    %v7747 = vpack.c.b16 %v7712, %v7711
    %v7748 = vpack.c.b16 %v7714, %v7713
    %v7749 = vpack.c.b16 %v7716, %v7715
    %v7750 = vpack.c.b16 %v7718, %v7717
    %7783 = vmatprep.subr.bf16.mxu0 0
    %7784 = vmatpush1.bf16.msra.mxu0 %v7719
    %7785 = vmatprep.subr.bf16.mxu0 0
    %7786 = vmatpush1.bf16.msra.mxu0 %v7720
    %7787 = vmatprep.subr.bf16.mxu0 0
    %7788 = vmatpush1.bf16.msra.mxu0 %v7721
    %7789 = vmatprep.subr.bf16.mxu0 0
    %7790 = vmatpush1.bf16.msra.mxu0 %v7722
    %7791 = vmatprep.subr.bf16.mxu0 0
    %7792 = vmatpush1.bf16.msra.mxu0 %v7723
    %7793 = vmatprep.subr.bf16.mxu0 0
    %7794 = vmatpush1.bf16.msra.mxu0 %v7724
    %7795 = vmatprep.subr.bf16.mxu0 0
    %7796 = vmatpush1.bf16.msra.mxu0 %v7725
    %7797 = vmatprep.subr.bf16.mxu0 0
    %7798 = vmatpush1.bf16.msra.mxu0 %v7726
    %7799 = vmatprep.subr.bf16.mxu0 0
    %7800 = vmatpush1.bf16.msra.mxu0 %v7727
    %7801 = vmatprep.subr.bf16.mxu0 0
    %7802 = vmatpush1.bf16.msra.mxu0 %v7728
    %7803 = vmatprep.subr.bf16.mxu0 0
    %7804 = vmatpush1.bf16.msra.mxu0 %v7729
    %7805 = vmatprep.subr.bf16.mxu0 0
    %7806 = vmatpush1.bf16.msra.mxu0 %v7730
    %7807 = vmatprep.subr.bf16.mxu0 0
    %7808 = vmatpush1.bf16.msra.mxu0 %v7731
    %7809 = vmatprep.subr.bf16.mxu0 0
    %7810 = vmatpush1.bf16.msra.mxu0 %v7732
    %7811 = vmatprep.subr.bf16.mxu0 0
    %7812 = vmatpush1.bf16.msra.mxu0 %v7733
    %7813 = vmatprep.subr.bf16.mxu0 0
    %7814 = vmatpush1.bf16.msra.mxu0 %v7734
    %7815 = vmatprep.mubr.bf16.mxu0 %v7517
    %7816 = vmatmul.mubr.bf16.gmra.mrb[0].mxu0 %v7516
    %v7817 = vpop.f32.mrb[0].mxu0
    %v7818 = vadd.f32 %v7589, %v7817
    %v7819 = vpop.f32.mrb[0].mxu0
    %v7820 = vpop.f32.mrb[0].mxu0
    %v7821 = vpop.f32.mrb[0].mxu0
    %7822 = vdwg.mxu0
    %7823 = vmatprep.subr.bf16.mxu0 0
    %7824 = vmatpush1.bf16.msra.mxu0 %v7735
    %7825 = vmatprep.subr.bf16.mxu0 0
    %7826 = vmatpush1.bf16.msra.mxu0 %v7736
    %7827 = vmatprep.subr.bf16.mxu0 0
    %7828 = vmatpush1.bf16.msra.mxu0 %v7737
    %7829 = vmatprep.subr.bf16.mxu0 0
    %7830 = vmatpush1.bf16.msra.mxu0 %v7738
    %7831 = vmatprep.subr.bf16.mxu0 0
    %7832 = vmatpush1.bf16.msra.mxu0 %v7739
    %7833 = vmatprep.subr.bf16.mxu0 0
    %7834 = vmatpush1.bf16.msra.mxu0 %v7740
    %7835 = vmatprep.subr.bf16.mxu0 0
    %7836 = vmatpush1.bf16.msra.mxu0 %v7741
    %7837 = vmatprep.subr.bf16.mxu0 0
    %7838 = vmatpush1.bf16.msra.mxu0 %v7742
    %7839 = vmatprep.subr.bf16.mxu0 0
    %7840 = vmatpush1.bf16.msra.mxu0 %v7743
    %7841 = vmatprep.subr.bf16.mxu0 0
    %7842 = vmatpush1.bf16.msra.mxu0 %v7744
    %7843 = vmatprep.subr.bf16.mxu0 0
    %7844 = vmatpush1.bf16.msra.mxu0 %v7745
    %7845 = vmatprep.subr.bf16.mxu0 0
    %7846 = vmatpush1.bf16.msra.mxu0 %v7746
    %7847 = vmatprep.subr.bf16.mxu0 0
    %7848 = vmatpush1.bf16.msra.mxu0 %v7747
    %7849 = vmatprep.subr.bf16.mxu0 0
    %7850 = vmatpush1.bf16.msra.mxu0 %v7748
    %7851 = vmatprep.subr.bf16.mxu0 0
    %7852 = vmatpush1.bf16.msra.mxu0 %v7749
    %7853 = vmatprep.subr.bf16.mxu0 0
    %7854 = vmatpush1.bf16.msra.mxu0 %v7750
    %7855 = vmatprep.mubr.bf16.mxu0 %v7519
    %7856 = vmatmul.mubr.bf16.gmra.mrb[0].mxu0 %v7518
    %v7857 = vpop.f32.mrb[0].mxu0
    %v7858 = vadd.f32 %v7818, %v7857
    %v7859 = vpop.f32.mrb[0].mxu0
    %v7860 = vpop.f32.mrb[0].mxu0
    %v7861 = vpop.f32.mrb[0].mxu0
    %7862 = vdwg.mxu0
    %7863 = vst.msk [vmem:[#allocation7] sm:$0x3] %vm4218, %v7858
    // Predicated region
    $region94: #{conv_encoder_shar_forward.1} parent=1 // pred_check
      _
    $region95: #{conv_encoder_shar_forward.1} parent=1 // pred_check_branch
      %7865 = sbr.rel (0) target = $region97
    $region96: #{conv_encoder_shar_forward.1} parent=1 // pred_region
      %s7867 = ssub.s32 32, 32
      %7868 = vsyncadd [#allocation8], %s7867
      %s7870 = sshll.u32 [#allocation7], 4
      %s7871 = int_to_ptr.vmem [resolvable:$true] %s7870
      %7873 = dma.vmem_to_hbm [thread:$0]  %s7871, 32, %s23, [#allocation8]
    $region97: #{conv_encoder_shar_forward.1} parent=1 // pred_fallthru
      _
    // Predicated region
    $region98: #{conv_encoder_shar_forward.1} parent=1 // pred_check
      _
    $region99: #{conv_encoder_shar_forward.1} parent=1 // pred_check_branch
      %7875 = sbr.rel (0) target = $region101
    $region100: #{conv_encoder_shar_forward.1} parent=1 // pred_region
      %7876 = dma.done [#allocation8], 32
    $region101: #{conv_encoder_shar_forward.1} parent=1 // pred_fallthru
      _
    %7877 = vsyncpa [#allocation8], 1

</llo_original>
